<compile_context>
chip_gen: v7x
topology: tpu7x:2x2x1
jax: 0.10.0
libtpu: 0.0.40
codegen_flags: <defaults>
</compile_context>

<pallas_src>
import functools

import numpy as np
import jax
import jax.numpy as jnp
from jax import lax
from jax.experimental import pallas as pl
from jax.experimental.pallas import tpu as pltpu

# ----------------------------- config (small) ------------------------------
B = 2                 # batch
T_RAW = 320           # raw audio samples
CONV_LAYERS = [(32, 10, 5), (32, 3, 2)]   # (C_out, kernel, stride)
HIDDEN = 32           # encoder hidden size
N_HEADS = 4
HEAD_DIM = HIDDEN // N_HEADS
FFN = 64              # feed-forward intermediate size
N_LAYERS = 2          # encoder layers
PROJ = 256            # classifier_proj_size (fixed by the module: Linear(256, 6))
N_LABELS = 6
POS_K = 3             # positional-conv kernel size
LN_EPS = 1e-5


def _gelu(x):
    # tanh-approximate GELU (EUP-friendly).
    # TODO(synk): HF wav2vec2 uses exact erf-GELU; tanh approximation used here.
    return jax.nn.gelu(x, approximate=True)


def _ln(x, g, b, eps=LN_EPS):
    mu = jnp.mean(x, axis=-1, keepdims=True)
    var = jnp.mean(jnp.square(x - mu), axis=-1, keepdims=True)
    return (x - mu) * lax.rsqrt(var + eps) * g + b


# ------------- single fused kernel: whole forward pass on grid=(L,) ---------

def _fused_forward_kernel(
        p1_ref, w1_ref, b1_ref, g1_ref, be1_ref,
        gmat_ref, w2_ref, b2_ref, g2_ref, be2_ref,
        fpg_ref, fpb_ref, fpw_ref, fpbias_ref,
        shift_ref, wpos_ref, bpos_ref,
        bias_ref, pool_ref,
        ln1g_ref, ln1b_ref, wqkv_ref, bqkv_ref, wo_ref, bo_ref,
        ln2g_ref, ln2b_ref, wff1_ref, bff1_ref, wff2_ref, bff2_ref,
        encg_ref, encb_ref, wp_ref, bp_ref, wc_ref, bc_ref,
        out_ref, x_scr, *, n_heads, head_dim, c1, k2):
    l = pl.program_id(0)
    hid = n_heads * head_dim
    scale = 1.0 / float(head_dim) ** 0.5

    # ---- grid step 0: conv extractor + feat-proj + positional conv ----
    @pl.when(l == 0)
    def _():
        # conv1 (im2col patches precomputed in glue) + channel-LN + GELU
        h1 = jnp.dot(p1_ref[...], w1_ref[...],
                     preferred_element_type=jnp.float32) + b1_ref[...]
        h1 = _gelu(_ln(h1, g1_ref[...], be1_ref[...]))            # (B*t1, C1)

        # conv2 (k=3, stride=2, per-batch) as gather-matmul: tap k of output
        # row p selects h1 row G_k[p, :]; G_k are constant one-hot matrices.
        acc = None
        for k in range(k2):
            taps = jnp.dot(gmat_ref[k], h1, preferred_element_type=jnp.float32)
            contrib = jnp.dot(taps, w2_ref[k * c1:(k + 1) * c1, :],
                              preferred_element_type=jnp.float32)
            acc = contrib if acc is None else acc + contrib
        y2 = _gelu(_ln(acc + b2_ref[...], g2_ref[...], be2_ref[...]))  # (BT, C2)

        # feature projection: LN -> Linear(C2, HIDDEN)
        hs = jnp.dot(_ln(y2, fpg_ref[...], fpb_ref[...]), fpw_ref[...],
                     preferred_element_type=jnp.float32) + fpbias_ref[...]

        # positional conv (k=3, same padding, per-batch) via block-diagonal
        # shift matrices (exact, no cross-batch leakage)
        pos = jnp.dot(hs, wpos_ref[hid:2 * hid, :],
                      preferred_element_type=jnp.float32)
        prev = jnp.dot(shift_ref[0], hs, preferred_element_type=jnp.float32)
        nxt = jnp.dot(shift_ref[1], hs, preferred_element_type=jnp.float32)
        pos = (pos
               + jnp.dot(prev, wpos_ref[0:hid, :],
                         preferred_element_type=jnp.float32)
               + jnp.dot(nxt, wpos_ref[2 * hid:3 * hid, :],
                         preferred_element_type=jnp.float32)
               + bpos_ref[...])
        x_scr[...] = hs + _gelu(pos)

    # ---- transformer layer l (pre-LN), residual stream in VMEM scratch ----
    x = x_scr[...]                                          # (BT, H)

    h1n = _ln(x, ln1g_ref[0], ln1b_ref[0])
    qkv = jnp.dot(h1n, wqkv_ref[0],
                  preferred_element_type=jnp.float32) + bqkv_ref[0]   # (BT, 3H)
    wo = wo_ref[0]                                                    # (H, H)

    attn_out = jnp.zeros_like(x)
    for h in range(n_heads):
        q_h = qkv[:, h * head_dim:(h + 1) * head_dim]
        k_h = qkv[:, hid + h * head_dim:hid + (h + 1) * head_dim]
        v_h = qkv[:, 2 * hid + h * head_dim:2 * hid + (h + 1) * head_dim]
        s = lax.dot_general(q_h, k_h, (((1,), (1,)), ((), ())),
                            preferred_element_type=jnp.float32) * scale
        s = s + bias_ref[...]                               # block-diag batch mask
        m = jnp.max(s, axis=-1, keepdims=True)
        p = jnp.exp(s - m)
        p = p * pl.reciprocal(jnp.sum(p, axis=-1, keepdims=True), approx=True)
        ah = jnp.dot(p, v_h, preferred_element_type=jnp.float32)      # (BT, dh)
        # head-merge + output projection folded into per-head accumulation
        attn_out = attn_out + jnp.dot(
            ah, wo[h * head_dim:(h + 1) * head_dim, :],
            preferred_element_type=jnp.float32)
    x = x + attn_out + bo_ref[0]

    h2 = _ln(x, ln2g_ref[0], ln2b_ref[0])
    ff = _gelu(jnp.dot(h2, wff1_ref[0],
                       preferred_element_type=jnp.float32) + bff1_ref[0])
    x = x + jnp.dot(ff, wff2_ref[0],
                    preferred_element_type=jnp.float32) + bff2_ref[0]
    x_scr[...] = x

    # ---- last grid step: final LN -> mean-pool -> projector -> classifier ----
    @pl.when(l == pl.num_programs(0) - 1)
    def _():
        xe = _ln(x_scr[...], encg_ref[...], encb_ref[...])            # (BT, H)
        pooled = jnp.dot(pool_ref[...], xe,
                         preferred_element_type=jnp.float32)          # (B, H)
        proj = jnp.dot(pooled, wp_ref[...],
                       preferred_element_type=jnp.float32) + bp_ref[...]
        out_ref[...] = (jnp.dot(proj, wc_ref[...],
                                preferred_element_type=jnp.float32)
                        + bc_ref[...]).astype(out_ref.dtype)


# ------------------------------ parameters ---------------------------------

def init_params(key):
    keys = iter(jax.random.split(key, 64))

    def dense(k, i, o, scale=0.02):
        return jax.random.normal(k, (i, o), jnp.float32) * scale

    p = {}
    conv = []
    c_in = 1
    for (c_out, k, _s) in CONV_LAYERS:
        w = jax.random.normal(next(keys), (c_out, c_in, k), jnp.float32) * 0.02
        conv.append({
            "w": w.transpose(2, 1, 0).reshape(k * c_in, c_out),   # (K*C_in, C_out)
            "b": jnp.zeros((1, c_out), jnp.float32),
            "g": jnp.ones((1, c_out), jnp.float32),
            "be": jnp.zeros((1, c_out), jnp.float32),
        })
        c_in = c_out
    p["conv"] = conv

    p["fp_g"] = jnp.ones((1, c_in), jnp.float32)
    p["fp_b"] = jnp.zeros((1, c_in), jnp.float32)
    p["fp_w"] = dense(next(keys), c_in, HIDDEN)
    p["fp_bias"] = jnp.zeros((1, HIDDEN), jnp.float32)

    wpos = jax.random.normal(next(keys), (HIDDEN, HIDDEN, POS_K), jnp.float32) * 0.02
    p["pos_w"] = wpos.transpose(2, 1, 0).reshape(POS_K * HIDDEN, HIDDEN)
    p["pos_b"] = jnp.zeros((1, HIDDEN), jnp.float32)

    enc = {k: [] for k in ("ln1_g", "ln1_b", "w_qkv", "b_qkv", "w_o", "b_o",
                           "ln2_g", "ln2_b", "w_ff1", "b_ff1", "w_ff2", "b_ff2")}
    for _ in range(N_LAYERS):
        enc["ln1_g"].append(jnp.ones((1, HIDDEN), jnp.float32))
        enc["ln1_b"].append(jnp.zeros((1, HIDDEN), jnp.float32))
        wq = dense(next(keys), HIDDEN, HIDDEN)
        wk = dense(next(keys), HIDDEN, HIDDEN)
        wv = dense(next(keys), HIDDEN, HIDDEN)
        enc["w_qkv"].append(jnp.concatenate([wq, wk, wv], axis=1))    # (H, 3H)
        enc["b_qkv"].append(jnp.zeros((1, 3 * HIDDEN), jnp.float32))
        enc["w_o"].append(dense(next(keys), HIDDEN, HIDDEN))
        enc["b_o"].append(jnp.zeros((1, HIDDEN), jnp.float32))
        enc["ln2_g"].append(jnp.ones((1, HIDDEN), jnp.float32))
        enc["ln2_b"].append(jnp.zeros((1, HIDDEN), jnp.float32))
        enc["w_ff1"].append(dense(next(keys), HIDDEN, FFN))
        enc["b_ff1"].append(jnp.zeros((1, FFN), jnp.float32))
        enc["w_ff2"].append(dense(next(keys), FFN, HIDDEN))
        enc["b_ff2"].append(jnp.zeros((1, HIDDEN), jnp.float32))
    p["enc"] = {k: jnp.stack(v, axis=0) for k, v in enc.items()}

    p["enc_ln_g"] = jnp.ones((1, HIDDEN), jnp.float32)
    p["enc_ln_b"] = jnp.zeros((1, HIDDEN), jnp.float32)
    p["proj_w"] = dense(next(keys), HIDDEN, PROJ)
    p["proj_b"] = jnp.zeros((1, PROJ), jnp.float32)
    p["cls_w"] = dense(next(keys), PROJ, N_LABELS)        # BaseModel.classifier
    p["cls_b"] = jnp.zeros((1, N_LABELS), jnp.float32)
    return p


# ------------------------------ forward pass --------------------------------

def base_model_forward(params, x):
    """x: (B, T_RAW) raw waveform float32 -> (B, 6) logits."""
    Bx, Traw = x.shape
    (c1_out, k1, s1), (c2_out, k2, s2) = CONV_LAYERS
    assert k1 == 2 * s1 and Traw % s1 == 0
    t1 = (Traw - k1) // s1 + 1
    t2 = (t1 - k2) // s2 + 1
    bt = Bx * t2
    H = HIDDEN
    H3 = 3 * H

    # conv1 im2col via pure reshape (k1 == 2*s1): row t = x[5t : 5t+10]
    xr = x.reshape(Bx, Traw // s1, s1)
    p1 = jnp.concatenate([xr[:, :t1, :], xr[:, 1:t1 + 1, :]],
                         axis=-1).reshape(Bx * t1, k1)

    # ---- constant index/mask matrices, baked at trace time (numpy) ----
    # conv2 stride-2 gather matrices: G_k[b*t2+t, b*t1 + 2t + k] = 1
    gmat = np.zeros((k2, bt, Bx * t1), np.float32)
    for b in range(Bx):
        for t in range(t2):
            for k in range(k2):
                gmat[k, b * t2 + t, b * t1 + t * s2 + k] = 1.0
    # positional-conv shift matrices (block-diagonal per batch, zero-padded edges)
    shift = np.zeros((2, bt, bt), np.float32)
    for b in range(Bx):
        for t in range(t2):
            if t > 0:
                shift[0, b * t2 + t, b * t2 + t - 1] = 1.0   # x[t-1]
            if t + 1 < t2:
                shift[1, b * t2 + t, b * t2 + t + 1] = 1.0   # x[t+1]
    # block-diagonal attention bias (forbids cross-batch attention) + mean-pool
    row_batch = np.repeat(np.arange(Bx), t2)
    attn_bias = np.where(row_batch[:, None] == row_batch[None, :],
                         0.0, -1e30).astype(np.float32)
    pool_mat = ((row_batch[None, :] == np.arange(Bx)[:, None]).astype(np.float32)
                / float(t2))

    enc = params["enc"]
    L = enc["w_qkv"].shape[0]
    c1_p, c2_p = params["conv"]

    def full(shape):
        return pl.BlockSpec(shape, lambda l, _s=shape: (0,) * len(_s))

    def stacked(a, b):
        return pl.BlockSpec((1, a, b), lambda l: (l, 0, 0))

    kernel = functools.partial(_fused_forward_kernel, n_heads=N_HEADS,
                               head_dim=HEAD_DIM, c1=c1_out, k2=k2)

    in_specs = [
        full((Bx * t1, k1)),                                        # p1
        full((k1, c1_out)), full((1, c1_out)),
        full((1, c1_out)), full((1, c1_out)),                       # conv1
        full((k2, bt, Bx * t1)),                                    # gather mats
        full((k2 * c1_out, c2_out)), full((1, c2_out)),
        full((1, c2_out)), full((1, c2_out)),                       # conv2
        full((1, c2_out)), full((1, c2_out)),                       # feat-proj LN
        full((c2_out, H)), full((1, H)),                            # feat-proj lin
        full((2, bt, bt)),                                          # shift mats
        full((POS_K * H, H)), full((1, H)),                         # pos conv
        full((bt, bt)), full((Bx, bt)),                             # bias, pool
        stacked(1, H), stacked(1, H),                               # ln1
        stacked(H, H3), stacked(1, H3),                             # fused QKV
        stacked(H, H), stacked(1, H),                               # O proj
        stacked(1, H), stacked(1, H),                               # ln2
        stacked(H, FFN), stacked(1, FFN),                           # ff1
        stacked(FFN, H), stacked(1, H),                             # ff2
        full((1, H)), full((1, H)),                                 # final LN
        full((H, PROJ)), full((1, PROJ)),                           # projector
        full((PROJ, N_LABELS)), full((1, N_LABELS)),                # classifier
    ]

    logits = pl.pallas_call(
        kernel,
        out_shape=jax.ShapeDtypeStruct((Bx, N_LABELS), jnp.float32),
        grid=(L,),
        in_specs=in_specs,
        out_specs=pl.BlockSpec((Bx, N_LABELS), lambda l: (0, 0)),
        scratch_shapes=[pltpu.VMEM((bt, H), jnp.float32)],
        compiler_params=pltpu.CompilerParams(dimension_semantics=("arbitrary",)),
    )(p1,
      c1_p["w"], c1_p["b"], c1_p["g"], c1_p["be"],
      gmat,
      c2_p["w"], c2_p["b"], c2_p["g"], c2_p["be"],
      params["fp_g"], params["fp_b"], params["fp_w"], params["fp_bias"],
      shift, params["pos_w"], params["pos_b"],
      attn_bias, pool_mat,
      enc["ln1_g"], enc["ln1_b"], enc["w_qkv"], enc["b_qkv"],
      enc["w_o"], enc["b_o"],
      enc["ln2_g"], enc["ln2_b"], enc["w_ff1"], enc["b_ff1"],
      enc["w_ff2"], enc["b_ff2"],
      params["enc_ln_g"], params["enc_ln_b"],
      params["proj_w"], params["proj_b"], params["cls_w"], params["cls_b"])
    return logits

    # TODO(synk): HF dropout layers are omitted (eval-mode semantics); pretrained
    # wav2vec2-lg-xlsr checkpoint weights are replaced by deterministic random
    # params at a scaled-down config.


if __name__ == "__main__":
    key = jax.random.PRNGKey(0)
    pkey, xkey = jax.random.split(key)
    params = init_params(pkey)
    x = jax.random.normal(xkey, (B, T_RAW), jnp.float32)

    fwd = jax.jit(base_model_forward)
    out = fwd(params, x)
    jax.block_until_ready(out)
    assert out.shape == (B, N_LABELS) and out.dtype == jnp.float32
    print("KERNEL_OK")
</pallas_src>

<mosaic_0001>
module attributes {stable_mosaic.version = 11 : i64} {
  func.func @_fused_forward_kernel(%arg0: i32, %arg1: memref<126x10xf32, #tpu.memory_space<vmem>>, %arg2: memref<10x32xf32, #tpu.memory_space<vmem>>, %arg3: memref<1x32xf32, #tpu.memory_space<vmem>>, %arg4: memref<1x32xf32, #tpu.memory_space<vmem>>, %arg5: memref<1x32xf32, #tpu.memory_space<vmem>>, %arg6: memref<3x62x126xf32, #tpu.memory_space<vmem>>, %arg7: memref<96x32xf32, #tpu.memory_space<vmem>>, %arg8: memref<1x32xf32, #tpu.memory_space<vmem>>, %arg9: memref<1x32xf32, #tpu.memory_space<vmem>>, %arg10: memref<1x32xf32, #tpu.memory_space<vmem>>, %arg11: memref<1x32xf32, #tpu.memory_space<vmem>>, %arg12: memref<1x32xf32, #tpu.memory_space<vmem>>, %arg13: memref<32x32xf32, #tpu.memory_space<vmem>>, %arg14: memref<1x32xf32, #tpu.memory_space<vmem>>, %arg15: memref<2x62x62xf32, #tpu.memory_space<vmem>>, %arg16: memref<96x32xf32, #tpu.memory_space<vmem>>, %arg17: memref<1x32xf32, #tpu.memory_space<vmem>>, %arg18: memref<62x62xf32, #tpu.memory_space<vmem>>, %arg19: memref<2x62xf32, #tpu.memory_space<vmem>>, %arg20: memref<1x1x32xf32, #tpu.memory_space<vmem>>, %arg21: memref<1x1x32xf32, #tpu.memory_space<vmem>>, %arg22: memref<1x32x96xf32, #tpu.memory_space<vmem>>, %arg23: memref<1x1x96xf32, #tpu.memory_space<vmem>>, %arg24: memref<1x32x32xf32, #tpu.memory_space<vmem>>, %arg25: memref<1x1x32xf32, #tpu.memory_space<vmem>>, %arg26: memref<1x1x32xf32, #tpu.memory_space<vmem>>, %arg27: memref<1x1x32xf32, #tpu.memory_space<vmem>>, %arg28: memref<1x32x64xf32, #tpu.memory_space<vmem>>, %arg29: memref<1x1x64xf32, #tpu.memory_space<vmem>>, %arg30: memref<1x64x32xf32, #tpu.memory_space<vmem>>, %arg31: memref<1x1x32xf32, #tpu.memory_space<vmem>>, %arg32: memref<1x32xf32, #tpu.memory_space<vmem>>, %arg33: memref<1x32xf32, #tpu.memory_space<vmem>>, %arg34: memref<32x256xf32, #tpu.memory_space<vmem>>, %arg35: memref<1x256xf32, #tpu.memory_space<vmem>>, %arg36: memref<256x6xf32, #tpu.memory_space<vmem>>, %arg37: memref<1x6xf32, #tpu.memory_space<vmem>>, %arg38: memref<2x6xf32, #tpu.memory_space<vmem>>, %arg39: memref<62x32xf32, #tpu.memory_space<vmem>>) attributes {dimension_semantics = [#tpu.dimension_semantics<arbitrary>], iteration_bounds = array<i64: 2>, scalar_prefetch = 0 : i64, scratch_operands = 1 : i64, tpu.core_type = #tpu.core_type<tc>, window_params = [{pipeline_mode = #tpu.pipeline_mode<synchronous>, transform_indices = @transform_0, window_bounds = array<i64: 126, 10>}, {pipeline_mode = #tpu.pipeline_mode<synchronous>, transform_indices = @transform_1, window_bounds = array<i64: 10, 32>}, {pipeline_mode = #tpu.pipeline_mode<synchronous>, transform_indices = @transform_2, window_bounds = array<i64: 1, 32>}, {pipeline_mode = #tpu.pipeline_mode<synchronous>, transform_indices = @transform_3, window_bounds = array<i64: 1, 32>}, {pipeline_mode = #tpu.pipeline_mode<synchronous>, transform_indices = @transform_4, window_bounds = array<i64: 1, 32>}, {pipeline_mode = #tpu.pipeline_mode<synchronous>, transform_indices = @transform_5, window_bounds = array<i64: 3, 62, 126>}, {pipeline_mode = #tpu.pipeline_mode<synchronous>, transform_indices = @transform_6, window_bounds = array<i64: 96, 32>}, {pipeline_mode = #tpu.pipeline_mode<synchronous>, transform_indices = @transform_7, window_bounds = array<i64: 1, 32>}, {pipeline_mode = #tpu.pipeline_mode<synchronous>, transform_indices = @transform_8, window_bounds = array<i64: 1, 32>}, {pipeline_mode = #tpu.pipeline_mode<synchronous>, transform_indices = @transform_9, window_bounds = array<i64: 1, 32>}, {pipeline_mode = #tpu.pipeline_mode<synchronous>, transform_indices = @transform_10, window_bounds = array<i64: 1, 32>}, {pipeline_mode = #tpu.pipeline_mode<synchronous>, transform_indices = @transform_11, window_bounds = array<i64: 1, 32>}, {pipeline_mode = #tpu.pipeline_mode<synchronous>, transform_indices = @transform_12, window_bounds = array<i64: 32, 32>}, {pipeline_mode = #tpu.pipeline_mode<synchronous>, transform_indices = @transform_13, window_bounds = array<i64: 1, 32>}, {pipeline_mode = #tpu.pipeline_mode<synchronous>, transform_indices = @transform_14, window_bounds = array<i64: 2, 62, 62>}, {pipeline_mode = #tpu.pipeline_mode<synchronous>, transform_indices = @transform_15, window_bounds = array<i64: 96, 32>}, {pipeline_mode = #tpu.pipeline_mode<synchronous>, transform_indices = @transform_16, window_bounds = array<i64: 1, 32>}, {pipeline_mode = #tpu.pipeline_mode<synchronous>, transform_indices = @transform_17, window_bounds = array<i64: 62, 62>}, {pipeline_mode = #tpu.pipeline_mode<synchronous>, transform_indices = @transform_18, window_bounds = array<i64: 2, 62>}, {transform_indices = @transform_19, window_bounds = array<i64: 1, 1, 32>}, {transform_indices = @transform_20, window_bounds = array<i64: 1, 1, 32>}, {transform_indices = @transform_21, window_bounds = array<i64: 1, 32, 96>}, {transform_indices = @transform_22, window_bounds = array<i64: 1, 1, 96>}, {transform_indices = @transform_23, window_bounds = array<i64: 1, 32, 32>}, {transform_indices = @transform_24, window_bounds = array<i64: 1, 1, 32>}, {transform_indices = @transform_25, window_bounds = array<i64: 1, 1, 32>}, {transform_indices = @transform_26, window_bounds = array<i64: 1, 1, 32>}, {transform_indices = @transform_27, window_bounds = array<i64: 1, 32, 64>}, {transform_indices = @transform_28, window_bounds = array<i64: 1, 1, 64>}, {transform_indices = @transform_29, window_bounds = array<i64: 1, 64, 32>}, {transform_indices = @transform_30, window_bounds = array<i64: 1, 1, 32>}, {pipeline_mode = #tpu.pipeline_mode<synchronous>, transform_indices = @transform_31, window_bounds = array<i64: 1, 32>}, {pipeline_mode = #tpu.pipeline_mode<synchronous>, transform_indices = @transform_32, window_bounds = array<i64: 1, 32>}, {pipeline_mode = #tpu.pipeline_mode<synchronous>, transform_indices = @transform_33, window_bounds = array<i64: 32, 256>}, {pipeline_mode = #tpu.pipeline_mode<synchronous>, transform_indices = @transform_34, window_bounds = array<i64: 1, 256>}, {pipeline_mode = #tpu.pipeline_mode<synchronous>, transform_indices = @transform_35, window_bounds = array<i64: 256, 6>}, {pipeline_mode = #tpu.pipeline_mode<synchronous>, transform_indices = @transform_36, window_bounds = array<i64: 1, 6>}, {pipeline_mode = #tpu.pipeline_mode<synchronous>, transform_indices = @transform_37, window_bounds = array<i64: 2, 6>}]} {
    %c0_i32 = arith.constant 0 : i32
    %0 = arith.cmpi eq, %arg0, %c0_i32 : i32
    %1 = arith.extui %0 : i1 to i32
    %c0_i32_0 = arith.constant 0 : i32
    %2 = arith.cmpi ne, %1, %c0_i32_0 : i32
    scf.if %2 {
      %c0_90 = arith.constant 0 : index
      %c0_91 = arith.constant 0 : index
      %191 = vector.load %arg1[%c0_90, %c0_91] : memref<126x10xf32, #tpu.memory_space<vmem>>, vector<126x10xf32>
      %c0_92 = arith.constant 0 : index
      %c0_93 = arith.constant 0 : index
      %192 = vector.load %arg2[%c0_92, %c0_93] : memref<10x32xf32, #tpu.memory_space<vmem>>, vector<10x32xf32>
      %cst_94 = arith.constant dense<0.000000e+00> : vector<126x32xf32>
      %193 = tpu.matmul %191, %192, %cst_94 {dimension_numbers = #tpu.dot_dimension_numbers<[1], [0], [0], [1], [0, 0, 1, 1], [], []>} : vector<126x10xf32>, vector<10x32xf32>, vector<126x32xf32> -> vector<126x32xf32>
      %c0_95 = arith.constant 0 : index
      %c0_96 = arith.constant 0 : index
      %194 = vector.load %arg3[%c0_95, %c0_96] : memref<1x32xf32, #tpu.memory_space<vmem>>, vector<1x32xf32>
      %195 = vector.broadcast %194 : vector<1x32xf32> to vector<126x32xf32>
      %196 = arith.addf %193, %195 : vector<126x32xf32>
      %c0_97 = arith.constant 0 : index
      %c0_98 = arith.constant 0 : index
      %197 = vector.load %arg4[%c0_97, %c0_98] : memref<1x32xf32, #tpu.memory_space<vmem>>, vector<1x32xf32>
      %c0_99 = arith.constant 0 : index
      %c0_100 = arith.constant 0 : index
      %198 = vector.load %arg5[%c0_99, %c0_100] : memref<1x32xf32, #tpu.memory_space<vmem>>, vector<1x32xf32>
      %cst_101 = arith.constant dense<0.000000e+00> : vector<126xf32>
      %199 = vector.multi_reduction <add>, %196, %cst_101 [1] : vector<126x32xf32> to vector<126xf32>
      %200 = vector.shape_cast %199 : vector<126xf32> to vector<126x1xf32>
      %cst_102 = arith.constant 3.200000e+01 : f32
      %201 = vector.broadcast %cst_102 : f32 to vector<126x1xf32>
      %202 = arith.divf %200, %201 : vector<126x1xf32>
      %203 = vector.broadcast %202 : vector<126x1xf32> to vector<126x32xf32>
      %204 = arith.subf %196, %203 : vector<126x32xf32>
      %205 = arith.mulf %204, %204 : vector<126x32xf32>
      %cst_103 = arith.constant dense<0.000000e+00> : vector<126xf32>
      %206 = vector.multi_reduction <add>, %205, %cst_103 [1] : vector<126x32xf32> to vector<126xf32>
      %207 = vector.shape_cast %206 : vector<126xf32> to vector<126x1xf32>
      %cst_104 = arith.constant 3.200000e+01 : f32
      %208 = vector.broadcast %cst_104 : f32 to vector<126x1xf32>
      %209 = arith.divf %207, %208 : vector<126x1xf32>
      %210 = vector.broadcast %202 : vector<126x1xf32> to vector<126x32xf32>
      %211 = arith.subf %196, %210 : vector<126x32xf32>
      %cst_105 = arith.constant 9.99999974E-6 : f32
      %212 = vector.broadcast %cst_105 : f32 to vector<126x1xf32>
      %213 = arith.addf %209, %212 : vector<126x1xf32>
      %214 = math.rsqrt %213 : vector<126x1xf32>
      %215 = vector.broadcast %214 : vector<126x1xf32> to vector<126x32xf32>
      %216 = arith.mulf %211, %215 : vector<126x32xf32>
      %217 = vector.broadcast %197 : vector<1x32xf32> to vector<126x32xf32>
      %218 = arith.mulf %216, %217 : vector<126x32xf32>
      %219 = vector.broadcast %198 : vector<1x32xf32> to vector<126x32xf32>
      %220 = arith.addf %218, %219 : vector<126x32xf32>
      %221 = arith.mulf %220, %220 : vector<126x32xf32>
      %222 = arith.mulf %220, %221 : vector<126x32xf32>
      %cst_106 = arith.constant 4.471500e-02 : f32
      %223 = vector.broadcast %cst_106 : f32 to vector<126x32xf32>
      %224 = arith.mulf %223, %222 : vector<126x32xf32>
      %225 = arith.addf %220, %224 : vector<126x32xf32>
      %cst_107 = arith.constant 0.797884583 : f32
      %226 = vector.broadcast %cst_107 : f32 to vector<126x32xf32>
      %227 = arith.mulf %226, %225 : vector<126x32xf32>
      %228 = math.tanh %227 : vector<126x32xf32>
      %cst_108 = arith.constant 1.000000e+00 : f32
      %229 = vector.broadcast %cst_108 : f32 to vector<126x32xf32>
      %230 = arith.addf %229, %228 : vector<126x32xf32>
      %cst_109 = arith.constant 5.000000e-01 : f32
      %231 = vector.broadcast %cst_109 : f32 to vector<126x32xf32>
      %232 = arith.mulf %231, %230 : vector<126x32xf32>
      %233 = arith.mulf %220, %232 : vector<126x32xf32>
      %c0_110 = arith.constant 0 : index
      %c0_111 = arith.constant 0 : index
      %c0_112 = arith.constant 0 : index
      %234 = vector.load %arg6[%c0_110, %c0_111, %c0_112] : memref<3x62x126xf32, #tpu.memory_space<vmem>>, vector<1x62x126xf32>
      %235 = vector.shape_cast %234 : vector<1x62x126xf32> to vector<62x126xf32>
      %cst_113 = arith.constant dense<0.000000e+00> : vector<62x32xf32>
      %236 = tpu.matmul %235, %233, %cst_113 {dimension_numbers = #tpu.dot_dimension_numbers<[1], [0], [0], [1], [0, 0, 1, 1], [], []>} : vector<62x126xf32>, vector<126x32xf32>, vector<62x32xf32> -> vector<62x32xf32>
      %c0_114 = arith.constant 0 : index
      %c0_115 = arith.constant 0 : index
      %237 = vector.load %arg7[%c0_114, %c0_115] : memref<96x32xf32, #tpu.memory_space<vmem>>, vector<32x32xf32>
      %cst_116 = arith.constant dense<0.000000e+00> : vector<62x32xf32>
      %238 = tpu.matmul %236, %237, %cst_116 {dimension_numbers = #tpu.dot_dimension_numbers<[1], [0], [0], [1], [0, 0, 1, 1], [], []>} : vector<62x32xf32>, vector<32x32xf32>, vector<62x32xf32> -> vector<62x32xf32>
      %c1 = arith.constant 1 : index
      %c0_117 = arith.constant 0 : index
      %c0_118 = arith.constant 0 : index
      %239 = vector.load %arg6[%c1, %c0_117, %c0_118] : memref<3x62x126xf32, #tpu.memory_space<vmem>>, vector<1x62x126xf32>
      %240 = vector.shape_cast %239 : vector<1x62x126xf32> to vector<62x126xf32>
      %cst_119 = arith.constant dense<0.000000e+00> : vector<62x32xf32>
      %241 = tpu.matmul %240, %233, %cst_119 {dimension_numbers = #tpu.dot_dimension_numbers<[1], [0], [0], [1], [0, 0, 1, 1], [], []>} : vector<62x126xf32>, vector<126x32xf32>, vector<62x32xf32> -> vector<62x32xf32>
      %c32 = arith.constant 32 : index
      %c0_120 = arith.constant 0 : index
      %242 = vector.load %arg7[%c32, %c0_120] : memref<96x32xf32, #tpu.memory_space<vmem>>, vector<32x32xf32>
      %cst_121 = arith.constant dense<0.000000e+00> : vector<62x32xf32>
      %243 = tpu.matmul %241, %242, %cst_121 {dimension_numbers = #tpu.dot_dimension_numbers<[1], [0], [0], [1], [0, 0, 1, 1], [], []>} : vector<62x32xf32>, vector<32x32xf32>, vector<62x32xf32> -> vector<62x32xf32>
      %244 = arith.addf %238, %243 : vector<62x32xf32>
      %c2 = arith.constant 2 : index
      %c0_122 = arith.constant 0 : index
      %c0_123 = arith.constant 0 : index
      %245 = vector.load %arg6[%c2, %c0_122, %c0_123] : memref<3x62x126xf32, #tpu.memory_space<vmem>>, vector<1x62x126xf32>
      %246 = vector.shape_cast %245 : vector<1x62x126xf32> to vector<62x126xf32>
      %cst_124 = arith.constant dense<0.000000e+00> : vector<62x32xf32>
      %247 = tpu.matmul %246, %233, %cst_124 {dimension_numbers = #tpu.dot_dimension_numbers<[1], [0], [0], [1], [0, 0, 1, 1], [], []>} : vector<62x126xf32>, vector<126x32xf32>, vector<62x32xf32> -> vector<62x32xf32>
      %c64 = arith.constant 64 : index
      %c0_125 = arith.constant 0 : index
      %248 = vector.load %arg7[%c64, %c0_125] : memref<96x32xf32, #tpu.memory_space<vmem>>, vector<32x32xf32>
      %cst_126 = arith.constant dense<0.000000e+00> : vector<62x32xf32>
      %249 = tpu.matmul %247, %248, %cst_126 {dimension_numbers = #tpu.dot_dimension_numbers<[1], [0], [0], [1], [0, 0, 1, 1], [], []>} : vector<62x32xf32>, vector<32x32xf32>, vector<62x32xf32> -> vector<62x32xf32>
      %250 = arith.addf %244, %249 : vector<62x32xf32>
      %c0_127 = arith.constant 0 : index
      %c0_128 = arith.constant 0 : index
      %251 = vector.load %arg8[%c0_127, %c0_128] : memref<1x32xf32, #tpu.memory_space<vmem>>, vector<1x32xf32>
      %252 = vector.broadcast %251 : vector<1x32xf32> to vector<62x32xf32>
      %253 = arith.addf %250, %252 : vector<62x32xf32>
      %c0_129 = arith.constant 0 : index
      %c0_130 = arith.constant 0 : index
      %254 = vector.load %arg9[%c0_129, %c0_130] : memref<1x32xf32, #tpu.memory_space<vmem>>, vector<1x32xf32>
      %c0_131 = arith.constant 0 : index
      %c0_132 = arith.constant 0 : index
      %255 = vector.load %arg10[%c0_131, %c0_132] : memref<1x32xf32, #tpu.memory_space<vmem>>, vector<1x32xf32>
      %cst_133 = arith.constant dense<0.000000e+00> : vector<62xf32>
      %256 = vector.multi_reduction <add>, %253, %cst_133 [1] : vector<62x32xf32> to vector<62xf32>
      %257 = vector.shape_cast %256 : vector<62xf32> to vector<62x1xf32>
      %cst_134 = arith.constant 3.200000e+01 : f32
      %258 = vector.broadcast %cst_134 : f32 to vector<62x1xf32>
      %259 = arith.divf %257, %258 : vector<62x1xf32>
      %260 = vector.broadcast %259 : vector<62x1xf32> to vector<62x32xf32>
      %261 = arith.subf %253, %260 : vector<62x32xf32>
      %262 = arith.mulf %261, %261 : vector<62x32xf32>
      %cst_135 = arith.constant dense<0.000000e+00> : vector<62xf32>
      %263 = vector.multi_reduction <add>, %262, %cst_135 [1] : vector<62x32xf32> to vector<62xf32>
      %264 = vector.shape_cast %263 : vector<62xf32> to vector<62x1xf32>
      %cst_136 = arith.constant 3.200000e+01 : f32
      %265 = vector.broadcast %cst_136 : f32 to vector<62x1xf32>
      %266 = arith.divf %264, %265 : vector<62x1xf32>
      %267 = vector.broadcast %259 : vector<62x1xf32> to vector<62x32xf32>
      %268 = arith.subf %253, %267 : vector<62x32xf32>
      %cst_137 = arith.constant 9.99999974E-6 : f32
      %269 = vector.broadcast %cst_137 : f32 to vector<62x1xf32>
      %270 = arith.addf %266, %269 : vector<62x1xf32>
      %271 = math.rsqrt %270 : vector<62x1xf32>
      %272 = vector.broadcast %271 : vector<62x1xf32> to vector<62x32xf32>
      %273 = arith.mulf %268, %272 : vector<62x32xf32>
      %274 = vector.broadcast %254 : vector<1x32xf32> to vector<62x32xf32>
      %275 = arith.mulf %273, %274 : vector<62x32xf32>
      %276 = vector.broadcast %255 : vector<1x32xf32> to vector<62x32xf32>
      %277 = arith.addf %275, %276 : vector<62x32xf32>
      %278 = arith.mulf %277, %277 : vector<62x32xf32>
      %279 = arith.mulf %277, %278 : vector<62x32xf32>
      %cst_138 = arith.constant 4.471500e-02 : f32
      %280 = vector.broadcast %cst_138 : f32 to vector<62x32xf32>
      %281 = arith.mulf %280, %279 : vector<62x32xf32>
      %282 = arith.addf %277, %281 : vector<62x32xf32>
      %cst_139 = arith.constant 0.797884583 : f32
      %283 = vector.broadcast %cst_139 : f32 to vector<62x32xf32>
      %284 = arith.mulf %283, %282 : vector<62x32xf32>
      %285 = math.tanh %284 : vector<62x32xf32>
      %cst_140 = arith.constant 1.000000e+00 : f32
      %286 = vector.broadcast %cst_140 : f32 to vector<62x32xf32>
      %287 = arith.addf %286, %285 : vector<62x32xf32>
      %cst_141 = arith.constant 5.000000e-01 : f32
      %288 = vector.broadcast %cst_141 : f32 to vector<62x32xf32>
      %289 = arith.mulf %288, %287 : vector<62x32xf32>
      %290 = arith.mulf %277, %289 : vector<62x32xf32>
      %c0_142 = arith.constant 0 : index
      %c0_143 = arith.constant 0 : index
      %291 = vector.load %arg11[%c0_142, %c0_143] : memref<1x32xf32, #tpu.memory_space<vmem>>, vector<1x32xf32>
      %c0_144 = arith.constant 0 : index
      %c0_145 = arith.constant 0 : index
      %292 = vector.load %arg12[%c0_144, %c0_145] : memref<1x32xf32, #tpu.memory_space<vmem>>, vector<1x32xf32>
      %cst_146 = arith.constant dense<0.000000e+00> : vector<62xf32>
      %293 = vector.multi_reduction <add>, %290, %cst_146 [1] : vector<62x32xf32> to vector<62xf32>
      %294 = vector.shape_cast %293 : vector<62xf32> to vector<62x1xf32>
      %cst_147 = arith.constant 3.200000e+01 : f32
      %295 = vector.broadcast %cst_147 : f32 to vector<62x1xf32>
      %296 = arith.divf %294, %295 : vector<62x1xf32>
      %297 = vector.broadcast %296 : vector<62x1xf32> to vector<62x32xf32>
      %298 = arith.subf %290, %297 : vector<62x32xf32>
      %299 = arith.mulf %298, %298 : vector<62x32xf32>
      %cst_148 = arith.constant dense<0.000000e+00> : vector<62xf32>
      %300 = vector.multi_reduction <add>, %299, %cst_148 [1] : vector<62x32xf32> to vector<62xf32>
      %301 = vector.shape_cast %300 : vector<62xf32> to vector<62x1xf32>
      %cst_149 = arith.constant 3.200000e+01 : f32
      %302 = vector.broadcast %cst_149 : f32 to vector<62x1xf32>
      %303 = arith.divf %301, %302 : vector<62x1xf32>
      %304 = vector.broadcast %296 : vector<62x1xf32> to vector<62x32xf32>
      %305 = arith.subf %290, %304 : vector<62x32xf32>
      %cst_150 = arith.constant 9.99999974E-6 : f32
      %306 = vector.broadcast %cst_150 : f32 to vector<62x1xf32>
      %307 = arith.addf %303, %306 : vector<62x1xf32>
      %308 = math.rsqrt %307 : vector<62x1xf32>
      %309 = vector.broadcast %308 : vector<62x1xf32> to vector<62x32xf32>
      %310 = arith.mulf %305, %309 : vector<62x32xf32>
      %311 = vector.broadcast %291 : vector<1x32xf32> to vector<62x32xf32>
      %312 = arith.mulf %310, %311 : vector<62x32xf32>
      %313 = vector.broadcast %292 : vector<1x32xf32> to vector<62x32xf32>
      %314 = arith.addf %312, %313 : vector<62x32xf32>
      %c0_151 = arith.constant 0 : index
      %c0_152 = arith.constant 0 : index
      %315 = vector.load %arg13[%c0_151, %c0_152] : memref<32x32xf32, #tpu.memory_space<vmem>>, vector<32x32xf32>
      %cst_153 = arith.constant dense<0.000000e+00> : vector<62x32xf32>
      %316 = tpu.matmul %314, %315, %cst_153 {dimension_numbers = #tpu.dot_dimension_numbers<[1], [0], [0], [1], [0, 0, 1, 1], [], []>} : vector<62x32xf32>, vector<32x32xf32>, vector<62x32xf32> -> vector<62x32xf32>
      %c0_154 = arith.constant 0 : index
      %c0_155 = arith.constant 0 : index
      %317 = vector.load %arg14[%c0_154, %c0_155] : memref<1x32xf32, #tpu.memory_space<vmem>>, vector<1x32xf32>
      %318 = vector.broadcast %317 : vector<1x32xf32> to vector<62x32xf32>
      %319 = arith.addf %316, %318 : vector<62x32xf32>
      %c32_156 = arith.constant 32 : index
      %c0_157 = arith.constant 0 : index
      %320 = vector.load %arg16[%c32_156, %c0_157] : memref<96x32xf32, #tpu.memory_space<vmem>>, vector<32x32xf32>
      %cst_158 = arith.constant dense<0.000000e+00> : vector<62x32xf32>
      %321 = tpu.matmul %319, %320, %cst_158 {dimension_numbers = #tpu.dot_dimension_numbers<[1], [0], [0], [1], [0, 0, 1, 1], [], []>} : vector<62x32xf32>, vector<32x32xf32>, vector<62x32xf32> -> vector<62x32xf32>
      %c0_159 = arith.constant 0 : index
      %c0_160 = arith.constant 0 : index
      %c0_161 = arith.constant 0 : index
      %322 = vector.load %arg15[%c0_159, %c0_160, %c0_161] : memref<2x62x62xf32, #tpu.memory_space<vmem>>, vector<1x62x62xf32>
      %323 = vector.shape_cast %322 : vector<1x62x62xf32> to vector<62x62xf32>
      %cst_162 = arith.constant dense<0.000000e+00> : vector<62x32xf32>
      %324 = tpu.matmul %323, %319, %cst_162 {dimension_numbers = #tpu.dot_dimension_numbers<[1], [0], [0], [1], [0, 0, 1, 1], [], []>} : vector<62x62xf32>, vector<62x32xf32>, vector<62x32xf32> -> vector<62x32xf32>
      %c1_163 = arith.constant 1 : index
      %c0_164 = arith.constant 0 : index
      %c0_165 = arith.constant 0 : index
      %325 = vector.load %arg15[%c1_163, %c0_164, %c0_165] : memref<2x62x62xf32, #tpu.memory_space<vmem>>, vector<1x62x62xf32>
      %326 = vector.shape_cast %325 : vector<1x62x62xf32> to vector<62x62xf32>
      %cst_166 = arith.constant dense<0.000000e+00> : vector<62x32xf32>
      %327 = tpu.matmul %326, %319, %cst_166 {dimension_numbers = #tpu.dot_dimension_numbers<[1], [0], [0], [1], [0, 0, 1, 1], [], []>} : vector<62x62xf32>, vector<62x32xf32>, vector<62x32xf32> -> vector<62x32xf32>
      %c0_167 = arith.constant 0 : index
      %c0_168 = arith.constant 0 : index
      %328 = vector.load %arg16[%c0_167, %c0_168] : memref<96x32xf32, #tpu.memory_space<vmem>>, vector<32x32xf32>
      %cst_169 = arith.constant dense<0.000000e+00> : vector<62x32xf32>
      %329 = tpu.matmul %324, %328, %cst_169 {dimension_numbers = #tpu.dot_dimension_numbers<[1], [0], [0], [1], [0, 0, 1, 1], [], []>} : vector<62x32xf32>, vector<32x32xf32>, vector<62x32xf32> -> vector<62x32xf32>
      %330 = arith.addf %321, %329 : vector<62x32xf32>
      %c64_170 = arith.constant 64 : index
      %c0_171 = arith.constant 0 : index
      %331 = vector.load %arg16[%c64_170, %c0_171] : memref<96x32xf32, #tpu.memory_space<vmem>>, vector<32x32xf32>
      %cst_172 = arith.constant dense<0.000000e+00> : vector<62x32xf32>
      %332 = tpu.matmul %327, %331, %cst_172 {dimension_numbers = #tpu.dot_dimension_numbers<[1], [0], [0], [1], [0, 0, 1, 1], [], []>} : vector<62x32xf32>, vector<32x32xf32>, vector<62x32xf32> -> vector<62x32xf32>
      %333 = arith.addf %330, %332 : vector<62x32xf32>
      %c0_173 = arith.constant 0 : index
      %c0_174 = arith.constant 0 : index
      %334 = vector.load %arg17[%c0_173, %c0_174] : memref<1x32xf32, #tpu.memory_space<vmem>>, vector<1x32xf32>
      %335 = vector.broadcast %334 : vector<1x32xf32> to vector<62x32xf32>
      %336 = arith.addf %333, %335 : vector<62x32xf32>
      %337 = arith.mulf %336, %336 : vector<62x32xf32>
      %338 = arith.mulf %336, %337 : vector<62x32xf32>
      %cst_175 = arith.constant 4.471500e-02 : f32
      %339 = vector.broadcast %cst_175 : f32 to vector<62x32xf32>
      %340 = arith.mulf %339, %338 : vector<62x32xf32>
      %341 = arith.addf %336, %340 : vector<62x32xf32>
      %cst_176 = arith.constant 0.797884583 : f32
      %342 = vector.broadcast %cst_176 : f32 to vector<62x32xf32>
      %343 = arith.mulf %342, %341 : vector<62x32xf32>
      %344 = math.tanh %343 : vector<62x32xf32>
      %cst_177 = arith.constant 1.000000e+00 : f32
      %345 = vector.broadcast %cst_177 : f32 to vector<62x32xf32>
      %346 = arith.addf %345, %344 : vector<62x32xf32>
      %cst_178 = arith.constant 5.000000e-01 : f32
      %347 = vector.broadcast %cst_178 : f32 to vector<62x32xf32>
      %348 = arith.mulf %347, %346 : vector<62x32xf32>
      %349 = arith.mulf %336, %348 : vector<62x32xf32>
      %350 = arith.addf %319, %349 : vector<62x32xf32>
      %c0_179 = arith.constant 0 : index
      %c0_180 = arith.constant 0 : index
      %351 = vector.load %arg39[%c0_179, %c0_180] : memref<62x32xf32, #tpu.memory_space<vmem>>, vector<62x32xf32>
      tpu.vector_store %arg39[%c0_179, %c0_180], %350 {strides = array<i32>} : memref<62x32xf32, #tpu.memory_space<vmem>>, vector<62x32xf32>,
    } else {
    }
    %c0 = arith.constant 0 : index
    %c0_1 = arith.constant 0 : index
    %3 = vector.load %arg39[%c0, %c0_1] : memref<62x32xf32, #tpu.memory_space<vmem>>, vector<62x32xf32>
    %c0_2 = arith.constant 0 : index
    %c0_3 = arith.constant 0 : index
    %c0_4 = arith.constant 0 : index
    %4 = vector.load %arg20[%c0_2, %c0_3, %c0_4] : memref<1x1x32xf32, #tpu.memory_space<vmem>>, vector<1x1x32xf32>
    %5 = vector.shape_cast %4 : vector<1x1x32xf32> to vector<1x32xf32>
    %c0_5 = arith.constant 0 : index
    %c0_6 = arith.constant 0 : index
    %c0_7 = arith.constant 0 : index
    %6 = vector.load %arg21[%c0_5, %c0_6, %c0_7] : memref<1x1x32xf32, #tpu.memory_space<vmem>>, vector<1x1x32xf32>
    %7 = vector.shape_cast %6 : vector<1x1x32xf32> to vector<1x32xf32>
    %cst = arith.constant dense<0.000000e+00> : vector<62xf32>
    %8 = vector.multi_reduction <add>, %3, %cst [1] : vector<62x32xf32> to vector<62xf32>
    %9 = vector.shape_cast %8 : vector<62xf32> to vector<62x1xf32>
    %cst_8 = arith.constant 3.200000e+01 : f32
    %10 = vector.broadcast %cst_8 : f32 to vector<62x1xf32>
    %11 = arith.divf %9, %10 : vector<62x1xf32>
    %12 = vector.broadcast %11 : vector<62x1xf32> to vector<62x32xf32>
    %13 = arith.subf %3, %12 : vector<62x32xf32>
    %14 = arith.mulf %13, %13 : vector<62x32xf32>
    %cst_9 = arith.constant dense<0.000000e+00> : vector<62xf32>
    %15 = vector.multi_reduction <add>, %14, %cst_9 [1] : vector<62x32xf32> to vector<62xf32>
    %16 = vector.shape_cast %15 : vector<62xf32> to vector<62x1xf32>
    %cst_10 = arith.constant 3.200000e+01 : f32
    %17 = vector.broadcast %cst_10 : f32 to vector<62x1xf32>
    %18 = arith.divf %16, %17 : vector<62x1xf32>
    %19 = vector.broadcast %11 : vector<62x1xf32> to vector<62x32xf32>
    %20 = arith.subf %3, %19 : vector<62x32xf32>
    %cst_11 = arith.constant 9.99999974E-6 : f32
    %21 = vector.broadcast %cst_11 : f32 to vector<62x1xf32>
    %22 = arith.addf %18, %21 : vector<62x1xf32>
    %23 = math.rsqrt %22 : vector<62x1xf32>
    %24 = vector.broadcast %23 : vector<62x1xf32> to vector<62x32xf32>
    %25 = arith.mulf %20, %24 : vector<62x32xf32>
    %26 = vector.broadcast %5 : vector<1x32xf32> to vector<62x32xf32>
    %27 = arith.mulf %25, %26 : vector<62x32xf32>
    %28 = vector.broadcast %7 : vector<1x32xf32> to vector<62x32xf32>
    %29 = arith.addf %27, %28 : vector<62x32xf32>
    %c0_12 = arith.constant 0 : index
    %c0_13 = arith.constant 0 : index
    %c0_14 = arith.constant 0 : index
    %30 = vector.load %arg22[%c0_12, %c0_13, %c0_14] : memref<1x32x96xf32, #tpu.memory_space<vmem>>, vector<1x32x96xf32>
    %31 = vector.shape_cast %30 : vector<1x32x96xf32> to vector<32x96xf32>
    %cst_15 = arith.constant dense<0.000000e+00> : vector<62x96xf32>
    %32 = tpu.matmul %29, %31, %cst_15 {dimension_numbers = #tpu.dot_dimension_numbers<[1], [0], [0], [1], [0, 0, 1, 1], [], []>} : vector<62x32xf32>, vector<32x96xf32>, vector<62x96xf32> -> vector<62x96xf32>
    %c0_16 = arith.constant 0 : index
    %c0_17 = arith.constant 0 : index
    %c0_18 = arith.constant 0 : index
    %33 = vector.load %arg23[%c0_16, %c0_17, %c0_18] : memref<1x1x96xf32, #tpu.memory_space<vmem>>, vector<1x1x96xf32>
    %34 = vector.shape_cast %33 : vector<1x1x96xf32> to vector<1x96xf32>
    %35 = vector.broadcast %34 : vector<1x96xf32> to vector<62x96xf32>
    %36 = arith.addf %32, %35 : vector<62x96xf32>
    %c0_19 = arith.constant 0 : index
    %c0_20 = arith.constant 0 : index
    %c0_21 = arith.constant 0 : index
    %37 = vector.load %arg24[%c0_19, %c0_20, %c0_21] : memref<1x32x32xf32, #tpu.memory_space<vmem>>, vector<1x32x32xf32>
    %38 = vector.shape_cast %37 : vector<1x32x32xf32> to vector<32x32xf32>
    %cst_22 = arith.constant 0.000000e+00 : f32
    %39 = vector.broadcast %cst_22 : f32 to vector<62x32xf32>
    %40 = vector.extract_strided_slice %36 {offsets = [0, 0], sizes = [62, 8], strides = [1, 1]} : vector<62x96xf32> to vector<62x8xf32>
    %41 = vector.extract_strided_slice %36 {offsets = [0, 32], sizes = [62, 8], strides = [1, 1]} : vector<62x96xf32> to vector<62x8xf32>
    %42 = vector.extract_strided_slice %36 {offsets = [0, 64], sizes = [62, 8], strides = [1, 1]} : vector<62x96xf32> to vector<62x8xf32>
    %cst_23 = arith.constant dense<0.000000e+00> : vector<62x62xf32>
    %43 = tpu.matmul %40, %41, %cst_23 {dimension_numbers = #tpu.dot_dimension_numbers<[1], [1], [0], [0], [0, 0, 1, 0], [], []>} : vector<62x8xf32>, vector<62x8xf32>, vector<62x62xf32> -> vector<62x62xf32>
    %cst_24 = arith.constant 0.353553385 : f32
    %44 = vector.broadcast %cst_24 : f32 to vector<62x62xf32>
    %45 = arith.mulf %43, %44 : vector<62x62xf32>
    %c0_25 = arith.constant 0 : index
    %c0_26 = arith.constant 0 : index
    %46 = vector.load %arg18[%c0_25, %c0_26] : memref<62x62xf32, #tpu.memory_space<vmem>>, vector<62x62xf32>
    %47 = arith.addf %45, %46 : vector<62x62xf32>
    %cst_27 = arith.constant dense<0xFF800000> : vector<62xf32>
    %48 = vector.multi_reduction <maximumf>, %47, %cst_27 [1] : vector<62x62xf32> to vector<62xf32>
    %49 = vector.shape_cast %48 : vector<62xf32> to vector<62x1xf32>
    %50 = vector.broadcast %49 : vector<62x1xf32> to vector<62x62xf32>
    %51 = arith.subf %47, %50 : vector<62x62xf32>
    %52 = math.exp %51 : vector<62x62xf32>
    %cst_28 = arith.constant dense<0.000000e+00> : vector<62xf32>
    %53 = vector.multi_reduction <add>, %52, %cst_28 [1] : vector<62x62xf32> to vector<62xf32>
    %54 = vector.shape_cast %53 : vector<62xf32> to vector<62x1xf32>
    %55 = tpu.reciprocal %54 {approx = true} : vector<62x1xf32> -> vector<62x1xf32>
    %56 = vector.broadcast %55 : vector<62x1xf32> to vector<62x62xf32>
    %57 = arith.mulf %52, %56 : vector<62x62xf32>
    %cst_29 = arith.constant dense<0.000000e+00> : vector<62x8xf32>
    %58 = tpu.matmul %57, %42, %cst_29 {dimension_numbers = #tpu.dot_dimension_numbers<[1], [0], [0], [1], [0, 0, 1, 1], [], []>} : vector<62x62xf32>, vector<62x8xf32>, vector<62x8xf32> -> vector<62x8xf32>
    %59 = vector.extract_strided_slice %38 {offsets = [0, 0], sizes = [8, 32], strides = [1, 1]} : vector<32x32xf32> to vector<8x32xf32>
    %cst_30 = arith.constant dense<0.000000e+00> : vector<62x32xf32>
    %60 = tpu.matmul %58, %59, %cst_30 {dimension_numbers = #tpu.dot_dimension_numbers<[1], [0], [0], [1], [0, 0, 1, 1], [], []>} : vector<62x8xf32>, vector<8x32xf32>, vector<62x32xf32> -> vector<62x32xf32>
    %61 = arith.addf %39, %60 : vector<62x32xf32>
    %62 = vector.extract_strided_slice %36 {offsets = [0, 8], sizes = [62, 8], strides = [1, 1]} : vector<62x96xf32> to vector<62x8xf32>
    %63 = vector.extract_strided_slice %36 {offsets = [0, 40], sizes = [62, 8], strides = [1, 1]} : vector<62x96xf32> to vector<62x8xf32>
    %64 = vector.extract_strided_slice %36 {offsets = [0, 72], sizes = [62, 8], strides = [1, 1]} : vector<62x96xf32> to vector<62x8xf32>
    %cst_31 = arith.constant dense<0.000000e+00> : vector<62x62xf32>
    %65 = tpu.matmul %62, %63, %cst_31 {dimension_numbers = #tpu.dot_dimension_numbers<[1], [1], [0], [0], [0, 0, 1, 0], [], []>} : vector<62x8xf32>, vector<62x8xf32>, vector<62x62xf32> -> vector<62x62xf32>
    %cst_32 = arith.constant 0.353553385 : f32
    %66 = vector.broadcast %cst_32 : f32 to vector<62x62xf32>
    %67 = arith.mulf %65, %66 : vector<62x62xf32>
    %c0_33 = arith.constant 0 : index
    %c0_34 = arith.constant 0 : index
    %68 = vector.load %arg18[%c0_33, %c0_34] : memref<62x62xf32, #tpu.memory_space<vmem>>, vector<62x62xf32>
    %69 = arith.addf %67, %68 : vector<62x62xf32>
    %cst_35 = arith.constant dense<0xFF800000> : vector<62xf32>
    %70 = vector.multi_reduction <maximumf>, %69, %cst_35 [1] : vector<62x62xf32> to vector<62xf32>
    %71 = vector.shape_cast %70 : vector<62xf32> to vector<62x1xf32>
    %72 = vector.broadcast %71 : vector<62x1xf32> to vector<62x62xf32>
    %73 = arith.subf %69, %72 : vector<62x62xf32>
    %74 = math.exp %73 : vector<62x62xf32>
    %cst_36 = arith.constant dense<0.000000e+00> : vector<62xf32>
    %75 = vector.multi_reduction <add>, %74, %cst_36 [1] : vector<62x62xf32> to vector<62xf32>
    %76 = vector.shape_cast %75 : vector<62xf32> to vector<62x1xf32>
    %77 = tpu.reciprocal %76 {approx = true} : vector<62x1xf32> -> vector<62x1xf32>
    %78 = vector.broadcast %77 : vector<62x1xf32> to vector<62x62xf32>
    %79 = arith.mulf %74, %78 : vector<62x62xf32>
    %cst_37 = arith.constant dense<0.000000e+00> : vector<62x8xf32>
    %80 = tpu.matmul %79, %64, %cst_37 {dimension_numbers = #tpu.dot_dimension_numbers<[1], [0], [0], [1], [0, 0, 1, 1], [], []>} : vector<62x62xf32>, vector<62x8xf32>, vector<62x8xf32> -> vector<62x8xf32>
    %81 = vector.extract_strided_slice %38 {offsets = [8, 0], sizes = [8, 32], strides = [1, 1]} : vector<32x32xf32> to vector<8x32xf32>
    %cst_38 = arith.constant dense<0.000000e+00> : vector<62x32xf32>
    %82 = tpu.matmul %80, %81, %cst_38 {dimension_numbers = #tpu.dot_dimension_numbers<[1], [0], [0], [1], [0, 0, 1, 1], [], []>} : vector<62x8xf32>, vector<8x32xf32>, vector<62x32xf32> -> vector<62x32xf32>
    %83 = arith.addf %61, %82 : vector<62x32xf32>
    %84 = vector.extract_strided_slice %36 {offsets = [0, 16], sizes = [62, 8], strides = [1, 1]} : vector<62x96xf32> to vector<62x8xf32>
    %85 = vector.extract_strided_slice %36 {offsets = [0, 48], sizes = [62, 8], strides = [1, 1]} : vector<62x96xf32> to vector<62x8xf32>
    %86 = vector.extract_strided_slice %36 {offsets = [0, 80], sizes = [62, 8], strides = [1, 1]} : vector<62x96xf32> to vector<62x8xf32>
    %cst_39 = arith.constant dense<0.000000e+00> : vector<62x62xf32>
    %87 = tpu.matmul %84, %85, %cst_39 {dimension_numbers = #tpu.dot_dimension_numbers<[1], [1], [0], [0], [0, 0, 1, 0], [], []>} : vector<62x8xf32>, vector<62x8xf32>, vector<62x62xf32> -> vector<62x62xf32>
    %cst_40 = arith.constant 0.353553385 : f32
    %88 = vector.broadcast %cst_40 : f32 to vector<62x62xf32>
    %89 = arith.mulf %87, %88 : vector<62x62xf32>
    %c0_41 = arith.constant 0 : index
    %c0_42 = arith.constant 0 : index
    %90 = vector.load %arg18[%c0_41, %c0_42] : memref<62x62xf32, #tpu.memory_space<vmem>>, vector<62x62xf32>
    %91 = arith.addf %89, %90 : vector<62x62xf32>
    %cst_43 = arith.constant dense<0xFF800000> : vector<62xf32>
    %92 = vector.multi_reduction <maximumf>, %91, %cst_43 [1] : vector<62x62xf32> to vector<62xf32>
    %93 = vector.shape_cast %92 : vector<62xf32> to vector<62x1xf32>
    %94 = vector.broadcast %93 : vector<62x1xf32> to vector<62x62xf32>
    %95 = arith.subf %91, %94 : vector<62x62xf32>
    %96 = math.exp %95 : vector<62x62xf32>
    %cst_44 = arith.constant dense<0.000000e+00> : vector<62xf32>
    %97 = vector.multi_reduction <add>, %96, %cst_44 [1] : vector<62x62xf32> to vector<62xf32>
    %98 = vector.shape_cast %97 : vector<62xf32> to vector<62x1xf32>
    %99 = tpu.reciprocal %98 {approx = true} : vector<62x1xf32> -> vector<62x1xf32>
    %100 = vector.broadcast %99 : vector<62x1xf32> to vector<62x62xf32>
    %101 = arith.mulf %96, %100 : vector<62x62xf32>
    %cst_45 = arith.constant dense<0.000000e+00> : vector<62x8xf32>
    %102 = tpu.matmul %101, %86, %cst_45 {dimension_numbers = #tpu.dot_dimension_numbers<[1], [0], [0], [1], [0, 0, 1, 1], [], []>} : vector<62x62xf32>, vector<62x8xf32>, vector<62x8xf32> -> vector<62x8xf32>
    %103 = vector.extract_strided_slice %38 {offsets = [16, 0], sizes = [8, 32], strides = [1, 1]} : vector<32x32xf32> to vector<8x32xf32>
    %cst_46 = arith.constant dense<0.000000e+00> : vector<62x32xf32>
    %104 = tpu.matmul %102, %103, %cst_46 {dimension_numbers = #tpu.dot_dimension_numbers<[1], [0], [0], [1], [0, 0, 1, 1], [], []>} : vector<62x8xf32>, vector<8x32xf32>, vector<62x32xf32> -> vector<62x32xf32>
    %105 = arith.addf %83, %104 : vector<62x32xf32>
    %106 = vector.extract_strided_slice %36 {offsets = [0, 24], sizes = [62, 8], strides = [1, 1]} : vector<62x96xf32> to vector<62x8xf32>
    %107 = vector.extract_strided_slice %36 {offsets = [0, 56], sizes = [62, 8], strides = [1, 1]} : vector<62x96xf32> to vector<62x8xf32>
    %108 = vector.extract_strided_slice %36 {offsets = [0, 88], sizes = [62, 8], strides = [1, 1]} : vector<62x96xf32> to vector<62x8xf32>
    %cst_47 = arith.constant dense<0.000000e+00> : vector<62x62xf32>
    %109 = tpu.matmul %106, %107, %cst_47 {dimension_numbers = #tpu.dot_dimension_numbers<[1], [1], [0], [0], [0, 0, 1, 0], [], []>} : vector<62x8xf32>, vector<62x8xf32>, vector<62x62xf32> -> vector<62x62xf32>
    %cst_48 = arith.constant 0.353553385 : f32
    %110 = vector.broadcast %cst_48 : f32 to vector<62x62xf32>
    %111 = arith.mulf %109, %110 : vector<62x62xf32>
    %c0_49 = arith.constant 0 : index
    %c0_50 = arith.constant 0 : index
    %112 = vector.load %arg18[%c0_49, %c0_50] : memref<62x62xf32, #tpu.memory_space<vmem>>, vector<62x62xf32>
    %113 = arith.addf %111, %112 : vector<62x62xf32>
    %cst_51 = arith.constant dense<0xFF800000> : vector<62xf32>
    %114 = vector.multi_reduction <maximumf>, %113, %cst_51 [1] : vector<62x62xf32> to vector<62xf32>
    %115 = vector.shape_cast %114 : vector<62xf32> to vector<62x1xf32>
    %116 = vector.broadcast %115 : vector<62x1xf32> to vector<62x62xf32>
    %117 = arith.subf %113, %116 : vector<62x62xf32>
    %118 = math.exp %117 : vector<62x62xf32>
    %cst_52 = arith.constant dense<0.000000e+00> : vector<62xf32>
    %119 = vector.multi_reduction <add>, %118, %cst_52 [1] : vector<62x62xf32> to vector<62xf32>
    %120 = vector.shape_cast %119 : vector<62xf32> to vector<62x1xf32>
    %121 = tpu.reciprocal %120 {approx = true} : vector<62x1xf32> -> vector<62x1xf32>
    %122 = vector.broadcast %121 : vector<62x1xf32> to vector<62x62xf32>
    %123 = arith.mulf %118, %122 : vector<62x62xf32>
    %cst_53 = arith.constant dense<0.000000e+00> : vector<62x8xf32>
    %124 = tpu.matmul %123, %108, %cst_53 {dimension_numbers = #tpu.dot_dimension_numbers<[1], [0], [0], [1], [0, 0, 1, 1], [], []>} : vector<62x62xf32>, vector<62x8xf32>, vector<62x8xf32> -> vector<62x8xf32>
    %125 = vector.extract_strided_slice %38 {offsets = [24, 0], sizes = [8, 32], strides = [1, 1]} : vector<32x32xf32> to vector<8x32xf32>
    %cst_54 = arith.constant dense<0.000000e+00> : vector<62x32xf32>
    %126 = tpu.matmul %124, %125, %cst_54 {dimension_numbers = #tpu.dot_dimension_numbers<[1], [0], [0], [1], [0, 0, 1, 1], [], []>} : vector<62x8xf32>, vector<8x32xf32>, vector<62x32xf32> -> vector<62x32xf32>
    %127 = arith.addf %105, %126 : vector<62x32xf32>
    %128 = arith.addf %3, %127 : vector<62x32xf32>
    %c0_55 = arith.constant 0 : index
    %c0_56 = arith.constant 0 : index
    %c0_57 = arith.constant 0 : index
    %129 = vector.load %arg25[%c0_55, %c0_56, %c0_57] : memref<1x1x32xf32, #tpu.memory_space<vmem>>, vector<1x1x32xf32>
    %130 = vector.shape_cast %129 : vector<1x1x32xf32> to vector<1x32xf32>
    %131 = vector.broadcast %130 : vector<1x32xf32> to vector<62x32xf32>
    %132 = arith.addf %128, %131 : vector<62x32xf32>
    %c0_58 = arith.constant 0 : index
    %c0_59 = arith.constant 0 : index
    %c0_60 = arith.constant 0 : index
    %133 = vector.load %arg26[%c0_58, %c0_59, %c0_60] : memref<1x1x32xf32, #tpu.memory_space<vmem>>, vector<1x1x32xf32>
    %134 = vector.shape_cast %133 : vector<1x1x32xf32> to vector<1x32xf32>
    %c0_61 = arith.constant 0 : index
    %c0_62 = arith.constant 0 : index
    %c0_63 = arith.constant 0 : index
    %135 = vector.load %arg27[%c0_61, %c0_62, %c0_63] : memref<1x1x32xf32, #tpu.memory_space<vmem>>, vector<1x1x32xf32>
    %136 = vector.shape_cast %135 : vector<1x1x32xf32> to vector<1x32xf32>
    %cst_64 = arith.constant dense<0.000000e+00> : vector<62xf32>
    %137 = vector.multi_reduction <add>, %132, %cst_64 [1] : vector<62x32xf32> to vector<62xf32>
    %138 = vector.shape_cast %137 : vector<62xf32> to vector<62x1xf32>
    %cst_65 = arith.constant 3.200000e+01 : f32
    %139 = vector.broadcast %cst_65 : f32 to vector<62x1xf32>
    %140 = arith.divf %138, %139 : vector<62x1xf32>
    %141 = vector.broadcast %140 : vector<62x1xf32> to vector<62x32xf32>
    %142 = arith.subf %132, %141 : vector<62x32xf32>
    %143 = arith.mulf %142, %142 : vector<62x32xf32>
    %cst_66 = arith.constant dense<0.000000e+00> : vector<62xf32>
    %144 = vector.multi_reduction <add>, %143, %cst_66 [1] : vector<62x32xf32> to vector<62xf32>
    %145 = vector.shape_cast %144 : vector<62xf32> to vector<62x1xf32>
    %cst_67 = arith.constant 3.200000e+01 : f32
    %146 = vector.broadcast %cst_67 : f32 to vector<62x1xf32>
    %147 = arith.divf %145, %146 : vector<62x1xf32>
    %148 = vector.broadcast %140 : vector<62x1xf32> to vector<62x32xf32>
    %149 = arith.subf %132, %148 : vector<62x32xf32>
    %cst_68 = arith.constant 9.99999974E-6 : f32
    %150 = vector.broadcast %cst_68 : f32 to vector<62x1xf32>
    %151 = arith.addf %147, %150 : vector<62x1xf32>
    %152 = math.rsqrt %151 : vector<62x1xf32>
    %153 = vector.broadcast %152 : vector<62x1xf32> to vector<62x32xf32>
    %154 = arith.mulf %149, %153 : vector<62x32xf32>
    %155 = vector.broadcast %134 : vector<1x32xf32> to vector<62x32xf32>
    %156 = arith.mulf %154, %155 : vector<62x32xf32>
    %157 = vector.broadcast %136 : vector<1x32xf32> to vector<62x32xf32>
    %158 = arith.addf %156, %157 : vector<62x32xf32>
    %c0_69 = arith.constant 0 : index
    %c0_70 = arith.constant 0 : index
    %c0_71 = arith.constant 0 : index
    %159 = vector.load %arg28[%c0_69, %c0_70, %c0_71] : memref<1x32x64xf32, #tpu.memory_space<vmem>>, vector<1x32x64xf32>
    %160 = vector.shape_cast %159 : vector<1x32x64xf32> to vector<32x64xf32>
    %cst_72 = arith.constant dense<0.000000e+00> : vector<62x64xf32>
    %161 = tpu.matmul %158, %160, %cst_72 {dimension_numbers = #tpu.dot_dimension_numbers<[1], [0], [0], [1], [0, 0, 1, 1], [], []>} : vector<62x32xf32>, vector<32x64xf32>, vector<62x64xf32> -> vector<62x64xf32>
    %c0_73 = arith.constant 0 : index
    %c0_74 = arith.constant 0 : index
    %c0_75 = arith.constant 0 : index
    %162 = vector.load %arg29[%c0_73, %c0_74, %c0_75] : memref<1x1x64xf32, #tpu.memory_space<vmem>>, vector<1x1x64xf32>
    %163 = vector.shape_cast %162 : vector<1x1x64xf32> to vector<1x64xf32>
    %164 = vector.broadcast %163 : vector<1x64xf32> to vector<62x64xf32>
    %165 = arith.addf %161, %164 : vector<62x64xf32>
    %166 = arith.mulf %165, %165 : vector<62x64xf32>
    %167 = arith.mulf %165, %166 : vector<62x64xf32>
    %cst_76 = arith.constant 4.471500e-02 : f32
    %168 = vector.broadcast %cst_76 : f32 to vector<62x64xf32>
    %169 = arith.mulf %168, %167 : vector<62x64xf32>
    %170 = arith.addf %165, %169 : vector<62x64xf32>
    %cst_77 = arith.constant 0.797884583 : f32
    %171 = vector.broadcast %cst_77 : f32 to vector<62x64xf32>
    %172 = arith.mulf %171, %170 : vector<62x64xf32>
    %173 = math.tanh %172 : vector<62x64xf32>
    %cst_78 = arith.constant 1.000000e+00 : f32
    %174 = vector.broadcast %cst_78 : f32 to vector<62x64xf32>
    %175 = arith.addf %174, %173 : vector<62x64xf32>
    %cst_79 = arith.constant 5.000000e-01 : f32
    %176 = vector.broadcast %cst_79 : f32 to vector<62x64xf32>
    %177 = arith.mulf %176, %175 : vector<62x64xf32>
    %178 = arith.mulf %165, %177 : vector<62x64xf32>
    %c0_80 = arith.constant 0 : index
    %c0_81 = arith.constant 0 : index
    %c0_82 = arith.constant 0 : index
    %179 = vector.load %arg30[%c0_80, %c0_81, %c0_82] : memref<1x64x32xf32, #tpu.memory_space<vmem>>, vector<1x64x32xf32>
    %180 = vector.shape_cast %179 : vector<1x64x32xf32> to vector<64x32xf32>
    %cst_83 = arith.constant dense<0.000000e+00> : vector<62x32xf32>
    %181 = tpu.matmul %178, %180, %cst_83 {dimension_numbers = #tpu.dot_dimension_numbers<[1], [0], [0], [1], [0, 0, 1, 1], [], []>} : vector<62x64xf32>, vector<64x32xf32>, vector<62x32xf32> -> vector<62x32xf32>
    %182 = arith.addf %132, %181 : vector<62x32xf32>
    %c0_84 = arith.constant 0 : index
    %c0_85 = arith.constant 0 : index
    %c0_86 = arith.constant 0 : index
    %183 = vector.load %arg31[%c0_84, %c0_85, %c0_86] : memref<1x1x32xf32, #tpu.memory_space<vmem>>, vector<1x1x32xf32>
    %184 = vector.shape_cast %183 : vector<1x1x32xf32> to vector<1x32xf32>
    %185 = vector.broadcast %184 : vector<1x32xf32> to vector<62x32xf32>
    %186 = arith.addf %182, %185 : vector<62x32xf32>
    %c0_87 = arith.constant 0 : index
    %c0_88 = arith.constant 0 : index
    %187 = vector.load %arg39[%c0_87, %c0_88] : memref<62x32xf32, #tpu.memory_space<vmem>>, vector<62x32xf32>
    tpu.vector_store %arg39[%c0_87, %c0_88], %186 {strides = array<i32>} : memref<62x32xf32, #tpu.memory_space<vmem>>, vector<62x32xf32>,
    %c1_i32 = arith.constant 1 : i32
    %188 = arith.cmpi eq, %arg0, %c1_i32 : i32
    %189 = arith.extui %188 : i1 to i32
    %c0_i32_89 = arith.constant 0 : i32
    %190 = arith.cmpi ne, %189, %c0_i32_89 : i32
    scf.if %190 {
      %c0_90 = arith.constant 0 : index
      %c0_91 = arith.constant 0 : index
      %191 = vector.load %arg39[%c0_90, %c0_91] : memref<62x32xf32, #tpu.memory_space<vmem>>, vector<62x32xf32>
      %c0_92 = arith.constant 0 : index
      %c0_93 = arith.constant 0 : index
      %192 = vector.load %arg32[%c0_92, %c0_93] : memref<1x32xf32, #tpu.memory_space<vmem>>, vector<1x32xf32>
      %c0_94 = arith.constant 0 : index
      %c0_95 = arith.constant 0 : index
      %193 = vector.load %arg33[%c0_94, %c0_95] : memref<1x32xf32, #tpu.memory_space<vmem>>, vector<1x32xf32>
      %cst_96 = arith.constant dense<0.000000e+00> : vector<62xf32>
      %194 = vector.multi_reduction <add>, %191, %cst_96 [1] : vector<62x32xf32> to vector<62xf32>
      %195 = vector.shape_cast %194 : vector<62xf32> to vector<62x1xf32>
      %cst_97 = arith.constant 3.200000e+01 : f32
      %196 = vector.broadcast %cst_97 : f32 to vector<62x1xf32>
      %197 = arith.divf %195, %196 : vector<62x1xf32>
      %198 = vector.broadcast %197 : vector<62x1xf32> to vector<62x32xf32>
      %199 = arith.subf %191, %198 : vector<62x32xf32>
      %200 = arith.mulf %199, %199 : vector<62x32xf32>
      %cst_98 = arith.constant dense<0.000000e+00> : vector<62xf32>
      %201 = vector.multi_reduction <add>, %200, %cst_98 [1] : vector<62x32xf32> to vector<62xf32>
      %202 = vector.shape_cast %201 : vector<62xf32> to vector<62x1xf32>
      %cst_99 = arith.constant 3.200000e+01 : f32
      %203 = vector.broadcast %cst_99 : f32 to vector<62x1xf32>
      %204 = arith.divf %202, %203 : vector<62x1xf32>
      %205 = vector.broadcast %197 : vector<62x1xf32> to vector<62x32xf32>
      %206 = arith.subf %191, %205 : vector<62x32xf32>
      %cst_100 = arith.constant 9.99999974E-6 : f32
      %207 = vector.broadcast %cst_100 : f32 to vector<62x1xf32>
      %208 = arith.addf %204, %207 : vector<62x1xf32>
      %209 = math.rsqrt %208 : vector<62x1xf32>
      %210 = vector.broadcast %209 : vector<62x1xf32> to vector<62x32xf32>
      %211 = arith.mulf %206, %210 : vector<62x32xf32>
      %212 = vector.broadcast %192 : vector<1x32xf32> to vector<62x32xf32>
      %213 = arith.mulf %211, %212 : vector<62x32xf32>
      %214 = vector.broadcast %193 : vector<1x32xf32> to vector<62x32xf32>
      %215 = arith.addf %213, %214 : vector<62x32xf32>
      %c0_101 = arith.constant 0 : index
      %c0_102 = arith.constant 0 : index
      %216 = vector.load %arg19[%c0_101, %c0_102] : memref<2x62xf32, #tpu.memory_space<vmem>>, vector<2x62xf32>
      %cst_103 = arith.constant dense<0.000000e+00> : vector<2x32xf32>
      %217 = tpu.matmul %216, %215, %cst_103 {dimension_numbers = #tpu.dot_dimension_numbers<[1], [0], [0], [1], [0, 0, 1, 1], [], []>} : vector<2x62xf32>, vector<62x32xf32>, vector<2x32xf32> -> vector<2x32xf32>
      %c0_104 = arith.constant 0 : index
      %c0_105 = arith.constant 0 : index
      %218 = vector.load %arg34[%c0_104, %c0_105] : memref<32x256xf32, #tpu.memory_space<vmem>>, vector<32x256xf32>
      %cst_106 = arith.constant dense<0.000000e+00> : vector<2x256xf32>
      %219 = tpu.matmul %217, %218, %cst_106 {dimension_numbers = #tpu.dot_dimension_numbers<[1], [0], [0], [1], [0, 0, 1, 1], [], []>} : vector<2x32xf32>, vector<32x256xf32>, vector<2x256xf32> -> vector<2x256xf32>
      %c0_107 = arith.constant 0 : index
      %c0_108 = arith.constant 0 : index
      %220 = vector.load %arg35[%c0_107, %c0_108] : memref<1x256xf32, #tpu.memory_space<vmem>>, vector<1x256xf32>
      %221 = vector.broadcast %220 : vector<1x256xf32> to vector<2x256xf32>
      %222 = arith.addf %219, %221 : vector<2x256xf32>
      %c0_109 = arith.constant 0 : index
      %c0_110 = arith.constant 0 : index
      %223 = vector.load %arg36[%c0_109, %c0_110] : memref<256x6xf32, #tpu.memory_space<vmem>>, vector<256x6xf32>
      %cst_111 = arith.constant dense<0.000000e+00> : vector<2x6xf32>
      %224 = tpu.matmul %222, %223, %cst_111 {dimension_numbers = #tpu.dot_dimension_numbers<[1], [0], [0], [1], [0, 0, 1, 1], [], []>} : vector<2x256xf32>, vector<256x6xf32>, vector<2x6xf32> -> vector<2x6xf32>
      %c0_112 = arith.constant 0 : index
      %c0_113 = arith.constant 0 : index
      %225 = vector.load %arg37[%c0_112, %c0_113] : memref<1x6xf32, #tpu.memory_space<vmem>>, vector<1x6xf32>
      %226 = vector.broadcast %225 : vector<1x6xf32> to vector<2x6xf32>
      %227 = arith.addf %224, %226 : vector<2x6xf32>
      %c0_114 = arith.constant 0 : index
      %c0_115 = arith.constant 0 : index
      %228 = vector.load %arg38[%c0_114, %c0_115] : memref<2x6xf32, #tpu.memory_space<vmem>>, vector<2x6xf32>
      tpu.vector_store %arg38[%c0_114, %c0_115], %227 {strides = array<i32>} : memref<2x6xf32, #tpu.memory_space<vmem>>, vector<2x6xf32>,
    } else {
    }
    return
  }
  func.func @transform_0(%arg0: i32) -> (i32, i32) {
    %c0_i32 = arith.constant 0 : i32
    %c0_i32_0 = arith.constant 0 : i32
    %c0_i32_1 = arith.constant 0 : i32
    return %c0_i32, %c0_i32_0 : i32, i32
  }
  func.func @transform_1(%arg0: i32) -> (i32, i32) {
    %c0_i32 = arith.constant 0 : i32
    %c0_i32_0 = arith.constant 0 : i32
    %c0_i32_1 = arith.constant 0 : i32
    return %c0_i32, %c0_i32_0 : i32, i32
  }
  func.func @transform_2(%arg0: i32) -> (i32, i32) {
    %c0_i32 = arith.constant 0 : i32
    %c0_i32_0 = arith.constant 0 : i32
    %c0_i32_1 = arith.constant 0 : i32
    return %c0_i32, %c0_i32_0 : i32, i32
  }
  func.func @transform_3(%arg0: i32) -> (i32, i32) {
    %c0_i32 = arith.constant 0 : i32
    %c0_i32_0 = arith.constant 0 : i32
    %c0_i32_1 = arith.constant 0 : i32
    return %c0_i32, %c0_i32_0 : i32, i32
  }
  func.func @transform_4(%arg0: i32) -> (i32, i32) {
    %c0_i32 = arith.constant 0 : i32
    %c0_i32_0 = arith.constant 0 : i32
    %c0_i32_1 = arith.constant 0 : i32
    return %c0_i32, %c0_i32_0 : i32, i32
  }
  func.func @transform_5(%arg0: i32) -> (i32, i32, i32) {
    %c0_i32 = arith.constant 0 : i32
    %c0_i32_0 = arith.constant 0 : i32
    %c0_i32_1 = arith.constant 0 : i32
    %c0_i32_2 = arith.constant 0 : i32
    return %c0_i32, %c0_i32_0, %c0_i32_1 : i32, i32, i32
  }
  func.func @transform_6(%arg0: i32) -> (i32, i32) {
    %c0_i32 = arith.constant 0 : i32
    %c0_i32_0 = arith.constant 0 : i32
    %c0_i32_1 = arith.constant 0 : i32
    return %c0_i32, %c0_i32_0 : i32, i32
  }
  func.func @transform_7(%arg0: i32) -> (i32, i32) {
    %c0_i32 = arith.constant 0 : i32
    %c0_i32_0 = arith.constant 0 : i32
    %c0_i32_1 = arith.constant 0 : i32
    return %c0_i32, %c0_i32_0 : i32, i32
  }
  func.func @transform_8(%arg0: i32) -> (i32, i32) {
    %c0_i32 = arith.constant 0 : i32
    %c0_i32_0 = arith.constant 0 : i32
    %c0_i32_1 = arith.constant 0 : i32
    return %c0_i32, %c0_i32_0 : i32, i32
  }
  func.func @transform_9(%arg0: i32) -> (i32, i32) {
    %c0_i32 = arith.constant 0 : i32
    %c0_i32_0 = arith.constant 0 : i32
    %c0_i32_1 = arith.constant 0 : i32
    return %c0_i32, %c0_i32_0 : i32, i32
  }
  func.func @transform_10(%arg0: i32) -> (i32, i32) {
    %c0_i32 = arith.constant 0 : i32
    %c0_i32_0 = arith.constant 0 : i32
    %c0_i32_1 = arith.constant 0 : i32
    return %c0_i32, %c0_i32_0 : i32, i32
  }
  func.func @transform_11(%arg0: i32) -> (i32, i32) {
    %c0_i32 = arith.constant 0 : i32
    %c0_i32_0 = arith.constant 0 : i32
    %c0_i32_1 = arith.constant 0 : i32
    return %c0_i32, %c0_i32_0 : i32, i32
  }
  func.func @transform_12(%arg0: i32) -> (i32, i32) {
    %c0_i32 = arith.constant 0 : i32
    %c0_i32_0 = arith.constant 0 : i32
    %c0_i32_1 = arith.constant 0 : i32
    return %c0_i32, %c0_i32_0 : i32, i32
  }
  func.func @transform_13(%arg0: i32) -> (i32, i32) {
    %c0_i32 = arith.constant 0 : i32
    %c0_i32_0 = arith.constant 0 : i32
    %c0_i32_1 = arith.constant 0 : i32
    return %c0_i32, %c0_i32_0 : i32, i32
  }
  func.func @transform_14(%arg0: i32) -> (i32, i32, i32) {
    %c0_i32 = arith.constant 0 : i32
    %c0_i32_0 = arith.constant 0 : i32
    %c0_i32_1 = arith.constant 0 : i32
    %c0_i32_2 = arith.constant 0 : i32
    return %c0_i32, %c0_i32_0, %c0_i32_1 : i32, i32, i32
  }
  func.func @transform_15(%arg0: i32) -> (i32, i32) {
    %c0_i32 = arith.constant 0 : i32
    %c0_i32_0 = arith.constant 0 : i32
    %c0_i32_1 = arith.constant 0 : i32
    return %c0_i32, %c0_i32_0 : i32, i32
  }
  func.func @transform_16(%arg0: i32) -> (i32, i32) {
    %c0_i32 = arith.constant 0 : i32
    %c0_i32_0 = arith.constant 0 : i32
    %c0_i32_1 = arith.constant 0 : i32
    return %c0_i32, %c0_i32_0 : i32, i32
  }
  func.func @transform_17(%arg0: i32) -> (i32, i32) {
    %c0_i32 = arith.constant 0 : i32
    %c0_i32_0 = arith.constant 0 : i32
    %c0_i32_1 = arith.constant 0 : i32
    return %c0_i32, %c0_i32_0 : i32, i32
  }
  func.func @transform_18(%arg0: i32) -> (i32, i32) {
    %c0_i32 = arith.constant 0 : i32
    %c0_i32_0 = arith.constant 0 : i32
    %c0_i32_1 = arith.constant 0 : i32
    return %c0_i32, %c0_i32_0 : i32, i32
  }
  func.func @transform_19(%arg0: i32) -> (i32, i32, i32) {
    %c0_i32 = arith.constant 0 : i32
    %c0_i32_0 = arith.constant 0 : i32
    %c0_i32_1 = arith.constant 0 : i32
    return %arg0, %c0_i32, %c0_i32_0 : i32, i32, i32
  }
  func.func @transform_20(%arg0: i32) -> (i32, i32, i32) {
    %c0_i32 = arith.constant 0 : i32
    %c0_i32_0 = arith.constant 0 : i32
    %c0_i32_1 = arith.constant 0 : i32
    return %arg0, %c0_i32, %c0_i32_0 : i32, i32, i32
  }
  func.func @transform_21(%arg0: i32) -> (i32, i32, i32) {
    %c0_i32 = arith.constant 0 : i32
    %c0_i32_0 = arith.constant 0 : i32
    %c0_i32_1 = arith.constant 0 : i32
    return %arg0, %c0_i32, %c0_i32_0 : i32, i32, i32
  }
  func.func @transform_22(%arg0: i32) -> (i32, i32, i32) {
    %c0_i32 = arith.constant 0 : i32
    %c0_i32_0 = arith.constant 0 : i32
    %c0_i32_1 = arith.constant 0 : i32
    return %arg0, %c0_i32, %c0_i32_0 : i32, i32, i32
  }
  func.func @transform_23(%arg0: i32) -> (i32, i32, i32) {
    %c0_i32 = arith.constant 0 : i32
    %c0_i32_0 = arith.constant 0 : i32
    %c0_i32_1 = arith.constant 0 : i32
    return %arg0, %c0_i32, %c0_i32_0 : i32, i32, i32
  }
  func.func @transform_24(%arg0: i32) -> (i32, i32, i32) {
    %c0_i32 = arith.constant 0 : i32
    %c0_i32_0 = arith.constant 0 : i32
    %c0_i32_1 = arith.constant 0 : i32
    return %arg0, %c0_i32, %c0_i32_0 : i32, i32, i32
  }
  func.func @transform_25(%arg0: i32) -> (i32, i32, i32) {
    %c0_i32 = arith.constant 0 : i32
    %c0_i32_0 = arith.constant 0 : i32
    %c0_i32_1 = arith.constant 0 : i32
    return %arg0, %c0_i32, %c0_i32_0 : i32, i32, i32
  }
  func.func @transform_26(%arg0: i32) -> (i32, i32, i32) {
    %c0_i32 = arith.constant 0 : i32
    %c0_i32_0 = arith.constant 0 : i32
    %c0_i32_1 = arith.constant 0 : i32
    return %arg0, %c0_i32, %c0_i32_0 : i32, i32, i32
  }
  func.func @transform_27(%arg0: i32) -> (i32, i32, i32) {
    %c0_i32 = arith.constant 0 : i32
    %c0_i32_0 = arith.constant 0 : i32
    %c0_i32_1 = arith.constant 0 : i32
    return %arg0, %c0_i32, %c0_i32_0 : i32, i32, i32
  }
  func.func @transform_28(%arg0: i32) -> (i32, i32, i32) {
    %c0_i32 = arith.constant 0 : i32
    %c0_i32_0 = arith.constant 0 : i32
    %c0_i32_1 = arith.constant 0 : i32
    return %arg0, %c0_i32, %c0_i32_0 : i32, i32, i32
  }
  func.func @transform_29(%arg0: i32) -> (i32, i32, i32) {
    %c0_i32 = arith.constant 0 : i32
    %c0_i32_0 = arith.constant 0 : i32
    %c0_i32_1 = arith.constant 0 : i32
    return %arg0, %c0_i32, %c0_i32_0 : i32, i32, i32
  }
  func.func @transform_30(%arg0: i32) -> (i32, i32, i32) {
    %c0_i32 = arith.constant 0 : i32
    %c0_i32_0 = arith.constant 0 : i32
    %c0_i32_1 = arith.constant 0 : i32
    return %arg0, %c0_i32, %c0_i32_0 : i32, i32, i32
  }
  func.func @transform_31(%arg0: i32) -> (i32, i32) {
    %c0_i32 = arith.constant 0 : i32
    %c0_i32_0 = arith.constant 0 : i32
    %c0_i32_1 = arith.constant 0 : i32
    return %c0_i32, %c0_i32_0 : i32, i32
  }
  func.func @transform_32(%arg0: i32) -> (i32, i32) {
    %c0_i32 = arith.constant 0 : i32
    %c0_i32_0 = arith.constant 0 : i32
    %c0_i32_1 = arith.constant 0 : i32
    return %c0_i32, %c0_i32_0 : i32, i32
  }
  func.func @transform_33(%arg0: i32) -> (i32, i32) {
    %c0_i32 = arith.constant 0 : i32
    %c0_i32_0 = arith.constant 0 : i32
    %c0_i32_1 = arith.constant 0 : i32
    return %c0_i32, %c0_i32_0 : i32, i32
  }
  func.func @transform_34(%arg0: i32) -> (i32, i32) {
    %c0_i32 = arith.constant 0 : i32
    %c0_i32_0 = arith.constant 0 : i32
    %c0_i32_1 = arith.constant 0 : i32
    return %c0_i32, %c0_i32_0 : i32, i32
  }
  func.func @transform_35(%arg0: i32) -> (i32, i32) {
    %c0_i32 = arith.constant 0 : i32
    %c0_i32_0 = arith.constant 0 : i32
    %c0_i32_1 = arith.constant 0 : i32
    return %c0_i32, %c0_i32_0 : i32, i32
  }
  func.func @transform_36(%arg0: i32) -> (i32, i32) {
    %c0_i32 = arith.constant 0 : i32
    %c0_i32_0 = arith.constant 0 : i32
    %c0_i32_1 = arith.constant 0 : i32
    return %c0_i32, %c0_i32_0 : i32, i32
  }
  func.func @transform_37(%arg0: i32) -> (i32, i32) {
    %c0_i32 = arith.constant 0 : i32
    %c0_i32_0 = arith.constant 0 : i32
    %c0_i32_1 = arith.constant 0 : i32
    return %c0_i32, %c0_i32_0 : i32, i32
  }
}

</mosaic_0001>

<llo_original>
// kernel: base_model_forward.1
$region0: #{base_model_forward.1}
  #allocation0 [shape = 'u32[]', space=smem, size = 0x4, offset = 0x4, fixed_abs, tag = 'smem constant byte address 0x4 - core index']
  #allocation1 [shape = 'u32[144,128]{1,0:T(1,128)}', space=vmem, size = 0x12000, scoped, tag = 'internal scratch']
  #allocation2 [shape = 'f32[62,32]{1,0:T(8,128)}', space=vmem, size = 0x8000, scoped, tag = 'scratch operand']
  %s0 = inlined_call_operand.smem [shape: u32[38], index: -1, kind: input, shape index: {}]
  %s1 = sld [smem:[%s0]]
  %s2 = scalar_lea.smem %s0, 1
  %s3 = sld [smem:[%s2]]
  %s4 = scalar_lea.smem %s0, 2
  %s5 = sld [smem:[%s4]]
  %s6 = scalar_lea.smem %s0, 3
  %s7 = sld [smem:[%s6]]
  %s8 = scalar_lea.smem %s0, 4
  %s9 = sld [smem:[%s8]]
  %s10 = scalar_lea.smem %s0, 5
  %s11 = sld [smem:[%s10]]
  %s12 = scalar_lea.smem %s0, 6
  %s13 = sld [smem:[%s12]]
  %s14 = scalar_lea.smem %s0, 7
  %s15 = sld [smem:[%s14]]
  %s16 = scalar_lea.smem %s0, 8
  %s17 = sld [smem:[%s16]]
  %s18 = scalar_lea.smem %s0, 9
  %s19 = sld [smem:[%s18]]
  %s20 = scalar_lea.smem %s0, 10
  %s21 = sld [smem:[%s20]]
  %s22 = scalar_lea.smem %s0, 11
  %s23 = sld [smem:[%s22]]
  %s24 = scalar_lea.smem %s0, 12
  %s25 = sld [smem:[%s24]]
  %s26 = scalar_lea.smem %s0, 13
  %s27 = sld [smem:[%s26]]
  %s28 = scalar_lea.smem %s0, 14
  %s29 = sld [smem:[%s28]]
  %s30 = scalar_lea.smem %s0, 15
  %s31 = sld [smem:[%s30]]
  %s32 = scalar_lea.smem %s0, 16
  %s33 = sld [smem:[%s32]]
  %s34 = scalar_lea.smem %s0, 17
  %s35 = sld [smem:[%s34]]
  %s36 = scalar_lea.smem %s0, 18
  %s37 = sld [smem:[%s36]]
  %s38 = scalar_lea.smem %s0, 19
  %s39 = sld [smem:[%s38]]
  %s40 = scalar_lea.smem %s0, 20
  %s41 = sld [smem:[%s40]]
  %s42 = scalar_lea.smem %s0, 21
  %s43 = sld [smem:[%s42]]
  %s44 = scalar_lea.smem %s0, 22
  %s45 = sld [smem:[%s44]]
  %s46 = scalar_lea.smem %s0, 23
  %s47 = sld [smem:[%s46]]
  %s48 = scalar_lea.smem %s0, 24
  %s49 = sld [smem:[%s48]]
  %s50 = scalar_lea.smem %s0, 25
  %s51 = sld [smem:[%s50]]
  %s52 = scalar_lea.smem %s0, 26
  %s53 = sld [smem:[%s52]]
  %s54 = scalar_lea.smem %s0, 27
  %s55 = sld [smem:[%s54]]
  %s56 = scalar_lea.smem %s0, 28
  %s57 = sld [smem:[%s56]]
  %s58 = scalar_lea.smem %s0, 29
  %s59 = sld [smem:[%s58]]
  %s60 = scalar_lea.smem %s0, 30
  %s61 = sld [smem:[%s60]]
  %s62 = scalar_lea.smem %s0, 31
  %s63 = sld [smem:[%s62]]
  %s64 = scalar_lea.smem %s0, 32
  %s65 = sld [smem:[%s64]]
  %s66 = scalar_lea.smem %s0, 33
  %s67 = sld [smem:[%s66]]
  %s68 = scalar_lea.smem %s0, 34
  %s69 = sld [smem:[%s68]]
  %s70 = scalar_lea.smem %s0, 35
  %s71 = sld [smem:[%s70]]
  %s72 = scalar_lea.smem %s0, 36
  %s73 = sld [smem:[%s72]]
  %s74 = scalar_lea.smem %s0, 37
  %s75 = sld [smem:[%s74]]
  %s76 = sld [smem:[#allocation0]]
  $region189: #{base_model_forward.1} parent=0
    _
  %s78 = ssub.s32 1, %s76
  %s79 = scalar_select 0, %s78, %s76
  $region1: #{base_model_forward.1} parent=0
    #allocation3 [shape = 'u8[1024]{0}', space=vmem, size = 0x400, scoped, tag = 'output window, operand 0, single buffered']
    #allocation4 [shape = 's32[2]{0}', space=sflag, size = 0x8, scoped, tag = 'scoped memory for base_model_forward.1']
    %80 = vsyncpa [#allocation4], 0
    loop: start=0, step=1, limit=4
    $region2: #{base_model_forward.1} parent=1 // loop_pre_header
      _
    $region3: #{base_model_forward.1} parent=1 // loop_header
      %s82 = sphi 0, %s86
      %p83 = scmp.ge.s32.totalorder %s82, 4
      %s90 = sphi 0, %s90
      %s92 = sphi 0, %s90
      %s93 = sphi 0, %s92
      %s107 = sphi 0, %s93
      %s111 = sphi 0, %s111
      %s113 = sphi 0, %s111
      %s114 = sphi 0, %s113
      %s128 = sphi 0, %s114
      %s132 = sphi 0, %s132
      %s134 = sphi 0, %s132
      %s135 = sphi 0, %s134
      %s149 = sphi 0, %s135
      %s153 = sphi 0, %s153
      %s155 = sphi 0, %s153
      %s156 = sphi 0, %s155
      %s170 = sphi 0, %s156
      %s174 = sphi 0, %s174
      %s176 = sphi 0, %s174
      %s177 = sphi 0, %s176
      %s191 = sphi 0, %s177
      %s195 = sphi 0, %s195
      %s197 = sphi 0, %s195
      %s198 = sphi 0, %s197
      %s212 = sphi 0, %s198
      %s216 = sphi 0, %s216
      %s218 = sphi 0, %s216
      %s219 = sphi 0, %s218
      %s233 = sphi 0, %s219
      %s237 = sphi 0, %s237
      %s239 = sphi 0, %s237
      %s240 = sphi 0, %s239
      %s254 = sphi 0, %s240
      %s258 = sphi 0, %s258
      %s260 = sphi 0, %s258
      %s261 = sphi 0, %s260
      %s275 = sphi 0, %s261
      %s279 = sphi 0, %s279
      %s281 = sphi 0, %s279
      %s282 = sphi 0, %s281
      %s296 = sphi 0, %s282
      %s300 = sphi 0, %s300
      %s302 = sphi 0, %s300
      %s303 = sphi 0, %s302
      %s317 = sphi 0, %s303
      %s321 = sphi 0, %s321
      %s323 = sphi 0, %s321
      %s324 = sphi 0, %s323
      %s338 = sphi 0, %s324
      %s342 = sphi 0, %s342
      %s344 = sphi 0, %s342
      %s345 = sphi 0, %s344
      %s359 = sphi 0, %s345
      %s363 = sphi 0, %s363
      %s365 = sphi 0, %s363
      %s366 = sphi 0, %s365
      %s380 = sphi 0, %s366
      %s384 = sphi 0, %s384
      %s386 = sphi 0, %s384
      %s387 = sphi 0, %s386
      %s401 = sphi 0, %s387
      %s405 = sphi 0, %s405
      %s407 = sphi 0, %s405
      %s408 = sphi 0, %s407
      %s422 = sphi 0, %s408
      %s426 = sphi 0, %s426
      %s428 = sphi 0, %s426
      %s429 = sphi 0, %s428
      %s443 = sphi 0, %s429
      %s447 = sphi 0, %s447
      %s449 = sphi 0, %s447
      %s450 = sphi 0, %s449
      %s464 = sphi 0, %s450
      %s468 = sphi 0, %s468
      %s470 = sphi 0, %s468
      %s471 = sphi 0, %s470
      %s485 = sphi 0, %s471
      %s491 = sphi 0, %s493
      %s494 = sphi 0, %s491
      %s495 = sphi 0, %s494
      %s511 = sphi 0, %s495
      %s517 = sphi 0, %s519
      %s520 = sphi 0, %s517
      %s521 = sphi 0, %s520
      %s537 = sphi 0, %s521
      %s543 = sphi 0, %s545
      %s546 = sphi 0, %s543
      %s547 = sphi 0, %s546
      %s563 = sphi 0, %s547
      %s569 = sphi 0, %s571
      %s572 = sphi 0, %s569
      %s573 = sphi 0, %s572
      %s589 = sphi 0, %s573
      %s595 = sphi 0, %s597
      %s598 = sphi 0, %s595
      %s599 = sphi 0, %s598
      %s615 = sphi 0, %s599
      %s621 = sphi 0, %s623
      %s624 = sphi 0, %s621
      %s625 = sphi 0, %s624
      %s641 = sphi 0, %s625
      %s647 = sphi 0, %s649
      %s650 = sphi 0, %s647
      %s651 = sphi 0, %s650
      %s667 = sphi 0, %s651
      %s673 = sphi 0, %s675
      %s676 = sphi 0, %s673
      %s677 = sphi 0, %s676
      %s693 = sphi 0, %s677
      %s699 = sphi 0, %s701
      %s702 = sphi 0, %s699
      %s703 = sphi 0, %s702
      %s719 = sphi 0, %s703
      %s725 = sphi 0, %s727
      %s728 = sphi 0, %s725
      %s729 = sphi 0, %s728
      %s745 = sphi 0, %s729
      %s751 = sphi 0, %s753
      %s754 = sphi 0, %s751
      %s755 = sphi 0, %s754
      %s771 = sphi 0, %s755
      %s777 = sphi 0, %s779
      %s780 = sphi 0, %s777
      %s781 = sphi 0, %s780
      %s797 = sphi 0, %s781
      %s801 = sphi 0, %s801
      %s803 = sphi 0, %s801
      %s804 = sphi 0, %s803
      %s818 = sphi 0, %s804
      %s822 = sphi 0, %s822
      %s824 = sphi 0, %s822
      %s825 = sphi 0, %s824
      %s839 = sphi 0, %s825
      %s843 = sphi 0, %s843
      %s845 = sphi 0, %s843
      %s846 = sphi 0, %s845
      %s860 = sphi 0, %s846
      %s864 = sphi 0, %s864
      %s866 = sphi 0, %s864
      %s867 = sphi 0, %s866
      %s881 = sphi 0, %s867
      %s885 = sphi 0, %s885
      %s887 = sphi 0, %s885
      %s888 = sphi 0, %s887
      %s902 = sphi 0, %s888
      %s906 = sphi 0, %s906
      %s908 = sphi 0, %s906
      %s909 = sphi 0, %s908
      %s923 = sphi 0, %s909
      %s927 = sphi 0, %s927
      %s929 = sphi 0, %s927
      %s930 = sphi 0, %s929
      %s944 = sphi 0, %s930
    $region4: #{base_model_forward.1} parent=1 // loop_header_branch
      %85 = sbr.rel (%p83) target = $region8
    $region5: #{base_model_forward.1} parent=1 // loop_body
      %s87 = ssub.s32 %s82, 1
      %s88 = ssub.s32 %s82, 2
      %s89 = sadd.s32 %s82, 1
      %s91 = sadd.s32 %s90, 1
      %p94 = scmp.eq.s32.totalorder %s82, 1
      %p95 = scmp.ne.s32.totalorder %s90, %s92
      %p96 = scmp.eq.s32.totalorder %s82, 0
      %p97 = por %p95, %p96
      %p98 = scmp.ne.s32.totalorder %s90, %s92
      %p99 = scmp.eq.s32.totalorder %s87, 1
      %p100 = por %p98, %p99
      %p101 = scmp.ne.s32.totalorder %s92, %s93
      %p102 = scmp.eq.s32.totalorder %s87, 0
      %p103 = por %p101, %p102
      %p104 = scmp.ne.s32.totalorder %s92, %s93
      %p105 = scmp.eq.s32.totalorder %s88, 1
      %p106 = por %p104, %p105
      %p108 = scmp.ne.s32.totalorder %s93, %s107
      %p109 = scmp.eq.s32.totalorder %s88, 0
      %p110 = por %p108, %p109
      %s112 = sadd.s32 %s111, 1
      %p115 = scmp.eq.s32.totalorder %s82, 1
      %p116 = scmp.ne.s32.totalorder %s111, %s113
      %p117 = scmp.eq.s32.totalorder %s82, 0
      %p118 = por %p116, %p117
      %p119 = scmp.ne.s32.totalorder %s111, %s113
      %p120 = scmp.eq.s32.totalorder %s87, 1
      %p121 = por %p119, %p120
      %p122 = scmp.ne.s32.totalorder %s113, %s114
      %p123 = scmp.eq.s32.totalorder %s87, 0
      %p124 = por %p122, %p123
      %p125 = scmp.ne.s32.totalorder %s113, %s114
      %p126 = scmp.eq.s32.totalorder %s88, 1
      %p127 = por %p125, %p126
      %p129 = scmp.ne.s32.totalorder %s114, %s128
      %p130 = scmp.eq.s32.totalorder %s88, 0
      %p131 = por %p129, %p130
      %s133 = sadd.s32 %s132, 1
      %p136 = scmp.eq.s32.totalorder %s82, 1
      %p137 = scmp.ne.s32.totalorder %s132, %s134
      %p138 = scmp.eq.s32.totalorder %s82, 0
      %p139 = por %p137, %p138
      %p140 = scmp.ne.s32.totalorder %s132, %s134
      %p141 = scmp.eq.s32.totalorder %s87, 1
      %p142 = por %p140, %p141
      %p143 = scmp.ne.s32.totalorder %s134, %s135
      %p144 = scmp.eq.s32.totalorder %s87, 0
      %p145 = por %p143, %p144
      %p146 = scmp.ne.s32.totalorder %s134, %s135
      %p147 = scmp.eq.s32.totalorder %s88, 1
      %p148 = por %p146, %p147
      %p150 = scmp.ne.s32.totalorder %s135, %s149
      %p151 = scmp.eq.s32.totalorder %s88, 0
      %p152 = por %p150, %p151
      %s154 = sadd.s32 %s153, 1
      %p157 = scmp.eq.s32.totalorder %s82, 1
      %p158 = scmp.ne.s32.totalorder %s153, %s155
      %p159 = scmp.eq.s32.totalorder %s82, 0
      %p160 = por %p158, %p159
      %p161 = scmp.ne.s32.totalorder %s153, %s155
      %p162 = scmp.eq.s32.totalorder %s87, 1
      %p163 = por %p161, %p162
      %p164 = scmp.ne.s32.totalorder %s155, %s156
      %p165 = scmp.eq.s32.totalorder %s87, 0
      %p166 = por %p164, %p165
      %p167 = scmp.ne.s32.totalorder %s155, %s156
      %p168 = scmp.eq.s32.totalorder %s88, 1
      %p169 = por %p167, %p168
      %p171 = scmp.ne.s32.totalorder %s156, %s170
      %p172 = scmp.eq.s32.totalorder %s88, 0
      %p173 = por %p171, %p172
      %s175 = sadd.s32 %s174, 1
      %p178 = scmp.eq.s32.totalorder %s82, 1
      %p179 = scmp.ne.s32.totalorder %s174, %s176
      %p180 = scmp.eq.s32.totalorder %s82, 0
      %p181 = por %p179, %p180
      %p182 = scmp.ne.s32.totalorder %s174, %s176
      %p183 = scmp.eq.s32.totalorder %s87, 1
      %p184 = por %p182, %p183
      %p185 = scmp.ne.s32.totalorder %s176, %s177
      %p186 = scmp.eq.s32.totalorder %s87, 0
      %p187 = por %p185, %p186
      %p188 = scmp.ne.s32.totalorder %s176, %s177
      %p189 = scmp.eq.s32.totalorder %s88, 1
      %p190 = por %p188, %p189
      %p192 = scmp.ne.s32.totalorder %s177, %s191
      %p193 = scmp.eq.s32.totalorder %s88, 0
      %p194 = por %p192, %p193
      %s196 = sadd.s32 %s195, 1
      %p199 = scmp.eq.s32.totalorder %s82, 1
      %p200 = scmp.ne.s32.totalorder %s195, %s197
      %p201 = scmp.eq.s32.totalorder %s82, 0
      %p202 = por %p200, %p201
      %p203 = scmp.ne.s32.totalorder %s195, %s197
      %p204 = scmp.eq.s32.totalorder %s87, 1
      %p205 = por %p203, %p204
      %p206 = scmp.ne.s32.totalorder %s197, %s198
      %p207 = scmp.eq.s32.totalorder %s87, 0
      %p208 = por %p206, %p207
      %p209 = scmp.ne.s32.totalorder %s197, %s198
      %p210 = scmp.eq.s32.totalorder %s88, 1
      %p211 = por %p209, %p210
      %p213 = scmp.ne.s32.totalorder %s198, %s212
      %p214 = scmp.eq.s32.totalorder %s88, 0
      %p215 = por %p213, %p214
      %s217 = sadd.s32 %s216, 1
      %p220 = scmp.eq.s32.totalorder %s82, 1
      %p221 = scmp.ne.s32.totalorder %s216, %s218
      %p222 = scmp.eq.s32.totalorder %s82, 0
      %p223 = por %p221, %p222
      %p224 = scmp.ne.s32.totalorder %s216, %s218
      %p225 = scmp.eq.s32.totalorder %s87, 1
      %p226 = por %p224, %p225
      %p227 = scmp.ne.s32.totalorder %s218, %s219
      %p228 = scmp.eq.s32.totalorder %s87, 0
      %p229 = por %p227, %p228
      %p230 = scmp.ne.s32.totalorder %s218, %s219
      %p231 = scmp.eq.s32.totalorder %s88, 1
      %p232 = por %p230, %p231
      %p234 = scmp.ne.s32.totalorder %s219, %s233
      %p235 = scmp.eq.s32.totalorder %s88, 0
      %p236 = por %p234, %p235
      %s238 = sadd.s32 %s237, 1
      %p241 = scmp.eq.s32.totalorder %s82, 1
      %p242 = scmp.ne.s32.totalorder %s237, %s239
      %p243 = scmp.eq.s32.totalorder %s82, 0
      %p244 = por %p242, %p243
      %p245 = scmp.ne.s32.totalorder %s237, %s239
      %p246 = scmp.eq.s32.totalorder %s87, 1
      %p247 = por %p245, %p246
      %p248 = scmp.ne.s32.totalorder %s239, %s240
      %p249 = scmp.eq.s32.totalorder %s87, 0
      %p250 = por %p248, %p249
      %p251 = scmp.ne.s32.totalorder %s239, %s240
      %p252 = scmp.eq.s32.totalorder %s88, 1
      %p253 = por %p251, %p252
      %p255 = scmp.ne.s32.totalorder %s240, %s254
      %p256 = scmp.eq.s32.totalorder %s88, 0
      %p257 = por %p255, %p256
      %s259 = sadd.s32 %s258, 1
      %p262 = scmp.eq.s32.totalorder %s82, 1
      %p263 = scmp.ne.s32.totalorder %s258, %s260
      %p264 = scmp.eq.s32.totalorder %s82, 0
      %p265 = por %p263, %p264
      %p266 = scmp.ne.s32.totalorder %s258, %s260
      %p267 = scmp.eq.s32.totalorder %s87, 1
      %p268 = por %p266, %p267
      %p269 = scmp.ne.s32.totalorder %s260, %s261
      %p270 = scmp.eq.s32.totalorder %s87, 0
      %p271 = por %p269, %p270
      %p272 = scmp.ne.s32.totalorder %s260, %s261
      %p273 = scmp.eq.s32.totalorder %s88, 1
      %p274 = por %p272, %p273
      %p276 = scmp.ne.s32.totalorder %s261, %s275
      %p277 = scmp.eq.s32.totalorder %s88, 0
      %p278 = por %p276, %p277
      %s280 = sadd.s32 %s279, 1
      %p283 = scmp.eq.s32.totalorder %s82, 1
      %p284 = scmp.ne.s32.totalorder %s279, %s281
      %p285 = scmp.eq.s32.totalorder %s82, 0
      %p286 = por %p284, %p285
      %p287 = scmp.ne.s32.totalorder %s279, %s281
      %p288 = scmp.eq.s32.totalorder %s87, 1
      %p289 = por %p287, %p288
      %p290 = scmp.ne.s32.totalorder %s281, %s282
      %p291 = scmp.eq.s32.totalorder %s87, 0
      %p292 = por %p290, %p291
      %p293 = scmp.ne.s32.totalorder %s281, %s282
      %p294 = scmp.eq.s32.totalorder %s88, 1
      %p295 = por %p293, %p294
      %p297 = scmp.ne.s32.totalorder %s282, %s296
      %p298 = scmp.eq.s32.totalorder %s88, 0
      %p299 = por %p297, %p298
      %s301 = sadd.s32 %s300, 1
      %p304 = scmp.eq.s32.totalorder %s82, 1
      %p305 = scmp.ne.s32.totalorder %s300, %s302
      %p306 = scmp.eq.s32.totalorder %s82, 0
      %p307 = por %p305, %p306
      %p308 = scmp.ne.s32.totalorder %s300, %s302
      %p309 = scmp.eq.s32.totalorder %s87, 1
      %p310 = por %p308, %p309
      %p311 = scmp.ne.s32.totalorder %s302, %s303
      %p312 = scmp.eq.s32.totalorder %s87, 0
      %p313 = por %p311, %p312
      %p314 = scmp.ne.s32.totalorder %s302, %s303
      %p315 = scmp.eq.s32.totalorder %s88, 1
      %p316 = por %p314, %p315
      %p318 = scmp.ne.s32.totalorder %s303, %s317
      %p319 = scmp.eq.s32.totalorder %s88, 0
      %p320 = por %p318, %p319
      %s322 = sadd.s32 %s321, 1
      %p325 = scmp.eq.s32.totalorder %s82, 1
      %p326 = scmp.ne.s32.totalorder %s321, %s323
      %p327 = scmp.eq.s32.totalorder %s82, 0
      %p328 = por %p326, %p327
      %p329 = scmp.ne.s32.totalorder %s321, %s323
      %p330 = scmp.eq.s32.totalorder %s87, 1
      %p331 = por %p329, %p330
      %p332 = scmp.ne.s32.totalorder %s323, %s324
      %p333 = scmp.eq.s32.totalorder %s87, 0
      %p334 = por %p332, %p333
      %p335 = scmp.ne.s32.totalorder %s323, %s324
      %p336 = scmp.eq.s32.totalorder %s88, 1
      %p337 = por %p335, %p336
      %p339 = scmp.ne.s32.totalorder %s324, %s338
      %p340 = scmp.eq.s32.totalorder %s88, 0
      %p341 = por %p339, %p340
      %s343 = sadd.s32 %s342, 1
      %p346 = scmp.eq.s32.totalorder %s82, 1
      %p347 = scmp.ne.s32.totalorder %s342, %s344
      %p348 = scmp.eq.s32.totalorder %s82, 0
      %p349 = por %p347, %p348
      %p350 = scmp.ne.s32.totalorder %s342, %s344
      %p351 = scmp.eq.s32.totalorder %s87, 1
      %p352 = por %p350, %p351
      %p353 = scmp.ne.s32.totalorder %s344, %s345
      %p354 = scmp.eq.s32.totalorder %s87, 0
      %p355 = por %p353, %p354
      %p356 = scmp.ne.s32.totalorder %s344, %s345
      %p357 = scmp.eq.s32.totalorder %s88, 1
      %p358 = por %p356, %p357
      %p360 = scmp.ne.s32.totalorder %s345, %s359
      %p361 = scmp.eq.s32.totalorder %s88, 0
      %p362 = por %p360, %p361
      %s364 = sadd.s32 %s363, 1
      %p367 = scmp.eq.s32.totalorder %s82, 1
      %p368 = scmp.ne.s32.totalorder %s363, %s365
      %p369 = scmp.eq.s32.totalorder %s82, 0
      %p370 = por %p368, %p369
      %p371 = scmp.ne.s32.totalorder %s363, %s365
      %p372 = scmp.eq.s32.totalorder %s87, 1
      %p373 = por %p371, %p372
      %p374 = scmp.ne.s32.totalorder %s365, %s366
      %p375 = scmp.eq.s32.totalorder %s87, 0
      %p376 = por %p374, %p375
      %p377 = scmp.ne.s32.totalorder %s365, %s366
      %p378 = scmp.eq.s32.totalorder %s88, 1
      %p379 = por %p377, %p378
      %p381 = scmp.ne.s32.totalorder %s366, %s380
      %p382 = scmp.eq.s32.totalorder %s88, 0
      %p383 = por %p381, %p382
      %s385 = sadd.s32 %s384, 1
      %p388 = scmp.eq.s32.totalorder %s82, 1
      %p389 = scmp.ne.s32.totalorder %s384, %s386
      %p390 = scmp.eq.s32.totalorder %s82, 0
      %p391 = por %p389, %p390
      %p392 = scmp.ne.s32.totalorder %s384, %s386
      %p393 = scmp.eq.s32.totalorder %s87, 1
      %p394 = por %p392, %p393
      %p395 = scmp.ne.s32.totalorder %s386, %s387
      %p396 = scmp.eq.s32.totalorder %s87, 0
      %p397 = por %p395, %p396
      %p398 = scmp.ne.s32.totalorder %s386, %s387
      %p399 = scmp.eq.s32.totalorder %s88, 1
      %p400 = por %p398, %p399
      %p402 = scmp.ne.s32.totalorder %s387, %s401
      %p403 = scmp.eq.s32.totalorder %s88, 0
      %p404 = por %p402, %p403
      %s406 = sadd.s32 %s405, 1
      %p409 = scmp.eq.s32.totalorder %s82, 1
      %p410 = scmp.ne.s32.totalorder %s405, %s407
      %p411 = scmp.eq.s32.totalorder %s82, 0
      %p412 = por %p410, %p411
      %p413 = scmp.ne.s32.totalorder %s405, %s407
      %p414 = scmp.eq.s32.totalorder %s87, 1
      %p415 = por %p413, %p414
      %p416 = scmp.ne.s32.totalorder %s407, %s408
      %p417 = scmp.eq.s32.totalorder %s87, 0
      %p418 = por %p416, %p417
      %p419 = scmp.ne.s32.totalorder %s407, %s408
      %p420 = scmp.eq.s32.totalorder %s88, 1
      %p421 = por %p419, %p420
      %p423 = scmp.ne.s32.totalorder %s408, %s422
      %p424 = scmp.eq.s32.totalorder %s88, 0
      %p425 = por %p423, %p424
      %s427 = sadd.s32 %s426, 1
      %p430 = scmp.eq.s32.totalorder %s82, 1
      %p431 = scmp.ne.s32.totalorder %s426, %s428
      %p432 = scmp.eq.s32.totalorder %s82, 0
      %p433 = por %p431, %p432
      %p434 = scmp.ne.s32.totalorder %s426, %s428
      %p435 = scmp.eq.s32.totalorder %s87, 1
      %p436 = por %p434, %p435
      %p437 = scmp.ne.s32.totalorder %s428, %s429
      %p438 = scmp.eq.s32.totalorder %s87, 0
      %p439 = por %p437, %p438
      %p440 = scmp.ne.s32.totalorder %s428, %s429
      %p441 = scmp.eq.s32.totalorder %s88, 1
      %p442 = por %p440, %p441
      %p444 = scmp.ne.s32.totalorder %s429, %s443
      %p445 = scmp.eq.s32.totalorder %s88, 0
      %p446 = por %p444, %p445
      %s448 = sadd.s32 %s447, 1
      %p451 = scmp.eq.s32.totalorder %s82, 1
      %p452 = scmp.ne.s32.totalorder %s447, %s449
      %p453 = scmp.eq.s32.totalorder %s82, 0
      %p454 = por %p452, %p453
      %p455 = scmp.ne.s32.totalorder %s447, %s449
      %p456 = scmp.eq.s32.totalorder %s87, 1
      %p457 = por %p455, %p456
      %p458 = scmp.ne.s32.totalorder %s449, %s450
      %p459 = scmp.eq.s32.totalorder %s87, 0
      %p460 = por %p458, %p459
      %p461 = scmp.ne.s32.totalorder %s449, %s450
      %p462 = scmp.eq.s32.totalorder %s88, 1
      %p463 = por %p461, %p462
      %p465 = scmp.ne.s32.totalorder %s450, %s464
      %p466 = scmp.eq.s32.totalorder %s88, 0
      %p467 = por %p465, %p466
      %s469 = sadd.s32 %s468, 1
      %p472 = scmp.eq.s32.totalorder %s82, 1
      %p473 = scmp.ne.s32.totalorder %s468, %s470
      %p474 = scmp.eq.s32.totalorder %s82, 0
      %p475 = por %p473, %p474
      %p476 = scmp.ne.s32.totalorder %s468, %s470
      %p477 = scmp.eq.s32.totalorder %s87, 1
      %p478 = por %p476, %p477
      %p479 = scmp.ne.s32.totalorder %s470, %s471
      %p480 = scmp.eq.s32.totalorder %s87, 0
      %p481 = por %p479, %p480
      %p482 = scmp.ne.s32.totalorder %s470, %s471
      %p483 = scmp.eq.s32.totalorder %s88, 1
      %p484 = por %p482, %p483
      %p486 = scmp.ne.s32.totalorder %s471, %s485
      %p487 = scmp.eq.s32.totalorder %s88, 0
      %p488 = por %p486, %p487
      %s489 = ssub.s32 %s82, %s89
      %p490 = scmp.eq.s32.totalorder %s489, 0
      %s492 = sadd.s32 %s491, 1
      %s493 = scalar_select %p490, %s491, %s492
      %p496 = pneg %p490
      %p497 = scmp.eq.s32.totalorder %s82, 1
      %p498 = por %p496, %p497
      %p499 = scmp.ne.s32.totalorder %s491, %s494
      %p500 = scmp.eq.s32.totalorder %s82, 0
      %p501 = por %p499, %p500
      %p502 = scmp.ne.s32.totalorder %s491, %s494
      %p503 = scmp.eq.s32.totalorder %s87, 1
      %p504 = por %p502, %p503
      %p505 = scmp.ne.s32.totalorder %s494, %s495
      %p506 = scmp.eq.s32.totalorder %s87, 0
      %p507 = por %p505, %p506
      %p508 = scmp.ne.s32.totalorder %s494, %s495
      %p509 = scmp.eq.s32.totalorder %s88, 1
      %p510 = por %p508, %p509
      %p512 = scmp.ne.s32.totalorder %s495, %s511
      %p513 = scmp.eq.s32.totalorder %s88, 0
      %p514 = por %p512, %p513
      %s515 = ssub.s32 %s82, %s89
      %p516 = scmp.eq.s32.totalorder %s515, 0
      %s518 = sadd.s32 %s517, 1
      %s519 = scalar_select %p516, %s517, %s518
      %p522 = pneg %p516
      %p523 = scmp.eq.s32.totalorder %s82, 1
      %p524 = por %p522, %p523
      %p525 = scmp.ne.s32.totalorder %s517, %s520
      %p526 = scmp.eq.s32.totalorder %s82, 0
      %p527 = por %p525, %p526
      %p528 = scmp.ne.s32.totalorder %s517, %s520
      %p529 = scmp.eq.s32.totalorder %s87, 1
      %p530 = por %p528, %p529
      %p531 = scmp.ne.s32.totalorder %s520, %s521
      %p532 = scmp.eq.s32.totalorder %s87, 0
      %p533 = por %p531, %p532
      %p534 = scmp.ne.s32.totalorder %s520, %s521
      %p535 = scmp.eq.s32.totalorder %s88, 1
      %p536 = por %p534, %p535
      %p538 = scmp.ne.s32.totalorder %s521, %s537
      %p539 = scmp.eq.s32.totalorder %s88, 0
      %p540 = por %p538, %p539
      %s541 = ssub.s32 %s82, %s89
      %p542 = scmp.eq.s32.totalorder %s541, 0
      %s544 = sadd.s32 %s543, 1
      %s545 = scalar_select %p542, %s543, %s544
      %p548 = pneg %p542
      %p549 = scmp.eq.s32.totalorder %s82, 1
      %p550 = por %p548, %p549
      %p551 = scmp.ne.s32.totalorder %s543, %s546
      %p552 = scmp.eq.s32.totalorder %s82, 0
      %p553 = por %p551, %p552
      %p554 = scmp.ne.s32.totalorder %s543, %s546
      %p555 = scmp.eq.s32.totalorder %s87, 1
      %p556 = por %p554, %p555
      %p557 = scmp.ne.s32.totalorder %s546, %s547
      %p558 = scmp.eq.s32.totalorder %s87, 0
      %p559 = por %p557, %p558
      %p560 = scmp.ne.s32.totalorder %s546, %s547
      %p561 = scmp.eq.s32.totalorder %s88, 1
      %p562 = por %p560, %p561
      %p564 = scmp.ne.s32.totalorder %s547, %s563
      %p565 = scmp.eq.s32.totalorder %s88, 0
      %p566 = por %p564, %p565
      %s567 = ssub.s32 %s82, %s89
      %p568 = scmp.eq.s32.totalorder %s567, 0
      %s570 = sadd.s32 %s569, 1
      %s571 = scalar_select %p568, %s569, %s570
      %p574 = pneg %p568
      %p575 = scmp.eq.s32.totalorder %s82, 1
      %p576 = por %p574, %p575
      %p577 = scmp.ne.s32.totalorder %s569, %s572
      %p578 = scmp.eq.s32.totalorder %s82, 0
      %p579 = por %p577, %p578
      %p580 = scmp.ne.s32.totalorder %s569, %s572
      %p581 = scmp.eq.s32.totalorder %s87, 1
      %p582 = por %p580, %p581
      %p583 = scmp.ne.s32.totalorder %s572, %s573
      %p584 = scmp.eq.s32.totalorder %s87, 0
      %p585 = por %p583, %p584
      %p586 = scmp.ne.s32.totalorder %s572, %s573
      %p587 = scmp.eq.s32.totalorder %s88, 1
      %p588 = por %p586, %p587
      %p590 = scmp.ne.s32.totalorder %s573, %s589
      %p591 = scmp.eq.s32.totalorder %s88, 0
      %p592 = por %p590, %p591
      %s593 = ssub.s32 %s82, %s89
      %p594 = scmp.eq.s32.totalorder %s593, 0
      %s596 = sadd.s32 %s595, 1
      %s597 = scalar_select %p594, %s595, %s596
      %p600 = pneg %p594
      %p601 = scmp.eq.s32.totalorder %s82, 1
      %p602 = por %p600, %p601
      %p603 = scmp.ne.s32.totalorder %s595, %s598
      %p604 = scmp.eq.s32.totalorder %s82, 0
      %p605 = por %p603, %p604
      %p606 = scmp.ne.s32.totalorder %s595, %s598
      %p607 = scmp.eq.s32.totalorder %s87, 1
      %p608 = por %p606, %p607
      %p609 = scmp.ne.s32.totalorder %s598, %s599
      %p610 = scmp.eq.s32.totalorder %s87, 0
      %p611 = por %p609, %p610
      %p612 = scmp.ne.s32.totalorder %s598, %s599
      %p613 = scmp.eq.s32.totalorder %s88, 1
      %p614 = por %p612, %p613
      %p616 = scmp.ne.s32.totalorder %s599, %s615
      %p617 = scmp.eq.s32.totalorder %s88, 0
      %p618 = por %p616, %p617
      %s619 = ssub.s32 %s82, %s89
      %p620 = scmp.eq.s32.totalorder %s619, 0
      %s622 = sadd.s32 %s621, 1
      %s623 = scalar_select %p620, %s621, %s622
      %p626 = pneg %p620
      %p627 = scmp.eq.s32.totalorder %s82, 1
      %p628 = por %p626, %p627
      %p629 = scmp.ne.s32.totalorder %s621, %s624
      %p630 = scmp.eq.s32.totalorder %s82, 0
      %p631 = por %p629, %p630
      %p632 = scmp.ne.s32.totalorder %s621, %s624
      %p633 = scmp.eq.s32.totalorder %s87, 1
      %p634 = por %p632, %p633
      %p635 = scmp.ne.s32.totalorder %s624, %s625
      %p636 = scmp.eq.s32.totalorder %s87, 0
      %p637 = por %p635, %p636
      %p638 = scmp.ne.s32.totalorder %s624, %s625
      %p639 = scmp.eq.s32.totalorder %s88, 1
      %p640 = por %p638, %p639
      %p642 = scmp.ne.s32.totalorder %s625, %s641
      %p643 = scmp.eq.s32.totalorder %s88, 0
      %p644 = por %p642, %p643
      %s645 = ssub.s32 %s82, %s89
      %p646 = scmp.eq.s32.totalorder %s645, 0
      %s648 = sadd.s32 %s647, 1
      %s649 = scalar_select %p646, %s647, %s648
      %p652 = pneg %p646
      %p653 = scmp.eq.s32.totalorder %s82, 1
      %p654 = por %p652, %p653
      %p655 = scmp.ne.s32.totalorder %s647, %s650
      %p656 = scmp.eq.s32.totalorder %s82, 0
      %p657 = por %p655, %p656
      %p658 = scmp.ne.s32.totalorder %s647, %s650
      %p659 = scmp.eq.s32.totalorder %s87, 1
      %p660 = por %p658, %p659
      %p661 = scmp.ne.s32.totalorder %s650, %s651
      %p662 = scmp.eq.s32.totalorder %s87, 0
      %p663 = por %p661, %p662
      %p664 = scmp.ne.s32.totalorder %s650, %s651
      %p665 = scmp.eq.s32.totalorder %s88, 1
      %p666 = por %p664, %p665
      %p668 = scmp.ne.s32.totalorder %s651, %s667
      %p669 = scmp.eq.s32.totalorder %s88, 0
      %p670 = por %p668, %p669
      %s671 = ssub.s32 %s82, %s89
      %p672 = scmp.eq.s32.totalorder %s671, 0
      %s674 = sadd.s32 %s673, 1
      %s675 = scalar_select %p672, %s673, %s674
      %p678 = pneg %p672
      %p679 = scmp.eq.s32.totalorder %s82, 1
      %p680 = por %p678, %p679
      %p681 = scmp.ne.s32.totalorder %s673, %s676
      %p682 = scmp.eq.s32.totalorder %s82, 0
      %p683 = por %p681, %p682
      %p684 = scmp.ne.s32.totalorder %s673, %s676
      %p685 = scmp.eq.s32.totalorder %s87, 1
      %p686 = por %p684, %p685
      %p687 = scmp.ne.s32.totalorder %s676, %s677
      %p688 = scmp.eq.s32.totalorder %s87, 0
      %p689 = por %p687, %p688
      %p690 = scmp.ne.s32.totalorder %s676, %s677
      %p691 = scmp.eq.s32.totalorder %s88, 1
      %p692 = por %p690, %p691
      %p694 = scmp.ne.s32.totalorder %s677, %s693
      %p695 = scmp.eq.s32.totalorder %s88, 0
      %p696 = por %p694, %p695
      %s697 = ssub.s32 %s82, %s89
      %p698 = scmp.eq.s32.totalorder %s697, 0
      %s700 = sadd.s32 %s699, 1
      %s701 = scalar_select %p698, %s699, %s700
      %p704 = pneg %p698
      %p705 = scmp.eq.s32.totalorder %s82, 1
      %p706 = por %p704, %p705
      %p707 = scmp.ne.s32.totalorder %s699, %s702
      %p708 = scmp.eq.s32.totalorder %s82, 0
      %p709 = por %p707, %p708
      %p710 = scmp.ne.s32.totalorder %s699, %s702
      %p711 = scmp.eq.s32.totalorder %s87, 1
      %p712 = por %p710, %p711
      %p713 = scmp.ne.s32.totalorder %s702, %s703
      %p714 = scmp.eq.s32.totalorder %s87, 0
      %p715 = por %p713, %p714
      %p716 = scmp.ne.s32.totalorder %s702, %s703
      %p717 = scmp.eq.s32.totalorder %s88, 1
      %p718 = por %p716, %p717
      %p720 = scmp.ne.s32.totalorder %s703, %s719
      %p721 = scmp.eq.s32.totalorder %s88, 0
      %p722 = por %p720, %p721
      %s723 = ssub.s32 %s82, %s89
      %p724 = scmp.eq.s32.totalorder %s723, 0
      %s726 = sadd.s32 %s725, 1
      %s727 = scalar_select %p724, %s725, %s726
      %p730 = pneg %p724
      %p731 = scmp.eq.s32.totalorder %s82, 1
      %p732 = por %p730, %p731
      %p733 = scmp.ne.s32.totalorder %s725, %s728
      %p734 = scmp.eq.s32.totalorder %s82, 0
      %p735 = por %p733, %p734
      %p736 = scmp.ne.s32.totalorder %s725, %s728
      %p737 = scmp.eq.s32.totalorder %s87, 1
      %p738 = por %p736, %p737
      %p739 = scmp.ne.s32.totalorder %s728, %s729
      %p740 = scmp.eq.s32.totalorder %s87, 0
      %p741 = por %p739, %p740
      %p742 = scmp.ne.s32.totalorder %s728, %s729
      %p743 = scmp.eq.s32.totalorder %s88, 1
      %p744 = por %p742, %p743
      %p746 = scmp.ne.s32.totalorder %s729, %s745
      %p747 = scmp.eq.s32.totalorder %s88, 0
      %p748 = por %p746, %p747
      %s749 = ssub.s32 %s82, %s89
      %p750 = scmp.eq.s32.totalorder %s749, 0
      %s752 = sadd.s32 %s751, 1
      %s753 = scalar_select %p750, %s751, %s752
      %p756 = pneg %p750
      %p757 = scmp.eq.s32.totalorder %s82, 1
      %p758 = por %p756, %p757
      %p759 = scmp.ne.s32.totalorder %s751, %s754
      %p760 = scmp.eq.s32.totalorder %s82, 0
      %p761 = por %p759, %p760
      %p762 = scmp.ne.s32.totalorder %s751, %s754
      %p763 = scmp.eq.s32.totalorder %s87, 1
      %p764 = por %p762, %p763
      %p765 = scmp.ne.s32.totalorder %s754, %s755
      %p766 = scmp.eq.s32.totalorder %s87, 0
      %p767 = por %p765, %p766
      %p768 = scmp.ne.s32.totalorder %s754, %s755
      %p769 = scmp.eq.s32.totalorder %s88, 1
      %p770 = por %p768, %p769
      %p772 = scmp.ne.s32.totalorder %s755, %s771
      %p773 = scmp.eq.s32.totalorder %s88, 0
      %p774 = por %p772, %p773
      %s775 = ssub.s32 %s82, %s89
      %p776 = scmp.eq.s32.totalorder %s775, 0
      %s778 = sadd.s32 %s777, 1
      %s779 = scalar_select %p776, %s777, %s778
      %p782 = pneg %p776
      %p783 = scmp.eq.s32.totalorder %s82, 1
      %p784 = por %p782, %p783
      %p785 = scmp.ne.s32.totalorder %s777, %s780
      %p786 = scmp.eq.s32.totalorder %s82, 0
      %p787 = por %p785, %p786
      %p788 = scmp.ne.s32.totalorder %s777, %s780
      %p789 = scmp.eq.s32.totalorder %s87, 1
      %p790 = por %p788, %p789
      %p791 = scmp.ne.s32.totalorder %s780, %s781
      %p792 = scmp.eq.s32.totalorder %s87, 0
      %p793 = por %p791, %p792
      %p794 = scmp.ne.s32.totalorder %s780, %s781
      %p795 = scmp.eq.s32.totalorder %s88, 1
      %p796 = por %p794, %p795
      %p798 = scmp.ne.s32.totalorder %s781, %s797
      %p799 = scmp.eq.s32.totalorder %s88, 0
      %p800 = por %p798, %p799
      %s802 = sadd.s32 %s801, 1
      %p805 = scmp.eq.s32.totalorder %s82, 1
      %p806 = scmp.ne.s32.totalorder %s801, %s803
      %p807 = scmp.eq.s32.totalorder %s82, 0
      %p808 = por %p806, %p807
      %p809 = scmp.ne.s32.totalorder %s801, %s803
      %p810 = scmp.eq.s32.totalorder %s87, 1
      %p811 = por %p809, %p810
      %p812 = scmp.ne.s32.totalorder %s803, %s804
      %p813 = scmp.eq.s32.totalorder %s87, 0
      %p814 = por %p812, %p813
      %p815 = scmp.ne.s32.totalorder %s803, %s804
      %p816 = scmp.eq.s32.totalorder %s88, 1
      %p817 = por %p815, %p816
      %p819 = scmp.ne.s32.totalorder %s804, %s818
      %p820 = scmp.eq.s32.totalorder %s88, 0
      %p821 = por %p819, %p820
      %s823 = sadd.s32 %s822, 1
      %p826 = scmp.eq.s32.totalorder %s82, 1
      %p827 = scmp.ne.s32.totalorder %s822, %s824
      %p828 = scmp.eq.s32.totalorder %s82, 0
      %p829 = por %p827, %p828
      %p830 = scmp.ne.s32.totalorder %s822, %s824
      %p831 = scmp.eq.s32.totalorder %s87, 1
      %p832 = por %p830, %p831
      %p833 = scmp.ne.s32.totalorder %s824, %s825
      %p834 = scmp.eq.s32.totalorder %s87, 0
      %p835 = por %p833, %p834
      %p836 = scmp.ne.s32.totalorder %s824, %s825
      %p837 = scmp.eq.s32.totalorder %s88, 1
      %p838 = por %p836, %p837
      %p840 = scmp.ne.s32.totalorder %s825, %s839
      %p841 = scmp.eq.s32.totalorder %s88, 0
      %p842 = por %p840, %p841
      %s844 = sadd.s32 %s843, 1
      %p847 = scmp.eq.s32.totalorder %s82, 1
      %p848 = scmp.ne.s32.totalorder %s843, %s845
      %p849 = scmp.eq.s32.totalorder %s82, 0
      %p850 = por %p848, %p849
      %p851 = scmp.ne.s32.totalorder %s843, %s845
      %p852 = scmp.eq.s32.totalorder %s87, 1
      %p853 = por %p851, %p852
      %p854 = scmp.ne.s32.totalorder %s845, %s846
      %p855 = scmp.eq.s32.totalorder %s87, 0
      %p856 = por %p854, %p855
      %p857 = scmp.ne.s32.totalorder %s845, %s846
      %p858 = scmp.eq.s32.totalorder %s88, 1
      %p859 = por %p857, %p858
      %p861 = scmp.ne.s32.totalorder %s846, %s860
      %p862 = scmp.eq.s32.totalorder %s88, 0
      %p863 = por %p861, %p862
      %s865 = sadd.s32 %s864, 1
      %p868 = scmp.eq.s32.totalorder %s82, 1
      %p869 = scmp.ne.s32.totalorder %s864, %s866
      %p870 = scmp.eq.s32.totalorder %s82, 0
      %p871 = por %p869, %p870
      %p872 = scmp.ne.s32.totalorder %s864, %s866
      %p873 = scmp.eq.s32.totalorder %s87, 1
      %p874 = por %p872, %p873
      %p875 = scmp.ne.s32.totalorder %s866, %s867
      %p876 = scmp.eq.s32.totalorder %s87, 0
      %p877 = por %p875, %p876
      %p878 = scmp.ne.s32.totalorder %s866, %s867
      %p879 = scmp.eq.s32.totalorder %s88, 1
      %p880 = por %p878, %p879
      %p882 = scmp.ne.s32.totalorder %s867, %s881
      %p883 = scmp.eq.s32.totalorder %s88, 0
      %p884 = por %p882, %p883
      %s886 = sadd.s32 %s885, 1
      %p889 = scmp.eq.s32.totalorder %s82, 1
      %p890 = scmp.ne.s32.totalorder %s885, %s887
      %p891 = scmp.eq.s32.totalorder %s82, 0
      %p892 = por %p890, %p891
      %p893 = scmp.ne.s32.totalorder %s885, %s887
      %p894 = scmp.eq.s32.totalorder %s87, 1
      %p895 = por %p893, %p894
      %p896 = scmp.ne.s32.totalorder %s887, %s888
      %p897 = scmp.eq.s32.totalorder %s87, 0
      %p898 = por %p896, %p897
      %p899 = scmp.ne.s32.totalorder %s887, %s888
      %p900 = scmp.eq.s32.totalorder %s88, 1
      %p901 = por %p899, %p900
      %p903 = scmp.ne.s32.totalorder %s888, %s902
      %p904 = scmp.eq.s32.totalorder %s88, 0
      %p905 = por %p903, %p904
      %s907 = sadd.s32 %s906, 1
      %p910 = scmp.eq.s32.totalorder %s82, 1
      %p911 = scmp.ne.s32.totalorder %s906, %s908
      %p912 = scmp.eq.s32.totalorder %s82, 0
      %p913 = por %p911, %p912
      %p914 = scmp.ne.s32.totalorder %s906, %s908
      %p915 = scmp.eq.s32.totalorder %s87, 1
      %p916 = por %p914, %p915
      %p917 = scmp.ne.s32.totalorder %s908, %s909
      %p918 = scmp.eq.s32.totalorder %s87, 0
      %p919 = por %p917, %p918
      %p920 = scmp.ne.s32.totalorder %s908, %s909
      %p921 = scmp.eq.s32.totalorder %s88, 1
      %p922 = por %p920, %p921
      %p924 = scmp.ne.s32.totalorder %s909, %s923
      %p925 = scmp.eq.s32.totalorder %s88, 0
      %p926 = por %p924, %p925
      %s928 = sadd.s32 %s927, 1
      %p931 = scmp.eq.s32.totalorder %s82, 1
      %p932 = scmp.ne.s32.totalorder %s927, %s929
      %p933 = scmp.eq.s32.totalorder %s82, 0
      %p934 = por %p932, %p933
      %p935 = scmp.ne.s32.totalorder %s927, %s929
      %p936 = scmp.eq.s32.totalorder %s87, 1
      %p937 = por %p935, %p936
      %p938 = scmp.ne.s32.totalorder %s929, %s930
      %p939 = scmp.eq.s32.totalorder %s87, 0
      %p940 = por %p938, %p939
      %p941 = scmp.ne.s32.totalorder %s929, %s930
      %p942 = scmp.eq.s32.totalorder %s88, 1
      %p943 = por %p941, %p942
      %p945 = scmp.ne.s32.totalorder %s930, %s944
      %p946 = scmp.eq.s32.totalorder %s88, 0
      %p947 = por %p945, %p946
      %p948 = scmp.le.s32.totalorder 1, %s82
      %p949 = scmp.lt.s32.totalorder %s82, 3
      %p950 = pnand %p948, %p949
      %p951 = pneg %p950
      // Predicated region
      $region9: #{base_model_forward.1} parent=5 // pred_check
        _
      $region10: #{base_model_forward.1} parent=5 // pred_check_branch
        %953 = sbr.rel (%p950) target = $region12
      $region11: #{base_model_forward.1} parent=5 // pred_region
        %s954 = ssub.s32 %s82, 1
        // Predicated region
        $region13: #{base_model_forward.1} parent=11 // pred_check
          %p955 = pneg %p103
        $region14: #{base_model_forward.1} parent=11 // pred_check_branch
          %957 = sbr.rel (%p955) target = $region16
        $region15: #{base_model_forward.1} parent=11 // pred_region
          _
        $region16: #{base_model_forward.1} parent=11 // pred_fallthru
          _
        // Predicated region
        $region17: #{base_model_forward.1} parent=11 // pred_check
          %p958 = pneg %p124
        $region18: #{base_model_forward.1} parent=11 // pred_check_branch
          %960 = sbr.rel (%p958) target = $region20
        $region19: #{base_model_forward.1} parent=11 // pred_region
          _
        $region20: #{base_model_forward.1} parent=11 // pred_fallthru
          _
        // Predicated region
        $region21: #{base_model_forward.1} parent=11 // pred_check
          %p961 = pneg %p145
        $region22: #{base_model_forward.1} parent=11 // pred_check_branch
          %963 = sbr.rel (%p961) target = $region24
        $region23: #{base_model_forward.1} parent=11 // pred_region
          _
        $region24: #{base_model_forward.1} parent=11 // pred_fallthru
          _
        // Predicated region
        $region25: #{base_model_forward.1} parent=11 // pred_check
          %p964 = pneg %p166
        $region26: #{base_model_forward.1} parent=11 // pred_check_branch
          %966 = sbr.rel (%p964) target = $region28
        $region27: #{base_model_forward.1} parent=11 // pred_region
          _
        $region28: #{base_model_forward.1} parent=11 // pred_fallthru
          _
        // Predicated region
        $region29: #{base_model_forward.1} parent=11 // pred_check
          %p967 = pneg %p187
        $region30: #{base_model_forward.1} parent=11 // pred_check_branch
          %969 = sbr.rel (%p967) target = $region32
        $region31: #{base_model_forward.1} parent=11 // pred_region
          _
        $region32: #{base_model_forward.1} parent=11 // pred_fallthru
          _
        // Predicated region
        $region33: #{base_model_forward.1} parent=11 // pred_check
          %p970 = pneg %p208
        $region34: #{base_model_forward.1} parent=11 // pred_check_branch
          %972 = sbr.rel (%p970) target = $region36
        $region35: #{base_model_forward.1} parent=11 // pred_region
          _
        $region36: #{base_model_forward.1} parent=11 // pred_fallthru
          _
        // Predicated region
        $region37: #{base_model_forward.1} parent=11 // pred_check
          %p973 = pneg %p229
        $region38: #{base_model_forward.1} parent=11 // pred_check_branch
          %975 = sbr.rel (%p973) target = $region40
        $region39: #{base_model_forward.1} parent=11 // pred_region
          _
        $region40: #{base_model_forward.1} parent=11 // pred_fallthru
          _
        // Predicated region
        $region41: #{base_model_forward.1} parent=11 // pred_check
          %p976 = pneg %p250
        $region42: #{base_model_forward.1} parent=11 // pred_check_branch
          %978 = sbr.rel (%p976) target = $region44
        $region43: #{base_model_forward.1} parent=11 // pred_region
          _
        $region44: #{base_model_forward.1} parent=11 // pred_fallthru
          _
        // Predicated region
        $region45: #{base_model_forward.1} parent=11 // pred_check
          %p979 = pneg %p271
        $region46: #{base_model_forward.1} parent=11 // pred_check_branch
          %981 = sbr.rel (%p979) target = $region48
        $region47: #{base_model_forward.1} parent=11 // pred_region
          _
        $region48: #{base_model_forward.1} parent=11 // pred_fallthru
          _
        // Predicated region
        $region49: #{base_model_forward.1} parent=11 // pred_check
          %p982 = pneg %p292
        $region50: #{base_model_forward.1} parent=11 // pred_check_branch
          %984 = sbr.rel (%p982) target = $region52
        $region51: #{base_model_forward.1} parent=11 // pred_region
          _
        $region52: #{base_model_forward.1} parent=11 // pred_fallthru
          _
        // Predicated region
        $region53: #{base_model_forward.1} parent=11 // pred_check
          %p985 = pneg %p313
        $region54: #{base_model_forward.1} parent=11 // pred_check_branch
          %987 = sbr.rel (%p985) target = $region56
        $region55: #{base_model_forward.1} parent=11 // pred_region
          _
        $region56: #{base_model_forward.1} parent=11 // pred_fallthru
          _
        // Predicated region
        $region57: #{base_model_forward.1} parent=11 // pred_check
          %p988 = pneg %p334
        $region58: #{base_model_forward.1} parent=11 // pred_check_branch
          %990 = sbr.rel (%p988) target = $region60
        $region59: #{base_model_forward.1} parent=11 // pred_region
          _
        $region60: #{base_model_forward.1} parent=11 // pred_fallthru
          _
        // Predicated region
        $region61: #{base_model_forward.1} parent=11 // pred_check
          %p991 = pneg %p355
        $region62: #{base_model_forward.1} parent=11 // pred_check_branch
          %993 = sbr.rel (%p991) target = $region64
        $region63: #{base_model_forward.1} parent=11 // pred_region
          _
        $region64: #{base_model_forward.1} parent=11 // pred_fallthru
          _
        // Predicated region
        $region65: #{base_model_forward.1} parent=11 // pred_check
          %p994 = pneg %p376
        $region66: #{base_model_forward.1} parent=11 // pred_check_branch
          %996 = sbr.rel (%p994) target = $region68
        $region67: #{base_model_forward.1} parent=11 // pred_region
          _
        $region68: #{base_model_forward.1} parent=11 // pred_fallthru
          _
        // Predicated region
        $region69: #{base_model_forward.1} parent=11 // pred_check
          %p997 = pneg %p397
        $region70: #{base_model_forward.1} parent=11 // pred_check_branch
          %999 = sbr.rel (%p997) target = $region72
        $region71: #{base_model_forward.1} parent=11 // pred_region
          _
        $region72: #{base_model_forward.1} parent=11 // pred_fallthru
          _
        // Predicated region
        $region73: #{base_model_forward.1} parent=11 // pred_check
          %p1000 = pneg %p418
        $region74: #{base_model_forward.1} parent=11 // pred_check_branch
          %1002 = sbr.rel (%p1000) target = $region76
        $region75: #{base_model_forward.1} parent=11 // pred_region
          _
        $region76: #{base_model_forward.1} parent=11 // pred_fallthru
          _
        // Predicated region
        $region77: #{base_model_forward.1} parent=11 // pred_check
          %p1003 = pneg %p439
        $region78: #{base_model_forward.1} parent=11 // pred_check_branch
          %1005 = sbr.rel (%p1003) target = $region80
        $region79: #{base_model_forward.1} parent=11 // pred_region
          _
        $region80: #{base_model_forward.1} parent=11 // pred_fallthru
          _
        // Predicated region
        $region81: #{base_model_forward.1} parent=11 // pred_check
          %p1006 = pneg %p460
        $region82: #{base_model_forward.1} parent=11 // pred_check_branch
          %1008 = sbr.rel (%p1006) target = $region84
        $region83: #{base_model_forward.1} parent=11 // pred_region
          _
        $region84: #{base_model_forward.1} parent=11 // pred_fallthru
          _
        // Predicated region
        $region85: #{base_model_forward.1} parent=11 // pred_check
          %p1009 = pneg %p481
        $region86: #{base_model_forward.1} parent=11 // pred_check_branch
          %1011 = sbr.rel (%p1009) target = $region88
        $region87: #{base_model_forward.1} parent=11 // pred_region
          _
        $region88: #{base_model_forward.1} parent=11 // pred_fallthru
          _
        // Predicated region
        $region89: #{base_model_forward.1} parent=11 // pred_check
          %p1012 = pneg %p814
        $region90: #{base_model_forward.1} parent=11 // pred_check_branch
          %1014 = sbr.rel (%p1012) target = $region92
        $region91: #{base_model_forward.1} parent=11 // pred_region
          _
        $region92: #{base_model_forward.1} parent=11 // pred_fallthru
          _
        // Predicated region
        $region93: #{base_model_forward.1} parent=11 // pred_check
          %p1015 = pneg %p835
        $region94: #{base_model_forward.1} parent=11 // pred_check_branch
          %1017 = sbr.rel (%p1015) target = $region96
        $region95: #{base_model_forward.1} parent=11 // pred_region
          _
        $region96: #{base_model_forward.1} parent=11 // pred_fallthru
          _
        // Predicated region
        $region97: #{base_model_forward.1} parent=11 // pred_check
          %p1018 = pneg %p856
        $region98: #{base_model_forward.1} parent=11 // pred_check_branch
          %1020 = sbr.rel (%p1018) target = $region100
        $region99: #{base_model_forward.1} parent=11 // pred_region
          _
        $region100: #{base_model_forward.1} parent=11 // pred_fallthru
          _
        // Predicated region
        $region101: #{base_model_forward.1} parent=11 // pred_check
          %p1021 = pneg %p877
        $region102: #{base_model_forward.1} parent=11 // pred_check_branch
          %1023 = sbr.rel (%p1021) target = $region104
        $region103: #{base_model_forward.1} parent=11 // pred_region
          _
        $region104: #{base_model_forward.1} parent=11 // pred_fallthru
          _
        // Predicated region
        $region105: #{base_model_forward.1} parent=11 // pred_check
          %p1024 = pneg %p898
        $region106: #{base_model_forward.1} parent=11 // pred_check_branch
          %1026 = sbr.rel (%p1024) target = $region108
        $region107: #{base_model_forward.1} parent=11 // pred_region
          _
        $region108: #{base_model_forward.1} parent=11 // pred_fallthru
          _
        // Predicated region
        $region109: #{base_model_forward.1} parent=11 // pred_check
          %p1027 = pneg %p919
        $region110: #{base_model_forward.1} parent=11 // pred_check_branch
          %1029 = sbr.rel (%p1027) target = $region112
        $region111: #{base_model_forward.1} parent=11 // pred_region
          _
        $region112: #{base_model_forward.1} parent=11 // pred_fallthru
          _
      $region12: #{base_model_forward.1} parent=5 // pred_fallthru
        _
      %p1030 = scmp.lt.s32.totalorder %s82, 2
      // Predicated region
      $region113: #{base_model_forward.1} parent=5 // pred_check
        %p1031 = pneg %p1030
      $region114: #{base_model_forward.1} parent=5 // pred_check_branch
        %1033 = sbr.rel (%p1031) target = $region116
      $region115: #{base_model_forward.1} parent=5 // pred_region
        // Predicated region
        $region117: #{base_model_forward.1} parent=115 // pred_check
          %p1034 = pneg %p501
        $region118: #{base_model_forward.1} parent=115 // pred_check_branch
          %1036 = sbr.rel (%p1034) target = $region120
        $region119: #{base_model_forward.1} parent=115 // pred_region
          %p1037 = scmp.lt.s32.totalorder %s82, 1
          %s1038 = scalar_select %p1037, %s82, 1
          %s1039 = scalar_lea.vmem %s39, %s1038
        $region120: #{base_model_forward.1} parent=115 // pred_fallthru
          _
        // Predicated region
        $region121: #{base_model_forward.1} parent=115 // pred_check
          %p1040 = pneg %p527
        $region122: #{base_model_forward.1} parent=115 // pred_check_branch
          %1042 = sbr.rel (%p1040) target = $region124
        $region123: #{base_model_forward.1} parent=115 // pred_region
          %p1043 = scmp.lt.s32.totalorder %s82, 1
          %s1044 = scalar_select %p1043, %s82, 1
          %s1045 = scalar_lea.vmem %s41, %s1044
        $region124: #{base_model_forward.1} parent=115 // pred_fallthru
          _
        // Predicated region
        $region125: #{base_model_forward.1} parent=115 // pred_check
          %p1046 = pneg %p553
        $region126: #{base_model_forward.1} parent=115 // pred_check_branch
          %1048 = sbr.rel (%p1046) target = $region128
        $region127: #{base_model_forward.1} parent=115 // pred_region
          %p1049 = scmp.lt.s32.totalorder %s82, 1
          %s1050 = scalar_select %p1049, %s82, 1
          %s1051 = smul.addr %s1050, 4
          %s1052 = smul.addr %s1051, 8
          %s1053 = scalar_lea.vmem %s43, %s1052
        $region128: #{base_model_forward.1} parent=115 // pred_fallthru
          _
        // Predicated region
        $region129: #{base_model_forward.1} parent=115 // pred_check
          %p1054 = pneg %p579
        $region130: #{base_model_forward.1} parent=115 // pred_check_branch
          %1056 = sbr.rel (%p1054) target = $region132
        $region131: #{base_model_forward.1} parent=115 // pred_region
          %p1057 = scmp.lt.s32.totalorder %s82, 1
          %s1058 = scalar_select %p1057, %s82, 1
          %s1059 = scalar_lea.vmem %s45, %s1058
        $region132: #{base_model_forward.1} parent=115 // pred_fallthru
          _
        // Predicated region
        $region133: #{base_model_forward.1} parent=115 // pred_check
          %p1060 = pneg %p605
        $region134: #{base_model_forward.1} parent=115 // pred_check_branch
          %1062 = sbr.rel (%p1060) target = $region136
        $region135: #{base_model_forward.1} parent=115 // pred_region
          %p1063 = scmp.lt.s32.totalorder %s82, 1
          %s1064 = scalar_select %p1063, %s82, 1
          %s1065 = smul.addr %s1064, 4
          %s1066 = smul.addr %s1065, 8
          %s1067 = scalar_lea.vmem %s47, %s1066
        $region136: #{base_model_forward.1} parent=115 // pred_fallthru
          _
        // Predicated region
        $region137: #{base_model_forward.1} parent=115 // pred_check
          %p1068 = pneg %p631
        $region138: #{base_model_forward.1} parent=115 // pred_check_branch
          %1070 = sbr.rel (%p1068) target = $region140
        $region139: #{base_model_forward.1} parent=115 // pred_region
          %p1071 = scmp.lt.s32.totalorder %s82, 1
          %s1072 = scalar_select %p1071, %s82, 1
          %s1073 = scalar_lea.vmem %s49, %s1072
        $region140: #{base_model_forward.1} parent=115 // pred_fallthru
          _
        // Predicated region
        $region141: #{base_model_forward.1} parent=115 // pred_check
          %p1074 = pneg %p657
        $region142: #{base_model_forward.1} parent=115 // pred_check_branch
          %1076 = sbr.rel (%p1074) target = $region144
        $region143: #{base_model_forward.1} parent=115 // pred_region
          %p1077 = scmp.lt.s32.totalorder %s82, 1
          %s1078 = scalar_select %p1077, %s82, 1
          %s1079 = scalar_lea.vmem %s51, %s1078
        $region144: #{base_model_forward.1} parent=115 // pred_fallthru
          _
        // Predicated region
        $region145: #{base_model_forward.1} parent=115 // pred_check
          %p1080 = pneg %p683
        $region146: #{base_model_forward.1} parent=115 // pred_check_branch
          %1082 = sbr.rel (%p1080) target = $region148
        $region147: #{base_model_forward.1} parent=115 // pred_region
          %p1083 = scmp.lt.s32.totalorder %s82, 1
          %s1084 = scalar_select %p1083, %s82, 1
          %s1085 = scalar_lea.vmem %s53, %s1084
        $region148: #{base_model_forward.1} parent=115 // pred_fallthru
          _
        // Predicated region
        $region149: #{base_model_forward.1} parent=115 // pred_check
          %p1086 = pneg %p709
        $region150: #{base_model_forward.1} parent=115 // pred_check_branch
          %1088 = sbr.rel (%p1086) target = $region152
        $region151: #{base_model_forward.1} parent=115 // pred_region
          %p1089 = scmp.lt.s32.totalorder %s82, 1
          %s1090 = scalar_select %p1089, %s82, 1
          %s1091 = smul.addr %s1090, 4
          %s1092 = smul.addr %s1091, 8
          %s1093 = scalar_lea.vmem %s55, %s1092
        $region152: #{base_model_forward.1} parent=115 // pred_fallthru
          _
        // Predicated region
        $region153: #{base_model_forward.1} parent=115 // pred_check
          %p1094 = pneg %p735
        $region154: #{base_model_forward.1} parent=115 // pred_check_branch
          %1096 = sbr.rel (%p1094) target = $region156
        $region155: #{base_model_forward.1} parent=115 // pred_region
          %p1097 = scmp.lt.s32.totalorder %s82, 1
          %s1098 = scalar_select %p1097, %s82, 1
          %s1099 = scalar_lea.vmem %s57, %s1098
        $region156: #{base_model_forward.1} parent=115 // pred_fallthru
          _
        // Predicated region
        $region157: #{base_model_forward.1} parent=115 // pred_check
          %p1100 = pneg %p761
        $region158: #{base_model_forward.1} parent=115 // pred_check_branch
          %1102 = sbr.rel (%p1100) target = $region160
        $region159: #{base_model_forward.1} parent=115 // pred_region
          %p1103 = scmp.lt.s32.totalorder %s82, 1
          %s1104 = scalar_select %p1103, %s82, 1
          %s1105 = smul.addr %s1104, 8
          %s1106 = smul.addr %s1105, 8
          %s1107 = scalar_lea.vmem %s59, %s1106
        $region160: #{base_model_forward.1} parent=115 // pred_fallthru
          _
        // Predicated region
        $region161: #{base_model_forward.1} parent=115 // pred_check
          %p1108 = pneg %p787
        $region162: #{base_model_forward.1} parent=115 // pred_check_branch
          %1110 = sbr.rel (%p1108) target = $region164
        $region163: #{base_model_forward.1} parent=115 // pred_region
          %p1111 = scmp.lt.s32.totalorder %s82, 1
          %s1112 = scalar_select %p1111, %s82, 1
          %s1113 = scalar_lea.vmem %s61, %s1112
        $region164: #{base_model_forward.1} parent=115 // pred_fallthru
          _
      $region116: #{base_model_forward.1} parent=5 // pred_fallthru
        _
      %p1114 = scmp.le.s32.totalorder 1, %s82
      %p1115 = scmp.lt.s32.totalorder %s82, 3
      %p1116 = pnand %p1114, %p1115
      %p1117 = pneg %p1116
      // Predicated region
      $region165: #{base_model_forward.1} parent=5 // pred_check
        _
      $region166: #{base_model_forward.1} parent=5 // pred_check_branch
        %1119 = sbr.rel (%p1116) target = $region168
      $region167: #{base_model_forward.1} parent=5 // pred_region
        %s1120 = ssub.s32 %s82, 1
        %p1121 = pneg %p103
        %p1122 = pneg %p100
        %p1123 = pneg %p124
        %p1124 = pneg %p121
        %p1125 = pneg %p145
        %p1126 = pneg %p142
        %p1127 = pneg %p166
        %p1128 = pneg %p163
        %p1129 = pneg %p187
        %p1130 = pneg %p184
        %p1131 = pneg %p208
        %p1132 = pneg %p205
        %p1133 = pneg %p229
        %p1134 = pneg %p226
        %p1135 = pneg %p250
        %p1136 = pneg %p247
        %p1137 = pneg %p271
        %p1138 = pneg %p268
        %p1139 = pneg %p292
        %p1140 = pneg %p289
        %p1141 = pneg %p313
        %p1142 = pneg %p310
        %p1143 = pneg %p334
        %p1144 = pneg %p331
        %p1145 = pneg %p355
        %p1146 = pneg %p352
        %p1147 = pneg %p376
        %p1148 = pneg %p373
        %p1149 = pneg %p397
        %p1150 = pneg %p394
        %p1151 = pneg %p418
        %p1152 = pneg %p415
        %p1153 = pneg %p439
        %p1154 = pneg %p436
        %p1155 = pneg %p460
        %p1156 = pneg %p457
        %p1157 = pneg %p481
        %p1158 = pneg %p478
        %p1159 = scmp.lt.s32.totalorder %s87, 1
        %s1160 = scalar_select %p1159, %s87, 1
        %s1161 = scalar_lea.vmem %s39, %s1160
        %p1162 = pneg %p507
        %p1163 = pneg %p504
        %p1164 = scmp.lt.s32.totalorder %s87, 1
        %s1165 = scalar_select %p1164, %s87, 1
        %s1166 = scalar_lea.vmem %s41, %s1165
        %p1167 = pneg %p533
        %p1168 = pneg %p530
        %p1169 = scmp.lt.s32.totalorder %s87, 1
        %s1170 = scalar_select %p1169, %s87, 1
        %s1171 = smul.addr %s1170, 4
        %s1172 = smul.addr %s1171, 8
        %s1173 = scalar_lea.vmem %s43, %s1172
        %p1174 = pneg %p559
        %p1175 = pneg %p556
        %p1176 = scmp.lt.s32.totalorder %s87, 1
        %s1177 = scalar_select %p1176, %s87, 1
        %s1178 = scalar_lea.vmem %s45, %s1177
        %p1179 = pneg %p585
        %p1180 = pneg %p582
        %p1181 = scmp.lt.s32.totalorder %s87, 1
        %s1182 = scalar_select %p1181, %s87, 1
        %s1183 = smul.addr %s1182, 4
        %s1184 = smul.addr %s1183, 8
        %s1185 = scalar_lea.vmem %s47, %s1184
        %p1186 = pneg %p611
        %p1187 = pneg %p608
        %p1188 = scmp.lt.s32.totalorder %s87, 1
        %s1189 = scalar_select %p1188, %s87, 1
        %s1190 = scalar_lea.vmem %s49, %s1189
        %p1191 = pneg %p637
        %p1192 = pneg %p634
        %p1193 = scmp.lt.s32.totalorder %s87, 1
        %s1194 = scalar_select %p1193, %s87, 1
        %s1195 = scalar_lea.vmem %s51, %s1194
        %p1196 = pneg %p663
        %p1197 = pneg %p660
        %p1198 = scmp.lt.s32.totalorder %s87, 1
        %s1199 = scalar_select %p1198, %s87, 1
        %s1200 = scalar_lea.vmem %s53, %s1199
        %p1201 = pneg %p689
        %p1202 = pneg %p686
        %p1203 = scmp.lt.s32.totalorder %s87, 1
        %s1204 = scalar_select %p1203, %s87, 1
        %s1205 = smul.addr %s1204, 4
        %s1206 = smul.addr %s1205, 8
        %s1207 = scalar_lea.vmem %s55, %s1206
        %p1208 = pneg %p715
        %p1209 = pneg %p712
        %p1210 = scmp.lt.s32.totalorder %s87, 1
        %s1211 = scalar_select %p1210, %s87, 1
        %s1212 = scalar_lea.vmem %s57, %s1211
        %p1213 = pneg %p741
        %p1214 = pneg %p738
        %p1215 = scmp.lt.s32.totalorder %s87, 1
        %s1216 = scalar_select %p1215, %s87, 1
        %s1217 = smul.addr %s1216, 8
        %s1218 = smul.addr %s1217, 8
        %s1219 = scalar_lea.vmem %s59, %s1218
        %p1220 = pneg %p767
        %p1221 = pneg %p764
        %p1222 = scmp.lt.s32.totalorder %s87, 1
        %s1223 = scalar_select %p1222, %s87, 1
        %s1224 = scalar_lea.vmem %s61, %s1223
        %p1225 = pneg %p793
        %p1226 = pneg %p790
        %p1227 = pneg %p814
        %p1228 = pneg %p811
        %p1229 = pneg %p835
        %p1230 = pneg %p832
        %p1231 = pneg %p856
        %p1232 = pneg %p853
        %p1233 = pneg %p877
        %p1234 = pneg %p874
        %p1235 = pneg %p898
        %p1236 = pneg %p895
        %p1237 = pneg %p919
        %p1238 = pneg %p916
        %p1239 = pneg %p940
        %p1240 = pneg %p937
        %p1241 = scmp.lt.s32.totalorder %s87, 1
        %s1242 = scalar_select %p1241, %s87, 1
        %s1243 = scalar_lea.vmem %s39, %s1242
        %p1244 = scmp.lt.s32.totalorder %s87, 1
        %s1245 = scalar_select %p1244, %s87, 1
        %s1246 = scalar_lea.vmem %s41, %s1245
        %p1247 = scmp.lt.s32.totalorder %s87, 1
        %s1248 = scalar_select %p1247, %s87, 1
        %s1249 = smul.addr %s1248, 4
        %s1250 = smul.addr %s1249, 8
        %s1251 = scalar_lea.vmem %s43, %s1250
        %p1252 = scmp.lt.s32.totalorder %s87, 1
        %s1253 = scalar_select %p1252, %s87, 1
        %s1254 = scalar_lea.vmem %s45, %s1253
        %p1255 = scmp.lt.s32.totalorder %s87, 1
        %s1256 = scalar_select %p1255, %s87, 1
        %s1257 = smul.addr %s1256, 4
        %s1258 = smul.addr %s1257, 8
        %s1259 = scalar_lea.vmem %s47, %s1258
        %p1260 = scmp.lt.s32.totalorder %s87, 1
        %s1261 = scalar_select %p1260, %s87, 1
        %s1262 = scalar_lea.vmem %s49, %s1261
        %p1263 = scmp.lt.s32.totalorder %s87, 1
        %s1264 = scalar_select %p1263, %s87, 1
        %s1265 = scalar_lea.vmem %s51, %s1264
        %p1266 = scmp.lt.s32.totalorder %s87, 1
        %s1267 = scalar_select %p1266, %s87, 1
        %s1268 = scalar_lea.vmem %s53, %s1267
        %p1269 = scmp.lt.s32.totalorder %s87, 1
        %s1270 = scalar_select %p1269, %s87, 1
        %s1271 = smul.addr %s1270, 4
        %s1272 = smul.addr %s1271, 8
        %s1273 = scalar_lea.vmem %s55, %s1272
        %p1274 = scmp.lt.s32.totalorder %s87, 1
        %s1275 = scalar_select %p1274, %s87, 1
        %s1276 = scalar_lea.vmem %s57, %s1275
        %p1277 = scmp.lt.s32.totalorder %s87, 1
        %s1278 = scalar_select %p1277, %s87, 1
        %s1279 = smul.addr %s1278, 8
        %s1280 = smul.addr %s1279, 8
        %s1281 = scalar_lea.vmem %s59, %s1280
        %p1282 = scmp.lt.s32.totalorder %s87, 1
        %s1283 = scalar_select %p1282, %s87, 1
        %s1284 = scalar_lea.vmem %s61, %s1283
        %p1285 = scmp.eq.s32.totalorder %s87, 0
        // Predicated region
        $region169: #{base_model_forward.1} parent=167 // pred_check
          %p1286 = pneg %p1285
        $region170: #{base_model_forward.1} parent=167 // pred_check_branch
          %1288 = sbr.rel (%p1286) target = $region172
        $region171: #{base_model_forward.1} parent=167 // pred_region
          %v1289 = vld [vmem:[%s1] sm:$0xff]
          %v1290 = vld [vmem:[%s1 + $0x8] sm:$0xff]
          %v1291 = vld [vmem:[%s1 + $0x10] sm:$0xff]
          %v1292 = vld [vmem:[%s1 + $0x18] sm:$0xff]
          %v1293 = vld [vmem:[%s1 + $0x20] sm:$0xff]
          %v1294 = vld [vmem:[%s1 + $0x28] sm:$0xff]
          %v1295 = vld [vmem:[%s1 + $0x30] sm:$0xff]
          %v1296 = vld [vmem:[%s1 + $0x38] sm:$0xff]
          %v1297 = vld [vmem:[%s1 + $0x40] sm:$0xff]
          %v1298 = vld [vmem:[%s1 + $0x48] sm:$0xff]
          %v1299 = vld [vmem:[%s1 + $0x50] sm:$0xff]
          %v1300 = vld [vmem:[%s1 + $0x58] sm:$0xff]
          %v1301 = vld [vmem:[%s1 + $0x60] sm:$0xff]
          %v1302 = vld [vmem:[%s1 + $0x68] sm:$0xff]
          %v1303 = vld [vmem:[%s1 + $0x70] sm:$0xff]
          %v1304 = vld [vmem:[%s1 + $0x78] sm:$0x3f]
          %v1305 = vld [vmem:[%s3] sm:$0xff]
          %v1306 = vld [vmem:[%s3 + $0x8] sm:$0x3]
          %v1307 = vld [vmem:[%s5] sm:$0x1]
          %v1309 = vlaneseq
          %v1310 = vshrl.u32 %v1309, 7
          %v1311 = vsub.s32 0, %v1310
          %v1312 = vrot.slane %v1307, %v1311
          %vm1314 = vcmask 80896
          %v1316 = vsel %vm1314, %v1289, 0
          %v1319 = vsel %vm1314, %v1290, 0
          %v1322 = vsel %vm1314, %v1291, 0
          %v1325 = vsel %vm1314, %v1292, 0
          %v1328 = vsel %vm1314, %v1293, 0
          %v1331 = vsel %vm1314, %v1294, 0
          %v1334 = vsel %vm1314, %v1295, 0
          %v1337 = vsel %vm1314, %v1296, 0
          %v1340 = vsel %vm1314, %v1297, 0
          %v1343 = vsel %vm1314, %v1298, 0
          %v1346 = vsel %vm1314, %v1299, 0
          %v1349 = vsel %vm1314, %v1300, 0
          %v1352 = vsel %vm1314, %v1301, 0
          %v1355 = vsel %vm1314, %v1302, 0
          %v1358 = vsel %vm1314, %v1303, 0
          %v1361 = vsel %vm1314, %v1304, 0
          %vm1363 = vcmask 1041408
          %v1365 = vsel %vm1363, %v1306, 0
          %1367 = vmatprep.subr.mxu0 0.0
          %1368 = vmatpush1.msra.mxu0 %v1305
          %1369 = vmatprep.subr.mxu0 0.0
          %1370 = vmatpush1.msra.mxu0 %v1365
          %1371 = vmatprep.subr.mxu0 0.0
          %1372 = vmatpush1.msra.mxu0 0.0
          %1373 = vmatprep.subr.mxu0 0.0
          %1374 = vmatpush1.msra.mxu0 0.0
          %1375 = vmatprep.subr.mxu0 0.0
          %1376 = vmatpush1.msra.mxu0 0.0
          %1377 = vmatprep.subr.mxu0 0.0
          %1378 = vmatpush1.msra.mxu0 0.0
          %1379 = vmatprep.subr.mxu0 0.0
          %1380 = vmatpush1.msra.mxu0 0.0
          %1381 = vmatprep.subr.mxu0 0.0
          %1382 = vmatpush1.msra.mxu0 0.0
          %1383 = vmatprep.subr.mxu0 0.0
          %1384 = vmatpush1.msra.mxu0 0.0
          %1385 = vmatprep.subr.mxu0 0.0
          %1386 = vmatpush1.msra.mxu0 0.0
          %1387 = vmatprep.subr.mxu0 0.0
          %1388 = vmatpush1.msra.mxu0 0.0
          %1389 = vmatprep.subr.mxu0 0.0
          %1390 = vmatpush1.msra.mxu0 0.0
          %1391 = vmatprep.subr.mxu0 0.0
          %1392 = vmatpush1.msra.mxu0 0.0
          %1393 = vmatprep.subr.mxu0 0.0
          %1394 = vmatpush1.msra.mxu0 0.0
          %1395 = vmatprep.subr.mxu0 0.0
          %1396 = vmatpush1.msra.mxu0 0.0
          %1397 = vmatprep.subr.mxu0 0.0
          %1398 = vmatpush1.msra.mxu0 0.0
          %1399 = vmatprep.subr.mxu0 0.0
          %1400 = vmatpush1.msra.mxu0 0.0
          %1401 = vmatprep.subr.mxu0 0.0
          %1402 = vmatpush1.msra.mxu0 0.0
          %1403 = vmatprep.subr.mxu0 0.0
          %1404 = vmatpush1.msra.mxu0 0.0
          %1405 = vmatprep.subr.mxu0 0.0
          %1406 = vmatpush1.msra.mxu0 0.0
          %1407 = vmatprep.subr.mxu0 0.0
          %1408 = vmatpush1.msra.mxu0 0.0
          %1409 = vmatprep.subr.mxu0 0.0
          %1410 = vmatpush1.msra.mxu0 0.0
          %1411 = vmatprep.subr.mxu0 0.0
          %1412 = vmatpush1.msra.mxu0 0.0
          %1413 = vmatprep.subr.mxu0 0.0
          %1414 = vmatpush1.msra.mxu0 0.0
          %1415 = vmatprep.subr.mxu0 0.0
          %1416 = vmatpush1.msra.mxu0 0.0
          %1417 = vmatprep.subr.mxu0 0.0
          %1418 = vmatpush1.msra.mxu0 0.0
          %1419 = vmatprep.subr.mxu0 0.0
          %1420 = vmatpush1.msra.mxu0 0.0
          %1421 = vmatprep.subr.mxu0 0.0
          %1422 = vmatpush1.msra.mxu0 0.0
          %1423 = vmatprep.subr.mxu0 0.0
          %1424 = vmatpush1.msra.mxu0 0.0
          %1425 = vmatprep.subr.mxu0 0.0
          %1426 = vmatpush1.msra.mxu0 0.0
          %1427 = vmatprep.subr.mxu0 0.0
          %1428 = vmatpush1.msra.mxu0 0.0
          %1429 = vmatprep.subr.mxu0 0.0
          %1430 = vmatpush1.msra.mxu0 0.0
          %1431 = vmatprep.mubr.f32.mxu0 0.0
          %1432 = vmatmul.mubr.f32.gmra.mrb[0].mxu0 %v1316
          %v1433 = vpop.f32.mrb[0].mxu0
          %v1434 = vadd.f32 %v1312, %v1433
          %v1435 = vpop.f32.mrb[0].mxu0
          %1436 = vmatprep.mubr.f32.mxu0 0.0
          %1437 = vmatmul.mubr.f32.gmra.mrb[0].mxu0 %v1319
          %v1438 = vpop.f32.mrb[0].mxu0
          %v1439 = vadd.f32 %v1312, %v1438
          %v1440 = vpop.f32.mrb[0].mxu0
          %1441 = vmatprep.mubr.f32.mxu0 0.0
          %1442 = vmatmul.mubr.f32.gmra.mrb[0].mxu0 %v1322
          %v1443 = vpop.f32.mrb[0].mxu0
          %v1444 = vadd.f32 %v1312, %v1443
          %v1445 = vpop.f32.mrb[0].mxu0
          %1446 = vmatprep.mubr.f32.mxu0 0.0
          %1447 = vmatmul.mubr.f32.gmra.mrb[0].mxu0 %v1325
          %v1448 = vpop.f32.mrb[0].mxu0
          %v1449 = vadd.f32 %v1312, %v1448
          %v1450 = vpop.f32.mrb[0].mxu0
          %1451 = vmatprep.mubr.f32.mxu0 0.0
          %1452 = vmatmul.mubr.f32.gmra.mrb[0].mxu0 %v1328
          %v1453 = vpop.f32.mrb[0].mxu0
          %v1454 = vadd.f32 %v1312, %v1453
          %v1455 = vpop.f32.mrb[0].mxu0
          %1456 = vmatprep.mubr.f32.mxu0 0.0
          %1457 = vmatmul.mubr.f32.gmra.mrb[0].mxu0 %v1331
          %v1458 = vpop.f32.mrb[0].mxu0
          %v1459 = vadd.f32 %v1312, %v1458
          %v1460 = vpop.f32.mrb[0].mxu0
          %1461 = vmatprep.mubr.f32.mxu0 0.0
          %1462 = vmatmul.mubr.f32.gmra.mrb[0].mxu0 %v1334
          %v1463 = vpop.f32.mrb[0].mxu0
          %v1464 = vadd.f32 %v1312, %v1463
          %v1465 = vpop.f32.mrb[0].mxu0
          %1466 = vmatprep.mubr.f32.mxu0 0.0
          %1467 = vmatmul.mubr.f32.gmra.mrb[0].mxu0 %v1337
          %v1468 = vpop.f32.mrb[0].mxu0
          %v1469 = vadd.f32 %v1312, %v1468
          %v1470 = vpop.f32.mrb[0].mxu0
          %1471 = vmatprep.mubr.f32.mxu0 0.0
          %1472 = vmatmul.mubr.f32.gmra.mrb[0].mxu0 %v1340
          %v1473 = vpop.f32.mrb[0].mxu0
          %v1474 = vadd.f32 %v1312, %v1473
          %v1475 = vpop.f32.mrb[0].mxu0
          %1476 = vmatprep.mubr.f32.mxu0 0.0
          %1477 = vmatmul.mubr.f32.gmra.mrb[0].mxu0 %v1343
          %v1478 = vpop.f32.mrb[0].mxu0
          %v1479 = vadd.f32 %v1312, %v1478
          %v1480 = vpop.f32.mrb[0].mxu0
          %1481 = vmatprep.mubr.f32.mxu0 0.0
          %1482 = vmatmul.mubr.f32.gmra.mrb[0].mxu0 %v1346
          %v1483 = vpop.f32.mrb[0].mxu0
          %v1484 = vadd.f32 %v1312, %v1483
          %v1485 = vpop.f32.mrb[0].mxu0
          %1486 = vmatprep.mubr.f32.mxu0 0.0
          %1487 = vmatmul.mubr.f32.gmra.mrb[0].mxu0 %v1349
          %v1488 = vpop.f32.mrb[0].mxu0
          %v1489 = vadd.f32 %v1312, %v1488
          %v1490 = vpop.f32.mrb[0].mxu0
          %1491 = vmatprep.mubr.f32.mxu0 0.0
          %1492 = vmatmul.mubr.f32.gmra.mrb[0].mxu0 %v1352
          %v1493 = vpop.f32.mrb[0].mxu0
          %v1494 = vadd.f32 %v1312, %v1493
          %v1495 = vpop.f32.mrb[0].mxu0
          %1496 = vmatprep.mubr.f32.mxu0 0.0
          %1497 = vmatmul.mubr.f32.gmra.mrb[0].mxu0 %v1355
          %v1498 = vpop.f32.mrb[0].mxu0
          %v1499 = vadd.f32 %v1312, %v1498
          %v1500 = vpop.f32.mrb[0].mxu0
          %1501 = vmatprep.mubr.f32.mxu0 0.0
          %1502 = vmatmul.mubr.f32.gmra.mrb[0].mxu0 %v1358
          %v1503 = vpop.f32.mrb[0].mxu0
          %v1504 = vadd.f32 %v1312, %v1503
          %v1505 = vpop.f32.mrb[0].mxu0
          %1506 = vmatprep.mubr.f32.mxu0 0.0
          %1507 = vmatmul.mubr.f32.gmra.mrb[0].mxu0 %v1361
          %v1508 = vpop.f32.mrb[0].mxu0
          %v1509 = vadd.f32 %v1312, %v1508
          %v1510 = vpop.f32.mrb[0].mxu0
          %1511 = vdwg.mxu0
          %v1512 = vld [vmem:[%s7] sm:$0x1]
          %v1513 = vld [vmem:[%s9] sm:$0x1]
          %vm1514 = vcmask 261120
          %v1515 = vsel %vm1514, %v1434, 0.0
          %1516 = vadd.xlane.f32.xlu0 %v1515
          %v1517 = vpop.xlane.xlu0 %1516
          %v1518 = vsel %vm1514, %v1439, 0.0
          %1519 = vadd.xlane.f32.xlu0 %v1518
          %v1520 = vpop.xlane.xlu0 %1519
          %v1521 = vsel %vm1514, %v1444, 0.0
          %1522 = vadd.xlane.f32.xlu0 %v1521
          %v1523 = vpop.xlane.xlu0 %1522
          %v1524 = vsel %vm1514, %v1449, 0.0
          %1525 = vadd.xlane.f32.xlu0 %v1524
          %v1526 = vpop.xlane.xlu0 %1525
          %v1527 = vsel %vm1514, %v1454, 0.0
          %1528 = vadd.xlane.f32.xlu0 %v1527
          %v1529 = vpop.xlane.xlu0 %1528
          %v1530 = vsel %vm1514, %v1459, 0.0
          %1531 = vadd.xlane.f32.xlu0 %v1530
          %v1532 = vpop.xlane.xlu0 %1531
          %v1533 = vsel %vm1514, %v1464, 0.0
          %1534 = vadd.xlane.f32.xlu0 %v1533
          %v1535 = vpop.xlane.xlu0 %1534
          %v1536 = vsel %vm1514, %v1469, 0.0
          %1537 = vadd.xlane.f32.xlu0 %v1536
          %v1538 = vpop.xlane.xlu0 %1537
          %v1539 = vsel %vm1514, %v1474, 0.0
          %1540 = vadd.xlane.f32.xlu0 %v1539
          %v1541 = vpop.xlane.xlu0 %1540
          %v1542 = vsel %vm1514, %v1479, 0.0
          %1543 = vadd.xlane.f32.xlu0 %v1542
          %v1544 = vpop.xlane.xlu0 %1543
          %v1545 = vsel %vm1514, %v1484, 0.0
          %1546 = vadd.xlane.f32.xlu0 %v1545
          %v1547 = vpop.xlane.xlu0 %1546
          %v1548 = vsel %vm1514, %v1489, 0.0
          %1549 = vadd.xlane.f32.xlu0 %v1548
          %v1550 = vpop.xlane.xlu0 %1549
          %v1551 = vsel %vm1514, %v1494, 0.0
          %1552 = vadd.xlane.f32.xlu0 %v1551
          %v1553 = vpop.xlane.xlu0 %1552
          %v1554 = vsel %vm1514, %v1499, 0.0
          %1555 = vadd.xlane.f32.xlu0 %v1554
          %v1556 = vpop.xlane.xlu0 %1555
          %v1557 = vsel %vm1514, %v1504, 0.0
          %1558 = vadd.xlane.f32.xlu0 %v1557
          %v1559 = vpop.xlane.xlu0 %1558
          %vm1560 = vcmask 259072
          %v1561 = vsel %vm1560, %v1509, 0.0
          %1562 = vadd.xlane.f32.xlu0 %v1561
          %v1563 = vpop.xlane.xlu0 %1562
          %v1564 = vrcp.pop 32.0
          %v1565 = vmul.f32 %v1517, %v1564
          %v1566 = vmul.f32 %v1520, %v1564
          %v1567 = vmul.f32 %v1523, %v1564
          %v1568 = vmul.f32 %v1526, %v1564
          %v1569 = vmul.f32 %v1529, %v1564
          %v1570 = vmul.f32 %v1532, %v1564
          %v1571 = vmul.f32 %v1535, %v1564
          %v1572 = vmul.f32 %v1538, %v1564
          %v1573 = vmul.f32 %v1541, %v1564
          %v1574 = vmul.f32 %v1544, %v1564
          %v1575 = vmul.f32 %v1547, %v1564
          %v1576 = vmul.f32 %v1550, %v1564
          %v1577 = vmul.f32 %v1553, %v1564
          %v1578 = vmul.f32 %v1556, %v1564
          %v1579 = vmul.f32 %v1559, %v1564
          %v1580 = vmul.f32 %v1563, %v1564
          %v1581 = vsub.f32 %v1434, %v1565
          %v1582 = vsub.f32 %v1439, %v1566
          %v1583 = vsub.f32 %v1444, %v1567
          %v1584 = vsub.f32 %v1449, %v1568
          %v1585 = vsub.f32 %v1454, %v1569
          %v1586 = vsub.f32 %v1459, %v1570
          %v1587 = vsub.f32 %v1464, %v1571
          %v1588 = vsub.f32 %v1469, %v1572
          %v1589 = vsub.f32 %v1474, %v1573
          %v1590 = vsub.f32 %v1479, %v1574
          %v1591 = vsub.f32 %v1484, %v1575
          %v1592 = vsub.f32 %v1489, %v1576
          %v1593 = vsub.f32 %v1494, %v1577
          %v1594 = vsub.f32 %v1499, %v1578
          %v1595 = vsub.f32 %v1504, %v1579
          %v1596 = vsub.f32 %v1509, %v1580
          %v1597 = vmul.f32 %v1581, %v1581
          %v1598 = vmul.f32 %v1582, %v1582
          %v1599 = vmul.f32 %v1583, %v1583
          %v1600 = vmul.f32 %v1584, %v1584
          %v1601 = vmul.f32 %v1585, %v1585
          %v1602 = vmul.f32 %v1586, %v1586
          %v1603 = vmul.f32 %v1587, %v1587
          %v1604 = vmul.f32 %v1588, %v1588
          %v1605 = vmul.f32 %v1589, %v1589
          %v1606 = vmul.f32 %v1590, %v1590
          %v1607 = vmul.f32 %v1591, %v1591
          %v1608 = vmul.f32 %v1592, %v1592
          %v1609 = vmul.f32 %v1593, %v1593
          %v1610 = vmul.f32 %v1594, %v1594
          %v1611 = vmul.f32 %v1595, %v1595
          %v1612 = vmul.f32 %v1596, %v1596
          %v1613 = vsel %vm1514, %v1597, 0.0
          %1614 = vadd.xlane.f32.xlu0 %v1613
          %v1615 = vpop.xlane.xlu0 %1614
          %v1616 = vsel %vm1514, %v1598, 0.0
          %1617 = vadd.xlane.f32.xlu0 %v1616
          %v1618 = vpop.xlane.xlu0 %1617
          %v1619 = vsel %vm1514, %v1599, 0.0
          %1620 = vadd.xlane.f32.xlu0 %v1619
          %v1621 = vpop.xlane.xlu0 %1620
          %v1622 = vsel %vm1514, %v1600, 0.0
          %1623 = vadd.xlane.f32.xlu0 %v1622
          %v1624 = vpop.xlane.xlu0 %1623
          %v1625 = vsel %vm1514, %v1601, 0.0
          %1626 = vadd.xlane.f32.xlu0 %v1625
          %v1627 = vpop.xlane.xlu0 %1626
          %v1628 = vsel %vm1514, %v1602, 0.0
          %1629 = vadd.xlane.f32.xlu0 %v1628
          %v1630 = vpop.xlane.xlu0 %1629
          %v1631 = vsel %vm1514, %v1603, 0.0
          %1632 = vadd.xlane.f32.xlu0 %v1631
          %v1633 = vpop.xlane.xlu0 %1632
          %v1634 = vsel %vm1514, %v1604, 0.0
          %1635 = vadd.xlane.f32.xlu0 %v1634
          %v1636 = vpop.xlane.xlu0 %1635
          %v1637 = vsel %vm1514, %v1605, 0.0
          %1638 = vadd.xlane.f32.xlu0 %v1637
          %v1639 = vpop.xlane.xlu0 %1638
          %v1640 = vsel %vm1514, %v1606, 0.0
          %1641 = vadd.xlane.f32.xlu0 %v1640
          %v1642 = vpop.xlane.xlu0 %1641
          %v1643 = vsel %vm1514, %v1607, 0.0
          %1644 = vadd.xlane.f32.xlu0 %v1643
          %v1645 = vpop.xlane.xlu0 %1644
          %v1646 = vsel %vm1514, %v1608, 0.0
          %1647 = vadd.xlane.f32.xlu0 %v1646
          %v1648 = vpop.xlane.xlu0 %1647
          %v1649 = vsel %vm1514, %v1609, 0.0
          %1650 = vadd.xlane.f32.xlu0 %v1649
          %v1651 = vpop.xlane.xlu0 %1650
          %v1652 = vsel %vm1514, %v1610, 0.0
          %1653 = vadd.xlane.f32.xlu0 %v1652
          %v1654 = vpop.xlane.xlu0 %1653
          %v1655 = vsel %vm1514, %v1611, 0.0
          %1656 = vadd.xlane.f32.xlu0 %v1655
          %v1657 = vpop.xlane.xlu0 %1656
          %v1658 = vsel %vm1560, %v1612, 0.0
          %1659 = vadd.xlane.f32.xlu0 %v1658
          %v1660 = vpop.xlane.xlu0 %1659
          %v1661 = vmul.f32 %v1615, %v1564
          %v1662 = vmul.f32 %v1618, %v1564
          %v1663 = vmul.f32 %v1621, %v1564
          %v1664 = vmul.f32 %v1624, %v1564
          %v1665 = vmul.f32 %v1627, %v1564
          %v1666 = vmul.f32 %v1630, %v1564
          %v1667 = vmul.f32 %v1633, %v1564
          %v1668 = vmul.f32 %v1636, %v1564
          %v1669 = vmul.f32 %v1639, %v1564
          %v1670 = vmul.f32 %v1642, %v1564
          %v1671 = vmul.f32 %v1645, %v1564
          %v1672 = vmul.f32 %v1648, %v1564
          %v1673 = vmul.f32 %v1651, %v1564
          %v1674 = vmul.f32 %v1654, %v1564
          %v1675 = vmul.f32 %v1657, %v1564
          %v1676 = vmul.f32 %v1660, %v1564
          %v1677 = vadd.f32 %v1661, 1e-05
          %v1678 = vadd.f32 %v1662, 1e-05
          %v1679 = vadd.f32 %v1663, 1e-05
          %v1680 = vadd.f32 %v1664, 1e-05
          %v1681 = vadd.f32 %v1665, 1e-05
          %v1682 = vadd.f32 %v1666, 1e-05
          %v1683 = vadd.f32 %v1667, 1e-05
          %v1684 = vadd.f32 %v1668, 1e-05
          %v1685 = vadd.f32 %v1669, 1e-05
          %v1686 = vadd.f32 %v1670, 1e-05
          %v1687 = vadd.f32 %v1671, 1e-05
          %v1688 = vadd.f32 %v1672, 1e-05
          %v1689 = vadd.f32 %v1673, 1e-05
          %v1690 = vadd.f32 %v1674, 1e-05
          %v1691 = vadd.f32 %v1675, 1e-05
          %v1692 = vadd.f32 %v1676, 1e-05
          %v1693 = vrsqrt.pop %v1677
          %v1694 = vrsqrt.pop %v1678
          %v1695 = vrsqrt.pop %v1679
          %v1696 = vrsqrt.pop %v1680
          %v1697 = vrsqrt.pop %v1681
          %v1698 = vrsqrt.pop %v1682
          %v1699 = vrsqrt.pop %v1683
          %v1700 = vrsqrt.pop %v1684
          %v1701 = vrsqrt.pop %v1685
          %v1702 = vrsqrt.pop %v1686
          %v1703 = vrsqrt.pop %v1687
          %v1704 = vrsqrt.pop %v1688
          %v1705 = vrsqrt.pop %v1689
          %v1706 = vrsqrt.pop %v1690
          %v1707 = vrsqrt.pop %v1691
          %v1708 = vrsqrt.pop %v1692
          %v1709 = vmul.f32 %v1581, %v1693
          %v1710 = vmul.f32 %v1582, %v1694
          %v1711 = vmul.f32 %v1583, %v1695
          %v1712 = vmul.f32 %v1584, %v1696
          %v1713 = vmul.f32 %v1585, %v1697
          %v1714 = vmul.f32 %v1586, %v1698
          %v1715 = vmul.f32 %v1587, %v1699
          %v1716 = vmul.f32 %v1588, %v1700
          %v1717 = vmul.f32 %v1589, %v1701
          %v1718 = vmul.f32 %v1590, %v1702
          %v1719 = vmul.f32 %v1591, %v1703
          %v1720 = vmul.f32 %v1592, %v1704
          %v1721 = vmul.f32 %v1593, %v1705
          %v1722 = vmul.f32 %v1594, %v1706
          %v1723 = vmul.f32 %v1595, %v1707
          %v1724 = vmul.f32 %v1596, %v1708
          %v1726 = vlaneseq
          %v1727 = vshrl.u32 %v1726, 7
          %v1728 = vsub.s32 0, %v1727
          %v1729 = vrot.slane %v1512, %v1728
          %v1731 = vmul.f32 %v1709, %v1729
          %v1732 = vmul.f32 %v1710, %v1729
          %v1733 = vmul.f32 %v1711, %v1729
          %v1734 = vmul.f32 %v1712, %v1729
          %v1735 = vmul.f32 %v1713, %v1729
          %v1736 = vmul.f32 %v1714, %v1729
          %v1737 = vmul.f32 %v1715, %v1729
          %v1738 = vmul.f32 %v1716, %v1729
          %v1739 = vmul.f32 %v1717, %v1729
          %v1740 = vmul.f32 %v1718, %v1729
          %v1741 = vmul.f32 %v1719, %v1729
          %v1742 = vmul.f32 %v1720, %v1729
          %v1743 = vmul.f32 %v1721, %v1729
          %v1744 = vmul.f32 %v1722, %v1729
          %v1745 = vmul.f32 %v1723, %v1729
          %v1746 = vmul.f32 %v1724, %v1729
          %v1748 = vlaneseq
          %v1749 = vshrl.u32 %v1748, 7
          %v1750 = vsub.s32 0, %v1749
          %v1751 = vrot.slane %v1513, %v1750
          %v1753 = vadd.f32 %v1731, %v1751
          %v1754 = vadd.f32 %v1732, %v1751
          %v1755 = vadd.f32 %v1733, %v1751
          %v1756 = vadd.f32 %v1734, %v1751
          %v1757 = vadd.f32 %v1735, %v1751
          %v1758 = vadd.f32 %v1736, %v1751
          %v1759 = vadd.f32 %v1737, %v1751
          %v1760 = vadd.f32 %v1738, %v1751
          %v1761 = vadd.f32 %v1739, %v1751
          %v1762 = vadd.f32 %v1740, %v1751
          %v1763 = vadd.f32 %v1741, %v1751
          %v1764 = vadd.f32 %v1742, %v1751
          %v1765 = vadd.f32 %v1743, %v1751
          %v1766 = vadd.f32 %v1744, %v1751
          %v1767 = vadd.f32 %v1745, %v1751
          %v1768 = vadd.f32 %v1746, %v1751
          %v1769 = vmul.f32 %v1753, %v1753
          %v1770 = vmul.f32 %v1754, %v1754
          %v1771 = vmul.f32 %v1755, %v1755
          %v1772 = vmul.f32 %v1756, %v1756
          %v1773 = vmul.f32 %v1757, %v1757
          %v1774 = vmul.f32 %v1758, %v1758
          %v1775 = vmul.f32 %v1759, %v1759
          %v1776 = vmul.f32 %v1760, %v1760
          %v1777 = vmul.f32 %v1761, %v1761
          %v1778 = vmul.f32 %v1762, %v1762
          %v1779 = vmul.f32 %v1763, %v1763
          %v1780 = vmul.f32 %v1764, %v1764
          %v1781 = vmul.f32 %v1765, %v1765
          %v1782 = vmul.f32 %v1766, %v1766
          %v1783 = vmul.f32 %v1767, %v1767
          %v1784 = vmul.f32 %v1768, %v1768
          %v1785 = vmul.f32 %v1753, %v1769
          %v1786 = vmul.f32 %v1754, %v1770
          %v1787 = vmul.f32 %v1755, %v1771
          %v1788 = vmul.f32 %v1756, %v1772
          %v1789 = vmul.f32 %v1757, %v1773
          %v1790 = vmul.f32 %v1758, %v1774
          %v1791 = vmul.f32 %v1759, %v1775
          %v1792 = vmul.f32 %v1760, %v1776
          %v1793 = vmul.f32 %v1761, %v1777
          %v1794 = vmul.f32 %v1762, %v1778
          %v1795 = vmul.f32 %v1763, %v1779
          %v1796 = vmul.f32 %v1764, %v1780
          %v1797 = vmul.f32 %v1765, %v1781
          %v1798 = vmul.f32 %v1766, %v1782
          %v1799 = vmul.f32 %v1767, %v1783
          %v1800 = vmul.f32 %v1768, %v1784
          %v1801 = vmul.f32 %v1785, 0.044715
          %v1802 = vmul.f32 %v1786, 0.044715
          %v1803 = vmul.f32 %v1787, 0.044715
          %v1804 = vmul.f32 %v1788, 0.044715
          %v1805 = vmul.f32 %v1789, 0.044715
          %v1806 = vmul.f32 %v1790, 0.044715
          %v1807 = vmul.f32 %v1791, 0.044715
          %v1808 = vmul.f32 %v1792, 0.044715
          %v1809 = vmul.f32 %v1793, 0.044715
          %v1810 = vmul.f32 %v1794, 0.044715
          %v1811 = vmul.f32 %v1795, 0.044715
          %v1812 = vmul.f32 %v1796, 0.044715
          %v1813 = vmul.f32 %v1797, 0.044715
          %v1814 = vmul.f32 %v1798, 0.044715
          %v1815 = vmul.f32 %v1799, 0.044715
          %v1816 = vmul.f32 %v1800, 0.044715
          %v1817 = vadd.f32 %v1753, %v1801
          %v1818 = vadd.f32 %v1754, %v1802
          %v1819 = vadd.f32 %v1755, %v1803
          %v1820 = vadd.f32 %v1756, %v1804
          %v1821 = vadd.f32 %v1757, %v1805
          %v1822 = vadd.f32 %v1758, %v1806
          %v1823 = vadd.f32 %v1759, %v1807
          %v1824 = vadd.f32 %v1760, %v1808
          %v1825 = vadd.f32 %v1761, %v1809
          %v1826 = vadd.f32 %v1762, %v1810
          %v1827 = vadd.f32 %v1763, %v1811
          %v1828 = vadd.f32 %v1764, %v1812
          %v1829 = vadd.f32 %v1765, %v1813
          %v1830 = vadd.f32 %v1766, %v1814
          %v1831 = vadd.f32 %v1767, %v1815
          %v1832 = vadd.f32 %v1768, %v1816
          %v1833 = vmul.f32 %v1817, 0.7978846
          %v1834 = vmul.f32 %v1818, 0.7978846
          %v1835 = vmul.f32 %v1819, 0.7978846
          %v1836 = vmul.f32 %v1820, 0.7978846
          %v1837 = vmul.f32 %v1821, 0.7978846
          %v1838 = vmul.f32 %v1822, 0.7978846
          %v1839 = vmul.f32 %v1823, 0.7978846
          %v1840 = vmul.f32 %v1824, 0.7978846
          %v1841 = vmul.f32 %v1825, 0.7978846
          %v1842 = vmul.f32 %v1826, 0.7978846
          %v1843 = vmul.f32 %v1827, 0.7978846
          %v1844 = vmul.f32 %v1828, 0.7978846
          %v1845 = vmul.f32 %v1829, 0.7978846
          %v1846 = vmul.f32 %v1830, 0.7978846
          %v1847 = vmul.f32 %v1831, 0.7978846
          %v1848 = vmul.f32 %v1832, 0.7978846
          %v1849 = vtanh.pop %v1833
          %v1850 = vtanh.pop %v1834
          %v1851 = vtanh.pop %v1835
          %v1852 = vtanh.pop %v1836
          %v1853 = vtanh.pop %v1837
          %v1854 = vtanh.pop %v1838
          %v1855 = vtanh.pop %v1839
          %v1856 = vtanh.pop %v1840
          %v1857 = vtanh.pop %v1841
          %v1858 = vtanh.pop %v1842
          %v1859 = vtanh.pop %v1843
          %v1860 = vtanh.pop %v1844
          %v1861 = vtanh.pop %v1845
          %v1862 = vtanh.pop %v1846
          %v1863 = vtanh.pop %v1847
          %v1864 = vtanh.pop %v1848
          %v1865 = vadd.f32 %v1849, 1.0
          %v1866 = vadd.f32 %v1850, 1.0
          %v1867 = vadd.f32 %v1851, 1.0
          %v1868 = vadd.f32 %v1852, 1.0
          %v1869 = vadd.f32 %v1853, 1.0
          %v1870 = vadd.f32 %v1854, 1.0
          %v1871 = vadd.f32 %v1855, 1.0
          %v1872 = vadd.f32 %v1856, 1.0
          %v1873 = vadd.f32 %v1857, 1.0
          %v1874 = vadd.f32 %v1858, 1.0
          %v1875 = vadd.f32 %v1859, 1.0
          %v1876 = vadd.f32 %v1860, 1.0
          %v1877 = vadd.f32 %v1861, 1.0
          %v1878 = vadd.f32 %v1862, 1.0
          %v1879 = vadd.f32 %v1863, 1.0
          %v1880 = vadd.f32 %v1864, 1.0
          %v1881 = vmul.f32 %v1865, 0.5
          %v1882 = vmul.f32 %v1866, 0.5
          %v1883 = vmul.f32 %v1867, 0.5
          %v1884 = vmul.f32 %v1868, 0.5
          %v1885 = vmul.f32 %v1869, 0.5
          %v1886 = vmul.f32 %v1870, 0.5
          %v1887 = vmul.f32 %v1871, 0.5
          %v1888 = vmul.f32 %v1872, 0.5
          %v1889 = vmul.f32 %v1873, 0.5
          %v1890 = vmul.f32 %v1874, 0.5
          %v1891 = vmul.f32 %v1875, 0.5
          %v1892 = vmul.f32 %v1876, 0.5
          %v1893 = vmul.f32 %v1877, 0.5
          %v1894 = vmul.f32 %v1878, 0.5
          %v1895 = vmul.f32 %v1879, 0.5
          %v1896 = vmul.f32 %v1880, 0.5
          %v1897 = vmul.f32 %v1753, %v1881
          %v1898 = vmul.f32 %v1754, %v1882
          %v1899 = vmul.f32 %v1755, %v1883
          %v1900 = vmul.f32 %v1756, %v1884
          %v1901 = vmul.f32 %v1757, %v1885
          %v1902 = vmul.f32 %v1758, %v1886
          %v1903 = vmul.f32 %v1759, %v1887
          %v1904 = vmul.f32 %v1760, %v1888
          %v1905 = vmul.f32 %v1761, %v1889
          %v1906 = vmul.f32 %v1762, %v1890
          %v1907 = vmul.f32 %v1763, %v1891
          %v1908 = vmul.f32 %v1764, %v1892
          %v1909 = vmul.f32 %v1765, %v1893
          %v1910 = vmul.f32 %v1766, %v1894
          %v1911 = vmul.f32 %v1767, %v1895
          %v1912 = vmul.f32 %v1768, %v1896
          %v1913 = vld [vmem:[%s11] sm:$0xff]
          %v1914 = vld [vmem:[%s11 + $0x8] sm:$0xff]
          %v1915 = vld [vmem:[%s11 + $0x10] sm:$0xff]
          %v1916 = vld [vmem:[%s11 + $0x18] sm:$0xff]
          %v1917 = vld [vmem:[%s11 + $0x20] sm:$0xff]
          %v1918 = vld [vmem:[%s11 + $0x28] sm:$0xff]
          %v1919 = vld [vmem:[%s11 + $0x30] sm:$0xff]
          %v1920 = vld [vmem:[%s11 + $0x38] sm:$0x3f]
          %vm1921 = vcmask 1031168
          %v1923 = vsel %vm1921, %v1913, 0
          %v1926 = vsel %vm1921, %v1914, 0
          %v1929 = vsel %vm1921, %v1915, 0
          %v1932 = vsel %vm1921, %v1916, 0
          %v1935 = vsel %vm1921, %v1917, 0
          %v1938 = vsel %vm1921, %v1918, 0
          %v1941 = vsel %vm1921, %v1919, 0
          %v1944 = vsel %vm1921, %v1920, 0
          %vm1946 = vcmask 1045504
          %v1948 = vsel %vm1946, %v1912, 0
          %1950 = vmatprep.subr.mxu0 0.0
          %1951 = vmatpush1.msra.mxu0 %v1897
          %1952 = vmatprep.subr.mxu0 0.0
          %1953 = vmatpush1.msra.mxu0 %v1898
          %1954 = vmatprep.subr.mxu0 0.0
          %1955 = vmatpush1.msra.mxu0 %v1899
          %1956 = vmatprep.subr.mxu0 0.0
          %1957 = vmatpush1.msra.mxu0 %v1900
          %1958 = vmatprep.subr.mxu0 0.0
          %1959 = vmatpush1.msra.mxu0 %v1901
          %1960 = vmatprep.subr.mxu0 0.0
          %1961 = vmatpush1.msra.mxu0 %v1902
          %1962 = vmatprep.subr.mxu0 0.0
          %1963 = vmatpush1.msra.mxu0 %v1903
          %1964 = vmatprep.subr.mxu0 0.0
          %1965 = vmatpush1.msra.mxu0 %v1904
          %1966 = vmatprep.subr.mxu0 0.0
          %1967 = vmatpush1.msra.mxu0 %v1905
          %1968 = vmatprep.subr.mxu0 0.0
          %1969 = vmatpush1.msra.mxu0 %v1906
          %1970 = vmatprep.subr.mxu0 0.0
          %1971 = vmatpush1.msra.mxu0 %v1907
          %1972 = vmatprep.subr.mxu0 0.0
          %1973 = vmatpush1.msra.mxu0 %v1908
          %1974 = vmatprep.subr.mxu0 0.0
          %1975 = vmatpush1.msra.mxu0 %v1909
          %1976 = vmatprep.subr.mxu0 0.0
          %1977 = vmatpush1.msra.mxu0 %v1910
          %1978 = vmatprep.subr.mxu0 0.0
          %1979 = vmatpush1.msra.mxu0 %v1911
          %1980 = vmatprep.subr.mxu0 0.0
          %1981 = vmatpush1.msra.mxu0 %v1948
          %1982 = vmatprep.subr.mxu0 0.0
          %1983 = vmatpush1.msra.mxu0 0.0
          %1984 = vmatprep.subr.mxu0 0.0
          %1985 = vmatpush1.msra.mxu0 0.0
          %1986 = vmatprep.subr.mxu0 0.0
          %1987 = vmatpush1.msra.mxu0 0.0
          %1988 = vmatprep.subr.mxu0 0.0
          %1989 = vmatpush1.msra.mxu0 0.0
          %1990 = vmatprep.subr.mxu0 0.0
          %1991 = vmatpush1.msra.mxu0 0.0
          %1992 = vmatprep.subr.mxu0 0.0
          %1993 = vmatpush1.msra.mxu0 0.0
          %1994 = vmatprep.subr.mxu0 0.0
          %1995 = vmatpush1.msra.mxu0 0.0
          %1996 = vmatprep.subr.mxu0 0.0
          %1997 = vmatpush1.msra.mxu0 0.0
          %1998 = vmatprep.subr.mxu0 0.0
          %1999 = vmatpush1.msra.mxu0 0.0
          %2000 = vmatprep.subr.mxu0 0.0
          %2001 = vmatpush1.msra.mxu0 0.0
          %2002 = vmatprep.subr.mxu0 0.0
          %2003 = vmatpush1.msra.mxu0 0.0
          %2004 = vmatprep.subr.mxu0 0.0
          %2005 = vmatpush1.msra.mxu0 0.0
          %2006 = vmatprep.subr.mxu0 0.0
          %2007 = vmatpush1.msra.mxu0 0.0
          %2008 = vmatprep.subr.mxu0 0.0
          %2009 = vmatpush1.msra.mxu0 0.0
          %2010 = vmatprep.subr.mxu0 0.0
          %2011 = vmatpush1.msra.mxu0 0.0
          %2012 = vmatprep.subr.mxu0 0.0
          %2013 = vmatpush1.msra.mxu0 0.0
          %2014 = vmatprep.mubr.f32.mxu0 0.0
          %2015 = vmatmul.mubr.f32.gmra.mrb[0].mxu0 %v1923
          %v2016 = vpop.f32.mrb[0].mxu0
          %v2017 = vadd.f32 0.0, %v2016
          %v2018 = vpop.f32.mrb[0].mxu0
          %2019 = vmatprep.mubr.f32.mxu0 0.0
          %2020 = vmatmul.mubr.f32.gmra.mrb[0].mxu0 %v1926
          %v2021 = vpop.f32.mrb[0].mxu0
          %v2022 = vadd.f32 0.0, %v2021
          %v2023 = vpop.f32.mrb[0].mxu0
          %2024 = vmatprep.mubr.f32.mxu0 0.0
          %2025 = vmatmul.mubr.f32.gmra.mrb[0].mxu0 %v1929
          %v2026 = vpop.f32.mrb[0].mxu0
          %v2027 = vadd.f32 0.0, %v2026
          %v2028 = vpop.f32.mrb[0].mxu0
          %2029 = vmatprep.mubr.f32.mxu0 0.0
          %2030 = vmatmul.mubr.f32.gmra.mrb[0].mxu0 %v1932
          %v2031 = vpop.f32.mrb[0].mxu0
          %v2032 = vadd.f32 0.0, %v2031
          %v2033 = vpop.f32.mrb[0].mxu0
          %2034 = vmatprep.mubr.f32.mxu0 0.0
          %2035 = vmatmul.mubr.f32.gmra.mrb[0].mxu0 %v1935
          %v2036 = vpop.f32.mrb[0].mxu0
          %v2037 = vadd.f32 0.0, %v2036
          %v2038 = vpop.f32.mrb[0].mxu0
          %2039 = vmatprep.mubr.f32.mxu0 0.0
          %2040 = vmatmul.mubr.f32.gmra.mrb[0].mxu0 %v1938
          %v2041 = vpop.f32.mrb[0].mxu0
          %v2042 = vadd.f32 0.0, %v2041
          %v2043 = vpop.f32.mrb[0].mxu0
          %2044 = vmatprep.mubr.f32.mxu0 0.0
          %2045 = vmatmul.mubr.f32.gmra.mrb[0].mxu0 %v1941
          %v2046 = vpop.f32.mrb[0].mxu0
          %v2047 = vadd.f32 0.0, %v2046
          %v2048 = vpop.f32.mrb[0].mxu0
          %2049 = vmatprep.mubr.f32.mxu0 0.0
          %2050 = vmatmul.mubr.f32.gmra.mrb[0].mxu0 %v1944
          %v2051 = vpop.f32.mrb[0].mxu0
          %v2052 = vadd.f32 0.0, %v2051
          %v2053 = vpop.f32.mrb[0].mxu0
          %2054 = vdwg.mxu0
          %v2055 = vld [vmem:[%s13] sm:$0xff]
          %v2056 = vld [vmem:[%s13 + $0x8] sm:$0xff]
          %v2057 = vld [vmem:[%s13 + $0x10] sm:$0xff]
          %v2058 = vld [vmem:[%s13 + $0x18] sm:$0xff]
          %s2059 = scalar_lea.vmem %s11, 64
          %v2060 = vld [vmem:[%s2059] sm:$0xff]
          %v2061 = vld [vmem:[%s2059 + $0x8] sm:$0xff]
          %v2062 = vld [vmem:[%s2059 + $0x10] sm:$0xff]
          %v2063 = vld [vmem:[%s2059 + $0x18] sm:$0xff]
          %v2064 = vld [vmem:[%s2059 + $0x20] sm:$0xff]
          %v2065 = vld [vmem:[%s2059 + $0x28] sm:$0xff]
          %v2066 = vld [vmem:[%s2059 + $0x30] sm:$0xff]
          %v2067 = vld [vmem:[%s2059 + $0x38] sm:$0x3f]
          %v2069 = vsel %vm1921, %v2060, 0
          %v2072 = vsel %vm1921, %v2061, 0
          %v2075 = vsel %vm1921, %v2062, 0
          %v2078 = vsel %vm1921, %v2063, 0
          %v2081 = vsel %vm1921, %v2064, 0
          %v2084 = vsel %vm1921, %v2065, 0
          %v2087 = vsel %vm1921, %v2066, 0
          %v2090 = vsel %vm1921, %v2067, 0
          %2092 = vmatprep.subr.mxu0 0.0
          %2093 = vmatpush1.msra.mxu0 %v1897
          %2094 = vmatprep.subr.mxu0 0.0
          %2095 = vmatpush1.msra.mxu0 %v1898
          %2096 = vmatprep.subr.mxu0 0.0
          %2097 = vmatpush1.msra.mxu0 %v1899
          %2098 = vmatprep.subr.mxu0 0.0
          %2099 = vmatpush1.msra.mxu0 %v1900
          %2100 = vmatprep.subr.mxu0 0.0
          %2101 = vmatpush1.msra.mxu0 %v1901
          %2102 = vmatprep.subr.mxu0 0.0
          %2103 = vmatpush1.msra.mxu0 %v1902
          %2104 = vmatprep.subr.mxu0 0.0
          %2105 = vmatpush1.msra.mxu0 %v1903
          %2106 = vmatprep.subr.mxu0 0.0
          %2107 = vmatpush1.msra.mxu0 %v1904
          %2108 = vmatprep.subr.mxu0 0.0
          %2109 = vmatpush1.msra.mxu0 %v1905
          %2110 = vmatprep.subr.mxu0 0.0
          %2111 = vmatpush1.msra.mxu0 %v1906
          %2112 = vmatprep.subr.mxu0 0.0
          %2113 = vmatpush1.msra.mxu0 %v1907
          %2114 = vmatprep.subr.mxu0 0.0
          %2115 = vmatpush1.msra.mxu0 %v1908
          %2116 = vmatprep.subr.mxu0 0.0
          %2117 = vmatpush1.msra.mxu0 %v1909
          %2118 = vmatprep.subr.mxu0 0.0
          %2119 = vmatpush1.msra.mxu0 %v1910
          %2120 = vmatprep.subr.mxu0 0.0
          %2121 = vmatpush1.msra.mxu0 %v1911
          %2122 = vmatprep.subr.mxu0 0.0
          %2123 = vmatpush1.msra.mxu0 %v1948
          %2124 = vmatprep.subr.mxu0 0.0
          %2125 = vmatpush1.msra.mxu0 0.0
          %2126 = vmatprep.subr.mxu0 0.0
          %2127 = vmatpush1.msra.mxu0 0.0
          %2128 = vmatprep.subr.mxu0 0.0
          %2129 = vmatpush1.msra.mxu0 0.0
          %2130 = vmatprep.subr.mxu0 0.0
          %2131 = vmatpush1.msra.mxu0 0.0
          %2132 = vmatprep.subr.mxu0 0.0
          %2133 = vmatpush1.msra.mxu0 0.0
          %2134 = vmatprep.subr.mxu0 0.0
          %2135 = vmatpush1.msra.mxu0 0.0
          %2136 = vmatprep.subr.mxu0 0.0
          %2137 = vmatpush1.msra.mxu0 0.0
          %2138 = vmatprep.subr.mxu0 0.0
          %2139 = vmatpush1.msra.mxu0 0.0
          %2140 = vmatprep.subr.mxu0 0.0
          %2141 = vmatpush1.msra.mxu0 0.0
          %2142 = vmatprep.subr.mxu0 0.0
          %2143 = vmatpush1.msra.mxu0 0.0
          %2144 = vmatprep.subr.mxu0 0.0
          %2145 = vmatpush1.msra.mxu0 0.0
          %2146 = vmatprep.subr.mxu0 0.0
          %2147 = vmatpush1.msra.mxu0 0.0
          %2148 = vmatprep.subr.mxu0 0.0
          %2149 = vmatpush1.msra.mxu0 0.0
          %2150 = vmatprep.subr.mxu0 0.0
          %2151 = vmatpush1.msra.mxu0 0.0
          %2152 = vmatprep.subr.mxu0 0.0
          %2153 = vmatpush1.msra.mxu0 0.0
          %2154 = vmatprep.subr.mxu0 0.0
          %2155 = vmatpush1.msra.mxu0 0.0
          %2156 = vmatprep.mubr.f32.mxu0 0.0
          %2157 = vmatmul.mubr.f32.gmra.mrb[0].mxu0 %v2069
          %v2158 = vpop.f32.mrb[0].mxu0
          %v2159 = vadd.f32 0.0, %v2158
          %v2160 = vpop.f32.mrb[0].mxu0
          %2161 = vmatprep.mubr.f32.mxu0 0.0
          %2162 = vmatmul.mubr.f32.gmra.mrb[0].mxu0 %v2072
          %v2163 = vpop.f32.mrb[0].mxu0
          %v2164 = vadd.f32 0.0, %v2163
          %v2165 = vpop.f32.mrb[0].mxu0
          %2166 = vmatprep.mubr.f32.mxu0 0.0
          %2167 = vmatmul.mubr.f32.gmra.mrb[0].mxu0 %v2075
          %v2168 = vpop.f32.mrb[0].mxu0
          %v2169 = vadd.f32 0.0, %v2168
          %v2170 = vpop.f32.mrb[0].mxu0
          %2171 = vmatprep.mubr.f32.mxu0 0.0
          %2172 = vmatmul.mubr.f32.gmra.mrb[0].mxu0 %v2078
          %v2173 = vpop.f32.mrb[0].mxu0
          %v2174 = vadd.f32 0.0, %v2173
          %v2175 = vpop.f32.mrb[0].mxu0
          %2176 = vmatprep.mubr.f32.mxu0 0.0
          %2177 = vmatmul.mubr.f32.gmra.mrb[0].mxu0 %v2081
          %v2178 = vpop.f32.mrb[0].mxu0
          %v2179 = vadd.f32 0.0, %v2178
          %v2180 = vpop.f32.mrb[0].mxu0
          %2181 = vmatprep.mubr.f32.mxu0 0.0
          %2182 = vmatmul.mubr.f32.gmra.mrb[0].mxu0 %v2084
          %v2183 = vpop.f32.mrb[0].mxu0
          %v2184 = vadd.f32 0.0, %v2183
          %v2185 = vpop.f32.mrb[0].mxu0
          %2186 = vmatprep.mubr.f32.mxu0 0.0
          %2187 = vmatmul.mubr.f32.gmra.mrb[0].mxu0 %v2087
          %v2188 = vpop.f32.mrb[0].mxu0
          %v2189 = vadd.f32 0.0, %v2188
          %v2190 = vpop.f32.mrb[0].mxu0
          %2191 = vmatprep.mubr.f32.mxu0 0.0
          %2192 = vmatmul.mubr.f32.gmra.mrb[0].mxu0 %v2090
          %v2193 = vpop.f32.mrb[0].mxu0
          %v2194 = vadd.f32 0.0, %v2193
          %v2195 = vpop.f32.mrb[0].mxu0
          %2196 = vdwg.mxu0
          %v2197 = vld [vmem:[%s13 + $0x20] sm:$0xff]
          %v2198 = vld [vmem:[%s13 + $0x28] sm:$0xff]
          %v2199 = vld [vmem:[%s13 + $0x30] sm:$0xff]
          %v2200 = vld [vmem:[%s13 + $0x38] sm:$0xff]
          %v2202 = vsel %vm1514, %v2159, 0
          %v2205 = vsel %vm1514, %v2164, 0
          %v2208 = vsel %vm1514, %v2169, 0
          %v2211 = vsel %vm1514, %v2174, 0
          %v2214 = vsel %vm1514, %v2179, 0
          %v2217 = vsel %vm1514, %v2184, 0
          %v2220 = vsel %vm1514, %v2189, 0
          %v2223 = vsel %vm1514, %v2194, 0
          %2225 = vmatprep.subr.mxu0 0.0
          %2226 = vmatpush1.msra.mxu0 %v2197
          %2227 = vmatprep.subr.mxu0 0.0
          %2228 = vmatpush1.msra.mxu0 %v2198
          %2229 = vmatprep.subr.mxu0 0.0
          %2230 = vmatpush1.msra.mxu0 %v2199
          %2231 = vmatprep.subr.mxu0 0.0
          %2232 = vmatpush1.msra.mxu0 %v2200
          %2233 = vmatprep.subr.mxu0 0.0
          %2234 = vmatpush1.msra.mxu0 0.0
          %2235 = vmatprep.subr.mxu0 0.0
          %2236 = vmatpush1.msra.mxu0 0.0
          %2237 = vmatprep.subr.mxu0 0.0
          %2238 = vmatpush1.msra.mxu0 0.0
          %2239 = vmatprep.subr.mxu0 0.0
          %2240 = vmatpush1.msra.mxu0 0.0
          %2241 = vmatprep.subr.mxu0 0.0
          %2242 = vmatpush1.msra.mxu0 0.0
          %2243 = vmatprep.subr.mxu0 0.0
          %2244 = vmatpush1.msra.mxu0 0.0
          %2245 = vmatprep.subr.mxu0 0.0
          %2246 = vmatpush1.msra.mxu0 0.0
          %2247 = vmatprep.subr.mxu0 0.0
          %2248 = vmatpush1.msra.mxu0 0.0
          %2249 = vmatprep.subr.mxu0 0.0
          %2250 = vmatpush1.msra.mxu0 0.0
          %2251 = vmatprep.subr.mxu0 0.0
          %2252 = vmatpush1.msra.mxu0 0.0
          %2253 = vmatprep.subr.mxu0 0.0
          %2254 = vmatpush1.msra.mxu0 0.0
          %2255 = vmatprep.subr.mxu0 0.0
          %2256 = vmatpush1.msra.mxu0 0.0
          %2257 = vmatprep.subr.mxu0 0.0
          %2258 = vmatpush1.msra.mxu0 0.0
          %2259 = vmatprep.subr.mxu0 0.0
          %2260 = vmatpush1.msra.mxu0 0.0
          %2261 = vmatprep.subr.mxu0 0.0
          %2262 = vmatpush1.msra.mxu0 0.0
          %2263 = vmatprep.subr.mxu0 0.0
          %2264 = vmatpush1.msra.mxu0 0.0
          %2265 = vmatprep.subr.mxu0 0.0
          %2266 = vmatpush1.msra.mxu0 0.0
          %2267 = vmatprep.subr.mxu0 0.0
          %2268 = vmatpush1.msra.mxu0 0.0
          %2269 = vmatprep.subr.mxu0 0.0
          %2270 = vmatpush1.msra.mxu0 0.0
          %2271 = vmatprep.subr.mxu0 0.0
          %2272 = vmatpush1.msra.mxu0 0.0
          %2273 = vmatprep.subr.mxu0 0.0
          %2274 = vmatpush1.msra.mxu0 0.0
          %2275 = vmatprep.subr.mxu0 0.0
          %2276 = vmatpush1.msra.mxu0 0.0
          %2277 = vmatprep.subr.mxu0 0.0
          %2278 = vmatpush1.msra.mxu0 0.0
          %2279 = vmatprep.subr.mxu0 0.0
          %2280 = vmatpush1.msra.mxu0 0.0
          %2281 = vmatprep.subr.mxu0 0.0
          %2282 = vmatpush1.msra.mxu0 0.0
          %2283 = vmatprep.subr.mxu0 0.0
          %2284 = vmatpush1.msra.mxu0 0.0
          %2285 = vmatprep.subr.mxu0 0.0
          %2286 = vmatpush1.msra.mxu0 0.0
          %2287 = vmatprep.subr.mxu0 0.0
          %2288 = vmatpush1.msra.mxu0 0.0
          %2289 = vmatprep.mubr.f32.mxu0 0.0
          %2290 = vmatmul.mubr.f32.gmra.mrb[0].mxu0 %v2202
          %v2291 = vpop.f32.mrb[0].mxu0
          %v2292 = vadd.f32 0.0, %v2291
          %v2293 = vpop.f32.mrb[0].mxu0
          %2294 = vmatprep.mubr.f32.mxu0 0.0
          %2295 = vmatmul.mubr.f32.gmra.mrb[0].mxu0 %v2205
          %v2296 = vpop.f32.mrb[0].mxu0
          %v2297 = vadd.f32 0.0, %v2296
          %v2298 = vpop.f32.mrb[0].mxu0
          %2299 = vmatprep.mubr.f32.mxu0 0.0
          %2300 = vmatmul.mubr.f32.gmra.mrb[0].mxu0 %v2208
          %v2301 = vpop.f32.mrb[0].mxu0
          %v2302 = vadd.f32 0.0, %v2301
          %v2303 = vpop.f32.mrb[0].mxu0
          %2304 = vmatprep.mubr.f32.mxu0 0.0
          %2305 = vmatmul.mubr.f32.gmra.mrb[0].mxu0 %v2211
          %v2306 = vpop.f32.mrb[0].mxu0
          %v2307 = vadd.f32 0.0, %v2306
          %v2308 = vpop.f32.mrb[0].mxu0
          %2309 = vmatprep.mubr.f32.mxu0 0.0
          %2310 = vmatmul.mubr.f32.gmra.mrb[0].mxu0 %v2214
          %v2311 = vpop.f32.mrb[0].mxu0
          %v2312 = vadd.f32 0.0, %v2311
          %v2313 = vpop.f32.mrb[0].mxu0
          %2314 = vmatprep.mubr.f32.mxu0 0.0
          %2315 = vmatmul.mubr.f32.gmra.mrb[0].mxu0 %v2217
          %v2316 = vpop.f32.mrb[0].mxu0
          %v2317 = vadd.f32 0.0, %v2316
          %v2318 = vpop.f32.mrb[0].mxu0
          %2319 = vmatprep.mubr.f32.mxu0 0.0
          %2320 = vmatmul.mubr.f32.gmra.mrb[0].mxu0 %v2220
          %v2321 = vpop.f32.mrb[0].mxu0
          %v2322 = vadd.f32 0.0, %v2321
          %v2323 = vpop.f32.mrb[0].mxu0
          %2324 = vmatprep.mubr.f32.mxu0 0.0
          %2325 = vmatmul.mubr.f32.gmra.mrb[0].mxu0 %v2223
          %v2326 = vpop.f32.mrb[0].mxu0
          %v2327 = vadd.f32 0.0, %v2326
          %v2328 = vpop.f32.mrb[0].mxu0
          %2329 = vdwg.mxu0
          %v2331 = vsel %vm1514, %v2017, 0
          %v2334 = vsel %vm1514, %v2022, 0
          %v2337 = vsel %vm1514, %v2027, 0
          %v2340 = vsel %vm1514, %v2032, 0
          %v2343 = vsel %vm1514, %v2037, 0
          %v2346 = vsel %vm1514, %v2042, 0
          %v2349 = vsel %vm1514, %v2047, 0
          %v2352 = vsel %vm1514, %v2052, 0
          %2354 = vmatprep.subr.mxu0 0.0
          %2355 = vmatpush1.msra.mxu0 %v2055
          %2356 = vmatprep.subr.mxu0 0.0
          %2357 = vmatpush1.msra.mxu0 %v2056
          %2358 = vmatprep.subr.mxu0 0.0
          %2359 = vmatpush1.msra.mxu0 %v2057
          %2360 = vmatprep.subr.mxu0 0.0
          %2361 = vmatpush1.msra.mxu0 %v2058
          %2362 = vmatprep.subr.mxu0 0.0
          %2363 = vmatpush1.msra.mxu0 0.0
          %2364 = vmatprep.subr.mxu0 0.0
          %2365 = vmatpush1.msra.mxu0 0.0
          %2366 = vmatprep.subr.mxu0 0.0
          %2367 = vmatpush1.msra.mxu0 0.0
          %2368 = vmatprep.subr.mxu0 0.0
          %2369 = vmatpush1.msra.mxu0 0.0
          %2370 = vmatprep.subr.mxu0 0.0
          %2371 = vmatpush1.msra.mxu0 0.0
          %2372 = vmatprep.subr.mxu0 0.0
          %2373 = vmatpush1.msra.mxu0 0.0
          %2374 = vmatprep.subr.mxu0 0.0
          %2375 = vmatpush1.msra.mxu0 0.0
          %2376 = vmatprep.subr.mxu0 0.0
          %2377 = vmatpush1.msra.mxu0 0.0
          %2378 = vmatprep.subr.mxu0 0.0
          %2379 = vmatpush1.msra.mxu0 0.0
          %2380 = vmatprep.subr.mxu0 0.0
          %2381 = vmatpush1.msra.mxu0 0.0
          %2382 = vmatprep.subr.mxu0 0.0
          %2383 = vmatpush1.msra.mxu0 0.0
          %2384 = vmatprep.subr.mxu0 0.0
          %2385 = vmatpush1.msra.mxu0 0.0
          %2386 = vmatprep.subr.mxu0 0.0
          %2387 = vmatpush1.msra.mxu0 0.0
          %2388 = vmatprep.subr.mxu0 0.0
          %2389 = vmatpush1.msra.mxu0 0.0
          %2390 = vmatprep.subr.mxu0 0.0
          %2391 = vmatpush1.msra.mxu0 0.0
          %2392 = vmatprep.subr.mxu0 0.0
          %2393 = vmatpush1.msra.mxu0 0.0
          %2394 = vmatprep.subr.mxu0 0.0
          %2395 = vmatpush1.msra.mxu0 0.0
          %2396 = vmatprep.subr.mxu0 0.0
          %2397 = vmatpush1.msra.mxu0 0.0
          %2398 = vmatprep.subr.mxu0 0.0
          %2399 = vmatpush1.msra.mxu0 0.0
          %2400 = vmatprep.subr.mxu0 0.0
          %2401 = vmatpush1.msra.mxu0 0.0
          %2402 = vmatprep.subr.mxu0 0.0
          %2403 = vmatpush1.msra.mxu0 0.0
          %2404 = vmatprep.subr.mxu0 0.0
          %2405 = vmatpush1.msra.mxu0 0.0
          %2406 = vmatprep.subr.mxu0 0.0
          %2407 = vmatpush1.msra.mxu0 0.0
          %2408 = vmatprep.subr.mxu0 0.0
          %2409 = vmatpush1.msra.mxu0 0.0
          %2410 = vmatprep.subr.mxu0 0.0
          %2411 = vmatpush1.msra.mxu0 0.0
          %2412 = vmatprep.subr.mxu0 0.0
          %2413 = vmatpush1.msra.mxu0 0.0
          %2414 = vmatprep.subr.mxu0 0.0
          %2415 = vmatpush1.msra.mxu0 0.0
          %2416 = vmatprep.subr.mxu0 0.0
          %2417 = vmatpush1.msra.mxu0 0.0
          %2418 = vmatprep.mubr.f32.mxu0 0.0
          %2419 = vmatmul.mubr.f32.gmra.mrb[0].mxu0 %v2331
          %v2420 = vpop.f32.mrb[0].mxu0
          %v2421 = vadd.f32 %v2292, %v2420
          %v2422 = vpop.f32.mrb[0].mxu0
          %2423 = vmatprep.mubr.f32.mxu0 0.0
          %2424 = vmatmul.mubr.f32.gmra.mrb[0].mxu0 %v2334
          %v2425 = vpop.f32.mrb[0].mxu0
          %v2426 = vadd.f32 %v2297, %v2425
          %v2427 = vpop.f32.mrb[0].mxu0
          %2428 = vmatprep.mubr.f32.mxu0 0.0
          %2429 = vmatmul.mubr.f32.gmra.mrb[0].mxu0 %v2337
          %v2430 = vpop.f32.mrb[0].mxu0
          %v2431 = vadd.f32 %v2302, %v2430
          %v2432 = vpop.f32.mrb[0].mxu0
          %2433 = vmatprep.mubr.f32.mxu0 0.0
          %2434 = vmatmul.mubr.f32.gmra.mrb[0].mxu0 %v2340
          %v2435 = vpop.f32.mrb[0].mxu0
          %v2436 = vadd.f32 %v2307, %v2435
          %v2437 = vpop.f32.mrb[0].mxu0
          %2438 = vmatprep.mubr.f32.mxu0 0.0
          %2439 = vmatmul.mubr.f32.gmra.mrb[0].mxu0 %v2343
          %v2440 = vpop.f32.mrb[0].mxu0
          %v2441 = vadd.f32 %v2312, %v2440
          %v2442 = vpop.f32.mrb[0].mxu0
          %2443 = vmatprep.mubr.f32.mxu0 0.0
          %2444 = vmatmul.mubr.f32.gmra.mrb[0].mxu0 %v2346
          %v2445 = vpop.f32.mrb[0].mxu0
          %v2446 = vadd.f32 %v2317, %v2445
          %v2447 = vpop.f32.mrb[0].mxu0
          %2448 = vmatprep.mubr.f32.mxu0 0.0
          %2449 = vmatmul.mubr.f32.gmra.mrb[0].mxu0 %v2349
          %v2450 = vpop.f32.mrb[0].mxu0
          %v2451 = vadd.f32 %v2322, %v2450
          %v2452 = vpop.f32.mrb[0].mxu0
          %2453 = vmatprep.mubr.f32.mxu0 0.0
          %2454 = vmatmul.mubr.f32.gmra.mrb[0].mxu0 %v2352
          %v2455 = vpop.f32.mrb[0].mxu0
          %v2456 = vadd.f32 %v2327, %v2455
          %v2457 = vpop.f32.mrb[0].mxu0
          %2458 = vdwg.mxu0
          %s2459 = scalar_lea.vmem %s11, 128
          %v2460 = vld [vmem:[%s2459] sm:$0xff]
          %v2461 = vld [vmem:[%s2459 + $0x8] sm:$0xff]
          %v2462 = vld [vmem:[%s2459 + $0x10] sm:$0xff]
          %v2463 = vld [vmem:[%s2459 + $0x18] sm:$0xff]
          %v2464 = vld [vmem:[%s2459 + $0x20] sm:$0xff]
          %v2465 = vld [vmem:[%s2459 + $0x28] sm:$0xff]
          %v2466 = vld [vmem:[%s2459 + $0x30] sm:$0xff]
          %v2467 = vld [vmem:[%s2459 + $0x38] sm:$0x3f]
          %v2469 = vsel %vm1921, %v2460, 0
          %v2472 = vsel %vm1921, %v2461, 0
          %v2475 = vsel %vm1921, %v2462, 0
          %v2478 = vsel %vm1921, %v2463, 0
          %v2481 = vsel %vm1921, %v2464, 0
          %v2484 = vsel %vm1921, %v2465, 0
          %v2487 = vsel %vm1921, %v2466, 0
          %v2490 = vsel %vm1921, %v2467, 0
          %2492 = vmatprep.subr.mxu0 0.0
          %2493 = vmatpush1.msra.mxu0 %v1897
          %2494 = vmatprep.subr.mxu0 0.0
          %2495 = vmatpush1.msra.mxu0 %v1898
          %2496 = vmatprep.subr.mxu0 0.0
          %2497 = vmatpush1.msra.mxu0 %v1899
          %2498 = vmatprep.subr.mxu0 0.0
          %2499 = vmatpush1.msra.mxu0 %v1900
          %2500 = vmatprep.subr.mxu0 0.0
          %2501 = vmatpush1.msra.mxu0 %v1901
          %2502 = vmatprep.subr.mxu0 0.0
          %2503 = vmatpush1.msra.mxu0 %v1902
          %2504 = vmatprep.subr.mxu0 0.0
          %2505 = vmatpush1.msra.mxu0 %v1903
          %2506 = vmatprep.subr.mxu0 0.0
          %2507 = vmatpush1.msra.mxu0 %v1904
          %2508 = vmatprep.subr.mxu0 0.0
          %2509 = vmatpush1.msra.mxu0 %v1905
          %2510 = vmatprep.subr.mxu0 0.0
          %2511 = vmatpush1.msra.mxu0 %v1906
          %2512 = vmatprep.subr.mxu0 0.0
          %2513 = vmatpush1.msra.mxu0 %v1907
          %2514 = vmatprep.subr.mxu0 0.0
          %2515 = vmatpush1.msra.mxu0 %v1908
          %2516 = vmatprep.subr.mxu0 0.0
          %2517 = vmatpush1.msra.mxu0 %v1909
          %2518 = vmatprep.subr.mxu0 0.0
          %2519 = vmatpush1.msra.mxu0 %v1910
          %2520 = vmatprep.subr.mxu0 0.0
          %2521 = vmatpush1.msra.mxu0 %v1911
          %2522 = vmatprep.subr.mxu0 0.0
          %2523 = vmatpush1.msra.mxu0 %v1948
          %2524 = vmatprep.subr.mxu0 0.0
          %2525 = vmatpush1.msra.mxu0 0.0
          %2526 = vmatprep.subr.mxu0 0.0
          %2527 = vmatpush1.msra.mxu0 0.0
          %2528 = vmatprep.subr.mxu0 0.0
          %2529 = vmatpush1.msra.mxu0 0.0
          %2530 = vmatprep.subr.mxu0 0.0
          %2531 = vmatpush1.msra.mxu0 0.0
          %2532 = vmatprep.subr.mxu0 0.0
          %2533 = vmatpush1.msra.mxu0 0.0
          %2534 = vmatprep.subr.mxu0 0.0
          %2535 = vmatpush1.msra.mxu0 0.0
          %2536 = vmatprep.subr.mxu0 0.0
          %2537 = vmatpush1.msra.mxu0 0.0
          %2538 = vmatprep.subr.mxu0 0.0
          %2539 = vmatpush1.msra.mxu0 0.0
          %2540 = vmatprep.subr.mxu0 0.0
          %2541 = vmatpush1.msra.mxu0 0.0
          %2542 = vmatprep.subr.mxu0 0.0
          %2543 = vmatpush1.msra.mxu0 0.0
          %2544 = vmatprep.subr.mxu0 0.0
          %2545 = vmatpush1.msra.mxu0 0.0
          %2546 = vmatprep.subr.mxu0 0.0
          %2547 = vmatpush1.msra.mxu0 0.0
          %2548 = vmatprep.subr.mxu0 0.0
          %2549 = vmatpush1.msra.mxu0 0.0
          %2550 = vmatprep.subr.mxu0 0.0
          %2551 = vmatpush1.msra.mxu0 0.0
          %2552 = vmatprep.subr.mxu0 0.0
          %2553 = vmatpush1.msra.mxu0 0.0
          %2554 = vmatprep.subr.mxu0 0.0
          %2555 = vmatpush1.msra.mxu0 0.0
          %2556 = vmatprep.mubr.f32.mxu0 0.0
          %2557 = vmatmul.mubr.f32.gmra.mrb[0].mxu0 %v2469
          %v2558 = vpop.f32.mrb[0].mxu0
          %v2559 = vadd.f32 0.0, %v2558
          %v2560 = vpop.f32.mrb[0].mxu0
          %2561 = vmatprep.mubr.f32.mxu0 0.0
          %2562 = vmatmul.mubr.f32.gmra.mrb[0].mxu0 %v2472
          %v2563 = vpop.f32.mrb[0].mxu0
          %v2564 = vadd.f32 0.0, %v2563
          %v2565 = vpop.f32.mrb[0].mxu0
          %2566 = vmatprep.mubr.f32.mxu0 0.0
          %2567 = vmatmul.mubr.f32.gmra.mrb[0].mxu0 %v2475
          %v2568 = vpop.f32.mrb[0].mxu0
          %v2569 = vadd.f32 0.0, %v2568
          %v2570 = vpop.f32.mrb[0].mxu0
          %2571 = vmatprep.mubr.f32.mxu0 0.0
          %2572 = vmatmul.mubr.f32.gmra.mrb[0].mxu0 %v2478
          %v2573 = vpop.f32.mrb[0].mxu0
          %v2574 = vadd.f32 0.0, %v2573
          %v2575 = vpop.f32.mrb[0].mxu0
          %2576 = vmatprep.mubr.f32.mxu0 0.0
          %2577 = vmatmul.mubr.f32.gmra.mrb[0].mxu0 %v2481
          %v2578 = vpop.f32.mrb[0].mxu0
          %v2579 = vadd.f32 0.0, %v2578
          %v2580 = vpop.f32.mrb[0].mxu0
          %2581 = vmatprep.mubr.f32.mxu0 0.0
          %2582 = vmatmul.mubr.f32.gmra.mrb[0].mxu0 %v2484
          %v2583 = vpop.f32.mrb[0].mxu0
          %v2584 = vadd.f32 0.0, %v2583
          %v2585 = vpop.f32.mrb[0].mxu0
          %2586 = vmatprep.mubr.f32.mxu0 0.0
          %2587 = vmatmul.mubr.f32.gmra.mrb[0].mxu0 %v2487
          %v2588 = vpop.f32.mrb[0].mxu0
          %v2589 = vadd.f32 0.0, %v2588
          %v2590 = vpop.f32.mrb[0].mxu0
          %2591 = vmatprep.mubr.f32.mxu0 0.0
          %2592 = vmatmul.mubr.f32.gmra.mrb[0].mxu0 %v2490
          %v2593 = vpop.f32.mrb[0].mxu0
          %v2594 = vadd.f32 0.0, %v2593
          %v2595 = vpop.f32.mrb[0].mxu0
          %2596 = vdwg.mxu0
          %v2597 = vld [vmem:[%s13 + $0x40] sm:$0xff]
          %v2598 = vld [vmem:[%s13 + $0x48] sm:$0xff]
          %v2599 = vld [vmem:[%s13 + $0x50] sm:$0xff]
          %v2600 = vld [vmem:[%s13 + $0x58] sm:$0xff]
          %v2602 = vsel %vm1514, %v2559, 0
          %v2605 = vsel %vm1514, %v2564, 0
          %v2608 = vsel %vm1514, %v2569, 0
          %v2611 = vsel %vm1514, %v2574, 0
          %v2614 = vsel %vm1514, %v2579, 0
          %v2617 = vsel %vm1514, %v2584, 0
          %v2620 = vsel %vm1514, %v2589, 0
          %v2623 = vsel %vm1514, %v2594, 0
          %2625 = vmatprep.subr.mxu0 0.0
          %2626 = vmatpush1.msra.mxu0 %v2597
          %2627 = vmatprep.subr.mxu0 0.0
          %2628 = vmatpush1.msra.mxu0 %v2598
          %2629 = vmatprep.subr.mxu0 0.0
          %2630 = vmatpush1.msra.mxu0 %v2599
          %2631 = vmatprep.subr.mxu0 0.0
          %2632 = vmatpush1.msra.mxu0 %v2600
          %2633 = vmatprep.subr.mxu0 0.0
          %2634 = vmatpush1.msra.mxu0 0.0
          %2635 = vmatprep.subr.mxu0 0.0
          %2636 = vmatpush1.msra.mxu0 0.0
          %2637 = vmatprep.subr.mxu0 0.0
          %2638 = vmatpush1.msra.mxu0 0.0
          %2639 = vmatprep.subr.mxu0 0.0
          %2640 = vmatpush1.msra.mxu0 0.0
          %2641 = vmatprep.subr.mxu0 0.0
          %2642 = vmatpush1.msra.mxu0 0.0
          %2643 = vmatprep.subr.mxu0 0.0
          %2644 = vmatpush1.msra.mxu0 0.0
          %2645 = vmatprep.subr.mxu0 0.0
          %2646 = vmatpush1.msra.mxu0 0.0
          %2647 = vmatprep.subr.mxu0 0.0
          %2648 = vmatpush1.msra.mxu0 0.0
          %2649 = vmatprep.subr.mxu0 0.0
          %2650 = vmatpush1.msra.mxu0 0.0
          %2651 = vmatprep.subr.mxu0 0.0
          %2652 = vmatpush1.msra.mxu0 0.0
          %2653 = vmatprep.subr.mxu0 0.0
          %2654 = vmatpush1.msra.mxu0 0.0
          %2655 = vmatprep.subr.mxu0 0.0
          %2656 = vmatpush1.msra.mxu0 0.0
          %2657 = vmatprep.subr.mxu0 0.0
          %2658 = vmatpush1.msra.mxu0 0.0
          %2659 = vmatprep.subr.mxu0 0.0
          %2660 = vmatpush1.msra.mxu0 0.0
          %2661 = vmatprep.subr.mxu0 0.0
          %2662 = vmatpush1.msra.mxu0 0.0
          %2663 = vmatprep.subr.mxu0 0.0
          %2664 = vmatpush1.msra.mxu0 0.0
          %2665 = vmatprep.subr.mxu0 0.0
          %2666 = vmatpush1.msra.mxu0 0.0
          %2667 = vmatprep.subr.mxu0 0.0
          %2668 = vmatpush1.msra.mxu0 0.0
          %2669 = vmatprep.subr.mxu0 0.0
          %2670 = vmatpush1.msra.mxu0 0.0
          %2671 = vmatprep.subr.mxu0 0.0
          %2672 = vmatpush1.msra.mxu0 0.0
          %2673 = vmatprep.subr.mxu0 0.0
          %2674 = vmatpush1.msra.mxu0 0.0
          %2675 = vmatprep.subr.mxu0 0.0
          %2676 = vmatpush1.msra.mxu0 0.0
          %2677 = vmatprep.subr.mxu0 0.0
          %2678 = vmatpush1.msra.mxu0 0.0
          %2679 = vmatprep.subr.mxu0 0.0
          %2680 = vmatpush1.msra.mxu0 0.0
          %2681 = vmatprep.subr.mxu0 0.0
          %2682 = vmatpush1.msra.mxu0 0.0
          %2683 = vmatprep.subr.mxu0 0.0
          %2684 = vmatpush1.msra.mxu0 0.0
          %2685 = vmatprep.subr.mxu0 0.0
          %2686 = vmatpush1.msra.mxu0 0.0
          %2687 = vmatprep.subr.mxu0 0.0
          %2688 = vmatpush1.msra.mxu0 0.0
          %2689 = vmatprep.mubr.f32.mxu0 0.0
          %2690 = vmatmul.mubr.f32.gmra.mrb[0].mxu0 %v2602
          %v2691 = vpop.f32.mrb[0].mxu0
          %v2692 = vadd.f32 0.0, %v2691
          %v2693 = vpop.f32.mrb[0].mxu0
          %2694 = vmatprep.mubr.f32.mxu0 0.0
          %2695 = vmatmul.mubr.f32.gmra.mrb[0].mxu0 %v2605
          %v2696 = vpop.f32.mrb[0].mxu0
          %v2697 = vadd.f32 0.0, %v2696
          %v2698 = vpop.f32.mrb[0].mxu0
          %2699 = vmatprep.mubr.f32.mxu0 0.0
          %2700 = vmatmul.mubr.f32.gmra.mrb[0].mxu0 %v2608
          %v2701 = vpop.f32.mrb[0].mxu0
          %v2702 = vadd.f32 0.0, %v2701
          %v2703 = vpop.f32.mrb[0].mxu0
          %2704 = vmatprep.mubr.f32.mxu0 0.0
          %2705 = vmatmul.mubr.f32.gmra.mrb[0].mxu0 %v2611
          %v2706 = vpop.f32.mrb[0].mxu0
          %v2707 = vadd.f32 0.0, %v2706
          %v2708 = vpop.f32.mrb[0].mxu0
          %2709 = vmatprep.mubr.f32.mxu0 0.0
          %2710 = vmatmul.mubr.f32.gmra.mrb[0].mxu0 %v2614
          %v2711 = vpop.f32.mrb[0].mxu0
          %v2712 = vadd.f32 0.0, %v2711
          %v2713 = vpop.f32.mrb[0].mxu0
          %2714 = vmatprep.mubr.f32.mxu0 0.0
          %2715 = vmatmul.mubr.f32.gmra.mrb[0].mxu0 %v2617
          %v2716 = vpop.f32.mrb[0].mxu0
          %v2717 = vadd.f32 0.0, %v2716
          %v2718 = vpop.f32.mrb[0].mxu0
          %2719 = vmatprep.mubr.f32.mxu0 0.0
          %2720 = vmatmul.mubr.f32.gmra.mrb[0].mxu0 %v2620
          %v2721 = vpop.f32.mrb[0].mxu0
          %v2722 = vadd.f32 0.0, %v2721
          %v2723 = vpop.f32.mrb[0].mxu0
          %2724 = vmatprep.mubr.f32.mxu0 0.0
          %2725 = vmatmul.mubr.f32.gmra.mrb[0].mxu0 %v2623
          %v2726 = vpop.f32.mrb[0].mxu0
          %v2727 = vadd.f32 0.0, %v2726
          %v2728 = vpop.f32.mrb[0].mxu0
          %2729 = vdwg.mxu0
          %v2730 = vadd.f32 %v2421, %v2692
          %v2731 = vadd.f32 %v2426, %v2697
          %v2732 = vadd.f32 %v2431, %v2702
          %v2733 = vadd.f32 %v2436, %v2707
          %v2734 = vadd.f32 %v2441, %v2712
          %v2735 = vadd.f32 %v2446, %v2717
          %v2736 = vadd.f32 %v2451, %v2722
          %v2737 = vadd.f32 %v2456, %v2727
          %v2738 = vld [vmem:[%s15] sm:$0x1]
          %v2740 = vlaneseq
          %v2741 = vshrl.u32 %v2740, 7
          %v2742 = vsub.s32 0, %v2741
          %v2743 = vrot.slane %v2738, %v2742
          %v2745 = vadd.f32 %v2730, %v2743
          %v2746 = vadd.f32 %v2731, %v2743
          %v2747 = vadd.f32 %v2732, %v2743
          %v2748 = vadd.f32 %v2733, %v2743
          %v2749 = vadd.f32 %v2734, %v2743
          %v2750 = vadd.f32 %v2735, %v2743
          %v2751 = vadd.f32 %v2736, %v2743
          %v2752 = vadd.f32 %v2737, %v2743
          %v2753 = vld [vmem:[%s17] sm:$0x1]
          %v2754 = vld [vmem:[%s19] sm:$0x1]
          %v2755 = vsel %vm1514, %v2745, 0.0
          %2756 = vadd.xlane.f32.xlu0 %v2755
          %v2757 = vpop.xlane.xlu0 %2756
          %v2758 = vsel %vm1514, %v2746, 0.0
          %2759 = vadd.xlane.f32.xlu0 %v2758
          %v2760 = vpop.xlane.xlu0 %2759
          %v2761 = vsel %vm1514, %v2747, 0.0
          %2762 = vadd.xlane.f32.xlu0 %v2761
          %v2763 = vpop.xlane.xlu0 %2762
          %v2764 = vsel %vm1514, %v2748, 0.0
          %2765 = vadd.xlane.f32.xlu0 %v2764
          %v2766 = vpop.xlane.xlu0 %2765
          %v2767 = vsel %vm1514, %v2749, 0.0
          %2768 = vadd.xlane.f32.xlu0 %v2767
          %v2769 = vpop.xlane.xlu0 %2768
          %v2770 = vsel %vm1514, %v2750, 0.0
          %2771 = vadd.xlane.f32.xlu0 %v2770
          %v2772 = vpop.xlane.xlu0 %2771
          %v2773 = vsel %vm1514, %v2751, 0.0
          %2774 = vadd.xlane.f32.xlu0 %v2773
          %v2775 = vpop.xlane.xlu0 %2774
          %v2776 = vsel %vm1560, %v2752, 0.0
          %2777 = vadd.xlane.f32.xlu0 %v2776
          %v2778 = vpop.xlane.xlu0 %2777
          %v2779 = vmul.f32 %v2757, %v1564
          %v2780 = vmul.f32 %v2760, %v1564
          %v2781 = vmul.f32 %v2763, %v1564
          %v2782 = vmul.f32 %v2766, %v1564
          %v2783 = vmul.f32 %v2769, %v1564
          %v2784 = vmul.f32 %v2772, %v1564
          %v2785 = vmul.f32 %v2775, %v1564
          %v2786 = vmul.f32 %v2778, %v1564
          %v2787 = vsub.f32 %v2745, %v2779
          %v2788 = vsub.f32 %v2746, %v2780
          %v2789 = vsub.f32 %v2747, %v2781
          %v2790 = vsub.f32 %v2748, %v2782
          %v2791 = vsub.f32 %v2749, %v2783
          %v2792 = vsub.f32 %v2750, %v2784
          %v2793 = vsub.f32 %v2751, %v2785
          %v2794 = vsub.f32 %v2752, %v2786
          %v2795 = vmul.f32 %v2787, %v2787
          %v2796 = vmul.f32 %v2788, %v2788
          %v2797 = vmul.f32 %v2789, %v2789
          %v2798 = vmul.f32 %v2790, %v2790
          %v2799 = vmul.f32 %v2791, %v2791
          %v2800 = vmul.f32 %v2792, %v2792
          %v2801 = vmul.f32 %v2793, %v2793
          %v2802 = vmul.f32 %v2794, %v2794
          %v2803 = vsel %vm1514, %v2795, 0.0
          %2804 = vadd.xlane.f32.xlu0 %v2803
          %v2805 = vpop.xlane.xlu0 %2804
          %v2806 = vsel %vm1514, %v2796, 0.0
          %2807 = vadd.xlane.f32.xlu0 %v2806
          %v2808 = vpop.xlane.xlu0 %2807
          %v2809 = vsel %vm1514, %v2797, 0.0
          %2810 = vadd.xlane.f32.xlu0 %v2809
          %v2811 = vpop.xlane.xlu0 %2810
          %v2812 = vsel %vm1514, %v2798, 0.0
          %2813 = vadd.xlane.f32.xlu0 %v2812
          %v2814 = vpop.xlane.xlu0 %2813
          %v2815 = vsel %vm1514, %v2799, 0.0
          %2816 = vadd.xlane.f32.xlu0 %v2815
          %v2817 = vpop.xlane.xlu0 %2816
          %v2818 = vsel %vm1514, %v2800, 0.0
          %2819 = vadd.xlane.f32.xlu0 %v2818
          %v2820 = vpop.xlane.xlu0 %2819
          %v2821 = vsel %vm1514, %v2801, 0.0
          %2822 = vadd.xlane.f32.xlu0 %v2821
          %v2823 = vpop.xlane.xlu0 %2822
          %v2824 = vsel %vm1560, %v2802, 0.0
          %2825 = vadd.xlane.f32.xlu0 %v2824
          %v2826 = vpop.xlane.xlu0 %2825
          %v2827 = vmul.f32 %v2805, %v1564
          %v2828 = vmul.f32 %v2808, %v1564
          %v2829 = vmul.f32 %v2811, %v1564
          %v2830 = vmul.f32 %v2814, %v1564
          %v2831 = vmul.f32 %v2817, %v1564
          %v2832 = vmul.f32 %v2820, %v1564
          %v2833 = vmul.f32 %v2823, %v1564
          %v2834 = vmul.f32 %v2826, %v1564
          %v2835 = vadd.f32 %v2827, 1e-05
          %v2836 = vadd.f32 %v2828, 1e-05
          %v2837 = vadd.f32 %v2829, 1e-05
          %v2838 = vadd.f32 %v2830, 1e-05
          %v2839 = vadd.f32 %v2831, 1e-05
          %v2840 = vadd.f32 %v2832, 1e-05
          %v2841 = vadd.f32 %v2833, 1e-05
          %v2842 = vadd.f32 %v2834, 1e-05
          %v2843 = vrsqrt.pop %v2835
          %v2844 = vrsqrt.pop %v2836
          %v2845 = vrsqrt.pop %v2837
          %v2846 = vrsqrt.pop %v2838
          %v2847 = vrsqrt.pop %v2839
          %v2848 = vrsqrt.pop %v2840
          %v2849 = vrsqrt.pop %v2841
          %v2850 = vrsqrt.pop %v2842
          %v2851 = vmul.f32 %v2787, %v2843
          %v2852 = vmul.f32 %v2788, %v2844
          %v2853 = vmul.f32 %v2789, %v2845
          %v2854 = vmul.f32 %v2790, %v2846
          %v2855 = vmul.f32 %v2791, %v2847
          %v2856 = vmul.f32 %v2792, %v2848
          %v2857 = vmul.f32 %v2793, %v2849
          %v2858 = vmul.f32 %v2794, %v2850
          %v2860 = vlaneseq
          %v2861 = vshrl.u32 %v2860, 7
          %v2862 = vsub.s32 0, %v2861
          %v2863 = vrot.slane %v2753, %v2862
          %v2865 = vmul.f32 %v2851, %v2863
          %v2866 = vmul.f32 %v2852, %v2863
          %v2867 = vmul.f32 %v2853, %v2863
          %v2868 = vmul.f32 %v2854, %v2863
          %v2869 = vmul.f32 %v2855, %v2863
          %v2870 = vmul.f32 %v2856, %v2863
          %v2871 = vmul.f32 %v2857, %v2863
          %v2872 = vmul.f32 %v2858, %v2863
          %v2874 = vlaneseq
          %v2875 = vshrl.u32 %v2874, 7
          %v2876 = vsub.s32 0, %v2875
          %v2877 = vrot.slane %v2754, %v2876
          %v2879 = vadd.f32 %v2865, %v2877
          %v2880 = vadd.f32 %v2866, %v2877
          %v2881 = vadd.f32 %v2867, %v2877
          %v2882 = vadd.f32 %v2868, %v2877
          %v2883 = vadd.f32 %v2869, %v2877
          %v2884 = vadd.f32 %v2870, %v2877
          %v2885 = vadd.f32 %v2871, %v2877
          %v2886 = vadd.f32 %v2872, %v2877
          %v2887 = vmul.f32 %v2879, %v2879
          %v2888 = vmul.f32 %v2880, %v2880
          %v2889 = vmul.f32 %v2881, %v2881
          %v2890 = vmul.f32 %v2882, %v2882
          %v2891 = vmul.f32 %v2883, %v2883
          %v2892 = vmul.f32 %v2884, %v2884
          %v2893 = vmul.f32 %v2885, %v2885
          %v2894 = vmul.f32 %v2886, %v2886
          %v2895 = vmul.f32 %v2879, %v2887
          %v2896 = vmul.f32 %v2880, %v2888
          %v2897 = vmul.f32 %v2881, %v2889
          %v2898 = vmul.f32 %v2882, %v2890
          %v2899 = vmul.f32 %v2883, %v2891
          %v2900 = vmul.f32 %v2884, %v2892
          %v2901 = vmul.f32 %v2885, %v2893
          %v2902 = vmul.f32 %v2886, %v2894
          %v2903 = vmul.f32 %v2895, 0.044715
          %v2904 = vmul.f32 %v2896, 0.044715
          %v2905 = vmul.f32 %v2897, 0.044715
          %v2906 = vmul.f32 %v2898, 0.044715
          %v2907 = vmul.f32 %v2899, 0.044715
          %v2908 = vmul.f32 %v2900, 0.044715
          %v2909 = vmul.f32 %v2901, 0.044715
          %v2910 = vmul.f32 %v2902, 0.044715
          %v2911 = vadd.f32 %v2879, %v2903
          %v2912 = vadd.f32 %v2880, %v2904
          %v2913 = vadd.f32 %v2881, %v2905
          %v2914 = vadd.f32 %v2882, %v2906
          %v2915 = vadd.f32 %v2883, %v2907
          %v2916 = vadd.f32 %v2884, %v2908
          %v2917 = vadd.f32 %v2885, %v2909
          %v2918 = vadd.f32 %v2886, %v2910
          %v2919 = vmul.f32 %v2911, 0.7978846
          %v2920 = vmul.f32 %v2912, 0.7978846
          %v2921 = vmul.f32 %v2913, 0.7978846
          %v2922 = vmul.f32 %v2914, 0.7978846
          %v2923 = vmul.f32 %v2915, 0.7978846
          %v2924 = vmul.f32 %v2916, 0.7978846
          %v2925 = vmul.f32 %v2917, 0.7978846
          %v2926 = vmul.f32 %v2918, 0.7978846
          %v2927 = vtanh.pop %v2919
          %v2928 = vtanh.pop %v2920
          %v2929 = vtanh.pop %v2921
          %v2930 = vtanh.pop %v2922
          %v2931 = vtanh.pop %v2923
          %v2932 = vtanh.pop %v2924
          %v2933 = vtanh.pop %v2925
          %v2934 = vtanh.pop %v2926
          %v2935 = vadd.f32 %v2927, 1.0
          %v2936 = vadd.f32 %v2928, 1.0
          %v2937 = vadd.f32 %v2929, 1.0
          %v2938 = vadd.f32 %v2930, 1.0
          %v2939 = vadd.f32 %v2931, 1.0
          %v2940 = vadd.f32 %v2932, 1.0
          %v2941 = vadd.f32 %v2933, 1.0
          %v2942 = vadd.f32 %v2934, 1.0
          %v2943 = vmul.f32 %v2935, 0.5
          %v2944 = vmul.f32 %v2936, 0.5
          %v2945 = vmul.f32 %v2937, 0.5
          %v2946 = vmul.f32 %v2938, 0.5
          %v2947 = vmul.f32 %v2939, 0.5
          %v2948 = vmul.f32 %v2940, 0.5
          %v2949 = vmul.f32 %v2941, 0.5
          %v2950 = vmul.f32 %v2942, 0.5
          %v2951 = vmul.f32 %v2879, %v2943
          %v2952 = vmul.f32 %v2880, %v2944
          %v2953 = vmul.f32 %v2881, %v2945
          %v2954 = vmul.f32 %v2882, %v2946
          %v2955 = vmul.f32 %v2883, %v2947
          %v2956 = vmul.f32 %v2884, %v2948
          %v2957 = vmul.f32 %v2885, %v2949
          %v2958 = vmul.f32 %v2886, %v2950
          %v2959 = vld [vmem:[%s21] sm:$0x1]
          %v2960 = vld [vmem:[%s23] sm:$0x1]
          %v2961 = vsel %vm1514, %v2951, 0.0
          %2962 = vadd.xlane.f32.xlu0 %v2961
          %v2963 = vpop.xlane.xlu0 %2962
          %v2964 = vsel %vm1514, %v2952, 0.0
          %2965 = vadd.xlane.f32.xlu0 %v2964
          %v2966 = vpop.xlane.xlu0 %2965
          %v2967 = vsel %vm1514, %v2953, 0.0
          %2968 = vadd.xlane.f32.xlu0 %v2967
          %v2969 = vpop.xlane.xlu0 %2968
          %v2970 = vsel %vm1514, %v2954, 0.0
          %2971 = vadd.xlane.f32.xlu0 %v2970
          %v2972 = vpop.xlane.xlu0 %2971
          %v2973 = vsel %vm1514, %v2955, 0.0
          %2974 = vadd.xlane.f32.xlu0 %v2973
          %v2975 = vpop.xlane.xlu0 %2974
          %v2976 = vsel %vm1514, %v2956, 0.0
          %2977 = vadd.xlane.f32.xlu0 %v2976
          %v2978 = vpop.xlane.xlu0 %2977
          %v2979 = vsel %vm1514, %v2957, 0.0
          %2980 = vadd.xlane.f32.xlu0 %v2979
          %v2981 = vpop.xlane.xlu0 %2980
          %v2982 = vsel %vm1560, %v2958, 0.0
          %2983 = vadd.xlane.f32.xlu0 %v2982
          %v2984 = vpop.xlane.xlu0 %2983
          %v2985 = vmul.f32 %v2963, %v1564
          %v2986 = vmul.f32 %v2966, %v1564
          %v2987 = vmul.f32 %v2969, %v1564
          %v2988 = vmul.f32 %v2972, %v1564
          %v2989 = vmul.f32 %v2975, %v1564
          %v2990 = vmul.f32 %v2978, %v1564
          %v2991 = vmul.f32 %v2981, %v1564
          %v2992 = vmul.f32 %v2984, %v1564
          %v2993 = vsub.f32 %v2951, %v2985
          %v2994 = vsub.f32 %v2952, %v2986
          %v2995 = vsub.f32 %v2953, %v2987
          %v2996 = vsub.f32 %v2954, %v2988
          %v2997 = vsub.f32 %v2955, %v2989
          %v2998 = vsub.f32 %v2956, %v2990
          %v2999 = vsub.f32 %v2957, %v2991
          %v3000 = vsub.f32 %v2958, %v2992
          %v3001 = vmul.f32 %v2993, %v2993
          %v3002 = vmul.f32 %v2994, %v2994
          %v3003 = vmul.f32 %v2995, %v2995
          %v3004 = vmul.f32 %v2996, %v2996
          %v3005 = vmul.f32 %v2997, %v2997
          %v3006 = vmul.f32 %v2998, %v2998
          %v3007 = vmul.f32 %v2999, %v2999
          %v3008 = vmul.f32 %v3000, %v3000
          %v3009 = vsel %vm1514, %v3001, 0.0
          %3010 = vadd.xlane.f32.xlu0 %v3009
          %v3011 = vpop.xlane.xlu0 %3010
          %v3012 = vsel %vm1514, %v3002, 0.0
          %3013 = vadd.xlane.f32.xlu0 %v3012
          %v3014 = vpop.xlane.xlu0 %3013
          %v3015 = vsel %vm1514, %v3003, 0.0
          %3016 = vadd.xlane.f32.xlu0 %v3015
          %v3017 = vpop.xlane.xlu0 %3016
          %v3018 = vsel %vm1514, %v3004, 0.0
          %3019 = vadd.xlane.f32.xlu0 %v3018
          %v3020 = vpop.xlane.xlu0 %3019
          %v3021 = vsel %vm1514, %v3005, 0.0
          %3022 = vadd.xlane.f32.xlu0 %v3021
          %v3023 = vpop.xlane.xlu0 %3022
          %v3024 = vsel %vm1514, %v3006, 0.0
          %3025 = vadd.xlane.f32.xlu0 %v3024
          %v3026 = vpop.xlane.xlu0 %3025
          %v3027 = vsel %vm1514, %v3007, 0.0
          %3028 = vadd.xlane.f32.xlu0 %v3027
          %v3029 = vpop.xlane.xlu0 %3028
          %v3030 = vsel %vm1560, %v3008, 0.0
          %3031 = vadd.xlane.f32.xlu0 %v3030
          %v3032 = vpop.xlane.xlu0 %3031
          %v3033 = vmul.f32 %v3011, %v1564
          %v3034 = vmul.f32 %v3014, %v1564
          %v3035 = vmul.f32 %v3017, %v1564
          %v3036 = vmul.f32 %v3020, %v1564
          %v3037 = vmul.f32 %v3023, %v1564
          %v3038 = vmul.f32 %v3026, %v1564
          %v3039 = vmul.f32 %v3029, %v1564
          %v3040 = vmul.f32 %v3032, %v1564
          %v3041 = vadd.f32 %v3033, 1e-05
          %v3042 = vadd.f32 %v3034, 1e-05
          %v3043 = vadd.f32 %v3035, 1e-05
          %v3044 = vadd.f32 %v3036, 1e-05
          %v3045 = vadd.f32 %v3037, 1e-05
          %v3046 = vadd.f32 %v3038, 1e-05
          %v3047 = vadd.f32 %v3039, 1e-05
          %v3048 = vadd.f32 %v3040, 1e-05
          %v3049 = vrsqrt.pop %v3041
          %v3050 = vrsqrt.pop %v3042
          %v3051 = vrsqrt.pop %v3043
          %v3052 = vrsqrt.pop %v3044
          %v3053 = vrsqrt.pop %v3045
          %v3054 = vrsqrt.pop %v3046
          %v3055 = vrsqrt.pop %v3047
          %v3056 = vrsqrt.pop %v3048
          %v3057 = vmul.f32 %v2993, %v3049
          %v3058 = vmul.f32 %v2994, %v3050
          %v3059 = vmul.f32 %v2995, %v3051
          %v3060 = vmul.f32 %v2996, %v3052
          %v3061 = vmul.f32 %v2997, %v3053
          %v3062 = vmul.f32 %v2998, %v3054
          %v3063 = vmul.f32 %v2999, %v3055
          %v3064 = vmul.f32 %v3000, %v3056
          %v3066 = vlaneseq
          %v3067 = vshrl.u32 %v3066, 7
          %v3068 = vsub.s32 0, %v3067
          %v3069 = vrot.slane %v2959, %v3068
          %v3071 = vmul.f32 %v3057, %v3069
          %v3072 = vmul.f32 %v3058, %v3069
          %v3073 = vmul.f32 %v3059, %v3069
          %v3074 = vmul.f32 %v3060, %v3069
          %v3075 = vmul.f32 %v3061, %v3069
          %v3076 = vmul.f32 %v3062, %v3069
          %v3077 = vmul.f32 %v3063, %v3069
          %v3078 = vmul.f32 %v3064, %v3069
          %v3080 = vlaneseq
          %v3081 = vshrl.u32 %v3080, 7
          %v3082 = vsub.s32 0, %v3081
          %v3083 = vrot.slane %v2960, %v3082
          %v3085 = vadd.f32 %v3071, %v3083
          %v3086 = vadd.f32 %v3072, %v3083
          %v3087 = vadd.f32 %v3073, %v3083
          %v3088 = vadd.f32 %v3074, %v3083
          %v3089 = vadd.f32 %v3075, %v3083
          %v3090 = vadd.f32 %v3076, %v3083
          %v3091 = vadd.f32 %v3077, %v3083
          %v3092 = vadd.f32 %v3078, %v3083
          %v3093 = vld [vmem:[%s25] sm:$0xff]
          %v3094 = vld [vmem:[%s25 + $0x8] sm:$0xff]
          %v3095 = vld [vmem:[%s25 + $0x10] sm:$0xff]
          %v3096 = vld [vmem:[%s25 + $0x18] sm:$0xff]
          %v3097 = vld [vmem:[%s27] sm:$0x1]
          %v3099 = vlaneseq
          %v3100 = vshrl.u32 %v3099, 7
          %v3101 = vsub.s32 0, %v3100
          %v3102 = vrot.slane %v3097, %v3101
          %v3105 = vsel %vm1514, %v3085, 0
          %v3108 = vsel %vm1514, %v3086, 0
          %v3111 = vsel %vm1514, %v3087, 0
          %v3114 = vsel %vm1514, %v3088, 0
          %v3117 = vsel %vm1514, %v3089, 0
          %v3120 = vsel %vm1514, %v3090, 0
          %v3123 = vsel %vm1514, %v3091, 0
          %v3126 = vsel %vm1514, %v3092, 0
          %3128 = vmatprep.subr.mxu0 0.0
          %3129 = vmatpush1.msra.mxu0 %v3093
          %3130 = vmatprep.subr.mxu0 0.0
          %3131 = vmatpush1.msra.mxu0 %v3094
          %3132 = vmatprep.subr.mxu0 0.0
          %3133 = vmatpush1.msra.mxu0 %v3095
          %3134 = vmatprep.subr.mxu0 0.0
          %3135 = vmatpush1.msra.mxu0 %v3096
          %3136 = vmatprep.subr.mxu0 0.0
          %3137 = vmatpush1.msra.mxu0 0.0
          %3138 = vmatprep.subr.mxu0 0.0
          %3139 = vmatpush1.msra.mxu0 0.0
          %3140 = vmatprep.subr.mxu0 0.0
          %3141 = vmatpush1.msra.mxu0 0.0
          %3142 = vmatprep.subr.mxu0 0.0
          %3143 = vmatpush1.msra.mxu0 0.0
          %3144 = vmatprep.subr.mxu0 0.0
          %3145 = vmatpush1.msra.mxu0 0.0
          %3146 = vmatprep.subr.mxu0 0.0
          %3147 = vmatpush1.msra.mxu0 0.0
          %3148 = vmatprep.subr.mxu0 0.0
          %3149 = vmatpush1.msra.mxu0 0.0
          %3150 = vmatprep.subr.mxu0 0.0
          %3151 = vmatpush1.msra.mxu0 0.0
          %3152 = vmatprep.subr.mxu0 0.0
          %3153 = vmatpush1.msra.mxu0 0.0
          %3154 = vmatprep.subr.mxu0 0.0
          %3155 = vmatpush1.msra.mxu0 0.0
          %3156 = vmatprep.subr.mxu0 0.0
          %3157 = vmatpush1.msra.mxu0 0.0
          %3158 = vmatprep.subr.mxu0 0.0
          %3159 = vmatpush1.msra.mxu0 0.0
          %3160 = vmatprep.subr.mxu0 0.0
          %3161 = vmatpush1.msra.mxu0 0.0
          %3162 = vmatprep.subr.mxu0 0.0
          %3163 = vmatpush1.msra.mxu0 0.0
          %3164 = vmatprep.subr.mxu0 0.0
          %3165 = vmatpush1.msra.mxu0 0.0
          %3166 = vmatprep.subr.mxu0 0.0
          %3167 = vmatpush1.msra.mxu0 0.0
          %3168 = vmatprep.subr.mxu0 0.0
          %3169 = vmatpush1.msra.mxu0 0.0
          %3170 = vmatprep.subr.mxu0 0.0
          %3171 = vmatpush1.msra.mxu0 0.0
          %3172 = vmatprep.subr.mxu0 0.0
          %3173 = vmatpush1.msra.mxu0 0.0
          %3174 = vmatprep.subr.mxu0 0.0
          %3175 = vmatpush1.msra.mxu0 0.0
          %3176 = vmatprep.subr.mxu0 0.0
          %3177 = vmatpush1.msra.mxu0 0.0
          %3178 = vmatprep.subr.mxu0 0.0
          %3179 = vmatpush1.msra.mxu0 0.0
          %3180 = vmatprep.subr.mxu0 0.0
          %3181 = vmatpush1.msra.mxu0 0.0
          %3182 = vmatprep.subr.mxu0 0.0
          %3183 = vmatpush1.msra.mxu0 0.0
          %3184 = vmatprep.subr.mxu0 0.0
          %3185 = vmatpush1.msra.mxu0 0.0
          %3186 = vmatprep.subr.mxu0 0.0
          %3187 = vmatpush1.msra.mxu0 0.0
          %3188 = vmatprep.subr.mxu0 0.0
          %3189 = vmatpush1.msra.mxu0 0.0
          %3190 = vmatprep.subr.mxu0 0.0
          %3191 = vmatpush1.msra.mxu0 0.0
          %3192 = vmatprep.mubr.f32.mxu0 0.0
          %3193 = vmatmul.mubr.f32.gmra.mrb[0].mxu0 %v3105
          %v3194 = vpop.f32.mrb[0].mxu0
          %v3195 = vadd.f32 %v3102, %v3194
          %v3196 = vpop.f32.mrb[0].mxu0
          %3197 = vmatprep.mubr.f32.mxu0 0.0
          %3198 = vmatmul.mubr.f32.gmra.mrb[0].mxu0 %v3108
          %v3199 = vpop.f32.mrb[0].mxu0
          %v3200 = vadd.f32 %v3102, %v3199
          %v3201 = vpop.f32.mrb[0].mxu0
          %3202 = vmatprep.mubr.f32.mxu0 0.0
          %3203 = vmatmul.mubr.f32.gmra.mrb[0].mxu0 %v3111
          %v3204 = vpop.f32.mrb[0].mxu0
          %v3205 = vadd.f32 %v3102, %v3204
          %v3206 = vpop.f32.mrb[0].mxu0
          %3207 = vmatprep.mubr.f32.mxu0 0.0
          %3208 = vmatmul.mubr.f32.gmra.mrb[0].mxu0 %v3114
          %v3209 = vpop.f32.mrb[0].mxu0
          %v3210 = vadd.f32 %v3102, %v3209
          %v3211 = vpop.f32.mrb[0].mxu0
          %3212 = vmatprep.mubr.f32.mxu0 0.0
          %3213 = vmatmul.mubr.f32.gmra.mrb[0].mxu0 %v3117
          %v3214 = vpop.f32.mrb[0].mxu0
          %v3215 = vadd.f32 %v3102, %v3214
          %v3216 = vpop.f32.mrb[0].mxu0
          %3217 = vmatprep.mubr.f32.mxu0 0.0
          %3218 = vmatmul.mubr.f32.gmra.mrb[0].mxu0 %v3120
          %v3219 = vpop.f32.mrb[0].mxu0
          %v3220 = vadd.f32 %v3102, %v3219
          %v3221 = vpop.f32.mrb[0].mxu0
          %3222 = vmatprep.mubr.f32.mxu0 0.0
          %3223 = vmatmul.mubr.f32.gmra.mrb[0].mxu0 %v3123
          %v3224 = vpop.f32.mrb[0].mxu0
          %v3225 = vadd.f32 %v3102, %v3224
          %v3226 = vpop.f32.mrb[0].mxu0
          %3227 = vmatprep.mubr.f32.mxu0 0.0
          %3228 = vmatmul.mubr.f32.gmra.mrb[0].mxu0 %v3126
          %v3229 = vpop.f32.mrb[0].mxu0
          %v3230 = vadd.f32 %v3102, %v3229
          %v3231 = vpop.f32.mrb[0].mxu0
          %3232 = vdwg.mxu0
          %v3233 = vld [vmem:[%s31 + $0x20] sm:$0xff]
          %v3234 = vld [vmem:[%s31 + $0x28] sm:$0xff]
          %v3235 = vld [vmem:[%s31 + $0x30] sm:$0xff]
          %v3236 = vld [vmem:[%s31 + $0x38] sm:$0xff]
          %v3237 = vld [vmem:[%s29] sm:$0xff]
          %v3238 = vld [vmem:[%s29 + $0x8] sm:$0xff]
          %v3239 = vld [vmem:[%s29 + $0x10] sm:$0xff]
          %v3240 = vld [vmem:[%s29 + $0x18] sm:$0xff]
          %v3241 = vld [vmem:[%s29 + $0x20] sm:$0xff]
          %v3242 = vld [vmem:[%s29 + $0x28] sm:$0xff]
          %v3243 = vld [vmem:[%s29 + $0x30] sm:$0xff]
          %v3244 = vld [vmem:[%s29 + $0x38] sm:$0x3f]
          %vm3245 = vcmask 506880
          %v3247 = vsel %vm3245, %v3237, 0
          %v3250 = vsel %vm3245, %v3238, 0
          %v3253 = vsel %vm3245, %v3239, 0
          %v3256 = vsel %vm3245, %v3240, 0
          %v3259 = vsel %vm3245, %v3241, 0
          %v3262 = vsel %vm3245, %v3242, 0
          %v3265 = vsel %vm3245, %v3243, 0
          %v3268 = vsel %vm3245, %v3244, 0
          %v3271 = vsel %vm1946, %v3230, 0
          %3273 = vmatprep.subr.mxu0 0.0
          %3274 = vmatpush1.msra.mxu0 %v3195
          %3275 = vmatprep.subr.mxu0 0.0
          %3276 = vmatpush1.msra.mxu0 %v3200
          %3277 = vmatprep.subr.mxu0 0.0
          %3278 = vmatpush1.msra.mxu0 %v3205
          %3279 = vmatprep.subr.mxu0 0.0
          %3280 = vmatpush1.msra.mxu0 %v3210
          %3281 = vmatprep.subr.mxu0 0.0
          %3282 = vmatpush1.msra.mxu0 %v3215
          %3283 = vmatprep.subr.mxu0 0.0
          %3284 = vmatpush1.msra.mxu0 %v3220
          %3285 = vmatprep.subr.mxu0 0.0
          %3286 = vmatpush1.msra.mxu0 %v3225
          %3287 = vmatprep.subr.mxu0 0.0
          %3288 = vmatpush1.msra.mxu0 %v3271
          %3289 = vmatprep.subr.mxu0 0.0
          %3290 = vmatpush1.msra.mxu0 0.0
          %3291 = vmatprep.subr.mxu0 0.0
          %3292 = vmatpush1.msra.mxu0 0.0
          %3293 = vmatprep.subr.mxu0 0.0
          %3294 = vmatpush1.msra.mxu0 0.0
          %3295 = vmatprep.subr.mxu0 0.0
          %3296 = vmatpush1.msra.mxu0 0.0
          %3297 = vmatprep.subr.mxu0 0.0
          %3298 = vmatpush1.msra.mxu0 0.0
          %3299 = vmatprep.subr.mxu0 0.0
          %3300 = vmatpush1.msra.mxu0 0.0
          %3301 = vmatprep.subr.mxu0 0.0
          %3302 = vmatpush1.msra.mxu0 0.0
          %3303 = vmatprep.subr.mxu0 0.0
          %3304 = vmatpush1.msra.mxu0 0.0
          %3305 = vmatprep.subr.mxu0 0.0
          %3306 = vmatpush1.msra.mxu0 0.0
          %3307 = vmatprep.subr.mxu0 0.0
          %3308 = vmatpush1.msra.mxu0 0.0
          %3309 = vmatprep.subr.mxu0 0.0
          %3310 = vmatpush1.msra.mxu0 0.0
          %3311 = vmatprep.subr.mxu0 0.0
          %3312 = vmatpush1.msra.mxu0 0.0
          %3313 = vmatprep.subr.mxu0 0.0
          %3314 = vmatpush1.msra.mxu0 0.0
          %3315 = vmatprep.subr.mxu0 0.0
          %3316 = vmatpush1.msra.mxu0 0.0
          %3317 = vmatprep.subr.mxu0 0.0
          %3318 = vmatpush1.msra.mxu0 0.0
          %3319 = vmatprep.subr.mxu0 0.0
          %3320 = vmatpush1.msra.mxu0 0.0
          %3321 = vmatprep.subr.mxu0 0.0
          %3322 = vmatpush1.msra.mxu0 0.0
          %3323 = vmatprep.subr.mxu0 0.0
          %3324 = vmatpush1.msra.mxu0 0.0
          %3325 = vmatprep.subr.mxu0 0.0
          %3326 = vmatpush1.msra.mxu0 0.0
          %3327 = vmatprep.subr.mxu0 0.0
          %3328 = vmatpush1.msra.mxu0 0.0
          %3329 = vmatprep.subr.mxu0 0.0
          %3330 = vmatpush1.msra.mxu0 0.0
          %3331 = vmatprep.subr.mxu0 0.0
          %3332 = vmatpush1.msra.mxu0 0.0
          %3333 = vmatprep.subr.mxu0 0.0
          %3334 = vmatpush1.msra.mxu0 0.0
          %3335 = vmatprep.subr.mxu0 0.0
          %3336 = vmatpush1.msra.mxu0 0.0
          %3337 = vmatprep.mubr.f32.mxu0 0.0
          %3338 = vmatmul.mubr.f32.gmra.mrb[0].mxu0 %v3247
          %v3339 = vpop.f32.mrb[0].mxu0
          %v3340 = vadd.f32 0.0, %v3339
          %v3341 = vpop.f32.mrb[0].mxu0
          %3342 = vmatprep.mubr.f32.mxu0 0.0
          %3343 = vmatmul.mubr.f32.gmra.mrb[0].mxu0 %v3250
          %v3344 = vpop.f32.mrb[0].mxu0
          %v3345 = vadd.f32 0.0, %v3344
          %v3346 = vpop.f32.mrb[0].mxu0
          %3347 = vmatprep.mubr.f32.mxu0 0.0
          %3348 = vmatmul.mubr.f32.gmra.mrb[0].mxu0 %v3253
          %v3349 = vpop.f32.mrb[0].mxu0
          %v3350 = vadd.f32 0.0, %v3349
          %v3351 = vpop.f32.mrb[0].mxu0
          %3352 = vmatprep.mubr.f32.mxu0 0.0
          %3353 = vmatmul.mubr.f32.gmra.mrb[0].mxu0 %v3256
          %v3354 = vpop.f32.mrb[0].mxu0
          %v3355 = vadd.f32 0.0, %v3354
          %v3356 = vpop.f32.mrb[0].mxu0
          %3357 = vmatprep.mubr.f32.mxu0 0.0
          %3358 = vmatmul.mubr.f32.gmra.mrb[0].mxu0 %v3259
          %v3359 = vpop.f32.mrb[0].mxu0
          %v3360 = vadd.f32 0.0, %v3359
          %v3361 = vpop.f32.mrb[0].mxu0
          %3362 = vmatprep.mubr.f32.mxu0 0.0
          %3363 = vmatmul.mubr.f32.gmra.mrb[0].mxu0 %v3262
          %v3364 = vpop.f32.mrb[0].mxu0
          %v3365 = vadd.f32 0.0, %v3364
          %v3366 = vpop.f32.mrb[0].mxu0
          %3367 = vmatprep.mubr.f32.mxu0 0.0
          %3368 = vmatmul.mubr.f32.gmra.mrb[0].mxu0 %v3265
          %v3369 = vpop.f32.mrb[0].mxu0
          %v3370 = vadd.f32 0.0, %v3369
          %v3371 = vpop.f32.mrb[0].mxu0
          %3372 = vmatprep.mubr.f32.mxu0 0.0
          %3373 = vmatmul.mubr.f32.gmra.mrb[0].mxu0 %v3268
          %v3374 = vpop.f32.mrb[0].mxu0
          %v3375 = vadd.f32 0.0, %v3374
          %v3376 = vpop.f32.mrb[0].mxu0
          %3377 = vdwg.mxu0
          %s3378 = scalar_lea.vmem %s29, 64
          %v3379 = vld [vmem:[%s3378] sm:$0xff]
          %v3380 = vld [vmem:[%s3378 + $0x8] sm:$0xff]
          %v3381 = vld [vmem:[%s3378 + $0x10] sm:$0xff]
          %v3382 = vld [vmem:[%s3378 + $0x18] sm:$0xff]
          %v3383 = vld [vmem:[%s3378 + $0x20] sm:$0xff]
          %v3384 = vld [vmem:[%s3378 + $0x28] sm:$0xff]
          %v3385 = vld [vmem:[%s3378 + $0x30] sm:$0xff]
          %v3386 = vld [vmem:[%s3378 + $0x38] sm:$0x3f]
          %v3388 = vsel %vm3245, %v3379, 0
          %v3391 = vsel %vm3245, %v3380, 0
          %v3394 = vsel %vm3245, %v3381, 0
          %v3397 = vsel %vm3245, %v3382, 0
          %v3400 = vsel %vm3245, %v3383, 0
          %v3403 = vsel %vm3245, %v3384, 0
          %v3406 = vsel %vm3245, %v3385, 0
          %v3409 = vsel %vm3245, %v3386, 0
          %3411 = vmatprep.subr.mxu0 0.0
          %3412 = vmatpush1.msra.mxu0 %v3195
          %3413 = vmatprep.subr.mxu0 0.0
          %3414 = vmatpush1.msra.mxu0 %v3200
          %3415 = vmatprep.subr.mxu0 0.0
          %3416 = vmatpush1.msra.mxu0 %v3205
          %3417 = vmatprep.subr.mxu0 0.0
          %3418 = vmatpush1.msra.mxu0 %v3210
          %3419 = vmatprep.subr.mxu0 0.0
          %3420 = vmatpush1.msra.mxu0 %v3215
          %3421 = vmatprep.subr.mxu0 0.0
          %3422 = vmatpush1.msra.mxu0 %v3220
          %3423 = vmatprep.subr.mxu0 0.0
          %3424 = vmatpush1.msra.mxu0 %v3225
          %3425 = vmatprep.subr.mxu0 0.0
          %3426 = vmatpush1.msra.mxu0 %v3271
          %3427 = vmatprep.subr.mxu0 0.0
          %3428 = vmatpush1.msra.mxu0 0.0
          %3429 = vmatprep.subr.mxu0 0.0
          %3430 = vmatpush1.msra.mxu0 0.0
          %3431 = vmatprep.subr.mxu0 0.0
          %3432 = vmatpush1.msra.mxu0 0.0
          %3433 = vmatprep.subr.mxu0 0.0
          %3434 = vmatpush1.msra.mxu0 0.0
          %3435 = vmatprep.subr.mxu0 0.0
          %3436 = vmatpush1.msra.mxu0 0.0
          %3437 = vmatprep.subr.mxu0 0.0
          %3438 = vmatpush1.msra.mxu0 0.0
          %3439 = vmatprep.subr.mxu0 0.0
          %3440 = vmatpush1.msra.mxu0 0.0
          %3441 = vmatprep.subr.mxu0 0.0
          %3442 = vmatpush1.msra.mxu0 0.0
          %3443 = vmatprep.subr.mxu0 0.0
          %3444 = vmatpush1.msra.mxu0 0.0
          %3445 = vmatprep.subr.mxu0 0.0
          %3446 = vmatpush1.msra.mxu0 0.0
          %3447 = vmatprep.subr.mxu0 0.0
          %3448 = vmatpush1.msra.mxu0 0.0
          %3449 = vmatprep.subr.mxu0 0.0
          %3450 = vmatpush1.msra.mxu0 0.0
          %3451 = vmatprep.subr.mxu0 0.0
          %3452 = vmatpush1.msra.mxu0 0.0
          %3453 = vmatprep.subr.mxu0 0.0
          %3454 = vmatpush1.msra.mxu0 0.0
          %3455 = vmatprep.subr.mxu0 0.0
          %3456 = vmatpush1.msra.mxu0 0.0
          %3457 = vmatprep.subr.mxu0 0.0
          %3458 = vmatpush1.msra.mxu0 0.0
          %3459 = vmatprep.subr.mxu0 0.0
          %3460 = vmatpush1.msra.mxu0 0.0
          %3461 = vmatprep.subr.mxu0 0.0
          %3462 = vmatpush1.msra.mxu0 0.0
          %3463 = vmatprep.subr.mxu0 0.0
          %3464 = vmatpush1.msra.mxu0 0.0
          %3465 = vmatprep.subr.mxu0 0.0
          %3466 = vmatpush1.msra.mxu0 0.0
          %3467 = vmatprep.subr.mxu0 0.0
          %3468 = vmatpush1.msra.mxu0 0.0
          %3469 = vmatprep.subr.mxu0 0.0
          %3470 = vmatpush1.msra.mxu0 0.0
          %3471 = vmatprep.subr.mxu0 0.0
          %3472 = vmatpush1.msra.mxu0 0.0
          %3473 = vmatprep.subr.mxu0 0.0
          %3474 = vmatpush1.msra.mxu0 0.0
          %3475 = vmatprep.mubr.f32.mxu0 0.0
          %3476 = vmatmul.mubr.f32.gmra.mrb[0].mxu0 %v3388
          %v3477 = vpop.f32.mrb[0].mxu0
          %v3478 = vadd.f32 0.0, %v3477
          %v3479 = vpop.f32.mrb[0].mxu0
          %3480 = vmatprep.mubr.f32.mxu0 0.0
          %3481 = vmatmul.mubr.f32.gmra.mrb[0].mxu0 %v3391
          %v3482 = vpop.f32.mrb[0].mxu0
          %v3483 = vadd.f32 0.0, %v3482
          %v3484 = vpop.f32.mrb[0].mxu0
          %3485 = vmatprep.mubr.f32.mxu0 0.0
          %3486 = vmatmul.mubr.f32.gmra.mrb[0].mxu0 %v3394
          %v3487 = vpop.f32.mrb[0].mxu0
          %v3488 = vadd.f32 0.0, %v3487
          %v3489 = vpop.f32.mrb[0].mxu0
          %3490 = vmatprep.mubr.f32.mxu0 0.0
          %3491 = vmatmul.mubr.f32.gmra.mrb[0].mxu0 %v3397
          %v3492 = vpop.f32.mrb[0].mxu0
          %v3493 = vadd.f32 0.0, %v3492
          %v3494 = vpop.f32.mrb[0].mxu0
          %3495 = vmatprep.mubr.f32.mxu0 0.0
          %3496 = vmatmul.mubr.f32.gmra.mrb[0].mxu0 %v3400
          %v3497 = vpop.f32.mrb[0].mxu0
          %v3498 = vadd.f32 0.0, %v3497
          %v3499 = vpop.f32.mrb[0].mxu0
          %3500 = vmatprep.mubr.f32.mxu0 0.0
          %3501 = vmatmul.mubr.f32.gmra.mrb[0].mxu0 %v3403
          %v3502 = vpop.f32.mrb[0].mxu0
          %v3503 = vadd.f32 0.0, %v3502
          %v3504 = vpop.f32.mrb[0].mxu0
          %3505 = vmatprep.mubr.f32.mxu0 0.0
          %3506 = vmatmul.mubr.f32.gmra.mrb[0].mxu0 %v3406
          %v3507 = vpop.f32.mrb[0].mxu0
          %v3508 = vadd.f32 0.0, %v3507
          %v3509 = vpop.f32.mrb[0].mxu0
          %3510 = vmatprep.mubr.f32.mxu0 0.0
          %3511 = vmatmul.mubr.f32.gmra.mrb[0].mxu0 %v3409
          %v3512 = vpop.f32.mrb[0].mxu0
          %v3513 = vadd.f32 0.0, %v3512
          %v3514 = vpop.f32.mrb[0].mxu0
          %3515 = vdwg.mxu0
          %v3516 = vld [vmem:[%s31] sm:$0xff]
          %v3517 = vld [vmem:[%s31 + $0x8] sm:$0xff]
          %v3518 = vld [vmem:[%s31 + $0x10] sm:$0xff]
          %v3519 = vld [vmem:[%s31 + $0x18] sm:$0xff]
          %v3521 = vsel %vm1514, %v3340, 0
          %v3524 = vsel %vm1514, %v3345, 0
          %v3527 = vsel %vm1514, %v3350, 0
          %v3530 = vsel %vm1514, %v3355, 0
          %v3533 = vsel %vm1514, %v3360, 0
          %v3536 = vsel %vm1514, %v3365, 0
          %v3539 = vsel %vm1514, %v3370, 0
          %v3542 = vsel %vm1514, %v3375, 0
          %3544 = vmatprep.subr.mxu0 0.0
          %3545 = vmatpush1.msra.mxu0 %v3516
          %3546 = vmatprep.subr.mxu0 0.0
          %3547 = vmatpush1.msra.mxu0 %v3517
          %3548 = vmatprep.subr.mxu0 0.0
          %3549 = vmatpush1.msra.mxu0 %v3518
          %3550 = vmatprep.subr.mxu0 0.0
          %3551 = vmatpush1.msra.mxu0 %v3519
          %3552 = vmatprep.subr.mxu0 0.0
          %3553 = vmatpush1.msra.mxu0 0.0
          %3554 = vmatprep.subr.mxu0 0.0
          %3555 = vmatpush1.msra.mxu0 0.0
          %3556 = vmatprep.subr.mxu0 0.0
          %3557 = vmatpush1.msra.mxu0 0.0
          %3558 = vmatprep.subr.mxu0 0.0
          %3559 = vmatpush1.msra.mxu0 0.0
          %3560 = vmatprep.subr.mxu0 0.0
          %3561 = vmatpush1.msra.mxu0 0.0
          %3562 = vmatprep.subr.mxu0 0.0
          %3563 = vmatpush1.msra.mxu0 0.0
          %3564 = vmatprep.subr.mxu0 0.0
          %3565 = vmatpush1.msra.mxu0 0.0
          %3566 = vmatprep.subr.mxu0 0.0
          %3567 = vmatpush1.msra.mxu0 0.0
          %3568 = vmatprep.subr.mxu0 0.0
          %3569 = vmatpush1.msra.mxu0 0.0
          %3570 = vmatprep.subr.mxu0 0.0
          %3571 = vmatpush1.msra.mxu0 0.0
          %3572 = vmatprep.subr.mxu0 0.0
          %3573 = vmatpush1.msra.mxu0 0.0
          %3574 = vmatprep.subr.mxu0 0.0
          %3575 = vmatpush1.msra.mxu0 0.0
          %3576 = vmatprep.subr.mxu0 0.0
          %3577 = vmatpush1.msra.mxu0 0.0
          %3578 = vmatprep.subr.mxu0 0.0
          %3579 = vmatpush1.msra.mxu0 0.0
          %3580 = vmatprep.subr.mxu0 0.0
          %3581 = vmatpush1.msra.mxu0 0.0
          %3582 = vmatprep.subr.mxu0 0.0
          %3583 = vmatpush1.msra.mxu0 0.0
          %3584 = vmatprep.subr.mxu0 0.0
          %3585 = vmatpush1.msra.mxu0 0.0
          %3586 = vmatprep.subr.mxu0 0.0
          %3587 = vmatpush1.msra.mxu0 0.0
          %3588 = vmatprep.subr.mxu0 0.0
          %3589 = vmatpush1.msra.mxu0 0.0
          %3590 = vmatprep.subr.mxu0 0.0
          %3591 = vmatpush1.msra.mxu0 0.0
          %3592 = vmatprep.subr.mxu0 0.0
          %3593 = vmatpush1.msra.mxu0 0.0
          %3594 = vmatprep.subr.mxu0 0.0
          %3595 = vmatpush1.msra.mxu0 0.0
          %3596 = vmatprep.subr.mxu0 0.0
          %3597 = vmatpush1.msra.mxu0 0.0
          %3598 = vmatprep.subr.mxu0 0.0
          %3599 = vmatpush1.msra.mxu0 0.0
          %3600 = vmatprep.subr.mxu0 0.0
          %3601 = vmatpush1.msra.mxu0 0.0
          %3602 = vmatprep.subr.mxu0 0.0
          %3603 = vmatpush1.msra.mxu0 0.0
          %3604 = vmatprep.subr.mxu0 0.0
          %3605 = vmatpush1.msra.mxu0 0.0
          %3606 = vmatprep.subr.mxu0 0.0
          %3607 = vmatpush1.msra.mxu0 0.0
          %3608 = vmatprep.mubr.f32.mxu0 0.0
          %3609 = vmatmul.mubr.f32.gmra.mrb[0].mxu0 %v3521
          %v3610 = vpop.f32.mrb[0].mxu0
          %v3611 = vadd.f32 0.0, %v3610
          %v3612 = vpop.f32.mrb[0].mxu0
          %3613 = vmatprep.mubr.f32.mxu0 0.0
          %3614 = vmatmul.mubr.f32.gmra.mrb[0].mxu0 %v3524
          %v3615 = vpop.f32.mrb[0].mxu0
          %v3616 = vadd.f32 0.0, %v3615
          %v3617 = vpop.f32.mrb[0].mxu0
          %3618 = vmatprep.mubr.f32.mxu0 0.0
          %3619 = vmatmul.mubr.f32.gmra.mrb[0].mxu0 %v3527
          %v3620 = vpop.f32.mrb[0].mxu0
          %v3621 = vadd.f32 0.0, %v3620
          %v3622 = vpop.f32.mrb[0].mxu0
          %3623 = vmatprep.mubr.f32.mxu0 0.0
          %3624 = vmatmul.mubr.f32.gmra.mrb[0].mxu0 %v3530
          %v3625 = vpop.f32.mrb[0].mxu0
          %v3626 = vadd.f32 0.0, %v3625
          %v3627 = vpop.f32.mrb[0].mxu0
          %3628 = vmatprep.mubr.f32.mxu0 0.0
          %3629 = vmatmul.mubr.f32.gmra.mrb[0].mxu0 %v3533
          %v3630 = vpop.f32.mrb[0].mxu0
          %v3631 = vadd.f32 0.0, %v3630
          %v3632 = vpop.f32.mrb[0].mxu0
          %3633 = vmatprep.mubr.f32.mxu0 0.0
          %3634 = vmatmul.mubr.f32.gmra.mrb[0].mxu0 %v3536
          %v3635 = vpop.f32.mrb[0].mxu0
          %v3636 = vadd.f32 0.0, %v3635
          %v3637 = vpop.f32.mrb[0].mxu0
          %3638 = vmatprep.mubr.f32.mxu0 0.0
          %3639 = vmatmul.mubr.f32.gmra.mrb[0].mxu0 %v3539
          %v3640 = vpop.f32.mrb[0].mxu0
          %v3641 = vadd.f32 0.0, %v3640
          %v3642 = vpop.f32.mrb[0].mxu0
          %3643 = vmatprep.mubr.f32.mxu0 0.0
          %3644 = vmatmul.mubr.f32.gmra.mrb[0].mxu0 %v3542
          %v3645 = vpop.f32.mrb[0].mxu0
          %v3646 = vadd.f32 0.0, %v3645
          %v3647 = vpop.f32.mrb[0].mxu0
          %3648 = vdwg.mxu0
          %v3650 = vsel %vm1514, %v3195, 0
          %v3653 = vsel %vm1514, %v3200, 0
          %v3656 = vsel %vm1514, %v3205, 0
          %v3659 = vsel %vm1514, %v3210, 0
          %v3662 = vsel %vm1514, %v3215, 0
          %v3665 = vsel %vm1514, %v3220, 0
          %v3668 = vsel %vm1514, %v3225, 0
          %v3670 = vsel %vm1514, %v3230, 0
          %3672 = vmatprep.subr.mxu0 0.0
          %3673 = vmatpush1.msra.mxu0 %v3233
          %3674 = vmatprep.subr.mxu0 0.0
          %3675 = vmatpush1.msra.mxu0 %v3234
          %3676 = vmatprep.subr.mxu0 0.0
          %3677 = vmatpush1.msra.mxu0 %v3235
          %3678 = vmatprep.subr.mxu0 0.0
          %3679 = vmatpush1.msra.mxu0 %v3236
          %3680 = vmatprep.subr.mxu0 0.0
          %3681 = vmatpush1.msra.mxu0 0.0
          %3682 = vmatprep.subr.mxu0 0.0
          %3683 = vmatpush1.msra.mxu0 0.0
          %3684 = vmatprep.subr.mxu0 0.0
          %3685 = vmatpush1.msra.mxu0 0.0
          %3686 = vmatprep.subr.mxu0 0.0
          %3687 = vmatpush1.msra.mxu0 0.0
          %3688 = vmatprep.subr.mxu0 0.0
          %3689 = vmatpush1.msra.mxu0 0.0
          %3690 = vmatprep.subr.mxu0 0.0
          %3691 = vmatpush1.msra.mxu0 0.0
          %3692 = vmatprep.subr.mxu0 0.0
          %3693 = vmatpush1.msra.mxu0 0.0
          %3694 = vmatprep.subr.mxu0 0.0
          %3695 = vmatpush1.msra.mxu0 0.0
          %3696 = vmatprep.subr.mxu0 0.0
          %3697 = vmatpush1.msra.mxu0 0.0
          %3698 = vmatprep.subr.mxu0 0.0
          %3699 = vmatpush1.msra.mxu0 0.0
          %3700 = vmatprep.subr.mxu0 0.0
          %3701 = vmatpush1.msra.mxu0 0.0
          %3702 = vmatprep.subr.mxu0 0.0
          %3703 = vmatpush1.msra.mxu0 0.0
          %3704 = vmatprep.subr.mxu0 0.0
          %3705 = vmatpush1.msra.mxu0 0.0
          %3706 = vmatprep.subr.mxu0 0.0
          %3707 = vmatpush1.msra.mxu0 0.0
          %3708 = vmatprep.subr.mxu0 0.0
          %3709 = vmatpush1.msra.mxu0 0.0
          %3710 = vmatprep.subr.mxu0 0.0
          %3711 = vmatpush1.msra.mxu0 0.0
          %3712 = vmatprep.subr.mxu0 0.0
          %3713 = vmatpush1.msra.mxu0 0.0
          %3714 = vmatprep.subr.mxu0 0.0
          %3715 = vmatpush1.msra.mxu0 0.0
          %3716 = vmatprep.subr.mxu0 0.0
          %3717 = vmatpush1.msra.mxu0 0.0
          %3718 = vmatprep.subr.mxu0 0.0
          %3719 = vmatpush1.msra.mxu0 0.0
          %3720 = vmatprep.subr.mxu0 0.0
          %3721 = vmatpush1.msra.mxu0 0.0
          %3722 = vmatprep.subr.mxu0 0.0
          %3723 = vmatpush1.msra.mxu0 0.0
          %3724 = vmatprep.subr.mxu0 0.0
          %3725 = vmatpush1.msra.mxu0 0.0
          %3726 = vmatprep.subr.mxu0 0.0
          %3727 = vmatpush1.msra.mxu0 0.0
          %3728 = vmatprep.subr.mxu0 0.0
          %3729 = vmatpush1.msra.mxu0 0.0
          %3730 = vmatprep.subr.mxu0 0.0
          %3731 = vmatpush1.msra.mxu0 0.0
          %3732 = vmatprep.subr.mxu0 0.0
          %3733 = vmatpush1.msra.mxu0 0.0
          %3734 = vmatprep.subr.mxu0 0.0
          %3735 = vmatpush1.msra.mxu0 0.0
          %3736 = vmatprep.mubr.f32.mxu0 0.0
          %3737 = vmatmul.mubr.f32.gmra.mrb[0].mxu0 %v3650
          %v3738 = vpop.f32.mrb[0].mxu0
          %v3739 = vadd.f32 %v3611, %v3738
          %v3740 = vpop.f32.mrb[0].mxu0
          %3741 = vmatprep.mubr.f32.mxu0 0.0
          %3742 = vmatmul.mubr.f32.gmra.mrb[0].mxu0 %v3653
          %v3743 = vpop.f32.mrb[0].mxu0
          %v3744 = vadd.f32 %v3616, %v3743
          %v3745 = vpop.f32.mrb[0].mxu0
          %3746 = vmatprep.mubr.f32.mxu0 0.0
          %3747 = vmatmul.mubr.f32.gmra.mrb[0].mxu0 %v3656
          %v3748 = vpop.f32.mrb[0].mxu0
          %v3749 = vadd.f32 %v3621, %v3748
          %v3750 = vpop.f32.mrb[0].mxu0
          %3751 = vmatprep.mubr.f32.mxu0 0.0
          %3752 = vmatmul.mubr.f32.gmra.mrb[0].mxu0 %v3659
          %v3753 = vpop.f32.mrb[0].mxu0
          %v3754 = vadd.f32 %v3626, %v3753
          %v3755 = vpop.f32.mrb[0].mxu0
          %3756 = vmatprep.mubr.f32.mxu0 0.0
          %3757 = vmatmul.mubr.f32.gmra.mrb[0].mxu0 %v3662
          %v3758 = vpop.f32.mrb[0].mxu0
          %v3759 = vadd.f32 %v3631, %v3758
          %v3760 = vpop.f32.mrb[0].mxu0
          %3761 = vmatprep.mubr.f32.mxu0 0.0
          %3762 = vmatmul.mubr.f32.gmra.mrb[0].mxu0 %v3665
          %v3763 = vpop.f32.mrb[0].mxu0
          %v3764 = vadd.f32 %v3636, %v3763
          %v3765 = vpop.f32.mrb[0].mxu0
          %3766 = vmatprep.mubr.f32.mxu0 0.0
          %3767 = vmatmul.mubr.f32.gmra.mrb[0].mxu0 %v3668
          %v3768 = vpop.f32.mrb[0].mxu0
          %v3769 = vadd.f32 %v3641, %v3768
          %v3770 = vpop.f32.mrb[0].mxu0
          %3771 = vmatprep.mubr.f32.mxu0 0.0
          %3772 = vmatmul.mubr.f32.gmra.mrb[0].mxu0 %v3670
          %v3773 = vpop.f32.mrb[0].mxu0
          %v3774 = vadd.f32 %v3646, %v3773
          %v3775 = vpop.f32.mrb[0].mxu0
          %3776 = vdwg.mxu0
          %v3777 = vld [vmem:[%s31 + $0x40] sm:$0xff]
          %v3778 = vld [vmem:[%s31 + $0x48] sm:$0xff]
          %v3779 = vld [vmem:[%s31 + $0x50] sm:$0xff]
          %v3780 = vld [vmem:[%s31 + $0x58] sm:$0xff]
          %v3782 = vsel %vm1514, %v3478, 0
          %v3785 = vsel %vm1514, %v3483, 0
          %v3788 = vsel %vm1514, %v3488, 0
          %v3791 = vsel %vm1514, %v3493, 0
          %v3794 = vsel %vm1514, %v3498, 0
          %v3797 = vsel %vm1514, %v3503, 0
          %v3800 = vsel %vm1514, %v3508, 0
          %v3803 = vsel %vm1514, %v3513, 0
          %3805 = vmatprep.subr.mxu0 0.0
          %3806 = vmatpush1.msra.mxu0 %v3777
          %3807 = vmatprep.subr.mxu0 0.0
          %3808 = vmatpush1.msra.mxu0 %v3778
          %3809 = vmatprep.subr.mxu0 0.0
          %3810 = vmatpush1.msra.mxu0 %v3779
          %3811 = vmatprep.subr.mxu0 0.0
          %3812 = vmatpush1.msra.mxu0 %v3780
          %3813 = vmatprep.subr.mxu0 0.0
          %3814 = vmatpush1.msra.mxu0 0.0
          %3815 = vmatprep.subr.mxu0 0.0
          %3816 = vmatpush1.msra.mxu0 0.0
          %3817 = vmatprep.subr.mxu0 0.0
          %3818 = vmatpush1.msra.mxu0 0.0
          %3819 = vmatprep.subr.mxu0 0.0
          %3820 = vmatpush1.msra.mxu0 0.0
          %3821 = vmatprep.subr.mxu0 0.0
          %3822 = vmatpush1.msra.mxu0 0.0
          %3823 = vmatprep.subr.mxu0 0.0
          %3824 = vmatpush1.msra.mxu0 0.0
          %3825 = vmatprep.subr.mxu0 0.0
          %3826 = vmatpush1.msra.mxu0 0.0
          %3827 = vmatprep.subr.mxu0 0.0
          %3828 = vmatpush1.msra.mxu0 0.0
          %3829 = vmatprep.subr.mxu0 0.0
          %3830 = vmatpush1.msra.mxu0 0.0
          %3831 = vmatprep.subr.mxu0 0.0
          %3832 = vmatpush1.msra.mxu0 0.0
          %3833 = vmatprep.subr.mxu0 0.0
          %3834 = vmatpush1.msra.mxu0 0.0
          %3835 = vmatprep.subr.mxu0 0.0
          %3836 = vmatpush1.msra.mxu0 0.0
          %3837 = vmatprep.subr.mxu0 0.0
          %3838 = vmatpush1.msra.mxu0 0.0
          %3839 = vmatprep.subr.mxu0 0.0
          %3840 = vmatpush1.msra.mxu0 0.0
          %3841 = vmatprep.subr.mxu0 0.0
          %3842 = vmatpush1.msra.mxu0 0.0
          %3843 = vmatprep.subr.mxu0 0.0
          %3844 = vmatpush1.msra.mxu0 0.0
          %3845 = vmatprep.subr.mxu0 0.0
          %3846 = vmatpush1.msra.mxu0 0.0
          %3847 = vmatprep.subr.mxu0 0.0
          %3848 = vmatpush1.msra.mxu0 0.0
          %3849 = vmatprep.subr.mxu0 0.0
          %3850 = vmatpush1.msra.mxu0 0.0
          %3851 = vmatprep.subr.mxu0 0.0
          %3852 = vmatpush1.msra.mxu0 0.0
          %3853 = vmatprep.subr.mxu0 0.0
          %3854 = vmatpush1.msra.mxu0 0.0
          %3855 = vmatprep.subr.mxu0 0.0
          %3856 = vmatpush1.msra.mxu0 0.0
          %3857 = vmatprep.subr.mxu0 0.0
          %3858 = vmatpush1.msra.mxu0 0.0
          %3859 = vmatprep.subr.mxu0 0.0
          %3860 = vmatpush1.msra.mxu0 0.0
          %3861 = vmatprep.subr.mxu0 0.0
          %3862 = vmatpush1.msra.mxu0 0.0
          %3863 = vmatprep.subr.mxu0 0.0
          %3864 = vmatpush1.msra.mxu0 0.0
          %3865 = vmatprep.subr.mxu0 0.0
          %3866 = vmatpush1.msra.mxu0 0.0
          %3867 = vmatprep.subr.mxu0 0.0
          %3868 = vmatpush1.msra.mxu0 0.0
          %3869 = vmatprep.mubr.f32.mxu0 0.0
          %3870 = vmatmul.mubr.f32.gmra.mrb[0].mxu0 %v3782
          %v3871 = vpop.f32.mrb[0].mxu0
          %v3872 = vadd.f32 0.0, %v3871
          %v3873 = vpop.f32.mrb[0].mxu0
          %3874 = vmatprep.mubr.f32.mxu0 0.0
          %3875 = vmatmul.mubr.f32.gmra.mrb[0].mxu0 %v3785
          %v3876 = vpop.f32.mrb[0].mxu0
          %v3877 = vadd.f32 0.0, %v3876
          %v3878 = vpop.f32.mrb[0].mxu0
          %3879 = vmatprep.mubr.f32.mxu0 0.0
          %3880 = vmatmul.mubr.f32.gmra.mrb[0].mxu0 %v3788
          %v3881 = vpop.f32.mrb[0].mxu0
          %v3882 = vadd.f32 0.0, %v3881
          %v3883 = vpop.f32.mrb[0].mxu0
          %3884 = vmatprep.mubr.f32.mxu0 0.0
          %3885 = vmatmul.mubr.f32.gmra.mrb[0].mxu0 %v3791
          %v3886 = vpop.f32.mrb[0].mxu0
          %v3887 = vadd.f32 0.0, %v3886
          %v3888 = vpop.f32.mrb[0].mxu0
          %3889 = vmatprep.mubr.f32.mxu0 0.0
          %3890 = vmatmul.mubr.f32.gmra.mrb[0].mxu0 %v3794
          %v3891 = vpop.f32.mrb[0].mxu0
          %v3892 = vadd.f32 0.0, %v3891
          %v3893 = vpop.f32.mrb[0].mxu0
          %3894 = vmatprep.mubr.f32.mxu0 0.0
          %3895 = vmatmul.mubr.f32.gmra.mrb[0].mxu0 %v3797
          %v3896 = vpop.f32.mrb[0].mxu0
          %v3897 = vadd.f32 0.0, %v3896
          %v3898 = vpop.f32.mrb[0].mxu0
          %3899 = vmatprep.mubr.f32.mxu0 0.0
          %3900 = vmatmul.mubr.f32.gmra.mrb[0].mxu0 %v3800
          %v3901 = vpop.f32.mrb[0].mxu0
          %v3902 = vadd.f32 0.0, %v3901
          %v3903 = vpop.f32.mrb[0].mxu0
          %3904 = vmatprep.mubr.f32.mxu0 0.0
          %3905 = vmatmul.mubr.f32.gmra.mrb[0].mxu0 %v3803
          %v3906 = vpop.f32.mrb[0].mxu0
          %v3907 = vadd.f32 0.0, %v3906
          %v3908 = vpop.f32.mrb[0].mxu0
          %3909 = vdwg.mxu0
          %v3910 = vadd.f32 %v3739, %v3872
          %v3911 = vadd.f32 %v3744, %v3877
          %v3912 = vadd.f32 %v3749, %v3882
          %v3913 = vadd.f32 %v3754, %v3887
          %v3914 = vadd.f32 %v3759, %v3892
          %v3915 = vadd.f32 %v3764, %v3897
          %v3916 = vadd.f32 %v3769, %v3902
          %v3917 = vadd.f32 %v3774, %v3907
          %v3918 = vld [vmem:[%s33] sm:$0x1]
          %v3920 = vlaneseq
          %v3921 = vshrl.u32 %v3920, 7
          %v3922 = vsub.s32 0, %v3921
          %v3923 = vrot.slane %v3918, %v3922
          %v3925 = vadd.f32 %v3910, %v3923
          %v3926 = vadd.f32 %v3911, %v3923
          %v3927 = vadd.f32 %v3912, %v3923
          %v3928 = vadd.f32 %v3913, %v3923
          %v3929 = vadd.f32 %v3914, %v3923
          %v3930 = vadd.f32 %v3915, %v3923
          %v3931 = vadd.f32 %v3916, %v3923
          %v3932 = vadd.f32 %v3917, %v3923
          %v3933 = vmul.f32 %v3925, %v3925
          %v3934 = vmul.f32 %v3926, %v3926
          %v3935 = vmul.f32 %v3927, %v3927
          %v3936 = vmul.f32 %v3928, %v3928
          %v3937 = vmul.f32 %v3929, %v3929
          %v3938 = vmul.f32 %v3930, %v3930
          %v3939 = vmul.f32 %v3931, %v3931
          %v3940 = vmul.f32 %v3932, %v3932
          %v3941 = vmul.f32 %v3925, %v3933
          %v3942 = vmul.f32 %v3926, %v3934
          %v3943 = vmul.f32 %v3927, %v3935
          %v3944 = vmul.f32 %v3928, %v3936
          %v3945 = vmul.f32 %v3929, %v3937
          %v3946 = vmul.f32 %v3930, %v3938
          %v3947 = vmul.f32 %v3931, %v3939
          %v3948 = vmul.f32 %v3932, %v3940
          %v3949 = vmul.f32 %v3941, 0.044715
          %v3950 = vmul.f32 %v3942, 0.044715
          %v3951 = vmul.f32 %v3943, 0.044715
          %v3952 = vmul.f32 %v3944, 0.044715
          %v3953 = vmul.f32 %v3945, 0.044715
          %v3954 = vmul.f32 %v3946, 0.044715
          %v3955 = vmul.f32 %v3947, 0.044715
          %v3956 = vmul.f32 %v3948, 0.044715
          %v3957 = vadd.f32 %v3925, %v3949
          %v3958 = vadd.f32 %v3926, %v3950
          %v3959 = vadd.f32 %v3927, %v3951
          %v3960 = vadd.f32 %v3928, %v3952
          %v3961 = vadd.f32 %v3929, %v3953
          %v3962 = vadd.f32 %v3930, %v3954
          %v3963 = vadd.f32 %v3931, %v3955
          %v3964 = vadd.f32 %v3932, %v3956
          %v3965 = vmul.f32 %v3957, 0.7978846
          %v3966 = vmul.f32 %v3958, 0.7978846
          %v3967 = vmul.f32 %v3959, 0.7978846
          %v3968 = vmul.f32 %v3960, 0.7978846
          %v3969 = vmul.f32 %v3961, 0.7978846
          %v3970 = vmul.f32 %v3962, 0.7978846
          %v3971 = vmul.f32 %v3963, 0.7978846
          %v3972 = vmul.f32 %v3964, 0.7978846
          %v3973 = vtanh.pop %v3965
          %v3974 = vtanh.pop %v3966
          %v3975 = vtanh.pop %v3967
          %v3976 = vtanh.pop %v3968
          %v3977 = vtanh.pop %v3969
          %v3978 = vtanh.pop %v3970
          %v3979 = vtanh.pop %v3971
          %v3980 = vtanh.pop %v3972
          %v3981 = vadd.f32 %v3973, 1.0
          %v3982 = vadd.f32 %v3974, 1.0
          %v3983 = vadd.f32 %v3975, 1.0
          %v3984 = vadd.f32 %v3976, 1.0
          %v3985 = vadd.f32 %v3977, 1.0
          %v3986 = vadd.f32 %v3978, 1.0
          %v3987 = vadd.f32 %v3979, 1.0
          %v3988 = vadd.f32 %v3980, 1.0
          %v3989 = vmul.f32 %v3981, 0.5
          %v3990 = vmul.f32 %v3982, 0.5
          %v3991 = vmul.f32 %v3983, 0.5
          %v3992 = vmul.f32 %v3984, 0.5
          %v3993 = vmul.f32 %v3985, 0.5
          %v3994 = vmul.f32 %v3986, 0.5
          %v3995 = vmul.f32 %v3987, 0.5
          %v3996 = vmul.f32 %v3988, 0.5
          %v3997 = vmul.f32 %v3925, %v3989
          %v3998 = vmul.f32 %v3926, %v3990
          %v3999 = vmul.f32 %v3927, %v3991
          %v4000 = vmul.f32 %v3928, %v3992
          %v4001 = vmul.f32 %v3929, %v3993
          %v4002 = vmul.f32 %v3930, %v3994
          %v4003 = vmul.f32 %v3931, %v3995
          %v4004 = vmul.f32 %v3932, %v3996
          %v4005 = vadd.f32 %v3195, %v3997
          %v4006 = vadd.f32 %v3200, %v3998
          %v4007 = vadd.f32 %v3205, %v3999
          %v4008 = vadd.f32 %v3210, %v4000
          %v4009 = vadd.f32 %v3215, %v4001
          %v4010 = vadd.f32 %v3220, %v4002
          %v4011 = vadd.f32 %v3225, %v4003
          %v4012 = vadd.f32 %v3230, %v4004
          %4013 = vst.msk [vmem:[#allocation2] sm:$0xff] %vm1514, %v4005
          %4014 = vst.msk [vmem:[#allocation2 + $0x8] sm:$0xff] %vm1514, %v4006
          %4015 = vst.msk [vmem:[#allocation2 + $0x10] sm:$0xff] %vm1514, %v4007
          %4016 = vst.msk [vmem:[#allocation2 + $0x18] sm:$0xff] %vm1514, %v4008
          %4017 = vst.msk [vmem:[#allocation2 + $0x20] sm:$0xff] %vm1514, %v4009
          %4018 = vst.msk [vmem:[#allocation2 + $0x28] sm:$0xff] %vm1514, %v4010
          %4019 = vst.msk [vmem:[#allocation2 + $0x30] sm:$0xff] %vm1514, %v4011
          %4020 = vst.msk [vmem:[#allocation2 + $0x38] sm:$0x3f] %vm1560, %v4012
        $region172: #{base_model_forward.1} parent=167 // pred_fallthru
          _
        %v4021 = vld [vmem:[#allocation2] sm:$0xff]
        %v4022 = vld [vmem:[#allocation2 + $0x8] sm:$0xff]
        %v4023 = vld [vmem:[#allocation2 + $0x10] sm:$0xff]
        %v4024 = vld [vmem:[#allocation2 + $0x18] sm:$0xff]
        %v4025 = vld [vmem:[#allocation2 + $0x20] sm:$0xff]
        %v4026 = vld [vmem:[#allocation2 + $0x28] sm:$0xff]
        %v4027 = vld [vmem:[#allocation2 + $0x30] sm:$0xff]
        %v4028 = vld [vmem:[#allocation2 + $0x38] sm:$0x3f]
        %v4029 = vld [vmem:[%s1243] sm:$0x1]
        %v4030 = vld [vmem:[%s1246] sm:$0x1]
        %vm4031 = vcmask 261120
        %v4032 = vsel %vm4031, %v4021, 0.0
        %4033 = vadd.xlane.f32.xlu0 %v4032
        %v4034 = vpop.xlane.xlu0 %4033
        %v4035 = vsel %vm4031, %v4022, 0.0
        %4036 = vadd.xlane.f32.xlu0 %v4035
        %v4037 = vpop.xlane.xlu0 %4036
        %v4038 = vsel %vm4031, %v4023, 0.0
        %4039 = vadd.xlane.f32.xlu0 %v4038
        %v4040 = vpop.xlane.xlu0 %4039
        %v4041 = vsel %vm4031, %v4024, 0.0
        %4042 = vadd.xlane.f32.xlu0 %v4041
        %v4043 = vpop.xlane.xlu0 %4042
        %v4044 = vsel %vm4031, %v4025, 0.0
        %4045 = vadd.xlane.f32.xlu0 %v4044
        %v4046 = vpop.xlane.xlu0 %4045
        %v4047 = vsel %vm4031, %v4026, 0.0
        %4048 = vadd.xlane.f32.xlu0 %v4047
        %v4049 = vpop.xlane.xlu0 %4048
        %v4050 = vsel %vm4031, %v4027, 0.0
        %4051 = vadd.xlane.f32.xlu0 %v4050
        %v4052 = vpop.xlane.xlu0 %4051
        %vm4053 = vcmask 259072
        %v4054 = vsel %vm4053, %v4028, 0.0
        %4055 = vadd.xlane.f32.xlu0 %v4054
        %v4056 = vpop.xlane.xlu0 %4055
        %v4057 = vrcp.pop 32.0
        %v4058 = vmul.f32 %v4034, %v4057
        %v4059 = vmul.f32 %v4037, %v4057
        %v4060 = vmul.f32 %v4040, %v4057
        %v4061 = vmul.f32 %v4043, %v4057
        %v4062 = vmul.f32 %v4046, %v4057
        %v4063 = vmul.f32 %v4049, %v4057
        %v4064 = vmul.f32 %v4052, %v4057
        %v4065 = vmul.f32 %v4056, %v4057
        %v4066 = vsub.f32 %v4021, %v4058
        %v4067 = vsub.f32 %v4022, %v4059
        %v4068 = vsub.f32 %v4023, %v4060
        %v4069 = vsub.f32 %v4024, %v4061
        %v4070 = vsub.f32 %v4025, %v4062
        %v4071 = vsub.f32 %v4026, %v4063
        %v4072 = vsub.f32 %v4027, %v4064
        %v4073 = vsub.f32 %v4028, %v4065
        %v4074 = vmul.f32 %v4066, %v4066
        %v4075 = vmul.f32 %v4067, %v4067
        %v4076 = vmul.f32 %v4068, %v4068
        %v4077 = vmul.f32 %v4069, %v4069
        %v4078 = vmul.f32 %v4070, %v4070
        %v4079 = vmul.f32 %v4071, %v4071
        %v4080 = vmul.f32 %v4072, %v4072
        %v4081 = vmul.f32 %v4073, %v4073
        %v4082 = vsel %vm4031, %v4074, 0.0
        %4083 = vadd.xlane.f32.xlu0 %v4082
        %v4084 = vpop.xlane.xlu0 %4083
        %v4085 = vsel %vm4031, %v4075, 0.0
        %4086 = vadd.xlane.f32.xlu0 %v4085
        %v4087 = vpop.xlane.xlu0 %4086
        %v4088 = vsel %vm4031, %v4076, 0.0
        %4089 = vadd.xlane.f32.xlu0 %v4088
        %v4090 = vpop.xlane.xlu0 %4089
        %v4091 = vsel %vm4031, %v4077, 0.0
        %4092 = vadd.xlane.f32.xlu0 %v4091
        %v4093 = vpop.xlane.xlu0 %4092
        %v4094 = vsel %vm4031, %v4078, 0.0
        %4095 = vadd.xlane.f32.xlu0 %v4094
        %v4096 = vpop.xlane.xlu0 %4095
        %v4097 = vsel %vm4031, %v4079, 0.0
        %4098 = vadd.xlane.f32.xlu0 %v4097
        %v4099 = vpop.xlane.xlu0 %4098
        %v4100 = vsel %vm4031, %v4080, 0.0
        %4101 = vadd.xlane.f32.xlu0 %v4100
        %v4102 = vpop.xlane.xlu0 %4101
        %v4103 = vsel %vm4053, %v4081, 0.0
        %4104 = vadd.xlane.f32.xlu0 %v4103
        %v4105 = vpop.xlane.xlu0 %4104
        %v4106 = vmul.f32 %v4084, %v4057
        %v4107 = vmul.f32 %v4087, %v4057
        %v4108 = vmul.f32 %v4090, %v4057
        %v4109 = vmul.f32 %v4093, %v4057
        %v4110 = vmul.f32 %v4096, %v4057
        %v4111 = vmul.f32 %v4099, %v4057
        %v4112 = vmul.f32 %v4102, %v4057
        %v4113 = vmul.f32 %v4105, %v4057
        %v4114 = vadd.f32 %v4106, 1e-05
        %v4115 = vadd.f32 %v4107, 1e-05
        %v4116 = vadd.f32 %v4108, 1e-05
        %v4117 = vadd.f32 %v4109, 1e-05
        %v4118 = vadd.f32 %v4110, 1e-05
        %v4119 = vadd.f32 %v4111, 1e-05
        %v4120 = vadd.f32 %v4112, 1e-05
        %v4121 = vadd.f32 %v4113, 1e-05
        %v4122 = vrsqrt.pop %v4114
        %v4123 = vrsqrt.pop %v4115
        %v4124 = vrsqrt.pop %v4116
        %v4125 = vrsqrt.pop %v4117
        %v4126 = vrsqrt.pop %v4118
        %v4127 = vrsqrt.pop %v4119
        %v4128 = vrsqrt.pop %v4120
        %v4129 = vrsqrt.pop %v4121
        %v4130 = vmul.f32 %v4066, %v4122
        %v4131 = vmul.f32 %v4067, %v4123
        %v4132 = vmul.f32 %v4068, %v4124
        %v4133 = vmul.f32 %v4069, %v4125
        %v4134 = vmul.f32 %v4070, %v4126
        %v4135 = vmul.f32 %v4071, %v4127
        %v4136 = vmul.f32 %v4072, %v4128
        %v4137 = vmul.f32 %v4073, %v4129
        %v4139 = vlaneseq
        %v4140 = vshrl.u32 %v4139, 7
        %v4141 = vsub.s32 0, %v4140
        %v4142 = vrot.slane %v4029, %v4141
        %v4144 = vmul.f32 %v4130, %v4142
        %v4145 = vmul.f32 %v4131, %v4142
        %v4146 = vmul.f32 %v4132, %v4142
        %v4147 = vmul.f32 %v4133, %v4142
        %v4148 = vmul.f32 %v4134, %v4142
        %v4149 = vmul.f32 %v4135, %v4142
        %v4150 = vmul.f32 %v4136, %v4142
        %v4151 = vmul.f32 %v4137, %v4142
        %v4153 = vlaneseq
        %v4154 = vshrl.u32 %v4153, 7
        %v4155 = vsub.s32 0, %v4154
        %v4156 = vrot.slane %v4030, %v4155
        %v4158 = vadd.f32 %v4144, %v4156
        %v4159 = vadd.f32 %v4145, %v4156
        %v4160 = vadd.f32 %v4146, %v4156
        %v4161 = vadd.f32 %v4147, %v4156
        %v4162 = vadd.f32 %v4148, %v4156
        %v4163 = vadd.f32 %v4149, %v4156
        %v4164 = vadd.f32 %v4150, %v4156
        %v4165 = vadd.f32 %v4151, %v4156
        %v4166 = vld [vmem:[%s1251] sm:$0xff]
        %v4167 = vld [vmem:[%s1251 + $0x8] sm:$0xff]
        %v4168 = vld [vmem:[%s1251 + $0x10] sm:$0xff]
        %v4169 = vld [vmem:[%s1251 + $0x18] sm:$0xff]
        %v4170 = vld [vmem:[%s1254] sm:$0x1]
        %v4172 = vlaneseq
        %v4173 = vshrl.u32 %v4172, 7
        %v4174 = vsub.s32 0, %v4173
        %v4175 = vrot.slane %v4170, %v4174
        %v4178 = vsel %vm4031, %v4158, 0
        %v4181 = vsel %vm4031, %v4159, 0
        %v4184 = vsel %vm4031, %v4160, 0
        %v4187 = vsel %vm4031, %v4161, 0
        %v4190 = vsel %vm4031, %v4162, 0
        %v4193 = vsel %vm4031, %v4163, 0
        %v4196 = vsel %vm4031, %v4164, 0
        %v4199 = vsel %vm4031, %v4165, 0
        %4201 = vmatprep.subr.mxu0 0.0
        %4202 = vmatpush1.msra.mxu0 %v4166
        %4203 = vmatprep.subr.mxu0 0.0
        %4204 = vmatpush1.msra.mxu0 %v4167
        %4205 = vmatprep.subr.mxu0 0.0
        %4206 = vmatpush1.msra.mxu0 %v4168
        %4207 = vmatprep.subr.mxu0 0.0
        %4208 = vmatpush1.msra.mxu0 %v4169
        %4209 = vmatprep.subr.mxu0 0.0
        %4210 = vmatpush1.msra.mxu0 0.0
        %4211 = vmatprep.subr.mxu0 0.0
        %4212 = vmatpush1.msra.mxu0 0.0
        %4213 = vmatprep.subr.mxu0 0.0
        %4214 = vmatpush1.msra.mxu0 0.0
        %4215 = vmatprep.subr.mxu0 0.0
        %4216 = vmatpush1.msra.mxu0 0.0
        %4217 = vmatprep.subr.mxu0 0.0
        %4218 = vmatpush1.msra.mxu0 0.0
        %4219 = vmatprep.subr.mxu0 0.0
        %4220 = vmatpush1.msra.mxu0 0.0
        %4221 = vmatprep.subr.mxu0 0.0
        %4222 = vmatpush1.msra.mxu0 0.0
        %4223 = vmatprep.subr.mxu0 0.0
        %4224 = vmatpush1.msra.mxu0 0.0
        %4225 = vmatprep.subr.mxu0 0.0
        %4226 = vmatpush1.msra.mxu0 0.0
        %4227 = vmatprep.subr.mxu0 0.0
        %4228 = vmatpush1.msra.mxu0 0.0
        %4229 = vmatprep.subr.mxu0 0.0
        %4230 = vmatpush1.msra.mxu0 0.0
        %4231 = vmatprep.subr.mxu0 0.0
        %4232 = vmatpush1.msra.mxu0 0.0
        %4233 = vmatprep.subr.mxu0 0.0
        %4234 = vmatpush1.msra.mxu0 0.0
        %4235 = vmatprep.subr.mxu0 0.0
        %4236 = vmatpush1.msra.mxu0 0.0
        %4237 = vmatprep.subr.mxu0 0.0
        %4238 = vmatpush1.msra.mxu0 0.0
        %4239 = vmatprep.subr.mxu0 0.0
        %4240 = vmatpush1.msra.mxu0 0.0
        %4241 = vmatprep.subr.mxu0 0.0
        %4242 = vmatpush1.msra.mxu0 0.0
        %4243 = vmatprep.subr.mxu0 0.0
        %4244 = vmatpush1.msra.mxu0 0.0
        %4245 = vmatprep.subr.mxu0 0.0
        %4246 = vmatpush1.msra.mxu0 0.0
        %4247 = vmatprep.subr.mxu0 0.0
        %4248 = vmatpush1.msra.mxu0 0.0
        %4249 = vmatprep.subr.mxu0 0.0
        %4250 = vmatpush1.msra.mxu0 0.0
        %4251 = vmatprep.subr.mxu0 0.0
        %4252 = vmatpush1.msra.mxu0 0.0
        %4253 = vmatprep.subr.mxu0 0.0
        %4254 = vmatpush1.msra.mxu0 0.0
        %4255 = vmatprep.subr.mxu0 0.0
        %4256 = vmatpush1.msra.mxu0 0.0
        %4257 = vmatprep.subr.mxu0 0.0
        %4258 = vmatpush1.msra.mxu0 0.0
        %4259 = vmatprep.subr.mxu0 0.0
        %4260 = vmatpush1.msra.mxu0 0.0
        %4261 = vmatprep.subr.mxu0 0.0
        %4262 = vmatpush1.msra.mxu0 0.0
        %4263 = vmatprep.subr.mxu0 0.0
        %4264 = vmatpush1.msra.mxu0 0.0
        %4265 = vmatprep.mubr.f32.mxu0 0.0
        %4266 = vmatmul.mubr.f32.gmra.mrb[0].mxu0 %v4178
        %v4267 = vpop.f32.mrb[0].mxu0
        %v4268 = vadd.f32 %v4175, %v4267
        %v4269 = vpop.f32.mrb[0].mxu0
        %4270 = vmatprep.mubr.f32.mxu0 0.0
        %4271 = vmatmul.mubr.f32.gmra.mrb[0].mxu0 %v4181
        %v4272 = vpop.f32.mrb[0].mxu0
        %v4273 = vadd.f32 %v4175, %v4272
        %v4274 = vpop.f32.mrb[0].mxu0
        %4275 = vmatprep.mubr.f32.mxu0 0.0
        %4276 = vmatmul.mubr.f32.gmra.mrb[0].mxu0 %v4184
        %v4277 = vpop.f32.mrb[0].mxu0
        %v4278 = vadd.f32 %v4175, %v4277
        %v4279 = vpop.f32.mrb[0].mxu0
        %4280 = vmatprep.mubr.f32.mxu0 0.0
        %4281 = vmatmul.mubr.f32.gmra.mrb[0].mxu0 %v4187
        %v4282 = vpop.f32.mrb[0].mxu0
        %v4283 = vadd.f32 %v4175, %v4282
        %v4284 = vpop.f32.mrb[0].mxu0
        %4285 = vmatprep.mubr.f32.mxu0 0.0
        %4286 = vmatmul.mubr.f32.gmra.mrb[0].mxu0 %v4190
        %v4287 = vpop.f32.mrb[0].mxu0
        %v4288 = vadd.f32 %v4175, %v4287
        %v4289 = vpop.f32.mrb[0].mxu0
        %4290 = vmatprep.mubr.f32.mxu0 0.0
        %4291 = vmatmul.mubr.f32.gmra.mrb[0].mxu0 %v4193
        %v4292 = vpop.f32.mrb[0].mxu0
        %v4293 = vadd.f32 %v4175, %v4292
        %v4294 = vpop.f32.mrb[0].mxu0
        %4295 = vmatprep.mubr.f32.mxu0 0.0
        %4296 = vmatmul.mubr.f32.gmra.mrb[0].mxu0 %v4196
        %v4297 = vpop.f32.mrb[0].mxu0
        %v4298 = vadd.f32 %v4175, %v4297
        %v4299 = vpop.f32.mrb[0].mxu0
        %4300 = vmatprep.mubr.f32.mxu0 0.0
        %4301 = vmatmul.mubr.f32.gmra.mrb[0].mxu0 %v4199
        %v4302 = vpop.f32.mrb[0].mxu0
        %v4303 = vadd.f32 %v4175, %v4302
        %v4304 = vpop.f32.mrb[0].mxu0
        %4305 = vdwg.mxu0
        %v4306 = vld [vmem:[%s1259] sm:$0xff]
        %v4307 = vld [vmem:[%s1259 + $0x8] sm:$0xff]
        %v4308 = vld [vmem:[%s1259 + $0x10] sm:$0xff]
        %v4309 = vld [vmem:[%s1259 + $0x18] sm:$0xff]
        %4318 = vrot.lane.b32.xlu0 %v4268, 96
        %v4319 = vpop.permute.xlu0 %4318
        %4320 = vrot.lane.b32.xlu0 %v4273, 96
        %v4321 = vpop.permute.xlu0 %4320
        %4322 = vrot.lane.b32.xlu0 %v4278, 96
        %v4323 = vpop.permute.xlu0 %4322
        %4324 = vrot.lane.b32.xlu0 %v4283, 96
        %v4325 = vpop.permute.xlu0 %4324
        %4326 = vrot.lane.b32.xlu0 %v4288, 96
        %v4327 = vpop.permute.xlu0 %4326
        %4328 = vrot.lane.b32.xlu0 %v4293, 96
        %v4329 = vpop.permute.xlu0 %4328
        %4330 = vrot.lane.b32.xlu0 %v4298, 96
        %v4331 = vpop.permute.xlu0 %4330
        %4332 = vrot.lane.b32.xlu0 %v4303, 96
        %v4333 = vpop.permute.xlu0 %4332
        %vm4334 = vcmask 64512
        %v4335 = vsel %vm4334, %v4268, 0
        %v4337 = vsel %vm4334, %v4273, 0
        %v4339 = vsel %vm4334, %v4278, 0
        %v4341 = vsel %vm4334, %v4283, 0
        %v4343 = vsel %vm4334, %v4288, 0
        %v4345 = vsel %vm4334, %v4293, 0
        %v4347 = vsel %vm4334, %v4298, 0
        %v4349 = vsel %vm4334, %v4303, 0
        %v4351 = vsel %vm4334, %v4319, 0
        %v4353 = vsel %vm4334, %v4321, 0
        %v4355 = vsel %vm4334, %v4323, 0
        %v4357 = vsel %vm4334, %v4325, 0
        %v4359 = vsel %vm4334, %v4327, 0
        %v4361 = vsel %vm4334, %v4329, 0
        %v4363 = vsel %vm4334, %v4331, 0
        %v4365 = vsel %vm4334, %v4333, 0
        %4367 = vmatprep.subr.mxu0 0.0
        %4368 = vmatpush1.xpose.msra.mxu0 %v4351
        %4369 = vmatprep.subr.mxu0 0.0
        %4370 = vmatpush1.xpose.msra.mxu0 %v4353
        %4371 = vmatprep.subr.mxu0 0.0
        %4372 = vmatpush1.xpose.msra.mxu0 %v4355
        %4373 = vmatprep.subr.mxu0 0.0
        %4374 = vmatpush1.xpose.msra.mxu0 %v4357
        %4375 = vmatprep.subr.mxu0 0.0
        %4376 = vmatpush1.xpose.msra.mxu0 %v4359
        %4377 = vmatprep.subr.mxu0 0.0
        %4378 = vmatpush1.xpose.msra.mxu0 %v4361
        %4379 = vmatprep.subr.mxu0 0.0
        %4380 = vmatpush1.xpose.msra.mxu0 %v4363
        %4381 = vmatprep.subr.mxu0 0.0
        %4382 = vmatpush1.xpose.msra.mxu0 %v4365
        %4383 = vmatprep.subr.mxu0 0.0
        %4384 = vmatpush1.xpose.msra.mxu0 0.0
        %4385 = vmatprep.subr.mxu0 0.0
        %4386 = vmatpush1.xpose.msra.mxu0 0.0
        %4387 = vmatprep.subr.mxu0 0.0
        %4388 = vmatpush1.xpose.msra.mxu0 0.0
        %4389 = vmatprep.subr.mxu0 0.0
        %4390 = vmatpush1.xpose.msra.mxu0 0.0
        %4391 = vmatprep.subr.mxu0 0.0
        %4392 = vmatpush1.xpose.msra.mxu0 0.0
        %4393 = vmatprep.subr.mxu0 0.0
        %4394 = vmatpush1.xpose.msra.mxu0 0.0
        %4395 = vmatprep.subr.mxu0 0.0
        %4396 = vmatpush1.xpose.msra.mxu0 0.0
        %4397 = vmatprep.subr.mxu0 0.0
        %4398 = vmatpush1.xpose.msra.mxu0 0.0
        %4399 = vmatprep.subr.mxu0 0.0
        %4400 = vmatpush1.xpose.msra.mxu0 0.0
        %4401 = vmatprep.subr.mxu0 0.0
        %4402 = vmatpush1.xpose.msra.mxu0 0.0
        %4403 = vmatprep.subr.mxu0 0.0
        %4404 = vmatpush1.xpose.msra.mxu0 0.0
        %4405 = vmatprep.subr.mxu0 0.0
        %4406 = vmatpush1.xpose.msra.mxu0 0.0
        %4407 = vmatprep.subr.mxu0 0.0
        %4408 = vmatpush1.xpose.msra.mxu0 0.0
        %4409 = vmatprep.subr.mxu0 0.0
        %4410 = vmatpush1.xpose.msra.mxu0 0.0
        %4411 = vmatprep.subr.mxu0 0.0
        %4412 = vmatpush1.xpose.msra.mxu0 0.0
        %4413 = vmatprep.subr.mxu0 0.0
        %4414 = vmatpush1.xpose.msra.mxu0 0.0
        %4415 = vmatprep.subr.mxu0 0.0
        %4416 = vmatpush1.xpose.msra.mxu0 0.0
        %4417 = vmatprep.subr.mxu0 0.0
        %4418 = vmatpush1.xpose.msra.mxu0 0.0
        %4419 = vmatprep.subr.mxu0 0.0
        %4420 = vmatpush1.xpose.msra.mxu0 0.0
        %4421 = vmatprep.subr.mxu0 0.0
        %4422 = vmatpush1.xpose.msra.mxu0 0.0
        %4423 = vmatprep.subr.mxu0 0.0
        %4424 = vmatpush1.xpose.msra.mxu0 0.0
        %4425 = vmatprep.subr.mxu0 0.0
        %4426 = vmatpush1.xpose.msra.mxu0 0.0
        %4427 = vmatprep.subr.mxu0 0.0
        %4428 = vmatpush1.xpose.msra.mxu0 0.0
        %4429 = vmatprep.subr.mxu0 0.0
        %4430 = vmatpush1.xpose.msra.mxu0 0.0
        %4431 = vmatprep.mubr.f32.mxu0 0.0
        %4432 = vmatmul.mubr.f32.gmra.mrb[0].mxu0 %v4335
        %v4433 = vpop.f32.mrb[0].mxu0
        %v4434 = vadd.f32 0.0, %v4433
        %v4435 = vpop.f32.mrb[0].mxu0
        %4436 = vmatprep.mubr.f32.mxu0 0.0
        %4437 = vmatmul.mubr.f32.gmra.mrb[0].mxu0 %v4337
        %v4438 = vpop.f32.mrb[0].mxu0
        %v4439 = vadd.f32 0.0, %v4438
        %v4440 = vpop.f32.mrb[0].mxu0
        %4441 = vmatprep.mubr.f32.mxu0 0.0
        %4442 = vmatmul.mubr.f32.gmra.mrb[0].mxu0 %v4339
        %v4443 = vpop.f32.mrb[0].mxu0
        %v4444 = vadd.f32 0.0, %v4443
        %v4445 = vpop.f32.mrb[0].mxu0
        %4446 = vmatprep.mubr.f32.mxu0 0.0
        %4447 = vmatmul.mubr.f32.gmra.mrb[0].mxu0 %v4341
        %v4448 = vpop.f32.mrb[0].mxu0
        %v4449 = vadd.f32 0.0, %v4448
        %v4450 = vpop.f32.mrb[0].mxu0
        %4451 = vmatprep.mubr.f32.mxu0 0.0
        %4452 = vmatmul.mubr.f32.gmra.mrb[0].mxu0 %v4343
        %v4453 = vpop.f32.mrb[0].mxu0
        %v4454 = vadd.f32 0.0, %v4453
        %v4455 = vpop.f32.mrb[0].mxu0
        %4456 = vmatprep.mubr.f32.mxu0 0.0
        %4457 = vmatmul.mubr.f32.gmra.mrb[0].mxu0 %v4345
        %v4458 = vpop.f32.mrb[0].mxu0
        %v4459 = vadd.f32 0.0, %v4458
        %v4460 = vpop.f32.mrb[0].mxu0
        %4461 = vmatprep.mubr.f32.mxu0 0.0
        %4462 = vmatmul.mubr.f32.gmra.mrb[0].mxu0 %v4347
        %v4463 = vpop.f32.mrb[0].mxu0
        %v4464 = vadd.f32 0.0, %v4463
        %v4465 = vpop.f32.mrb[0].mxu0
        %4466 = vmatprep.mubr.f32.mxu0 0.0
        %4467 = vmatmul.mubr.f32.gmra.mrb[0].mxu0 %v4349
        %v4468 = vpop.f32.mrb[0].mxu0
        %v4469 = vadd.f32 0.0, %v4468
        %v4470 = vpop.f32.mrb[0].mxu0
        %4471 = vdwg.mxu0
        %v4472 = vmul.f32 %v4434, 0.35355338
        %v4473 = vmul.f32 %v4439, 0.35355338
        %v4474 = vmul.f32 %v4444, 0.35355338
        %v4475 = vmul.f32 %v4449, 0.35355338
        %v4476 = vmul.f32 %v4454, 0.35355338
        %v4477 = vmul.f32 %v4459, 0.35355338
        %v4478 = vmul.f32 %v4464, 0.35355338
        %v4479 = vmul.f32 %v4469, 0.35355338
        %v4480 = vld [vmem:[%s35] sm:$0xff]
        %v4481 = vld [vmem:[%s35 + $0x8] sm:$0xff]
        %v4482 = vld [vmem:[%s35 + $0x10] sm:$0xff]
        %v4483 = vld [vmem:[%s35 + $0x18] sm:$0xff]
        %v4484 = vld [vmem:[%s35 + $0x20] sm:$0xff]
        %v4485 = vld [vmem:[%s35 + $0x28] sm:$0xff]
        %v4486 = vld [vmem:[%s35 + $0x30] sm:$0xff]
        %v4487 = vld [vmem:[%s35 + $0x38] sm:$0x3f]
        %v4488 = vadd.f32 %v4472, %v4480
        %v4489 = vadd.f32 %v4473, %v4481
        %v4490 = vadd.f32 %v4474, %v4482
        %v4491 = vadd.f32 %v4475, %v4483
        %v4492 = vadd.f32 %v4476, %v4484
        %v4493 = vadd.f32 %v4477, %v4485
        %v4494 = vadd.f32 %v4478, %v4486
        %v4495 = vadd.f32 %v4479, %v4487
        %vm4496 = vcmask 506880
        %v4497 = vsel %vm4496, %v4488, -inf
        %4498 = vmax.xlane.f32.xlu0 %v4497
        %v4499 = vpop.xlane.xlu0 %4498
        %v4500 = vsel %vm4496, %v4489, -inf
        %4501 = vmax.xlane.f32.xlu0 %v4500
        %v4502 = vpop.xlane.xlu0 %4501
        %v4503 = vsel %vm4496, %v4490, -inf
        %4504 = vmax.xlane.f32.xlu0 %v4503
        %v4505 = vpop.xlane.xlu0 %4504
        %v4506 = vsel %vm4496, %v4491, -inf
        %4507 = vmax.xlane.f32.xlu0 %v4506
        %v4508 = vpop.xlane.xlu0 %4507
        %v4509 = vsel %vm4496, %v4492, -inf
        %4510 = vmax.xlane.f32.xlu0 %v4509
        %v4511 = vpop.xlane.xlu0 %4510
        %v4512 = vsel %vm4496, %v4493, -inf
        %4513 = vmax.xlane.f32.xlu0 %v4512
        %v4514 = vpop.xlane.xlu0 %4513
        %v4515 = vsel %vm4496, %v4494, -inf
        %4516 = vmax.xlane.f32.xlu0 %v4515
        %v4517 = vpop.xlane.xlu0 %4516
        %vm4518 = vcmask 504832
        %v4519 = vsel %vm4518, %v4495, -inf
        %4520 = vmax.xlane.f32.xlu0 %v4519
        %v4521 = vpop.xlane.xlu0 %4520
        %v4522 = vsub.f32 %v4488, %v4499
        %v4523 = vsub.f32 %v4489, %v4502
        %v4524 = vsub.f32 %v4490, %v4505
        %v4525 = vsub.f32 %v4491, %v4508
        %v4526 = vsub.f32 %v4492, %v4511
        %v4527 = vsub.f32 %v4493, %v4514
        %v4528 = vsub.f32 %v4494, %v4517
        %v4529 = vsub.f32 %v4495, %v4521
        %v4530 = vmul.f32 %v4522, 1.442695
        %v4531 = vpow.pop %v4530
        %v4532 = vmul.f32 %v4523, 1.442695
        %v4533 = vpow.pop %v4532
        %v4534 = vmul.f32 %v4524, 1.442695
        %v4535 = vpow.pop %v4534
        %v4536 = vmul.f32 %v4525, 1.442695
        %v4537 = vpow.pop %v4536
        %v4538 = vmul.f32 %v4526, 1.442695
        %v4539 = vpow.pop %v4538
        %v4540 = vmul.f32 %v4527, 1.442695
        %v4541 = vpow.pop %v4540
        %v4542 = vmul.f32 %v4528, 1.442695
        %v4543 = vpow.pop %v4542
        %v4544 = vmul.f32 %v4529, 1.442695
        %v4545 = vpow.pop %v4544
        %v4546 = vsel %vm4496, %v4531, 0.0
        %4547 = vadd.xlane.f32.xlu0 %v4546
        %v4548 = vpop.xlane.xlu0 %4547
        %v4549 = vsel %vm4496, %v4533, 0.0
        %4550 = vadd.xlane.f32.xlu0 %v4549
        %v4551 = vpop.xlane.xlu0 %4550
        %v4552 = vsel %vm4496, %v4535, 0.0
        %4553 = vadd.xlane.f32.xlu0 %v4552
        %v4554 = vpop.xlane.xlu0 %4553
        %v4555 = vsel %vm4496, %v4537, 0.0
        %4556 = vadd.xlane.f32.xlu0 %v4555
        %v4557 = vpop.xlane.xlu0 %4556
        %v4558 = vsel %vm4496, %v4539, 0.0
        %4559 = vadd.xlane.f32.xlu0 %v4558
        %v4560 = vpop.xlane.xlu0 %4559
        %v4561 = vsel %vm4496, %v4541, 0.0
        %4562 = vadd.xlane.f32.xlu0 %v4561
        %v4563 = vpop.xlane.xlu0 %4562
        %v4564 = vsel %vm4496, %v4543, 0.0
        %4565 = vadd.xlane.f32.xlu0 %v4564
        %v4566 = vpop.xlane.xlu0 %4565
        %v4567 = vsel %vm4518, %v4545, 0.0
        %4568 = vadd.xlane.f32.xlu0 %v4567
        %v4569 = vpop.xlane.xlu0 %4568
        %v4570 = vrcp.pop %v4548
        %v4571 = vrcp.pop %v4551
        %v4572 = vrcp.pop %v4554
        %v4573 = vrcp.pop %v4557
        %v4574 = vrcp.pop %v4560
        %v4575 = vrcp.pop %v4563
        %v4576 = vrcp.pop %v4566
        %v4577 = vrcp.pop %v4569
        %v4578 = vmul.f32 %v4531, %v4570
        %v4579 = vmul.f32 %v4533, %v4571
        %v4580 = vmul.f32 %v4535, %v4572
        %v4581 = vmul.f32 %v4537, %v4573
        %v4582 = vmul.f32 %v4539, %v4574
        %v4583 = vmul.f32 %v4541, %v4575
        %v4584 = vmul.f32 %v4543, %v4576
        %v4585 = vmul.f32 %v4545, %v4577
        %4586 = vrot.lane.b32.xlu0 %v4268, 64
        %v4587 = vpop.permute.xlu0 %4586
        %4588 = vrot.lane.b32.xlu0 %v4273, 64
        %v4589 = vpop.permute.xlu0 %4588
        %4590 = vrot.lane.b32.xlu0 %v4278, 64
        %v4591 = vpop.permute.xlu0 %4590
        %4592 = vrot.lane.b32.xlu0 %v4283, 64
        %v4593 = vpop.permute.xlu0 %4592
        %4594 = vrot.lane.b32.xlu0 %v4288, 64
        %v4595 = vpop.permute.xlu0 %4594
        %4596 = vrot.lane.b32.xlu0 %v4293, 64
        %v4597 = vpop.permute.xlu0 %4596
        %4598 = vrot.lane.b32.xlu0 %v4298, 64
        %v4599 = vpop.permute.xlu0 %4598
        %4600 = vrot.lane.b32.xlu0 %v4303, 64
        %v4601 = vpop.permute.xlu0 %4600
        %v4610 = vsel %vm4496, %v4578, 0
        %v4613 = vsel %vm4496, %v4579, 0
        %v4616 = vsel %vm4496, %v4580, 0
        %v4619 = vsel %vm4496, %v4581, 0
        %v4622 = vsel %vm4496, %v4582, 0
        %v4625 = vsel %vm4496, %v4583, 0
        %v4628 = vsel %vm4496, %v4584, 0
        %v4631 = vsel %vm4496, %v4585, 0
        %vm4633 = vcmask 1045504
        %v4634 = vsel %vm4633, %v4601, 0
        %4636 = vmatprep.subr.mxu0 0.0
        %4637 = vmatpush1.msra.mxu0 %v4587
        %4638 = vmatprep.subr.mxu0 0.0
        %4639 = vmatpush1.msra.mxu0 %v4589
        %4640 = vmatprep.subr.mxu0 0.0
        %4641 = vmatpush1.msra.mxu0 %v4591
        %4642 = vmatprep.subr.mxu0 0.0
        %4643 = vmatpush1.msra.mxu0 %v4593
        %4644 = vmatprep.subr.mxu0 0.0
        %4645 = vmatpush1.msra.mxu0 %v4595
        %4646 = vmatprep.subr.mxu0 0.0
        %4647 = vmatpush1.msra.mxu0 %v4597
        %4648 = vmatprep.subr.mxu0 0.0
        %4649 = vmatpush1.msra.mxu0 %v4599
        %4650 = vmatprep.subr.mxu0 0.0
        %4651 = vmatpush1.msra.mxu0 %v4634
        %4652 = vmatprep.subr.mxu0 0.0
        %4653 = vmatpush1.msra.mxu0 0.0
        %4654 = vmatprep.subr.mxu0 0.0
        %4655 = vmatpush1.msra.mxu0 0.0
        %4656 = vmatprep.subr.mxu0 0.0
        %4657 = vmatpush1.msra.mxu0 0.0
        %4658 = vmatprep.subr.mxu0 0.0
        %4659 = vmatpush1.msra.mxu0 0.0
        %4660 = vmatprep.subr.mxu0 0.0
        %4661 = vmatpush1.msra.mxu0 0.0
        %4662 = vmatprep.subr.mxu0 0.0
        %4663 = vmatpush1.msra.mxu0 0.0
        %4664 = vmatprep.subr.mxu0 0.0
        %4665 = vmatpush1.msra.mxu0 0.0
        %4666 = vmatprep.subr.mxu0 0.0
        %4667 = vmatpush1.msra.mxu0 0.0
        %4668 = vmatprep.subr.mxu0 0.0
        %4669 = vmatpush1.msra.mxu0 0.0
        %4670 = vmatprep.subr.mxu0 0.0
        %4671 = vmatpush1.msra.mxu0 0.0
        %4672 = vmatprep.subr.mxu0 0.0
        %4673 = vmatpush1.msra.mxu0 0.0
        %4674 = vmatprep.subr.mxu0 0.0
        %4675 = vmatpush1.msra.mxu0 0.0
        %4676 = vmatprep.subr.mxu0 0.0
        %4677 = vmatpush1.msra.mxu0 0.0
        %4678 = vmatprep.subr.mxu0 0.0
        %4679 = vmatpush1.msra.mxu0 0.0
        %4680 = vmatprep.subr.mxu0 0.0
        %4681 = vmatpush1.msra.mxu0 0.0
        %4682 = vmatprep.subr.mxu0 0.0
        %4683 = vmatpush1.msra.mxu0 0.0
        %4684 = vmatprep.subr.mxu0 0.0
        %4685 = vmatpush1.msra.mxu0 0.0
        %4686 = vmatprep.subr.mxu0 0.0
        %4687 = vmatpush1.msra.mxu0 0.0
        %4688 = vmatprep.subr.mxu0 0.0
        %4689 = vmatpush1.msra.mxu0 0.0
        %4690 = vmatprep.subr.mxu0 0.0
        %4691 = vmatpush1.msra.mxu0 0.0
        %4692 = vmatprep.subr.mxu0 0.0
        %4693 = vmatpush1.msra.mxu0 0.0
        %4694 = vmatprep.subr.mxu0 0.0
        %4695 = vmatpush1.msra.mxu0 0.0
        %4696 = vmatprep.subr.mxu0 0.0
        %4697 = vmatpush1.msra.mxu0 0.0
        %4698 = vmatprep.subr.mxu0 0.0
        %4699 = vmatpush1.msra.mxu0 0.0
        %4700 = vmatprep.mubr.f32.mxu0 0.0
        %4701 = vmatmul.mubr.f32.gmra.mrb[0].mxu0 %v4610
        %v4702 = vpop.f32.mrb[0].mxu0
        %v4703 = vadd.f32 0.0, %v4702
        %v4704 = vpop.f32.mrb[0].mxu0
        %4705 = vmatprep.mubr.f32.mxu0 0.0
        %4706 = vmatmul.mubr.f32.gmra.mrb[0].mxu0 %v4613
        %v4707 = vpop.f32.mrb[0].mxu0
        %v4708 = vadd.f32 0.0, %v4707
        %v4709 = vpop.f32.mrb[0].mxu0
        %4710 = vmatprep.mubr.f32.mxu0 0.0
        %4711 = vmatmul.mubr.f32.gmra.mrb[0].mxu0 %v4616
        %v4712 = vpop.f32.mrb[0].mxu0
        %v4713 = vadd.f32 0.0, %v4712
        %v4714 = vpop.f32.mrb[0].mxu0
        %4715 = vmatprep.mubr.f32.mxu0 0.0
        %4716 = vmatmul.mubr.f32.gmra.mrb[0].mxu0 %v4619
        %v4717 = vpop.f32.mrb[0].mxu0
        %v4718 = vadd.f32 0.0, %v4717
        %v4719 = vpop.f32.mrb[0].mxu0
        %4720 = vmatprep.mubr.f32.mxu0 0.0
        %4721 = vmatmul.mubr.f32.gmra.mrb[0].mxu0 %v4622
        %v4722 = vpop.f32.mrb[0].mxu0
        %v4723 = vadd.f32 0.0, %v4722
        %v4724 = vpop.f32.mrb[0].mxu0
        %4725 = vmatprep.mubr.f32.mxu0 0.0
        %4726 = vmatmul.mubr.f32.gmra.mrb[0].mxu0 %v4625
        %v4727 = vpop.f32.mrb[0].mxu0
        %v4728 = vadd.f32 0.0, %v4727
        %v4729 = vpop.f32.mrb[0].mxu0
        %4730 = vmatprep.mubr.f32.mxu0 0.0
        %4731 = vmatmul.mubr.f32.gmra.mrb[0].mxu0 %v4628
        %v4732 = vpop.f32.mrb[0].mxu0
        %v4733 = vadd.f32 0.0, %v4732
        %v4734 = vpop.f32.mrb[0].mxu0
        %4735 = vmatprep.mubr.f32.mxu0 0.0
        %4736 = vmatmul.mubr.f32.gmra.mrb[0].mxu0 %v4631
        %v4737 = vpop.f32.mrb[0].mxu0
        %v4738 = vadd.f32 0.0, %v4737
        %v4739 = vpop.f32.mrb[0].mxu0
        %4740 = vdwg.mxu0
        %4741 = vrot.lane.b32.xlu0 %v4268, 120
        %v4742 = vpop.permute.xlu0 %4741
        %4743 = vrot.lane.b32.xlu0 %v4273, 120
        %v4744 = vpop.permute.xlu0 %4743
        %4745 = vrot.lane.b32.xlu0 %v4278, 120
        %v4746 = vpop.permute.xlu0 %4745
        %4747 = vrot.lane.b32.xlu0 %v4283, 120
        %v4748 = vpop.permute.xlu0 %4747
        %4749 = vrot.lane.b32.xlu0 %v4288, 120
        %v4750 = vpop.permute.xlu0 %4749
        %4751 = vrot.lane.b32.xlu0 %v4293, 120
        %v4752 = vpop.permute.xlu0 %4751
        %4753 = vrot.lane.b32.xlu0 %v4298, 120
        %v4754 = vpop.permute.xlu0 %4753
        %4755 = vrot.lane.b32.xlu0 %v4303, 120
        %v4756 = vpop.permute.xlu0 %4755
        %4757 = vrot.lane.b32.xlu0 %v4268, 88
        %v4758 = vpop.permute.xlu0 %4757
        %4759 = vrot.lane.b32.xlu0 %v4273, 88
        %v4760 = vpop.permute.xlu0 %4759
        %4761 = vrot.lane.b32.xlu0 %v4278, 88
        %v4762 = vpop.permute.xlu0 %4761
        %4763 = vrot.lane.b32.xlu0 %v4283, 88
        %v4764 = vpop.permute.xlu0 %4763
        %4765 = vrot.lane.b32.xlu0 %v4288, 88
        %v4766 = vpop.permute.xlu0 %4765
        %4767 = vrot.lane.b32.xlu0 %v4293, 88
        %v4768 = vpop.permute.xlu0 %4767
        %4769 = vrot.lane.b32.xlu0 %v4298, 88
        %v4770 = vpop.permute.xlu0 %4769
        %4771 = vrot.lane.b32.xlu0 %v4303, 88
        %v4772 = vpop.permute.xlu0 %4771
        %v4773 = vsel %vm4334, %v4742, 0
        %v4775 = vsel %vm4334, %v4744, 0
        %v4777 = vsel %vm4334, %v4746, 0
        %v4779 = vsel %vm4334, %v4748, 0
        %v4781 = vsel %vm4334, %v4750, 0
        %v4783 = vsel %vm4334, %v4752, 0
        %v4785 = vsel %vm4334, %v4754, 0
        %v4787 = vsel %vm4334, %v4756, 0
        %v4789 = vsel %vm4334, %v4758, 0
        %v4791 = vsel %vm4334, %v4760, 0
        %v4793 = vsel %vm4334, %v4762, 0
        %v4795 = vsel %vm4334, %v4764, 0
        %v4797 = vsel %vm4334, %v4766, 0
        %v4799 = vsel %vm4334, %v4768, 0
        %v4801 = vsel %vm4334, %v4770, 0
        %v4803 = vsel %vm4334, %v4772, 0
        %4805 = vmatprep.subr.mxu0 0.0
        %4806 = vmatpush1.xpose.msra.mxu0 %v4789
        %4807 = vmatprep.subr.mxu0 0.0
        %4808 = vmatpush1.xpose.msra.mxu0 %v4791
        %4809 = vmatprep.subr.mxu0 0.0
        %4810 = vmatpush1.xpose.msra.mxu0 %v4793
        %4811 = vmatprep.subr.mxu0 0.0
        %4812 = vmatpush1.xpose.msra.mxu0 %v4795
        %4813 = vmatprep.subr.mxu0 0.0
        %4814 = vmatpush1.xpose.msra.mxu0 %v4797
        %4815 = vmatprep.subr.mxu0 0.0
        %4816 = vmatpush1.xpose.msra.mxu0 %v4799
        %4817 = vmatprep.subr.mxu0 0.0
        %4818 = vmatpush1.xpose.msra.mxu0 %v4801
        %4819 = vmatprep.subr.mxu0 0.0
        %4820 = vmatpush1.xpose.msra.mxu0 %v4803
        %4821 = vmatprep.subr.mxu0 0.0
        %4822 = vmatpush1.xpose.msra.mxu0 0.0
        %4823 = vmatprep.subr.mxu0 0.0
        %4824 = vmatpush1.xpose.msra.mxu0 0.0
        %4825 = vmatprep.subr.mxu0 0.0
        %4826 = vmatpush1.xpose.msra.mxu0 0.0
        %4827 = vmatprep.subr.mxu0 0.0
        %4828 = vmatpush1.xpose.msra.mxu0 0.0
        %4829 = vmatprep.subr.mxu0 0.0
        %4830 = vmatpush1.xpose.msra.mxu0 0.0
        %4831 = vmatprep.subr.mxu0 0.0
        %4832 = vmatpush1.xpose.msra.mxu0 0.0
        %4833 = vmatprep.subr.mxu0 0.0
        %4834 = vmatpush1.xpose.msra.mxu0 0.0
        %4835 = vmatprep.subr.mxu0 0.0
        %4836 = vmatpush1.xpose.msra.mxu0 0.0
        %4837 = vmatprep.subr.mxu0 0.0
        %4838 = vmatpush1.xpose.msra.mxu0 0.0
        %4839 = vmatprep.subr.mxu0 0.0
        %4840 = vmatpush1.xpose.msra.mxu0 0.0
        %4841 = vmatprep.subr.mxu0 0.0
        %4842 = vmatpush1.xpose.msra.mxu0 0.0
        %4843 = vmatprep.subr.mxu0 0.0
        %4844 = vmatpush1.xpose.msra.mxu0 0.0
        %4845 = vmatprep.subr.mxu0 0.0
        %4846 = vmatpush1.xpose.msra.mxu0 0.0
        %4847 = vmatprep.subr.mxu0 0.0
        %4848 = vmatpush1.xpose.msra.mxu0 0.0
        %4849 = vmatprep.subr.mxu0 0.0
        %4850 = vmatpush1.xpose.msra.mxu0 0.0
        %4851 = vmatprep.subr.mxu0 0.0
        %4852 = vmatpush1.xpose.msra.mxu0 0.0
        %4853 = vmatprep.subr.mxu0 0.0
        %4854 = vmatpush1.xpose.msra.mxu0 0.0
        %4855 = vmatprep.subr.mxu0 0.0
        %4856 = vmatpush1.xpose.msra.mxu0 0.0
        %4857 = vmatprep.subr.mxu0 0.0
        %4858 = vmatpush1.xpose.msra.mxu0 0.0
        %4859 = vmatprep.subr.mxu0 0.0
        %4860 = vmatpush1.xpose.msra.mxu0 0.0
        %4861 = vmatprep.subr.mxu0 0.0
        %4862 = vmatpush1.xpose.msra.mxu0 0.0
        %4863 = vmatprep.subr.mxu0 0.0
        %4864 = vmatpush1.xpose.msra.mxu0 0.0
        %4865 = vmatprep.subr.mxu0 0.0
        %4866 = vmatpush1.xpose.msra.mxu0 0.0
        %4867 = vmatprep.subr.mxu0 0.0
        %4868 = vmatpush1.xpose.msra.mxu0 0.0
        %4869 = vmatprep.mubr.f32.mxu0 0.0
        %4870 = vmatmul.mubr.f32.gmra.mrb[0].mxu0 %v4773
        %v4871 = vpop.f32.mrb[0].mxu0
        %v4872 = vadd.f32 0.0, %v4871
        %v4873 = vpop.f32.mrb[0].mxu0
        %4874 = vmatprep.mubr.f32.mxu0 0.0
        %4875 = vmatmul.mubr.f32.gmra.mrb[0].mxu0 %v4775
        %v4876 = vpop.f32.mrb[0].mxu0
        %v4877 = vadd.f32 0.0, %v4876
        %v4878 = vpop.f32.mrb[0].mxu0
        %4879 = vmatprep.mubr.f32.mxu0 0.0
        %4880 = vmatmul.mubr.f32.gmra.mrb[0].mxu0 %v4777
        %v4881 = vpop.f32.mrb[0].mxu0
        %v4882 = vadd.f32 0.0, %v4881
        %v4883 = vpop.f32.mrb[0].mxu0
        %4884 = vmatprep.mubr.f32.mxu0 0.0
        %4885 = vmatmul.mubr.f32.gmra.mrb[0].mxu0 %v4779
        %v4886 = vpop.f32.mrb[0].mxu0
        %v4887 = vadd.f32 0.0, %v4886
        %v4888 = vpop.f32.mrb[0].mxu0
        %4889 = vmatprep.mubr.f32.mxu0 0.0
        %4890 = vmatmul.mubr.f32.gmra.mrb[0].mxu0 %v4781
        %v4891 = vpop.f32.mrb[0].mxu0
        %v4892 = vadd.f32 0.0, %v4891
        %v4893 = vpop.f32.mrb[0].mxu0
        %4894 = vmatprep.mubr.f32.mxu0 0.0
        %4895 = vmatmul.mubr.f32.gmra.mrb[0].mxu0 %v4783
        %v4896 = vpop.f32.mrb[0].mxu0
        %v4897 = vadd.f32 0.0, %v4896
        %v4898 = vpop.f32.mrb[0].mxu0
        %4899 = vmatprep.mubr.f32.mxu0 0.0
        %4900 = vmatmul.mubr.f32.gmra.mrb[0].mxu0 %v4785
        %v4901 = vpop.f32.mrb[0].mxu0
        %v4902 = vadd.f32 0.0, %v4901
        %v4903 = vpop.f32.mrb[0].mxu0
        %4904 = vmatprep.mubr.f32.mxu0 0.0
        %4905 = vmatmul.mubr.f32.gmra.mrb[0].mxu0 %v4787
        %v4906 = vpop.f32.mrb[0].mxu0
        %v4907 = vadd.f32 0.0, %v4906
        %v4908 = vpop.f32.mrb[0].mxu0
        %4909 = vdwg.mxu0
        %v4910 = vmul.f32 %v4872, 0.35355338
        %v4911 = vmul.f32 %v4877, 0.35355338
        %v4912 = vmul.f32 %v4882, 0.35355338
        %v4913 = vmul.f32 %v4887, 0.35355338
        %v4914 = vmul.f32 %v4892, 0.35355338
        %v4915 = vmul.f32 %v4897, 0.35355338
        %v4916 = vmul.f32 %v4902, 0.35355338
        %v4917 = vmul.f32 %v4907, 0.35355338
        %v4918 = vadd.f32 %v4910, %v4480
        %v4919 = vadd.f32 %v4911, %v4481
        %v4920 = vadd.f32 %v4912, %v4482
        %v4921 = vadd.f32 %v4913, %v4483
        %v4922 = vadd.f32 %v4914, %v4484
        %v4923 = vadd.f32 %v4915, %v4485
        %v4924 = vadd.f32 %v4916, %v4486
        %v4925 = vadd.f32 %v4917, %v4487
        %v4926 = vsel %vm4496, %v4918, -inf
        %4927 = vmax.xlane.f32.xlu0 %v4926
        %v4928 = vpop.xlane.xlu0 %4927
        %v4929 = vsel %vm4496, %v4919, -inf
        %4930 = vmax.xlane.f32.xlu0 %v4929
        %v4931 = vpop.xlane.xlu0 %4930
        %v4932 = vsel %vm4496, %v4920, -inf
        %4933 = vmax.xlane.f32.xlu0 %v4932
        %v4934 = vpop.xlane.xlu0 %4933
        %v4935 = vsel %vm4496, %v4921, -inf
        %4936 = vmax.xlane.f32.xlu0 %v4935
        %v4937 = vpop.xlane.xlu0 %4936
        %v4938 = vsel %vm4496, %v4922, -inf
        %4939 = vmax.xlane.f32.xlu0 %v4938
        %v4940 = vpop.xlane.xlu0 %4939
        %v4941 = vsel %vm4496, %v4923, -inf
        %4942 = vmax.xlane.f32.xlu0 %v4941
        %v4943 = vpop.xlane.xlu0 %4942
        %v4944 = vsel %vm4496, %v4924, -inf
        %4945 = vmax.xlane.f32.xlu0 %v4944
        %v4946 = vpop.xlane.xlu0 %4945
        %v4947 = vsel %vm4518, %v4925, -inf
        %4948 = vmax.xlane.f32.xlu0 %v4947
        %v4949 = vpop.xlane.xlu0 %4948
        %v4950 = vsub.f32 %v4918, %v4928
        %v4951 = vsub.f32 %v4919, %v4931
        %v4952 = vsub.f32 %v4920, %v4934
        %v4953 = vsub.f32 %v4921, %v4937
        %v4954 = vsub.f32 %v4922, %v4940
        %v4955 = vsub.f32 %v4923, %v4943
        %v4956 = vsub.f32 %v4924, %v4946
        %v4957 = vsub.f32 %v4925, %v4949
        %v4958 = vmul.f32 %v4950, 1.442695
        %v4959 = vpow.pop %v4958
        %v4960 = vmul.f32 %v4951, 1.442695
        %v4961 = vpow.pop %v4960
        %v4962 = vmul.f32 %v4952, 1.442695
        %v4963 = vpow.pop %v4962
        %v4964 = vmul.f32 %v4953, 1.442695
        %v4965 = vpow.pop %v4964
        %v4966 = vmul.f32 %v4954, 1.442695
        %v4967 = vpow.pop %v4966
        %v4968 = vmul.f32 %v4955, 1.442695
        %v4969 = vpow.pop %v4968
        %v4970 = vmul.f32 %v4956, 1.442695
        %v4971 = vpow.pop %v4970
        %v4972 = vmul.f32 %v4957, 1.442695
        %v4973 = vpow.pop %v4972
        %v4974 = vsel %vm4496, %v4959, 0.0
        %4975 = vadd.xlane.f32.xlu0 %v4974
        %v4976 = vpop.xlane.xlu0 %4975
        %v4977 = vsel %vm4496, %v4961, 0.0
        %4978 = vadd.xlane.f32.xlu0 %v4977
        %v4979 = vpop.xlane.xlu0 %4978
        %v4980 = vsel %vm4496, %v4963, 0.0
        %4981 = vadd.xlane.f32.xlu0 %v4980
        %v4982 = vpop.xlane.xlu0 %4981
        %v4983 = vsel %vm4496, %v4965, 0.0
        %4984 = vadd.xlane.f32.xlu0 %v4983
        %v4985 = vpop.xlane.xlu0 %4984
        %v4986 = vsel %vm4496, %v4967, 0.0
        %4987 = vadd.xlane.f32.xlu0 %v4986
        %v4988 = vpop.xlane.xlu0 %4987
        %v4989 = vsel %vm4496, %v4969, 0.0
        %4990 = vadd.xlane.f32.xlu0 %v4989
        %v4991 = vpop.xlane.xlu0 %4990
        %v4992 = vsel %vm4496, %v4971, 0.0
        %4993 = vadd.xlane.f32.xlu0 %v4992
        %v4994 = vpop.xlane.xlu0 %4993
        %v4995 = vsel %vm4518, %v4973, 0.0
        %4996 = vadd.xlane.f32.xlu0 %v4995
        %v4997 = vpop.xlane.xlu0 %4996
        %v4998 = vrcp.pop %v4976
        %v4999 = vrcp.pop %v4979
        %v5000 = vrcp.pop %v4982
        %v5001 = vrcp.pop %v4985
        %v5002 = vrcp.pop %v4988
        %v5003 = vrcp.pop %v4991
        %v5004 = vrcp.pop %v4994
        %v5005 = vrcp.pop %v4997
        %v5006 = vmul.f32 %v4959, %v4998
        %v5007 = vmul.f32 %v4961, %v4999
        %v5008 = vmul.f32 %v4963, %v5000
        %v5009 = vmul.f32 %v4965, %v5001
        %v5010 = vmul.f32 %v4967, %v5002
        %v5011 = vmul.f32 %v4969, %v5003
        %v5012 = vmul.f32 %v4971, %v5004
        %v5013 = vmul.f32 %v4973, %v5005
        %5014 = vrot.lane.b32.xlu0 %v4268, 56
        %v5015 = vpop.permute.xlu0 %5014
        %5016 = vrot.lane.b32.xlu0 %v4273, 56
        %v5017 = vpop.permute.xlu0 %5016
        %5018 = vrot.lane.b32.xlu0 %v4278, 56
        %v5019 = vpop.permute.xlu0 %5018
        %5020 = vrot.lane.b32.xlu0 %v4283, 56
        %v5021 = vpop.permute.xlu0 %5020
        %5022 = vrot.lane.b32.xlu0 %v4288, 56
        %v5023 = vpop.permute.xlu0 %5022
        %5024 = vrot.lane.b32.xlu0 %v4293, 56
        %v5025 = vpop.permute.xlu0 %5024
        %5026 = vrot.lane.b32.xlu0 %v4298, 56
        %v5027 = vpop.permute.xlu0 %5026
        %5028 = vrot.lane.b32.xlu0 %v4303, 56
        %v5029 = vpop.permute.xlu0 %5028
        %v5038 = vsel %vm4496, %v5006, 0
        %v5041 = vsel %vm4496, %v5007, 0
        %v5044 = vsel %vm4496, %v5008, 0
        %v5047 = vsel %vm4496, %v5009, 0
        %v5050 = vsel %vm4496, %v5010, 0
        %v5053 = vsel %vm4496, %v5011, 0
        %v5056 = vsel %vm4496, %v5012, 0
        %v5059 = vsel %vm4496, %v5013, 0
        %v5061 = vsel %vm4633, %v5029, 0
        %5063 = vmatprep.subr.mxu0 0.0
        %5064 = vmatpush1.msra.mxu0 %v5015
        %5065 = vmatprep.subr.mxu0 0.0
        %5066 = vmatpush1.msra.mxu0 %v5017
        %5067 = vmatprep.subr.mxu0 0.0
        %5068 = vmatpush1.msra.mxu0 %v5019
        %5069 = vmatprep.subr.mxu0 0.0
        %5070 = vmatpush1.msra.mxu0 %v5021
        %5071 = vmatprep.subr.mxu0 0.0
        %5072 = vmatpush1.msra.mxu0 %v5023
        %5073 = vmatprep.subr.mxu0 0.0
        %5074 = vmatpush1.msra.mxu0 %v5025
        %5075 = vmatprep.subr.mxu0 0.0
        %5076 = vmatpush1.msra.mxu0 %v5027
        %5077 = vmatprep.subr.mxu0 0.0
        %5078 = vmatpush1.msra.mxu0 %v5061
        %5079 = vmatprep.subr.mxu0 0.0
        %5080 = vmatpush1.msra.mxu0 0.0
        %5081 = vmatprep.subr.mxu0 0.0
        %5082 = vmatpush1.msra.mxu0 0.0
        %5083 = vmatprep.subr.mxu0 0.0
        %5084 = vmatpush1.msra.mxu0 0.0
        %5085 = vmatprep.subr.mxu0 0.0
        %5086 = vmatpush1.msra.mxu0 0.0
        %5087 = vmatprep.subr.mxu0 0.0
        %5088 = vmatpush1.msra.mxu0 0.0
        %5089 = vmatprep.subr.mxu0 0.0
        %5090 = vmatpush1.msra.mxu0 0.0
        %5091 = vmatprep.subr.mxu0 0.0
        %5092 = vmatpush1.msra.mxu0 0.0
        %5093 = vmatprep.subr.mxu0 0.0
        %5094 = vmatpush1.msra.mxu0 0.0
        %5095 = vmatprep.subr.mxu0 0.0
        %5096 = vmatpush1.msra.mxu0 0.0
        %5097 = vmatprep.subr.mxu0 0.0
        %5098 = vmatpush1.msra.mxu0 0.0
        %5099 = vmatprep.subr.mxu0 0.0
        %5100 = vmatpush1.msra.mxu0 0.0
        %5101 = vmatprep.subr.mxu0 0.0
        %5102 = vmatpush1.msra.mxu0 0.0
        %5103 = vmatprep.subr.mxu0 0.0
        %5104 = vmatpush1.msra.mxu0 0.0
        %5105 = vmatprep.subr.mxu0 0.0
        %5106 = vmatpush1.msra.mxu0 0.0
        %5107 = vmatprep.subr.mxu0 0.0
        %5108 = vmatpush1.msra.mxu0 0.0
        %5109 = vmatprep.subr.mxu0 0.0
        %5110 = vmatpush1.msra.mxu0 0.0
        %5111 = vmatprep.subr.mxu0 0.0
        %5112 = vmatpush1.msra.mxu0 0.0
        %5113 = vmatprep.subr.mxu0 0.0
        %5114 = vmatpush1.msra.mxu0 0.0
        %5115 = vmatprep.subr.mxu0 0.0
        %5116 = vmatpush1.msra.mxu0 0.0
        %5117 = vmatprep.subr.mxu0 0.0
        %5118 = vmatpush1.msra.mxu0 0.0
        %5119 = vmatprep.subr.mxu0 0.0
        %5120 = vmatpush1.msra.mxu0 0.0
        %5121 = vmatprep.subr.mxu0 0.0
        %5122 = vmatpush1.msra.mxu0 0.0
        %5123 = vmatprep.subr.mxu0 0.0
        %5124 = vmatpush1.msra.mxu0 0.0
        %5125 = vmatprep.subr.mxu0 0.0
        %5126 = vmatpush1.msra.mxu0 0.0
        %5127 = vmatprep.mubr.f32.mxu0 0.0
        %5128 = vmatmul.mubr.f32.gmra.mrb[0].mxu0 %v5038
        %v5129 = vpop.f32.mrb[0].mxu0
        %v5130 = vadd.f32 0.0, %v5129
        %v5131 = vpop.f32.mrb[0].mxu0
        %5132 = vmatprep.mubr.f32.mxu0 0.0
        %5133 = vmatmul.mubr.f32.gmra.mrb[0].mxu0 %v5041
        %v5134 = vpop.f32.mrb[0].mxu0
        %v5135 = vadd.f32 0.0, %v5134
        %v5136 = vpop.f32.mrb[0].mxu0
        %5137 = vmatprep.mubr.f32.mxu0 0.0
        %5138 = vmatmul.mubr.f32.gmra.mrb[0].mxu0 %v5044
        %v5139 = vpop.f32.mrb[0].mxu0
        %v5140 = vadd.f32 0.0, %v5139
        %v5141 = vpop.f32.mrb[0].mxu0
        %5142 = vmatprep.mubr.f32.mxu0 0.0
        %5143 = vmatmul.mubr.f32.gmra.mrb[0].mxu0 %v5047
        %v5144 = vpop.f32.mrb[0].mxu0
        %v5145 = vadd.f32 0.0, %v5144
        %v5146 = vpop.f32.mrb[0].mxu0
        %5147 = vmatprep.mubr.f32.mxu0 0.0
        %5148 = vmatmul.mubr.f32.gmra.mrb[0].mxu0 %v5050
        %v5149 = vpop.f32.mrb[0].mxu0
        %v5150 = vadd.f32 0.0, %v5149
        %v5151 = vpop.f32.mrb[0].mxu0
        %5152 = vmatprep.mubr.f32.mxu0 0.0
        %5153 = vmatmul.mubr.f32.gmra.mrb[0].mxu0 %v5053
        %v5154 = vpop.f32.mrb[0].mxu0
        %v5155 = vadd.f32 0.0, %v5154
        %v5156 = vpop.f32.mrb[0].mxu0
        %5157 = vmatprep.mubr.f32.mxu0 0.0
        %5158 = vmatmul.mubr.f32.gmra.mrb[0].mxu0 %v5056
        %v5159 = vpop.f32.mrb[0].mxu0
        %v5160 = vadd.f32 0.0, %v5159
        %v5161 = vpop.f32.mrb[0].mxu0
        %5162 = vmatprep.mubr.f32.mxu0 0.0
        %5163 = vmatmul.mubr.f32.gmra.mrb[0].mxu0 %v5059
        %v5164 = vpop.f32.mrb[0].mxu0
        %v5165 = vadd.f32 0.0, %v5164
        %v5166 = vpop.f32.mrb[0].mxu0
        %5167 = vdwg.mxu0
        %v5169 = vsel %vm4334, %v5130, 0
        %v5172 = vsel %vm4334, %v5135, 0
        %v5175 = vsel %vm4334, %v5140, 0
        %v5178 = vsel %vm4334, %v5145, 0
        %v5181 = vsel %vm4334, %v5150, 0
        %v5184 = vsel %vm4334, %v5155, 0
        %v5187 = vsel %vm4334, %v5160, 0
        %v5190 = vsel %vm4334, %v5165, 0
        %5192 = vmatprep.subr.mxu0 0.0
        %5193 = vmatpush1.msra.mxu0 %v4307
        %5194 = vmatprep.subr.mxu0 0.0
        %5195 = vmatpush1.msra.mxu0 0.0
        %5196 = vmatprep.subr.mxu0 0.0
        %5197 = vmatpush1.msra.mxu0 0.0
        %5198 = vmatprep.subr.mxu0 0.0
        %5199 = vmatpush1.msra.mxu0 0.0
        %5200 = vmatprep.subr.mxu0 0.0
        %5201 = vmatpush1.msra.mxu0 0.0
        %5202 = vmatprep.subr.mxu0 0.0
        %5203 = vmatpush1.msra.mxu0 0.0
        %5204 = vmatprep.subr.mxu0 0.0
        %5205 = vmatpush1.msra.mxu0 0.0
        %5206 = vmatprep.subr.mxu0 0.0
        %5207 = vmatpush1.msra.mxu0 0.0
        %5208 = vmatprep.subr.mxu0 0.0
        %5209 = vmatpush1.msra.mxu0 0.0
        %5210 = vmatprep.subr.mxu0 0.0
        %5211 = vmatpush1.msra.mxu0 0.0
        %5212 = vmatprep.subr.mxu0 0.0
        %5213 = vmatpush1.msra.mxu0 0.0
        %5214 = vmatprep.subr.mxu0 0.0
        %5215 = vmatpush1.msra.mxu0 0.0
        %5216 = vmatprep.subr.mxu0 0.0
        %5217 = vmatpush1.msra.mxu0 0.0
        %5218 = vmatprep.subr.mxu0 0.0
        %5219 = vmatpush1.msra.mxu0 0.0
        %5220 = vmatprep.subr.mxu0 0.0
        %5221 = vmatpush1.msra.mxu0 0.0
        %5222 = vmatprep.subr.mxu0 0.0
        %5223 = vmatpush1.msra.mxu0 0.0
        %5224 = vmatprep.subr.mxu0 0.0
        %5225 = vmatpush1.msra.mxu0 0.0
        %5226 = vmatprep.subr.mxu0 0.0
        %5227 = vmatpush1.msra.mxu0 0.0
        %5228 = vmatprep.subr.mxu0 0.0
        %5229 = vmatpush1.msra.mxu0 0.0
        %5230 = vmatprep.subr.mxu0 0.0
        %5231 = vmatpush1.msra.mxu0 0.0
        %5232 = vmatprep.subr.mxu0 0.0
        %5233 = vmatpush1.msra.mxu0 0.0
        %5234 = vmatprep.subr.mxu0 0.0
        %5235 = vmatpush1.msra.mxu0 0.0
        %5236 = vmatprep.subr.mxu0 0.0
        %5237 = vmatpush1.msra.mxu0 0.0
        %5238 = vmatprep.subr.mxu0 0.0
        %5239 = vmatpush1.msra.mxu0 0.0
        %5240 = vmatprep.subr.mxu0 0.0
        %5241 = vmatpush1.msra.mxu0 0.0
        %5242 = vmatprep.subr.mxu0 0.0
        %5243 = vmatpush1.msra.mxu0 0.0
        %5244 = vmatprep.subr.mxu0 0.0
        %5245 = vmatpush1.msra.mxu0 0.0
        %5246 = vmatprep.subr.mxu0 0.0
        %5247 = vmatpush1.msra.mxu0 0.0
        %5248 = vmatprep.subr.mxu0 0.0
        %5249 = vmatpush1.msra.mxu0 0.0
        %5250 = vmatprep.subr.mxu0 0.0
        %5251 = vmatpush1.msra.mxu0 0.0
        %5252 = vmatprep.subr.mxu0 0.0
        %5253 = vmatpush1.msra.mxu0 0.0
        %5254 = vmatprep.subr.mxu0 0.0
        %5255 = vmatpush1.msra.mxu0 0.0
        %5256 = vmatprep.mubr.f32.mxu0 0.0
        %5257 = vmatmul.mubr.f32.gmra.mrb[0].mxu0 %v5169
        %v5258 = vpop.f32.mrb[0].mxu0
        %v5259 = vadd.f32 0.0, %v5258
        %v5260 = vpop.f32.mrb[0].mxu0
        %5261 = vmatprep.mubr.f32.mxu0 0.0
        %5262 = vmatmul.mubr.f32.gmra.mrb[0].mxu0 %v5172
        %v5263 = vpop.f32.mrb[0].mxu0
        %v5264 = vadd.f32 0.0, %v5263
        %v5265 = vpop.f32.mrb[0].mxu0
        %5266 = vmatprep.mubr.f32.mxu0 0.0
        %5267 = vmatmul.mubr.f32.gmra.mrb[0].mxu0 %v5175
        %v5268 = vpop.f32.mrb[0].mxu0
        %v5269 = vadd.f32 0.0, %v5268
        %v5270 = vpop.f32.mrb[0].mxu0
        %5271 = vmatprep.mubr.f32.mxu0 0.0
        %5272 = vmatmul.mubr.f32.gmra.mrb[0].mxu0 %v5178
        %v5273 = vpop.f32.mrb[0].mxu0
        %v5274 = vadd.f32 0.0, %v5273
        %v5275 = vpop.f32.mrb[0].mxu0
        %5276 = vmatprep.mubr.f32.mxu0 0.0
        %5277 = vmatmul.mubr.f32.gmra.mrb[0].mxu0 %v5181
        %v5278 = vpop.f32.mrb[0].mxu0
        %v5279 = vadd.f32 0.0, %v5278
        %v5280 = vpop.f32.mrb[0].mxu0
        %5281 = vmatprep.mubr.f32.mxu0 0.0
        %5282 = vmatmul.mubr.f32.gmra.mrb[0].mxu0 %v5184
        %v5283 = vpop.f32.mrb[0].mxu0
        %v5284 = vadd.f32 0.0, %v5283
        %v5285 = vpop.f32.mrb[0].mxu0
        %5286 = vmatprep.mubr.f32.mxu0 0.0
        %5287 = vmatmul.mubr.f32.gmra.mrb[0].mxu0 %v5187
        %v5288 = vpop.f32.mrb[0].mxu0
        %v5289 = vadd.f32 0.0, %v5288
        %v5290 = vpop.f32.mrb[0].mxu0
        %5291 = vmatprep.mubr.f32.mxu0 0.0
        %5292 = vmatmul.mubr.f32.gmra.mrb[0].mxu0 %v5190
        %v5293 = vpop.f32.mrb[0].mxu0
        %v5294 = vadd.f32 0.0, %v5293
        %v5295 = vpop.f32.mrb[0].mxu0
        %5296 = vdwg.mxu0
        %v5298 = vsel %vm4334, %v4703, 0
        %v5301 = vsel %vm4334, %v4708, 0
        %v5304 = vsel %vm4334, %v4713, 0
        %v5307 = vsel %vm4334, %v4718, 0
        %v5310 = vsel %vm4334, %v4723, 0
        %v5313 = vsel %vm4334, %v4728, 0
        %v5316 = vsel %vm4334, %v4733, 0
        %v5319 = vsel %vm4334, %v4738, 0
        %5321 = vmatprep.subr.mxu0 0.0
        %5322 = vmatpush1.msra.mxu0 %v4306
        %5323 = vmatprep.subr.mxu0 0.0
        %5324 = vmatpush1.msra.mxu0 0.0
        %5325 = vmatprep.subr.mxu0 0.0
        %5326 = vmatpush1.msra.mxu0 0.0
        %5327 = vmatprep.subr.mxu0 0.0
        %5328 = vmatpush1.msra.mxu0 0.0
        %5329 = vmatprep.subr.mxu0 0.0
        %5330 = vmatpush1.msra.mxu0 0.0
        %5331 = vmatprep.subr.mxu0 0.0
        %5332 = vmatpush1.msra.mxu0 0.0
        %5333 = vmatprep.subr.mxu0 0.0
        %5334 = vmatpush1.msra.mxu0 0.0
        %5335 = vmatprep.subr.mxu0 0.0
        %5336 = vmatpush1.msra.mxu0 0.0
        %5337 = vmatprep.subr.mxu0 0.0
        %5338 = vmatpush1.msra.mxu0 0.0
        %5339 = vmatprep.subr.mxu0 0.0
        %5340 = vmatpush1.msra.mxu0 0.0
        %5341 = vmatprep.subr.mxu0 0.0
        %5342 = vmatpush1.msra.mxu0 0.0
        %5343 = vmatprep.subr.mxu0 0.0
        %5344 = vmatpush1.msra.mxu0 0.0
        %5345 = vmatprep.subr.mxu0 0.0
        %5346 = vmatpush1.msra.mxu0 0.0
        %5347 = vmatprep.subr.mxu0 0.0
        %5348 = vmatpush1.msra.mxu0 0.0
        %5349 = vmatprep.subr.mxu0 0.0
        %5350 = vmatpush1.msra.mxu0 0.0
        %5351 = vmatprep.subr.mxu0 0.0
        %5352 = vmatpush1.msra.mxu0 0.0
        %5353 = vmatprep.subr.mxu0 0.0
        %5354 = vmatpush1.msra.mxu0 0.0
        %5355 = vmatprep.subr.mxu0 0.0
        %5356 = vmatpush1.msra.mxu0 0.0
        %5357 = vmatprep.subr.mxu0 0.0
        %5358 = vmatpush1.msra.mxu0 0.0
        %5359 = vmatprep.subr.mxu0 0.0
        %5360 = vmatpush1.msra.mxu0 0.0
        %5361 = vmatprep.subr.mxu0 0.0
        %5362 = vmatpush1.msra.mxu0 0.0
        %5363 = vmatprep.subr.mxu0 0.0
        %5364 = vmatpush1.msra.mxu0 0.0
        %5365 = vmatprep.subr.mxu0 0.0
        %5366 = vmatpush1.msra.mxu0 0.0
        %5367 = vmatprep.subr.mxu0 0.0
        %5368 = vmatpush1.msra.mxu0 0.0
        %5369 = vmatprep.subr.mxu0 0.0
        %5370 = vmatpush1.msra.mxu0 0.0
        %5371 = vmatprep.subr.mxu0 0.0
        %5372 = vmatpush1.msra.mxu0 0.0
        %5373 = vmatprep.subr.mxu0 0.0
        %5374 = vmatpush1.msra.mxu0 0.0
        %5375 = vmatprep.subr.mxu0 0.0
        %5376 = vmatpush1.msra.mxu0 0.0
        %5377 = vmatprep.subr.mxu0 0.0
        %5378 = vmatpush1.msra.mxu0 0.0
        %5379 = vmatprep.subr.mxu0 0.0
        %5380 = vmatpush1.msra.mxu0 0.0
        %5381 = vmatprep.subr.mxu0 0.0
        %5382 = vmatpush1.msra.mxu0 0.0
        %5383 = vmatprep.subr.mxu0 0.0
        %5384 = vmatpush1.msra.mxu0 0.0
        %5385 = vmatprep.mubr.f32.mxu0 0.0
        %5386 = vmatmul.mubr.f32.gmra.mrb[0].mxu0 %v5298
        %v5387 = vpop.f32.mrb[0].mxu0
        %v5388 = vadd.f32 %v5259, %v5387
        %v5389 = vpop.f32.mrb[0].mxu0
        %5390 = vmatprep.mubr.f32.mxu0 0.0
        %5391 = vmatmul.mubr.f32.gmra.mrb[0].mxu0 %v5301
        %v5392 = vpop.f32.mrb[0].mxu0
        %v5393 = vadd.f32 %v5264, %v5392
        %v5394 = vpop.f32.mrb[0].mxu0
        %5395 = vmatprep.mubr.f32.mxu0 0.0
        %5396 = vmatmul.mubr.f32.gmra.mrb[0].mxu0 %v5304
        %v5397 = vpop.f32.mrb[0].mxu0
        %v5398 = vadd.f32 %v5269, %v5397
        %v5399 = vpop.f32.mrb[0].mxu0
        %5400 = vmatprep.mubr.f32.mxu0 0.0
        %5401 = vmatmul.mubr.f32.gmra.mrb[0].mxu0 %v5307
        %v5402 = vpop.f32.mrb[0].mxu0
        %v5403 = vadd.f32 %v5274, %v5402
        %v5404 = vpop.f32.mrb[0].mxu0
        %5405 = vmatprep.mubr.f32.mxu0 0.0
        %5406 = vmatmul.mubr.f32.gmra.mrb[0].mxu0 %v5310
        %v5407 = vpop.f32.mrb[0].mxu0
        %v5408 = vadd.f32 %v5279, %v5407
        %v5409 = vpop.f32.mrb[0].mxu0
        %5410 = vmatprep.mubr.f32.mxu0 0.0
        %5411 = vmatmul.mubr.f32.gmra.mrb[0].mxu0 %v5313
        %v5412 = vpop.f32.mrb[0].mxu0
        %v5413 = vadd.f32 %v5284, %v5412
        %v5414 = vpop.f32.mrb[0].mxu0
        %5415 = vmatprep.mubr.f32.mxu0 0.0
        %5416 = vmatmul.mubr.f32.gmra.mrb[0].mxu0 %v5316
        %v5417 = vpop.f32.mrb[0].mxu0
        %v5418 = vadd.f32 %v5289, %v5417
        %v5419 = vpop.f32.mrb[0].mxu0
        %5420 = vmatprep.mubr.f32.mxu0 0.0
        %5421 = vmatmul.mubr.f32.gmra.mrb[0].mxu0 %v5319
        %v5422 = vpop.f32.mrb[0].mxu0
        %v5423 = vadd.f32 %v5294, %v5422
        %v5424 = vpop.f32.mrb[0].mxu0
        %5425 = vdwg.mxu0
        %5426 = vrot.lane.b32.xlu0 %v4268, 112
        %v5427 = vpop.permute.xlu0 %5426
        %5428 = vrot.lane.b32.xlu0 %v4273, 112
        %v5429 = vpop.permute.xlu0 %5428
        %5430 = vrot.lane.b32.xlu0 %v4278, 112
        %v5431 = vpop.permute.xlu0 %5430
        %5432 = vrot.lane.b32.xlu0 %v4283, 112
        %v5433 = vpop.permute.xlu0 %5432
        %5434 = vrot.lane.b32.xlu0 %v4288, 112
        %v5435 = vpop.permute.xlu0 %5434
        %5436 = vrot.lane.b32.xlu0 %v4293, 112
        %v5437 = vpop.permute.xlu0 %5436
        %5438 = vrot.lane.b32.xlu0 %v4298, 112
        %v5439 = vpop.permute.xlu0 %5438
        %5440 = vrot.lane.b32.xlu0 %v4303, 112
        %v5441 = vpop.permute.xlu0 %5440
        %5442 = vrot.lane.b32.xlu0 %v4268, 80
        %v5443 = vpop.permute.xlu0 %5442
        %5444 = vrot.lane.b32.xlu0 %v4273, 80
        %v5445 = vpop.permute.xlu0 %5444
        %5446 = vrot.lane.b32.xlu0 %v4278, 80
        %v5447 = vpop.permute.xlu0 %5446
        %5448 = vrot.lane.b32.xlu0 %v4283, 80
        %v5449 = vpop.permute.xlu0 %5448
        %5450 = vrot.lane.b32.xlu0 %v4288, 80
        %v5451 = vpop.permute.xlu0 %5450
        %5452 = vrot.lane.b32.xlu0 %v4293, 80
        %v5453 = vpop.permute.xlu0 %5452
        %5454 = vrot.lane.b32.xlu0 %v4298, 80
        %v5455 = vpop.permute.xlu0 %5454
        %5456 = vrot.lane.b32.xlu0 %v4303, 80
        %v5457 = vpop.permute.xlu0 %5456
        %v5458 = vsel %vm4334, %v5427, 0
        %v5460 = vsel %vm4334, %v5429, 0
        %v5462 = vsel %vm4334, %v5431, 0
        %v5464 = vsel %vm4334, %v5433, 0
        %v5466 = vsel %vm4334, %v5435, 0
        %v5468 = vsel %vm4334, %v5437, 0
        %v5470 = vsel %vm4334, %v5439, 0
        %v5472 = vsel %vm4334, %v5441, 0
        %v5474 = vsel %vm4334, %v5443, 0
        %v5476 = vsel %vm4334, %v5445, 0
        %v5478 = vsel %vm4334, %v5447, 0
        %v5480 = vsel %vm4334, %v5449, 0
        %v5482 = vsel %vm4334, %v5451, 0
        %v5484 = vsel %vm4334, %v5453, 0
        %v5486 = vsel %vm4334, %v5455, 0
        %v5488 = vsel %vm4334, %v5457, 0
        %5490 = vmatprep.subr.mxu0 0.0
        %5491 = vmatpush1.xpose.msra.mxu0 %v5474
        %5492 = vmatprep.subr.mxu0 0.0
        %5493 = vmatpush1.xpose.msra.mxu0 %v5476
        %5494 = vmatprep.subr.mxu0 0.0
        %5495 = vmatpush1.xpose.msra.mxu0 %v5478
        %5496 = vmatprep.subr.mxu0 0.0
        %5497 = vmatpush1.xpose.msra.mxu0 %v5480
        %5498 = vmatprep.subr.mxu0 0.0
        %5499 = vmatpush1.xpose.msra.mxu0 %v5482
        %5500 = vmatprep.subr.mxu0 0.0
        %5501 = vmatpush1.xpose.msra.mxu0 %v5484
        %5502 = vmatprep.subr.mxu0 0.0
        %5503 = vmatpush1.xpose.msra.mxu0 %v5486
        %5504 = vmatprep.subr.mxu0 0.0
        %5505 = vmatpush1.xpose.msra.mxu0 %v5488
        %5506 = vmatprep.subr.mxu0 0.0
        %5507 = vmatpush1.xpose.msra.mxu0 0.0
        %5508 = vmatprep.subr.mxu0 0.0
        %5509 = vmatpush1.xpose.msra.mxu0 0.0
        %5510 = vmatprep.subr.mxu0 0.0
        %5511 = vmatpush1.xpose.msra.mxu0 0.0
        %5512 = vmatprep.subr.mxu0 0.0
        %5513 = vmatpush1.xpose.msra.mxu0 0.0
        %5514 = vmatprep.subr.mxu0 0.0
        %5515 = vmatpush1.xpose.msra.mxu0 0.0
        %5516 = vmatprep.subr.mxu0 0.0
        %5517 = vmatpush1.xpose.msra.mxu0 0.0
        %5518 = vmatprep.subr.mxu0 0.0
        %5519 = vmatpush1.xpose.msra.mxu0 0.0
        %5520 = vmatprep.subr.mxu0 0.0
        %5521 = vmatpush1.xpose.msra.mxu0 0.0
        %5522 = vmatprep.subr.mxu0 0.0
        %5523 = vmatpush1.xpose.msra.mxu0 0.0
        %5524 = vmatprep.subr.mxu0 0.0
        %5525 = vmatpush1.xpose.msra.mxu0 0.0
        %5526 = vmatprep.subr.mxu0 0.0
        %5527 = vmatpush1.xpose.msra.mxu0 0.0
        %5528 = vmatprep.subr.mxu0 0.0
        %5529 = vmatpush1.xpose.msra.mxu0 0.0
        %5530 = vmatprep.subr.mxu0 0.0
        %5531 = vmatpush1.xpose.msra.mxu0 0.0
        %5532 = vmatprep.subr.mxu0 0.0
        %5533 = vmatpush1.xpose.msra.mxu0 0.0
        %5534 = vmatprep.subr.mxu0 0.0
        %5535 = vmatpush1.xpose.msra.mxu0 0.0
        %5536 = vmatprep.subr.mxu0 0.0
        %5537 = vmatpush1.xpose.msra.mxu0 0.0
        %5538 = vmatprep.subr.mxu0 0.0
        %5539 = vmatpush1.xpose.msra.mxu0 0.0
        %5540 = vmatprep.subr.mxu0 0.0
        %5541 = vmatpush1.xpose.msra.mxu0 0.0
        %5542 = vmatprep.subr.mxu0 0.0
        %5543 = vmatpush1.xpose.msra.mxu0 0.0
        %5544 = vmatprep.subr.mxu0 0.0
        %5545 = vmatpush1.xpose.msra.mxu0 0.0
        %5546 = vmatprep.subr.mxu0 0.0
        %5547 = vmatpush1.xpose.msra.mxu0 0.0
        %5548 = vmatprep.subr.mxu0 0.0
        %5549 = vmatpush1.xpose.msra.mxu0 0.0
        %5550 = vmatprep.subr.mxu0 0.0
        %5551 = vmatpush1.xpose.msra.mxu0 0.0
        %5552 = vmatprep.subr.mxu0 0.0
        %5553 = vmatpush1.xpose.msra.mxu0 0.0
        %5554 = vmatprep.mubr.f32.mxu0 0.0
        %5555 = vmatmul.mubr.f32.gmra.mrb[0].mxu0 %v5458
        %v5556 = vpop.f32.mrb[0].mxu0
        %v5557 = vadd.f32 0.0, %v5556
        %v5558 = vpop.f32.mrb[0].mxu0
        %5559 = vmatprep.mubr.f32.mxu0 0.0
        %5560 = vmatmul.mubr.f32.gmra.mrb[0].mxu0 %v5460
        %v5561 = vpop.f32.mrb[0].mxu0
        %v5562 = vadd.f32 0.0, %v5561
        %v5563 = vpop.f32.mrb[0].mxu0
        %5564 = vmatprep.mubr.f32.mxu0 0.0
        %5565 = vmatmul.mubr.f32.gmra.mrb[0].mxu0 %v5462
        %v5566 = vpop.f32.mrb[0].mxu0
        %v5567 = vadd.f32 0.0, %v5566
        %v5568 = vpop.f32.mrb[0].mxu0
        %5569 = vmatprep.mubr.f32.mxu0 0.0
        %5570 = vmatmul.mubr.f32.gmra.mrb[0].mxu0 %v5464
        %v5571 = vpop.f32.mrb[0].mxu0
        %v5572 = vadd.f32 0.0, %v5571
        %v5573 = vpop.f32.mrb[0].mxu0
        %5574 = vmatprep.mubr.f32.mxu0 0.0
        %5575 = vmatmul.mubr.f32.gmra.mrb[0].mxu0 %v5466
        %v5576 = vpop.f32.mrb[0].mxu0
        %v5577 = vadd.f32 0.0, %v5576
        %v5578 = vpop.f32.mrb[0].mxu0
        %5579 = vmatprep.mubr.f32.mxu0 0.0
        %5580 = vmatmul.mubr.f32.gmra.mrb[0].mxu0 %v5468
        %v5581 = vpop.f32.mrb[0].mxu0
        %v5582 = vadd.f32 0.0, %v5581
        %v5583 = vpop.f32.mrb[0].mxu0
        %5584 = vmatprep.mubr.f32.mxu0 0.0
        %5585 = vmatmul.mubr.f32.gmra.mrb[0].mxu0 %v5470
        %v5586 = vpop.f32.mrb[0].mxu0
        %v5587 = vadd.f32 0.0, %v5586
        %v5588 = vpop.f32.mrb[0].mxu0
        %5589 = vmatprep.mubr.f32.mxu0 0.0
        %5590 = vmatmul.mubr.f32.gmra.mrb[0].mxu0 %v5472
        %v5591 = vpop.f32.mrb[0].mxu0
        %v5592 = vadd.f32 0.0, %v5591
        %v5593 = vpop.f32.mrb[0].mxu0
        %5594 = vdwg.mxu0
        %v5595 = vmul.f32 %v5557, 0.35355338
        %v5596 = vmul.f32 %v5562, 0.35355338
        %v5597 = vmul.f32 %v5567, 0.35355338
        %v5598 = vmul.f32 %v5572, 0.35355338
        %v5599 = vmul.f32 %v5577, 0.35355338
        %v5600 = vmul.f32 %v5582, 0.35355338
        %v5601 = vmul.f32 %v5587, 0.35355338
        %v5602 = vmul.f32 %v5592, 0.35355338
        %v5603 = vadd.f32 %v5595, %v4480
        %v5604 = vadd.f32 %v5596, %v4481
        %v5605 = vadd.f32 %v5597, %v4482
        %v5606 = vadd.f32 %v5598, %v4483
        %v5607 = vadd.f32 %v5599, %v4484
        %v5608 = vadd.f32 %v5600, %v4485
        %v5609 = vadd.f32 %v5601, %v4486
        %v5610 = vadd.f32 %v5602, %v4487
        %v5611 = vsel %vm4496, %v5603, -inf
        %5612 = vmax.xlane.f32.xlu0 %v5611
        %v5613 = vpop.xlane.xlu0 %5612
        %v5614 = vsel %vm4496, %v5604, -inf
        %5615 = vmax.xlane.f32.xlu0 %v5614
        %v5616 = vpop.xlane.xlu0 %5615
        %v5617 = vsel %vm4496, %v5605, -inf
        %5618 = vmax.xlane.f32.xlu0 %v5617
        %v5619 = vpop.xlane.xlu0 %5618
        %v5620 = vsel %vm4496, %v5606, -inf
        %5621 = vmax.xlane.f32.xlu0 %v5620
        %v5622 = vpop.xlane.xlu0 %5621
        %v5623 = vsel %vm4496, %v5607, -inf
        %5624 = vmax.xlane.f32.xlu0 %v5623
        %v5625 = vpop.xlane.xlu0 %5624
        %v5626 = vsel %vm4496, %v5608, -inf
        %5627 = vmax.xlane.f32.xlu0 %v5626
        %v5628 = vpop.xlane.xlu0 %5627
        %v5629 = vsel %vm4496, %v5609, -inf
        %5630 = vmax.xlane.f32.xlu0 %v5629
        %v5631 = vpop.xlane.xlu0 %5630
        %v5632 = vsel %vm4518, %v5610, -inf
        %5633 = vmax.xlane.f32.xlu0 %v5632
        %v5634 = vpop.xlane.xlu0 %5633
        %v5635 = vsub.f32 %v5603, %v5613
        %v5636 = vsub.f32 %v5604, %v5616
        %v5637 = vsub.f32 %v5605, %v5619
        %v5638 = vsub.f32 %v5606, %v5622
        %v5639 = vsub.f32 %v5607, %v5625
        %v5640 = vsub.f32 %v5608, %v5628
        %v5641 = vsub.f32 %v5609, %v5631
        %v5642 = vsub.f32 %v5610, %v5634
        %v5643 = vmul.f32 %v5635, 1.442695
        %v5644 = vpow.pop %v5643
        %v5645 = vmul.f32 %v5636, 1.442695
        %v5646 = vpow.pop %v5645
        %v5647 = vmul.f32 %v5637, 1.442695
        %v5648 = vpow.pop %v5647
        %v5649 = vmul.f32 %v5638, 1.442695
        %v5650 = vpow.pop %v5649
        %v5651 = vmul.f32 %v5639, 1.442695
        %v5652 = vpow.pop %v5651
        %v5653 = vmul.f32 %v5640, 1.442695
        %v5654 = vpow.pop %v5653
        %v5655 = vmul.f32 %v5641, 1.442695
        %v5656 = vpow.pop %v5655
        %v5657 = vmul.f32 %v5642, 1.442695
        %v5658 = vpow.pop %v5657
        %v5659 = vsel %vm4496, %v5644, 0.0
        %5660 = vadd.xlane.f32.xlu0 %v5659
        %v5661 = vpop.xlane.xlu0 %5660
        %v5662 = vsel %vm4496, %v5646, 0.0
        %5663 = vadd.xlane.f32.xlu0 %v5662
        %v5664 = vpop.xlane.xlu0 %5663
        %v5665 = vsel %vm4496, %v5648, 0.0
        %5666 = vadd.xlane.f32.xlu0 %v5665
        %v5667 = vpop.xlane.xlu0 %5666
        %v5668 = vsel %vm4496, %v5650, 0.0
        %5669 = vadd.xlane.f32.xlu0 %v5668
        %v5670 = vpop.xlane.xlu0 %5669
        %v5671 = vsel %vm4496, %v5652, 0.0
        %5672 = vadd.xlane.f32.xlu0 %v5671
        %v5673 = vpop.xlane.xlu0 %5672
        %v5674 = vsel %vm4496, %v5654, 0.0
        %5675 = vadd.xlane.f32.xlu0 %v5674
        %v5676 = vpop.xlane.xlu0 %5675
        %v5677 = vsel %vm4496, %v5656, 0.0
        %5678 = vadd.xlane.f32.xlu0 %v5677
        %v5679 = vpop.xlane.xlu0 %5678
        %v5680 = vsel %vm4518, %v5658, 0.0
        %5681 = vadd.xlane.f32.xlu0 %v5680
        %v5682 = vpop.xlane.xlu0 %5681
        %v5683 = vrcp.pop %v5661
        %v5684 = vrcp.pop %v5664
        %v5685 = vrcp.pop %v5667
        %v5686 = vrcp.pop %v5670
        %v5687 = vrcp.pop %v5673
        %v5688 = vrcp.pop %v5676
        %v5689 = vrcp.pop %v5679
        %v5690 = vrcp.pop %v5682
        %v5691 = vmul.f32 %v5644, %v5683
        %v5692 = vmul.f32 %v5646, %v5684
        %v5693 = vmul.f32 %v5648, %v5685
        %v5694 = vmul.f32 %v5650, %v5686
        %v5695 = vmul.f32 %v5652, %v5687
        %v5696 = vmul.f32 %v5654, %v5688
        %v5697 = vmul.f32 %v5656, %v5689
        %v5698 = vmul.f32 %v5658, %v5690
        %5699 = vrot.lane.b32.xlu0 %v4268, 48
        %v5700 = vpop.permute.xlu0 %5699
        %5701 = vrot.lane.b32.xlu0 %v4273, 48
        %v5702 = vpop.permute.xlu0 %5701
        %5703 = vrot.lane.b32.xlu0 %v4278, 48
        %v5704 = vpop.permute.xlu0 %5703
        %5705 = vrot.lane.b32.xlu0 %v4283, 48
        %v5706 = vpop.permute.xlu0 %5705
        %5707 = vrot.lane.b32.xlu0 %v4288, 48
        %v5708 = vpop.permute.xlu0 %5707
        %5709 = vrot.lane.b32.xlu0 %v4293, 48
        %v5710 = vpop.permute.xlu0 %5709
        %5711 = vrot.lane.b32.xlu0 %v4298, 48
        %v5712 = vpop.permute.xlu0 %5711
        %5713 = vrot.lane.b32.xlu0 %v4303, 48
        %v5714 = vpop.permute.xlu0 %5713
        %v5723 = vsel %vm4496, %v5691, 0
        %v5726 = vsel %vm4496, %v5692, 0
        %v5729 = vsel %vm4496, %v5693, 0
        %v5732 = vsel %vm4496, %v5694, 0
        %v5735 = vsel %vm4496, %v5695, 0
        %v5738 = vsel %vm4496, %v5696, 0
        %v5741 = vsel %vm4496, %v5697, 0
        %v5744 = vsel %vm4496, %v5698, 0
        %v5746 = vsel %vm4633, %v5714, 0
        %5748 = vmatprep.subr.mxu0 0.0
        %5749 = vmatpush1.msra.mxu0 %v5700
        %5750 = vmatprep.subr.mxu0 0.0
        %5751 = vmatpush1.msra.mxu0 %v5702
        %5752 = vmatprep.subr.mxu0 0.0
        %5753 = vmatpush1.msra.mxu0 %v5704
        %5754 = vmatprep.subr.mxu0 0.0
        %5755 = vmatpush1.msra.mxu0 %v5706
        %5756 = vmatprep.subr.mxu0 0.0
        %5757 = vmatpush1.msra.mxu0 %v5708
        %5758 = vmatprep.subr.mxu0 0.0
        %5759 = vmatpush1.msra.mxu0 %v5710
        %5760 = vmatprep.subr.mxu0 0.0
        %5761 = vmatpush1.msra.mxu0 %v5712
        %5762 = vmatprep.subr.mxu0 0.0
        %5763 = vmatpush1.msra.mxu0 %v5746
        %5764 = vmatprep.subr.mxu0 0.0
        %5765 = vmatpush1.msra.mxu0 0.0
        %5766 = vmatprep.subr.mxu0 0.0
        %5767 = vmatpush1.msra.mxu0 0.0
        %5768 = vmatprep.subr.mxu0 0.0
        %5769 = vmatpush1.msra.mxu0 0.0
        %5770 = vmatprep.subr.mxu0 0.0
        %5771 = vmatpush1.msra.mxu0 0.0
        %5772 = vmatprep.subr.mxu0 0.0
        %5773 = vmatpush1.msra.mxu0 0.0
        %5774 = vmatprep.subr.mxu0 0.0
        %5775 = vmatpush1.msra.mxu0 0.0
        %5776 = vmatprep.subr.mxu0 0.0
        %5777 = vmatpush1.msra.mxu0 0.0
        %5778 = vmatprep.subr.mxu0 0.0
        %5779 = vmatpush1.msra.mxu0 0.0
        %5780 = vmatprep.subr.mxu0 0.0
        %5781 = vmatpush1.msra.mxu0 0.0
        %5782 = vmatprep.subr.mxu0 0.0
        %5783 = vmatpush1.msra.mxu0 0.0
        %5784 = vmatprep.subr.mxu0 0.0
        %5785 = vmatpush1.msra.mxu0 0.0
        %5786 = vmatprep.subr.mxu0 0.0
        %5787 = vmatpush1.msra.mxu0 0.0
        %5788 = vmatprep.subr.mxu0 0.0
        %5789 = vmatpush1.msra.mxu0 0.0
        %5790 = vmatprep.subr.mxu0 0.0
        %5791 = vmatpush1.msra.mxu0 0.0
        %5792 = vmatprep.subr.mxu0 0.0
        %5793 = vmatpush1.msra.mxu0 0.0
        %5794 = vmatprep.subr.mxu0 0.0
        %5795 = vmatpush1.msra.mxu0 0.0
        %5796 = vmatprep.subr.mxu0 0.0
        %5797 = vmatpush1.msra.mxu0 0.0
        %5798 = vmatprep.subr.mxu0 0.0
        %5799 = vmatpush1.msra.mxu0 0.0
        %5800 = vmatprep.subr.mxu0 0.0
        %5801 = vmatpush1.msra.mxu0 0.0
        %5802 = vmatprep.subr.mxu0 0.0
        %5803 = vmatpush1.msra.mxu0 0.0
        %5804 = vmatprep.subr.mxu0 0.0
        %5805 = vmatpush1.msra.mxu0 0.0
        %5806 = vmatprep.subr.mxu0 0.0
        %5807 = vmatpush1.msra.mxu0 0.0
        %5808 = vmatprep.subr.mxu0 0.0
        %5809 = vmatpush1.msra.mxu0 0.0
        %5810 = vmatprep.subr.mxu0 0.0
        %5811 = vmatpush1.msra.mxu0 0.0
        %5812 = vmatprep.mubr.f32.mxu0 0.0
        %5813 = vmatmul.mubr.f32.gmra.mrb[0].mxu0 %v5723
        %v5814 = vpop.f32.mrb[0].mxu0
        %v5815 = vadd.f32 0.0, %v5814
        %v5816 = vpop.f32.mrb[0].mxu0
        %5817 = vmatprep.mubr.f32.mxu0 0.0
        %5818 = vmatmul.mubr.f32.gmra.mrb[0].mxu0 %v5726
        %v5819 = vpop.f32.mrb[0].mxu0
        %v5820 = vadd.f32 0.0, %v5819
        %v5821 = vpop.f32.mrb[0].mxu0
        %5822 = vmatprep.mubr.f32.mxu0 0.0
        %5823 = vmatmul.mubr.f32.gmra.mrb[0].mxu0 %v5729
        %v5824 = vpop.f32.mrb[0].mxu0
        %v5825 = vadd.f32 0.0, %v5824
        %v5826 = vpop.f32.mrb[0].mxu0
        %5827 = vmatprep.mubr.f32.mxu0 0.0
        %5828 = vmatmul.mubr.f32.gmra.mrb[0].mxu0 %v5732
        %v5829 = vpop.f32.mrb[0].mxu0
        %v5830 = vadd.f32 0.0, %v5829
        %v5831 = vpop.f32.mrb[0].mxu0
        %5832 = vmatprep.mubr.f32.mxu0 0.0
        %5833 = vmatmul.mubr.f32.gmra.mrb[0].mxu0 %v5735
        %v5834 = vpop.f32.mrb[0].mxu0
        %v5835 = vadd.f32 0.0, %v5834
        %v5836 = vpop.f32.mrb[0].mxu0
        %5837 = vmatprep.mubr.f32.mxu0 0.0
        %5838 = vmatmul.mubr.f32.gmra.mrb[0].mxu0 %v5738
        %v5839 = vpop.f32.mrb[0].mxu0
        %v5840 = vadd.f32 0.0, %v5839
        %v5841 = vpop.f32.mrb[0].mxu0
        %5842 = vmatprep.mubr.f32.mxu0 0.0
        %5843 = vmatmul.mubr.f32.gmra.mrb[0].mxu0 %v5741
        %v5844 = vpop.f32.mrb[0].mxu0
        %v5845 = vadd.f32 0.0, %v5844
        %v5846 = vpop.f32.mrb[0].mxu0
        %5847 = vmatprep.mubr.f32.mxu0 0.0
        %5848 = vmatmul.mubr.f32.gmra.mrb[0].mxu0 %v5744
        %v5849 = vpop.f32.mrb[0].mxu0
        %v5850 = vadd.f32 0.0, %v5849
        %v5851 = vpop.f32.mrb[0].mxu0
        %5852 = vdwg.mxu0
        %v5854 = vsel %vm4334, %v5815, 0
        %v5857 = vsel %vm4334, %v5820, 0
        %v5860 = vsel %vm4334, %v5825, 0
        %v5863 = vsel %vm4334, %v5830, 0
        %v5866 = vsel %vm4334, %v5835, 0
        %v5869 = vsel %vm4334, %v5840, 0
        %v5872 = vsel %vm4334, %v5845, 0
        %v5875 = vsel %vm4334, %v5850, 0
        %5877 = vmatprep.subr.mxu0 0.0
        %5878 = vmatpush1.msra.mxu0 %v4308
        %5879 = vmatprep.subr.mxu0 0.0
        %5880 = vmatpush1.msra.mxu0 0.0
        %5881 = vmatprep.subr.mxu0 0.0
        %5882 = vmatpush1.msra.mxu0 0.0
        %5883 = vmatprep.subr.mxu0 0.0
        %5884 = vmatpush1.msra.mxu0 0.0
        %5885 = vmatprep.subr.mxu0 0.0
        %5886 = vmatpush1.msra.mxu0 0.0
        %5887 = vmatprep.subr.mxu0 0.0
        %5888 = vmatpush1.msra.mxu0 0.0
        %5889 = vmatprep.subr.mxu0 0.0
        %5890 = vmatpush1.msra.mxu0 0.0
        %5891 = vmatprep.subr.mxu0 0.0
        %5892 = vmatpush1.msra.mxu0 0.0
        %5893 = vmatprep.subr.mxu0 0.0
        %5894 = vmatpush1.msra.mxu0 0.0
        %5895 = vmatprep.subr.mxu0 0.0
        %5896 = vmatpush1.msra.mxu0 0.0
        %5897 = vmatprep.subr.mxu0 0.0
        %5898 = vmatpush1.msra.mxu0 0.0
        %5899 = vmatprep.subr.mxu0 0.0
        %5900 = vmatpush1.msra.mxu0 0.0
        %5901 = vmatprep.subr.mxu0 0.0
        %5902 = vmatpush1.msra.mxu0 0.0
        %5903 = vmatprep.subr.mxu0 0.0
        %5904 = vmatpush1.msra.mxu0 0.0
        %5905 = vmatprep.subr.mxu0 0.0
        %5906 = vmatpush1.msra.mxu0 0.0
        %5907 = vmatprep.subr.mxu0 0.0
        %5908 = vmatpush1.msra.mxu0 0.0
        %5909 = vmatprep.subr.mxu0 0.0
        %5910 = vmatpush1.msra.mxu0 0.0
        %5911 = vmatprep.subr.mxu0 0.0
        %5912 = vmatpush1.msra.mxu0 0.0
        %5913 = vmatprep.subr.mxu0 0.0
        %5914 = vmatpush1.msra.mxu0 0.0
        %5915 = vmatprep.subr.mxu0 0.0
        %5916 = vmatpush1.msra.mxu0 0.0
        %5917 = vmatprep.subr.mxu0 0.0
        %5918 = vmatpush1.msra.mxu0 0.0
        %5919 = vmatprep.subr.mxu0 0.0
        %5920 = vmatpush1.msra.mxu0 0.0
        %5921 = vmatprep.subr.mxu0 0.0
        %5922 = vmatpush1.msra.mxu0 0.0
        %5923 = vmatprep.subr.mxu0 0.0
        %5924 = vmatpush1.msra.mxu0 0.0
        %5925 = vmatprep.subr.mxu0 0.0
        %5926 = vmatpush1.msra.mxu0 0.0
        %5927 = vmatprep.subr.mxu0 0.0
        %5928 = vmatpush1.msra.mxu0 0.0
        %5929 = vmatprep.subr.mxu0 0.0
        %5930 = vmatpush1.msra.mxu0 0.0
        %5931 = vmatprep.subr.mxu0 0.0
        %5932 = vmatpush1.msra.mxu0 0.0
        %5933 = vmatprep.subr.mxu0 0.0
        %5934 = vmatpush1.msra.mxu0 0.0
        %5935 = vmatprep.subr.mxu0 0.0
        %5936 = vmatpush1.msra.mxu0 0.0
        %5937 = vmatprep.subr.mxu0 0.0
        %5938 = vmatpush1.msra.mxu0 0.0
        %5939 = vmatprep.subr.mxu0 0.0
        %5940 = vmatpush1.msra.mxu0 0.0
        %5941 = vmatprep.mubr.f32.mxu0 0.0
        %5942 = vmatmul.mubr.f32.gmra.mrb[0].mxu0 %v5854
        %v5943 = vpop.f32.mrb[0].mxu0
        %v5944 = vadd.f32 0.0, %v5943
        %v5945 = vpop.f32.mrb[0].mxu0
        %5946 = vmatprep.mubr.f32.mxu0 0.0
        %5947 = vmatmul.mubr.f32.gmra.mrb[0].mxu0 %v5857
        %v5948 = vpop.f32.mrb[0].mxu0
        %v5949 = vadd.f32 0.0, %v5948
        %v5950 = vpop.f32.mrb[0].mxu0
        %5951 = vmatprep.mubr.f32.mxu0 0.0
        %5952 = vmatmul.mubr.f32.gmra.mrb[0].mxu0 %v5860
        %v5953 = vpop.f32.mrb[0].mxu0
        %v5954 = vadd.f32 0.0, %v5953
        %v5955 = vpop.f32.mrb[0].mxu0
        %5956 = vmatprep.mubr.f32.mxu0 0.0
        %5957 = vmatmul.mubr.f32.gmra.mrb[0].mxu0 %v5863
        %v5958 = vpop.f32.mrb[0].mxu0
        %v5959 = vadd.f32 0.0, %v5958
        %v5960 = vpop.f32.mrb[0].mxu0
        %5961 = vmatprep.mubr.f32.mxu0 0.0
        %5962 = vmatmul.mubr.f32.gmra.mrb[0].mxu0 %v5866
        %v5963 = vpop.f32.mrb[0].mxu0
        %v5964 = vadd.f32 0.0, %v5963
        %v5965 = vpop.f32.mrb[0].mxu0
        %5966 = vmatprep.mubr.f32.mxu0 0.0
        %5967 = vmatmul.mubr.f32.gmra.mrb[0].mxu0 %v5869
        %v5968 = vpop.f32.mrb[0].mxu0
        %v5969 = vadd.f32 0.0, %v5968
        %v5970 = vpop.f32.mrb[0].mxu0
        %5971 = vmatprep.mubr.f32.mxu0 0.0
        %5972 = vmatmul.mubr.f32.gmra.mrb[0].mxu0 %v5872
        %v5973 = vpop.f32.mrb[0].mxu0
        %v5974 = vadd.f32 0.0, %v5973
        %v5975 = vpop.f32.mrb[0].mxu0
        %5976 = vmatprep.mubr.f32.mxu0 0.0
        %5977 = vmatmul.mubr.f32.gmra.mrb[0].mxu0 %v5875
        %v5978 = vpop.f32.mrb[0].mxu0
        %v5979 = vadd.f32 0.0, %v5978
        %v5980 = vpop.f32.mrb[0].mxu0
        %5981 = vdwg.mxu0
        %v5982 = vadd.f32 %v5388, %v5944
        %v5983 = vadd.f32 %v5393, %v5949
        %v5984 = vadd.f32 %v5398, %v5954
        %v5985 = vadd.f32 %v5403, %v5959
        %v5986 = vadd.f32 %v5408, %v5964
        %v5987 = vadd.f32 %v5413, %v5969
        %v5988 = vadd.f32 %v5418, %v5974
        %v5989 = vadd.f32 %v5423, %v5979
        %5990 = vrot.lane.b32.xlu0 %v4268, 104
        %v5991 = vpop.permute.xlu0 %5990
        %5992 = vrot.lane.b32.xlu0 %v4273, 104
        %v5993 = vpop.permute.xlu0 %5992
        %5994 = vrot.lane.b32.xlu0 %v4278, 104
        %v5995 = vpop.permute.xlu0 %5994
        %5996 = vrot.lane.b32.xlu0 %v4283, 104
        %v5997 = vpop.permute.xlu0 %5996
        %5998 = vrot.lane.b32.xlu0 %v4288, 104
        %v5999 = vpop.permute.xlu0 %5998
        %6000 = vrot.lane.b32.xlu0 %v4293, 104
        %v6001 = vpop.permute.xlu0 %6000
        %6002 = vrot.lane.b32.xlu0 %v4298, 104
        %v6003 = vpop.permute.xlu0 %6002
        %6004 = vrot.lane.b32.xlu0 %v4303, 104
        %v6005 = vpop.permute.xlu0 %6004
        %6006 = vrot.lane.b32.xlu0 %v4268, 72
        %v6007 = vpop.permute.xlu0 %6006
        %6008 = vrot.lane.b32.xlu0 %v4273, 72
        %v6009 = vpop.permute.xlu0 %6008
        %6010 = vrot.lane.b32.xlu0 %v4278, 72
        %v6011 = vpop.permute.xlu0 %6010
        %6012 = vrot.lane.b32.xlu0 %v4283, 72
        %v6013 = vpop.permute.xlu0 %6012
        %6014 = vrot.lane.b32.xlu0 %v4288, 72
        %v6015 = vpop.permute.xlu0 %6014
        %6016 = vrot.lane.b32.xlu0 %v4293, 72
        %v6017 = vpop.permute.xlu0 %6016
        %6018 = vrot.lane.b32.xlu0 %v4298, 72
        %v6019 = vpop.permute.xlu0 %6018
        %6020 = vrot.lane.b32.xlu0 %v4303, 72
        %v6021 = vpop.permute.xlu0 %6020
        %v6022 = vsel %vm4334, %v5991, 0
        %v6024 = vsel %vm4334, %v5993, 0
        %v6026 = vsel %vm4334, %v5995, 0
        %v6028 = vsel %vm4334, %v5997, 0
        %v6030 = vsel %vm4334, %v5999, 0
        %v6032 = vsel %vm4334, %v6001, 0
        %v6034 = vsel %vm4334, %v6003, 0
        %v6036 = vsel %vm4334, %v6005, 0
        %v6038 = vsel %vm4334, %v6007, 0
        %v6040 = vsel %vm4334, %v6009, 0
        %v6042 = vsel %vm4334, %v6011, 0
        %v6044 = vsel %vm4334, %v6013, 0
        %v6046 = vsel %vm4334, %v6015, 0
        %v6048 = vsel %vm4334, %v6017, 0
        %v6050 = vsel %vm4334, %v6019, 0
        %v6052 = vsel %vm4334, %v6021, 0
        %6054 = vmatprep.subr.mxu0 0.0
        %6055 = vmatpush1.xpose.msra.mxu0 %v6038
        %6056 = vmatprep.subr.mxu0 0.0
        %6057 = vmatpush1.xpose.msra.mxu0 %v6040
        %6058 = vmatprep.subr.mxu0 0.0
        %6059 = vmatpush1.xpose.msra.mxu0 %v6042
        %6060 = vmatprep.subr.mxu0 0.0
        %6061 = vmatpush1.xpose.msra.mxu0 %v6044
        %6062 = vmatprep.subr.mxu0 0.0
        %6063 = vmatpush1.xpose.msra.mxu0 %v6046
        %6064 = vmatprep.subr.mxu0 0.0
        %6065 = vmatpush1.xpose.msra.mxu0 %v6048
        %6066 = vmatprep.subr.mxu0 0.0
        %6067 = vmatpush1.xpose.msra.mxu0 %v6050
        %6068 = vmatprep.subr.mxu0 0.0
        %6069 = vmatpush1.xpose.msra.mxu0 %v6052
        %6070 = vmatprep.subr.mxu0 0.0
        %6071 = vmatpush1.xpose.msra.mxu0 0.0
        %6072 = vmatprep.subr.mxu0 0.0
        %6073 = vmatpush1.xpose.msra.mxu0 0.0
        %6074 = vmatprep.subr.mxu0 0.0
        %6075 = vmatpush1.xpose.msra.mxu0 0.0
        %6076 = vmatprep.subr.mxu0 0.0
        %6077 = vmatpush1.xpose.msra.mxu0 0.0
        %6078 = vmatprep.subr.mxu0 0.0
        %6079 = vmatpush1.xpose.msra.mxu0 0.0
        %6080 = vmatprep.subr.mxu0 0.0
        %6081 = vmatpush1.xpose.msra.mxu0 0.0
        %6082 = vmatprep.subr.mxu0 0.0
        %6083 = vmatpush1.xpose.msra.mxu0 0.0
        %6084 = vmatprep.subr.mxu0 0.0
        %6085 = vmatpush1.xpose.msra.mxu0 0.0
        %6086 = vmatprep.subr.mxu0 0.0
        %6087 = vmatpush1.xpose.msra.mxu0 0.0
        %6088 = vmatprep.subr.mxu0 0.0
        %6089 = vmatpush1.xpose.msra.mxu0 0.0
        %6090 = vmatprep.subr.mxu0 0.0
        %6091 = vmatpush1.xpose.msra.mxu0 0.0
        %6092 = vmatprep.subr.mxu0 0.0
        %6093 = vmatpush1.xpose.msra.mxu0 0.0
        %6094 = vmatprep.subr.mxu0 0.0
        %6095 = vmatpush1.xpose.msra.mxu0 0.0
        %6096 = vmatprep.subr.mxu0 0.0
        %6097 = vmatpush1.xpose.msra.mxu0 0.0
        %6098 = vmatprep.subr.mxu0 0.0
        %6099 = vmatpush1.xpose.msra.mxu0 0.0
        %6100 = vmatprep.subr.mxu0 0.0
        %6101 = vmatpush1.xpose.msra.mxu0 0.0
        %6102 = vmatprep.subr.mxu0 0.0
        %6103 = vmatpush1.xpose.msra.mxu0 0.0
        %6104 = vmatprep.subr.mxu0 0.0
        %6105 = vmatpush1.xpose.msra.mxu0 0.0
        %6106 = vmatprep.subr.mxu0 0.0
        %6107 = vmatpush1.xpose.msra.mxu0 0.0
        %6108 = vmatprep.subr.mxu0 0.0
        %6109 = vmatpush1.xpose.msra.mxu0 0.0
        %6110 = vmatprep.subr.mxu0 0.0
        %6111 = vmatpush1.xpose.msra.mxu0 0.0
        %6112 = vmatprep.subr.mxu0 0.0
        %6113 = vmatpush1.xpose.msra.mxu0 0.0
        %6114 = vmatprep.subr.mxu0 0.0
        %6115 = vmatpush1.xpose.msra.mxu0 0.0
        %6116 = vmatprep.subr.mxu0 0.0
        %6117 = vmatpush1.xpose.msra.mxu0 0.0
        %6118 = vmatprep.mubr.f32.mxu0 0.0
        %6119 = vmatmul.mubr.f32.gmra.mrb[0].mxu0 %v6022
        %v6120 = vpop.f32.mrb[0].mxu0
        %v6121 = vadd.f32 0.0, %v6120
        %v6122 = vpop.f32.mrb[0].mxu0
        %6123 = vmatprep.mubr.f32.mxu0 0.0
        %6124 = vmatmul.mubr.f32.gmra.mrb[0].mxu0 %v6024
        %v6125 = vpop.f32.mrb[0].mxu0
        %v6126 = vadd.f32 0.0, %v6125
        %v6127 = vpop.f32.mrb[0].mxu0
        %6128 = vmatprep.mubr.f32.mxu0 0.0
        %6129 = vmatmul.mubr.f32.gmra.mrb[0].mxu0 %v6026
        %v6130 = vpop.f32.mrb[0].mxu0
        %v6131 = vadd.f32 0.0, %v6130
        %v6132 = vpop.f32.mrb[0].mxu0
        %6133 = vmatprep.mubr.f32.mxu0 0.0
        %6134 = vmatmul.mubr.f32.gmra.mrb[0].mxu0 %v6028
        %v6135 = vpop.f32.mrb[0].mxu0
        %v6136 = vadd.f32 0.0, %v6135
        %v6137 = vpop.f32.mrb[0].mxu0
        %6138 = vmatprep.mubr.f32.mxu0 0.0
        %6139 = vmatmul.mubr.f32.gmra.mrb[0].mxu0 %v6030
        %v6140 = vpop.f32.mrb[0].mxu0
        %v6141 = vadd.f32 0.0, %v6140
        %v6142 = vpop.f32.mrb[0].mxu0
        %6143 = vmatprep.mubr.f32.mxu0 0.0
        %6144 = vmatmul.mubr.f32.gmra.mrb[0].mxu0 %v6032
        %v6145 = vpop.f32.mrb[0].mxu0
        %v6146 = vadd.f32 0.0, %v6145
        %v6147 = vpop.f32.mrb[0].mxu0
        %6148 = vmatprep.mubr.f32.mxu0 0.0
        %6149 = vmatmul.mubr.f32.gmra.mrb[0].mxu0 %v6034
        %v6150 = vpop.f32.mrb[0].mxu0
        %v6151 = vadd.f32 0.0, %v6150
        %v6152 = vpop.f32.mrb[0].mxu0
        %6153 = vmatprep.mubr.f32.mxu0 0.0
        %6154 = vmatmul.mubr.f32.gmra.mrb[0].mxu0 %v6036
        %v6155 = vpop.f32.mrb[0].mxu0
        %v6156 = vadd.f32 0.0, %v6155
        %v6157 = vpop.f32.mrb[0].mxu0
        %6158 = vdwg.mxu0
        %v6159 = vmul.f32 %v6121, 0.35355338
        %v6160 = vmul.f32 %v6126, 0.35355338
        %v6161 = vmul.f32 %v6131, 0.35355338
        %v6162 = vmul.f32 %v6136, 0.35355338
        %v6163 = vmul.f32 %v6141, 0.35355338
        %v6164 = vmul.f32 %v6146, 0.35355338
        %v6165 = vmul.f32 %v6151, 0.35355338
        %v6166 = vmul.f32 %v6156, 0.35355338
        %v6167 = vadd.f32 %v6159, %v4480
        %v6168 = vadd.f32 %v6160, %v4481
        %v6169 = vadd.f32 %v6161, %v4482
        %v6170 = vadd.f32 %v6162, %v4483
        %v6171 = vadd.f32 %v6163, %v4484
        %v6172 = vadd.f32 %v6164, %v4485
        %v6173 = vadd.f32 %v6165, %v4486
        %v6174 = vadd.f32 %v6166, %v4487
        %v6175 = vsel %vm4496, %v6167, -inf
        %6176 = vmax.xlane.f32.xlu0 %v6175
        %v6177 = vpop.xlane.xlu0 %6176
        %v6178 = vsel %vm4496, %v6168, -inf
        %6179 = vmax.xlane.f32.xlu0 %v6178
        %v6180 = vpop.xlane.xlu0 %6179
        %v6181 = vsel %vm4496, %v6169, -inf
        %6182 = vmax.xlane.f32.xlu0 %v6181
        %v6183 = vpop.xlane.xlu0 %6182
        %v6184 = vsel %vm4496, %v6170, -inf
        %6185 = vmax.xlane.f32.xlu0 %v6184
        %v6186 = vpop.xlane.xlu0 %6185
        %v6187 = vsel %vm4496, %v6171, -inf
        %6188 = vmax.xlane.f32.xlu0 %v6187
        %v6189 = vpop.xlane.xlu0 %6188
        %v6190 = vsel %vm4496, %v6172, -inf
        %6191 = vmax.xlane.f32.xlu0 %v6190
        %v6192 = vpop.xlane.xlu0 %6191
        %v6193 = vsel %vm4496, %v6173, -inf
        %6194 = vmax.xlane.f32.xlu0 %v6193
        %v6195 = vpop.xlane.xlu0 %6194
        %v6196 = vsel %vm4518, %v6174, -inf
        %6197 = vmax.xlane.f32.xlu0 %v6196
        %v6198 = vpop.xlane.xlu0 %6197
        %v6199 = vsub.f32 %v6167, %v6177
        %v6200 = vsub.f32 %v6168, %v6180
        %v6201 = vsub.f32 %v6169, %v6183
        %v6202 = vsub.f32 %v6170, %v6186
        %v6203 = vsub.f32 %v6171, %v6189
        %v6204 = vsub.f32 %v6172, %v6192
        %v6205 = vsub.f32 %v6173, %v6195
        %v6206 = vsub.f32 %v6174, %v6198
        %v6207 = vmul.f32 %v6199, 1.442695
        %v6208 = vpow.pop %v6207
        %v6209 = vmul.f32 %v6200, 1.442695
        %v6210 = vpow.pop %v6209
        %v6211 = vmul.f32 %v6201, 1.442695
        %v6212 = vpow.pop %v6211
        %v6213 = vmul.f32 %v6202, 1.442695
        %v6214 = vpow.pop %v6213
        %v6215 = vmul.f32 %v6203, 1.442695
        %v6216 = vpow.pop %v6215
        %v6217 = vmul.f32 %v6204, 1.442695
        %v6218 = vpow.pop %v6217
        %v6219 = vmul.f32 %v6205, 1.442695
        %v6220 = vpow.pop %v6219
        %v6221 = vmul.f32 %v6206, 1.442695
        %v6222 = vpow.pop %v6221
        %v6223 = vsel %vm4496, %v6208, 0.0
        %6224 = vadd.xlane.f32.xlu0 %v6223
        %v6225 = vpop.xlane.xlu0 %6224
        %v6226 = vsel %vm4496, %v6210, 0.0
        %6227 = vadd.xlane.f32.xlu0 %v6226
        %v6228 = vpop.xlane.xlu0 %6227
        %v6229 = vsel %vm4496, %v6212, 0.0
        %6230 = vadd.xlane.f32.xlu0 %v6229
        %v6231 = vpop.xlane.xlu0 %6230
        %v6232 = vsel %vm4496, %v6214, 0.0
        %6233 = vadd.xlane.f32.xlu0 %v6232
        %v6234 = vpop.xlane.xlu0 %6233
        %v6235 = vsel %vm4496, %v6216, 0.0
        %6236 = vadd.xlane.f32.xlu0 %v6235
        %v6237 = vpop.xlane.xlu0 %6236
        %v6238 = vsel %vm4496, %v6218, 0.0
        %6239 = vadd.xlane.f32.xlu0 %v6238
        %v6240 = vpop.xlane.xlu0 %6239
        %v6241 = vsel %vm4496, %v6220, 0.0
        %6242 = vadd.xlane.f32.xlu0 %v6241
        %v6243 = vpop.xlane.xlu0 %6242
        %v6244 = vsel %vm4518, %v6222, 0.0
        %6245 = vadd.xlane.f32.xlu0 %v6244
        %v6246 = vpop.xlane.xlu0 %6245
        %v6247 = vrcp.pop %v6225
        %v6248 = vrcp.pop %v6228
        %v6249 = vrcp.pop %v6231
        %v6250 = vrcp.pop %v6234
        %v6251 = vrcp.pop %v6237
        %v6252 = vrcp.pop %v6240
        %v6253 = vrcp.pop %v6243
        %v6254 = vrcp.pop %v6246
        %v6255 = vmul.f32 %v6208, %v6247
        %v6256 = vmul.f32 %v6210, %v6248
        %v6257 = vmul.f32 %v6212, %v6249
        %v6258 = vmul.f32 %v6214, %v6250
        %v6259 = vmul.f32 %v6216, %v6251
        %v6260 = vmul.f32 %v6218, %v6252
        %v6261 = vmul.f32 %v6220, %v6253
        %v6262 = vmul.f32 %v6222, %v6254
        %6263 = vrot.lane.b32.xlu0 %v4268, 40
        %v6264 = vpop.permute.xlu0 %6263
        %6265 = vrot.lane.b32.xlu0 %v4273, 40
        %v6266 = vpop.permute.xlu0 %6265
        %6267 = vrot.lane.b32.xlu0 %v4278, 40
        %v6268 = vpop.permute.xlu0 %6267
        %6269 = vrot.lane.b32.xlu0 %v4283, 40
        %v6270 = vpop.permute.xlu0 %6269
        %6271 = vrot.lane.b32.xlu0 %v4288, 40
        %v6272 = vpop.permute.xlu0 %6271
        %6273 = vrot.lane.b32.xlu0 %v4293, 40
        %v6274 = vpop.permute.xlu0 %6273
        %6275 = vrot.lane.b32.xlu0 %v4298, 40
        %v6276 = vpop.permute.xlu0 %6275
        %6277 = vrot.lane.b32.xlu0 %v4303, 40
        %v6278 = vpop.permute.xlu0 %6277
        %v6287 = vsel %vm4496, %v6255, 0
        %v6290 = vsel %vm4496, %v6256, 0
        %v6293 = vsel %vm4496, %v6257, 0
        %v6296 = vsel %vm4496, %v6258, 0
        %v6299 = vsel %vm4496, %v6259, 0
        %v6302 = vsel %vm4496, %v6260, 0
        %v6305 = vsel %vm4496, %v6261, 0
        %v6308 = vsel %vm4496, %v6262, 0
        %v6310 = vsel %vm4633, %v6278, 0
        %6312 = vmatprep.subr.mxu0 0.0
        %6313 = vmatpush1.msra.mxu0 %v6264
        %6314 = vmatprep.subr.mxu0 0.0
        %6315 = vmatpush1.msra.mxu0 %v6266
        %6316 = vmatprep.subr.mxu0 0.0
        %6317 = vmatpush1.msra.mxu0 %v6268
        %6318 = vmatprep.subr.mxu0 0.0
        %6319 = vmatpush1.msra.mxu0 %v6270
        %6320 = vmatprep.subr.mxu0 0.0
        %6321 = vmatpush1.msra.mxu0 %v6272
        %6322 = vmatprep.subr.mxu0 0.0
        %6323 = vmatpush1.msra.mxu0 %v6274
        %6324 = vmatprep.subr.mxu0 0.0
        %6325 = vmatpush1.msra.mxu0 %v6276
        %6326 = vmatprep.subr.mxu0 0.0
        %6327 = vmatpush1.msra.mxu0 %v6310
        %6328 = vmatprep.subr.mxu0 0.0
        %6329 = vmatpush1.msra.mxu0 0.0
        %6330 = vmatprep.subr.mxu0 0.0
        %6331 = vmatpush1.msra.mxu0 0.0
        %6332 = vmatprep.subr.mxu0 0.0
        %6333 = vmatpush1.msra.mxu0 0.0
        %6334 = vmatprep.subr.mxu0 0.0
        %6335 = vmatpush1.msra.mxu0 0.0
        %6336 = vmatprep.subr.mxu0 0.0
        %6337 = vmatpush1.msra.mxu0 0.0
        %6338 = vmatprep.subr.mxu0 0.0
        %6339 = vmatpush1.msra.mxu0 0.0
        %6340 = vmatprep.subr.mxu0 0.0
        %6341 = vmatpush1.msra.mxu0 0.0
        %6342 = vmatprep.subr.mxu0 0.0
        %6343 = vmatpush1.msra.mxu0 0.0
        %6344 = vmatprep.subr.mxu0 0.0
        %6345 = vmatpush1.msra.mxu0 0.0
        %6346 = vmatprep.subr.mxu0 0.0
        %6347 = vmatpush1.msra.mxu0 0.0
        %6348 = vmatprep.subr.mxu0 0.0
        %6349 = vmatpush1.msra.mxu0 0.0
        %6350 = vmatprep.subr.mxu0 0.0
        %6351 = vmatpush1.msra.mxu0 0.0
        %6352 = vmatprep.subr.mxu0 0.0
        %6353 = vmatpush1.msra.mxu0 0.0
        %6354 = vmatprep.subr.mxu0 0.0
        %6355 = vmatpush1.msra.mxu0 0.0
        %6356 = vmatprep.subr.mxu0 0.0
        %6357 = vmatpush1.msra.mxu0 0.0
        %6358 = vmatprep.subr.mxu0 0.0
        %6359 = vmatpush1.msra.mxu0 0.0
        %6360 = vmatprep.subr.mxu0 0.0
        %6361 = vmatpush1.msra.mxu0 0.0
        %6362 = vmatprep.subr.mxu0 0.0
        %6363 = vmatpush1.msra.mxu0 0.0
        %6364 = vmatprep.subr.mxu0 0.0
        %6365 = vmatpush1.msra.mxu0 0.0
        %6366 = vmatprep.subr.mxu0 0.0
        %6367 = vmatpush1.msra.mxu0 0.0
        %6368 = vmatprep.subr.mxu0 0.0
        %6369 = vmatpush1.msra.mxu0 0.0
        %6370 = vmatprep.subr.mxu0 0.0
        %6371 = vmatpush1.msra.mxu0 0.0
        %6372 = vmatprep.subr.mxu0 0.0
        %6373 = vmatpush1.msra.mxu0 0.0
        %6374 = vmatprep.subr.mxu0 0.0
        %6375 = vmatpush1.msra.mxu0 0.0
        %6376 = vmatprep.mubr.f32.mxu0 0.0
        %6377 = vmatmul.mubr.f32.gmra.mrb[0].mxu0 %v6287
        %v6378 = vpop.f32.mrb[0].mxu0
        %v6379 = vadd.f32 0.0, %v6378
        %v6380 = vpop.f32.mrb[0].mxu0
        %6381 = vmatprep.mubr.f32.mxu0 0.0
        %6382 = vmatmul.mubr.f32.gmra.mrb[0].mxu0 %v6290
        %v6383 = vpop.f32.mrb[0].mxu0
        %v6384 = vadd.f32 0.0, %v6383
        %v6385 = vpop.f32.mrb[0].mxu0
        %6386 = vmatprep.mubr.f32.mxu0 0.0
        %6387 = vmatmul.mubr.f32.gmra.mrb[0].mxu0 %v6293
        %v6388 = vpop.f32.mrb[0].mxu0
        %v6389 = vadd.f32 0.0, %v6388
        %v6390 = vpop.f32.mrb[0].mxu0
        %6391 = vmatprep.mubr.f32.mxu0 0.0
        %6392 = vmatmul.mubr.f32.gmra.mrb[0].mxu0 %v6296
        %v6393 = vpop.f32.mrb[0].mxu0
        %v6394 = vadd.f32 0.0, %v6393
        %v6395 = vpop.f32.mrb[0].mxu0
        %6396 = vmatprep.mubr.f32.mxu0 0.0
        %6397 = vmatmul.mubr.f32.gmra.mrb[0].mxu0 %v6299
        %v6398 = vpop.f32.mrb[0].mxu0
        %v6399 = vadd.f32 0.0, %v6398
        %v6400 = vpop.f32.mrb[0].mxu0
        %6401 = vmatprep.mubr.f32.mxu0 0.0
        %6402 = vmatmul.mubr.f32.gmra.mrb[0].mxu0 %v6302
        %v6403 = vpop.f32.mrb[0].mxu0
        %v6404 = vadd.f32 0.0, %v6403
        %v6405 = vpop.f32.mrb[0].mxu0
        %6406 = vmatprep.mubr.f32.mxu0 0.0
        %6407 = vmatmul.mubr.f32.gmra.mrb[0].mxu0 %v6305
        %v6408 = vpop.f32.mrb[0].mxu0
        %v6409 = vadd.f32 0.0, %v6408
        %v6410 = vpop.f32.mrb[0].mxu0
        %6411 = vmatprep.mubr.f32.mxu0 0.0
        %6412 = vmatmul.mubr.f32.gmra.mrb[0].mxu0 %v6308
        %v6413 = vpop.f32.mrb[0].mxu0
        %v6414 = vadd.f32 0.0, %v6413
        %v6415 = vpop.f32.mrb[0].mxu0
        %6416 = vdwg.mxu0
        %v6418 = vsel %vm4334, %v6379, 0
        %v6421 = vsel %vm4334, %v6384, 0
        %v6424 = vsel %vm4334, %v6389, 0
        %v6427 = vsel %vm4334, %v6394, 0
        %v6430 = vsel %vm4334, %v6399, 0
        %v6433 = vsel %vm4334, %v6404, 0
        %v6436 = vsel %vm4334, %v6409, 0
        %v6439 = vsel %vm4334, %v6414, 0
        %6441 = vmatprep.subr.mxu0 0.0
        %6442 = vmatpush1.msra.mxu0 %v4309
        %6443 = vmatprep.subr.mxu0 0.0
        %6444 = vmatpush1.msra.mxu0 0.0
        %6445 = vmatprep.subr.mxu0 0.0
        %6446 = vmatpush1.msra.mxu0 0.0
        %6447 = vmatprep.subr.mxu0 0.0
        %6448 = vmatpush1.msra.mxu0 0.0
        %6449 = vmatprep.subr.mxu0 0.0
        %6450 = vmatpush1.msra.mxu0 0.0
        %6451 = vmatprep.subr.mxu0 0.0
        %6452 = vmatpush1.msra.mxu0 0.0
        %6453 = vmatprep.subr.mxu0 0.0
        %6454 = vmatpush1.msra.mxu0 0.0
        %6455 = vmatprep.subr.mxu0 0.0
        %6456 = vmatpush1.msra.mxu0 0.0
        %6457 = vmatprep.subr.mxu0 0.0
        %6458 = vmatpush1.msra.mxu0 0.0
        %6459 = vmatprep.subr.mxu0 0.0
        %6460 = vmatpush1.msra.mxu0 0.0
        %6461 = vmatprep.subr.mxu0 0.0
        %6462 = vmatpush1.msra.mxu0 0.0
        %6463 = vmatprep.subr.mxu0 0.0
        %6464 = vmatpush1.msra.mxu0 0.0
        %6465 = vmatprep.subr.mxu0 0.0
        %6466 = vmatpush1.msra.mxu0 0.0
        %6467 = vmatprep.subr.mxu0 0.0
        %6468 = vmatpush1.msra.mxu0 0.0
        %6469 = vmatprep.subr.mxu0 0.0
        %6470 = vmatpush1.msra.mxu0 0.0
        %6471 = vmatprep.subr.mxu0 0.0
        %6472 = vmatpush1.msra.mxu0 0.0
        %6473 = vmatprep.subr.mxu0 0.0
        %6474 = vmatpush1.msra.mxu0 0.0
        %6475 = vmatprep.subr.mxu0 0.0
        %6476 = vmatpush1.msra.mxu0 0.0
        %6477 = vmatprep.subr.mxu0 0.0
        %6478 = vmatpush1.msra.mxu0 0.0
        %6479 = vmatprep.subr.mxu0 0.0
        %6480 = vmatpush1.msra.mxu0 0.0
        %6481 = vmatprep.subr.mxu0 0.0
        %6482 = vmatpush1.msra.mxu0 0.0
        %6483 = vmatprep.subr.mxu0 0.0
        %6484 = vmatpush1.msra.mxu0 0.0
        %6485 = vmatprep.subr.mxu0 0.0
        %6486 = vmatpush1.msra.mxu0 0.0
        %6487 = vmatprep.subr.mxu0 0.0
        %6488 = vmatpush1.msra.mxu0 0.0
        %6489 = vmatprep.subr.mxu0 0.0
        %6490 = vmatpush1.msra.mxu0 0.0
        %6491 = vmatprep.subr.mxu0 0.0
        %6492 = vmatpush1.msra.mxu0 0.0
        %6493 = vmatprep.subr.mxu0 0.0
        %6494 = vmatpush1.msra.mxu0 0.0
        %6495 = vmatprep.subr.mxu0 0.0
        %6496 = vmatpush1.msra.mxu0 0.0
        %6497 = vmatprep.subr.mxu0 0.0
        %6498 = vmatpush1.msra.mxu0 0.0
        %6499 = vmatprep.subr.mxu0 0.0
        %6500 = vmatpush1.msra.mxu0 0.0
        %6501 = vmatprep.subr.mxu0 0.0
        %6502 = vmatpush1.msra.mxu0 0.0
        %6503 = vmatprep.subr.mxu0 0.0
        %6504 = vmatpush1.msra.mxu0 0.0
        %6505 = vmatprep.mubr.f32.mxu0 0.0
        %6506 = vmatmul.mubr.f32.gmra.mrb[0].mxu0 %v6418
        %v6507 = vpop.f32.mrb[0].mxu0
        %v6508 = vadd.f32 0.0, %v6507
        %v6509 = vpop.f32.mrb[0].mxu0
        %6510 = vmatprep.mubr.f32.mxu0 0.0
        %6511 = vmatmul.mubr.f32.gmra.mrb[0].mxu0 %v6421
        %v6512 = vpop.f32.mrb[0].mxu0
        %v6513 = vadd.f32 0.0, %v6512
        %v6514 = vpop.f32.mrb[0].mxu0
        %6515 = vmatprep.mubr.f32.mxu0 0.0
        %6516 = vmatmul.mubr.f32.gmra.mrb[0].mxu0 %v6424
        %v6517 = vpop.f32.mrb[0].mxu0
        %v6518 = vadd.f32 0.0, %v6517
        %v6519 = vpop.f32.mrb[0].mxu0
        %6520 = vmatprep.mubr.f32.mxu0 0.0
        %6521 = vmatmul.mubr.f32.gmra.mrb[0].mxu0 %v6427
        %v6522 = vpop.f32.mrb[0].mxu0
        %v6523 = vadd.f32 0.0, %v6522
        %v6524 = vpop.f32.mrb[0].mxu0
        %6525 = vmatprep.mubr.f32.mxu0 0.0
        %6526 = vmatmul.mubr.f32.gmra.mrb[0].mxu0 %v6430
        %v6527 = vpop.f32.mrb[0].mxu0
        %v6528 = vadd.f32 0.0, %v6527
        %v6529 = vpop.f32.mrb[0].mxu0
        %6530 = vmatprep.mubr.f32.mxu0 0.0
        %6531 = vmatmul.mubr.f32.gmra.mrb[0].mxu0 %v6433
        %v6532 = vpop.f32.mrb[0].mxu0
        %v6533 = vadd.f32 0.0, %v6532
        %v6534 = vpop.f32.mrb[0].mxu0
        %6535 = vmatprep.mubr.f32.mxu0 0.0
        %6536 = vmatmul.mubr.f32.gmra.mrb[0].mxu0 %v6436
        %v6537 = vpop.f32.mrb[0].mxu0
        %v6538 = vadd.f32 0.0, %v6537
        %v6539 = vpop.f32.mrb[0].mxu0
        %6540 = vmatprep.mubr.f32.mxu0 0.0
        %6541 = vmatmul.mubr.f32.gmra.mrb[0].mxu0 %v6439
        %v6542 = vpop.f32.mrb[0].mxu0
        %v6543 = vadd.f32 0.0, %v6542
        %v6544 = vpop.f32.mrb[0].mxu0
        %6545 = vdwg.mxu0
        %v6546 = vadd.f32 %v5982, %v6508
        %v6547 = vadd.f32 %v5983, %v6513
        %v6548 = vadd.f32 %v5984, %v6518
        %v6549 = vadd.f32 %v5985, %v6523
        %v6550 = vadd.f32 %v5986, %v6528
        %v6551 = vadd.f32 %v5987, %v6533
        %v6552 = vadd.f32 %v5988, %v6538
        %v6553 = vadd.f32 %v5989, %v6543
        %v6554 = vadd.f32 %v4021, %v6546
        %v6555 = vadd.f32 %v4022, %v6547
        %v6556 = vadd.f32 %v4023, %v6548
        %v6557 = vadd.f32 %v4024, %v6549
        %v6558 = vadd.f32 %v4025, %v6550
        %v6559 = vadd.f32 %v4026, %v6551
        %v6560 = vadd.f32 %v4027, %v6552
        %v6561 = vadd.f32 %v4028, %v6553
        %v6562 = vld [vmem:[%s1262] sm:$0x1]
        %v6564 = vlaneseq
        %v6565 = vshrl.u32 %v6564, 7
        %v6566 = vsub.s32 0, %v6565
        %v6567 = vrot.slane %v6562, %v6566
        %v6569 = vadd.f32 %v6554, %v6567
        %v6570 = vadd.f32 %v6555, %v6567
        %v6571 = vadd.f32 %v6556, %v6567
        %v6572 = vadd.f32 %v6557, %v6567
        %v6573 = vadd.f32 %v6558, %v6567
        %v6574 = vadd.f32 %v6559, %v6567
        %v6575 = vadd.f32 %v6560, %v6567
        %v6576 = vadd.f32 %v6561, %v6567
        %v6577 = vld [vmem:[%s1265] sm:$0x1]
        %v6578 = vld [vmem:[%s1268] sm:$0x1]
        %v6579 = vsel %vm4031, %v6569, 0.0
        %6580 = vadd.xlane.f32.xlu0 %v6579
        %v6581 = vpop.xlane.xlu0 %6580
        %v6582 = vsel %vm4031, %v6570, 0.0
        %6583 = vadd.xlane.f32.xlu0 %v6582
        %v6584 = vpop.xlane.xlu0 %6583
        %v6585 = vsel %vm4031, %v6571, 0.0
        %6586 = vadd.xlane.f32.xlu0 %v6585
        %v6587 = vpop.xlane.xlu0 %6586
        %v6588 = vsel %vm4031, %v6572, 0.0
        %6589 = vadd.xlane.f32.xlu0 %v6588
        %v6590 = vpop.xlane.xlu0 %6589
        %v6591 = vsel %vm4031, %v6573, 0.0
        %6592 = vadd.xlane.f32.xlu0 %v6591
        %v6593 = vpop.xlane.xlu0 %6592
        %v6594 = vsel %vm4031, %v6574, 0.0
        %6595 = vadd.xlane.f32.xlu0 %v6594
        %v6596 = vpop.xlane.xlu0 %6595
        %v6597 = vsel %vm4031, %v6575, 0.0
        %6598 = vadd.xlane.f32.xlu0 %v6597
        %v6599 = vpop.xlane.xlu0 %6598
        %v6600 = vsel %vm4053, %v6576, 0.0
        %6601 = vadd.xlane.f32.xlu0 %v6600
        %v6602 = vpop.xlane.xlu0 %6601
        %v6603 = vmul.f32 %v6581, %v4057
        %v6604 = vmul.f32 %v6584, %v4057
        %v6605 = vmul.f32 %v6587, %v4057
        %v6606 = vmul.f32 %v6590, %v4057
        %v6607 = vmul.f32 %v6593, %v4057
        %v6608 = vmul.f32 %v6596, %v4057
        %v6609 = vmul.f32 %v6599, %v4057
        %v6610 = vmul.f32 %v6602, %v4057
        %v6611 = vsub.f32 %v6569, %v6603
        %v6612 = vsub.f32 %v6570, %v6604
        %v6613 = vsub.f32 %v6571, %v6605
        %v6614 = vsub.f32 %v6572, %v6606
        %v6615 = vsub.f32 %v6573, %v6607
        %v6616 = vsub.f32 %v6574, %v6608
        %v6617 = vsub.f32 %v6575, %v6609
        %v6618 = vsub.f32 %v6576, %v6610
        %v6619 = vmul.f32 %v6611, %v6611
        %v6620 = vmul.f32 %v6612, %v6612
        %v6621 = vmul.f32 %v6613, %v6613
        %v6622 = vmul.f32 %v6614, %v6614
        %v6623 = vmul.f32 %v6615, %v6615
        %v6624 = vmul.f32 %v6616, %v6616
        %v6625 = vmul.f32 %v6617, %v6617
        %v6626 = vmul.f32 %v6618, %v6618
        %v6627 = vsel %vm4031, %v6619, 0.0
        %6628 = vadd.xlane.f32.xlu0 %v6627
        %v6629 = vpop.xlane.xlu0 %6628
        %v6630 = vsel %vm4031, %v6620, 0.0
        %6631 = vadd.xlane.f32.xlu0 %v6630
        %v6632 = vpop.xlane.xlu0 %6631
        %v6633 = vsel %vm4031, %v6621, 0.0
        %6634 = vadd.xlane.f32.xlu0 %v6633
        %v6635 = vpop.xlane.xlu0 %6634
        %v6636 = vsel %vm4031, %v6622, 0.0
        %6637 = vadd.xlane.f32.xlu0 %v6636
        %v6638 = vpop.xlane.xlu0 %6637
        %v6639 = vsel %vm4031, %v6623, 0.0
        %6640 = vadd.xlane.f32.xlu0 %v6639
        %v6641 = vpop.xlane.xlu0 %6640
        %v6642 = vsel %vm4031, %v6624, 0.0
        %6643 = vadd.xlane.f32.xlu0 %v6642
        %v6644 = vpop.xlane.xlu0 %6643
        %v6645 = vsel %vm4031, %v6625, 0.0
        %6646 = vadd.xlane.f32.xlu0 %v6645
        %v6647 = vpop.xlane.xlu0 %6646
        %v6648 = vsel %vm4053, %v6626, 0.0
        %6649 = vadd.xlane.f32.xlu0 %v6648
        %v6650 = vpop.xlane.xlu0 %6649
        %v6651 = vmul.f32 %v6629, %v4057
        %v6652 = vmul.f32 %v6632, %v4057
        %v6653 = vmul.f32 %v6635, %v4057
        %v6654 = vmul.f32 %v6638, %v4057
        %v6655 = vmul.f32 %v6641, %v4057
        %v6656 = vmul.f32 %v6644, %v4057
        %v6657 = vmul.f32 %v6647, %v4057
        %v6658 = vmul.f32 %v6650, %v4057
        %v6659 = vadd.f32 %v6651, 1e-05
        %v6660 = vadd.f32 %v6652, 1e-05
        %v6661 = vadd.f32 %v6653, 1e-05
        %v6662 = vadd.f32 %v6654, 1e-05
        %v6663 = vadd.f32 %v6655, 1e-05
        %v6664 = vadd.f32 %v6656, 1e-05
        %v6665 = vadd.f32 %v6657, 1e-05
        %v6666 = vadd.f32 %v6658, 1e-05
        %v6667 = vrsqrt.pop %v6659
        %v6668 = vrsqrt.pop %v6660
        %v6669 = vrsqrt.pop %v6661
        %v6670 = vrsqrt.pop %v6662
        %v6671 = vrsqrt.pop %v6663
        %v6672 = vrsqrt.pop %v6664
        %v6673 = vrsqrt.pop %v6665
        %v6674 = vrsqrt.pop %v6666
        %v6675 = vmul.f32 %v6611, %v6667
        %v6676 = vmul.f32 %v6612, %v6668
        %v6677 = vmul.f32 %v6613, %v6669
        %v6678 = vmul.f32 %v6614, %v6670
        %v6679 = vmul.f32 %v6615, %v6671
        %v6680 = vmul.f32 %v6616, %v6672
        %v6681 = vmul.f32 %v6617, %v6673
        %v6682 = vmul.f32 %v6618, %v6674
        %v6684 = vlaneseq
        %v6685 = vshrl.u32 %v6684, 7
        %v6686 = vsub.s32 0, %v6685
        %v6687 = vrot.slane %v6577, %v6686
        %v6689 = vmul.f32 %v6675, %v6687
        %v6690 = vmul.f32 %v6676, %v6687
        %v6691 = vmul.f32 %v6677, %v6687
        %v6692 = vmul.f32 %v6678, %v6687
        %v6693 = vmul.f32 %v6679, %v6687
        %v6694 = vmul.f32 %v6680, %v6687
        %v6695 = vmul.f32 %v6681, %v6687
        %v6696 = vmul.f32 %v6682, %v6687
        %v6698 = vlaneseq
        %v6699 = vshrl.u32 %v6698, 7
        %v6700 = vsub.s32 0, %v6699
        %v6701 = vrot.slane %v6578, %v6700
        %v6703 = vadd.f32 %v6689, %v6701
        %v6704 = vadd.f32 %v6690, %v6701
        %v6705 = vadd.f32 %v6691, %v6701
        %v6706 = vadd.f32 %v6692, %v6701
        %v6707 = vadd.f32 %v6693, %v6701
        %v6708 = vadd.f32 %v6694, %v6701
        %v6709 = vadd.f32 %v6695, %v6701
        %v6710 = vadd.f32 %v6696, %v6701
        %v6711 = vld [vmem:[%s1273] sm:$0xff]
        %v6712 = vld [vmem:[%s1273 + $0x8] sm:$0xff]
        %v6713 = vld [vmem:[%s1273 + $0x10] sm:$0xff]
        %v6714 = vld [vmem:[%s1273 + $0x18] sm:$0xff]
        %v6715 = vld [vmem:[%s1276] sm:$0x1]
        %v6717 = vlaneseq
        %v6718 = vshrl.u32 %v6717, 7
        %v6719 = vsub.s32 0, %v6718
        %v6720 = vrot.slane %v6715, %v6719
        %v6723 = vsel %vm4031, %v6703, 0
        %v6726 = vsel %vm4031, %v6704, 0
        %v6729 = vsel %vm4031, %v6705, 0
        %v6732 = vsel %vm4031, %v6706, 0
        %v6735 = vsel %vm4031, %v6707, 0
        %v6738 = vsel %vm4031, %v6708, 0
        %v6741 = vsel %vm4031, %v6709, 0
        %v6744 = vsel %vm4031, %v6710, 0
        %6746 = vmatprep.subr.mxu0 0.0
        %6747 = vmatpush1.msra.mxu0 %v6711
        %6748 = vmatprep.subr.mxu0 0.0
        %6749 = vmatpush1.msra.mxu0 %v6712
        %6750 = vmatprep.subr.mxu0 0.0
        %6751 = vmatpush1.msra.mxu0 %v6713
        %6752 = vmatprep.subr.mxu0 0.0
        %6753 = vmatpush1.msra.mxu0 %v6714
        %6754 = vmatprep.subr.mxu0 0.0
        %6755 = vmatpush1.msra.mxu0 0.0
        %6756 = vmatprep.subr.mxu0 0.0
        %6757 = vmatpush1.msra.mxu0 0.0
        %6758 = vmatprep.subr.mxu0 0.0
        %6759 = vmatpush1.msra.mxu0 0.0
        %6760 = vmatprep.subr.mxu0 0.0
        %6761 = vmatpush1.msra.mxu0 0.0
        %6762 = vmatprep.subr.mxu0 0.0
        %6763 = vmatpush1.msra.mxu0 0.0
        %6764 = vmatprep.subr.mxu0 0.0
        %6765 = vmatpush1.msra.mxu0 0.0
        %6766 = vmatprep.subr.mxu0 0.0
        %6767 = vmatpush1.msra.mxu0 0.0
        %6768 = vmatprep.subr.mxu0 0.0
        %6769 = vmatpush1.msra.mxu0 0.0
        %6770 = vmatprep.subr.mxu0 0.0
        %6771 = vmatpush1.msra.mxu0 0.0
        %6772 = vmatprep.subr.mxu0 0.0
        %6773 = vmatpush1.msra.mxu0 0.0
        %6774 = vmatprep.subr.mxu0 0.0
        %6775 = vmatpush1.msra.mxu0 0.0
        %6776 = vmatprep.subr.mxu0 0.0
        %6777 = vmatpush1.msra.mxu0 0.0
        %6778 = vmatprep.subr.mxu0 0.0
        %6779 = vmatpush1.msra.mxu0 0.0
        %6780 = vmatprep.subr.mxu0 0.0
        %6781 = vmatpush1.msra.mxu0 0.0
        %6782 = vmatprep.subr.mxu0 0.0
        %6783 = vmatpush1.msra.mxu0 0.0
        %6784 = vmatprep.subr.mxu0 0.0
        %6785 = vmatpush1.msra.mxu0 0.0
        %6786 = vmatprep.subr.mxu0 0.0
        %6787 = vmatpush1.msra.mxu0 0.0
        %6788 = vmatprep.subr.mxu0 0.0
        %6789 = vmatpush1.msra.mxu0 0.0
        %6790 = vmatprep.subr.mxu0 0.0
        %6791 = vmatpush1.msra.mxu0 0.0
        %6792 = vmatprep.subr.mxu0 0.0
        %6793 = vmatpush1.msra.mxu0 0.0
        %6794 = vmatprep.subr.mxu0 0.0
        %6795 = vmatpush1.msra.mxu0 0.0
        %6796 = vmatprep.subr.mxu0 0.0
        %6797 = vmatpush1.msra.mxu0 0.0
        %6798 = vmatprep.subr.mxu0 0.0
        %6799 = vmatpush1.msra.mxu0 0.0
        %6800 = vmatprep.subr.mxu0 0.0
        %6801 = vmatpush1.msra.mxu0 0.0
        %6802 = vmatprep.subr.mxu0 0.0
        %6803 = vmatpush1.msra.mxu0 0.0
        %6804 = vmatprep.subr.mxu0 0.0
        %6805 = vmatpush1.msra.mxu0 0.0
        %6806 = vmatprep.subr.mxu0 0.0
        %6807 = vmatpush1.msra.mxu0 0.0
        %6808 = vmatprep.subr.mxu0 0.0
        %6809 = vmatpush1.msra.mxu0 0.0
        %6810 = vmatprep.mubr.f32.mxu0 0.0
        %6811 = vmatmul.mubr.f32.gmra.mrb[0].mxu0 %v6723
        %v6812 = vpop.f32.mrb[0].mxu0
        %v6813 = vadd.f32 %v6720, %v6812
        %v6814 = vpop.f32.mrb[0].mxu0
        %6815 = vmatprep.mubr.f32.mxu0 0.0
        %6816 = vmatmul.mubr.f32.gmra.mrb[0].mxu0 %v6726
        %v6817 = vpop.f32.mrb[0].mxu0
        %v6818 = vadd.f32 %v6720, %v6817
        %v6819 = vpop.f32.mrb[0].mxu0
        %6820 = vmatprep.mubr.f32.mxu0 0.0
        %6821 = vmatmul.mubr.f32.gmra.mrb[0].mxu0 %v6729
        %v6822 = vpop.f32.mrb[0].mxu0
        %v6823 = vadd.f32 %v6720, %v6822
        %v6824 = vpop.f32.mrb[0].mxu0
        %6825 = vmatprep.mubr.f32.mxu0 0.0
        %6826 = vmatmul.mubr.f32.gmra.mrb[0].mxu0 %v6732
        %v6827 = vpop.f32.mrb[0].mxu0
        %v6828 = vadd.f32 %v6720, %v6827
        %v6829 = vpop.f32.mrb[0].mxu0
        %6830 = vmatprep.mubr.f32.mxu0 0.0
        %6831 = vmatmul.mubr.f32.gmra.mrb[0].mxu0 %v6735
        %v6832 = vpop.f32.mrb[0].mxu0
        %v6833 = vadd.f32 %v6720, %v6832
        %v6834 = vpop.f32.mrb[0].mxu0
        %6835 = vmatprep.mubr.f32.mxu0 0.0
        %6836 = vmatmul.mubr.f32.gmra.mrb[0].mxu0 %v6738
        %v6837 = vpop.f32.mrb[0].mxu0
        %v6838 = vadd.f32 %v6720, %v6837
        %v6839 = vpop.f32.mrb[0].mxu0
        %6840 = vmatprep.mubr.f32.mxu0 0.0
        %6841 = vmatmul.mubr.f32.gmra.mrb[0].mxu0 %v6741
        %v6842 = vpop.f32.mrb[0].mxu0
        %v6843 = vadd.f32 %v6720, %v6842
        %v6844 = vpop.f32.mrb[0].mxu0
        %6845 = vmatprep.mubr.f32.mxu0 0.0
        %6846 = vmatmul.mubr.f32.gmra.mrb[0].mxu0 %v6744
        %v6847 = vpop.f32.mrb[0].mxu0
        %v6848 = vadd.f32 %v6720, %v6847
        %v6849 = vpop.f32.mrb[0].mxu0
        %6850 = vdwg.mxu0
        %v6851 = vmul.f32 %v6813, %v6813
        %v6852 = vmul.f32 %v6818, %v6818
        %v6853 = vmul.f32 %v6823, %v6823
        %v6854 = vmul.f32 %v6828, %v6828
        %v6855 = vmul.f32 %v6833, %v6833
        %v6856 = vmul.f32 %v6838, %v6838
        %v6857 = vmul.f32 %v6843, %v6843
        %v6858 = vmul.f32 %v6848, %v6848
        %v6859 = vmul.f32 %v6813, %v6851
        %v6860 = vmul.f32 %v6818, %v6852
        %v6861 = vmul.f32 %v6823, %v6853
        %v6862 = vmul.f32 %v6828, %v6854
        %v6863 = vmul.f32 %v6833, %v6855
        %v6864 = vmul.f32 %v6838, %v6856
        %v6865 = vmul.f32 %v6843, %v6857
        %v6866 = vmul.f32 %v6848, %v6858
        %v6867 = vmul.f32 %v6859, 0.044715
        %v6868 = vmul.f32 %v6860, 0.044715
        %v6869 = vmul.f32 %v6861, 0.044715
        %v6870 = vmul.f32 %v6862, 0.044715
        %v6871 = vmul.f32 %v6863, 0.044715
        %v6872 = vmul.f32 %v6864, 0.044715
        %v6873 = vmul.f32 %v6865, 0.044715
        %v6874 = vmul.f32 %v6866, 0.044715
        %v6875 = vadd.f32 %v6813, %v6867
        %v6876 = vadd.f32 %v6818, %v6868
        %v6877 = vadd.f32 %v6823, %v6869
        %v6878 = vadd.f32 %v6828, %v6870
        %v6879 = vadd.f32 %v6833, %v6871
        %v6880 = vadd.f32 %v6838, %v6872
        %v6881 = vadd.f32 %v6843, %v6873
        %v6882 = vadd.f32 %v6848, %v6874
        %v6883 = vmul.f32 %v6875, 0.7978846
        %v6884 = vmul.f32 %v6876, 0.7978846
        %v6885 = vmul.f32 %v6877, 0.7978846
        %v6886 = vmul.f32 %v6878, 0.7978846
        %v6887 = vmul.f32 %v6879, 0.7978846
        %v6888 = vmul.f32 %v6880, 0.7978846
        %v6889 = vmul.f32 %v6881, 0.7978846
        %v6890 = vmul.f32 %v6882, 0.7978846
        %v6891 = vtanh.pop %v6883
        %v6892 = vtanh.pop %v6884
        %v6893 = vtanh.pop %v6885
        %v6894 = vtanh.pop %v6886
        %v6895 = vtanh.pop %v6887
        %v6896 = vtanh.pop %v6888
        %v6897 = vtanh.pop %v6889
        %v6898 = vtanh.pop %v6890
        %v6899 = vadd.f32 %v6891, 1.0
        %v6900 = vadd.f32 %v6892, 1.0
        %v6901 = vadd.f32 %v6893, 1.0
        %v6902 = vadd.f32 %v6894, 1.0
        %v6903 = vadd.f32 %v6895, 1.0
        %v6904 = vadd.f32 %v6896, 1.0
        %v6905 = vadd.f32 %v6897, 1.0
        %v6906 = vadd.f32 %v6898, 1.0
        %v6907 = vmul.f32 %v6899, 0.5
        %v6908 = vmul.f32 %v6900, 0.5
        %v6909 = vmul.f32 %v6901, 0.5
        %v6910 = vmul.f32 %v6902, 0.5
        %v6911 = vmul.f32 %v6903, 0.5
        %v6912 = vmul.f32 %v6904, 0.5
        %v6913 = vmul.f32 %v6905, 0.5
        %v6914 = vmul.f32 %v6906, 0.5
        %v6915 = vmul.f32 %v6813, %v6907
        %v6916 = vmul.f32 %v6818, %v6908
        %v6917 = vmul.f32 %v6823, %v6909
        %v6918 = vmul.f32 %v6828, %v6910
        %v6919 = vmul.f32 %v6833, %v6911
        %v6920 = vmul.f32 %v6838, %v6912
        %v6921 = vmul.f32 %v6843, %v6913
        %v6922 = vmul.f32 %v6848, %v6914
        %v6923 = vld [vmem:[%s1281] sm:$0xff]
        %v6924 = vld [vmem:[%s1281 + $0x8] sm:$0xff]
        %v6925 = vld [vmem:[%s1281 + $0x10] sm:$0xff]
        %v6926 = vld [vmem:[%s1281 + $0x18] sm:$0xff]
        %v6927 = vld [vmem:[%s1281 + $0x20] sm:$0xff]
        %v6928 = vld [vmem:[%s1281 + $0x28] sm:$0xff]
        %v6929 = vld [vmem:[%s1281 + $0x30] sm:$0xff]
        %v6930 = vld [vmem:[%s1281 + $0x38] sm:$0xff]
        %vm6931 = vcmask 523264
        %v6933 = vsel %vm6931, %v6915, 0
        %v6936 = vsel %vm6931, %v6916, 0
        %v6939 = vsel %vm6931, %v6917, 0
        %v6942 = vsel %vm6931, %v6918, 0
        %v6945 = vsel %vm6931, %v6919, 0
        %v6948 = vsel %vm6931, %v6920, 0
        %v6951 = vsel %vm6931, %v6921, 0
        %v6954 = vsel %vm6931, %v6922, 0
        %6956 = vmatprep.subr.mxu0 0.0
        %6957 = vmatpush1.msra.mxu0 %v6923
        %6958 = vmatprep.subr.mxu0 0.0
        %6959 = vmatpush1.msra.mxu0 %v6924
        %6960 = vmatprep.subr.mxu0 0.0
        %6961 = vmatpush1.msra.mxu0 %v6925
        %6962 = vmatprep.subr.mxu0 0.0
        %6963 = vmatpush1.msra.mxu0 %v6926
        %6964 = vmatprep.subr.mxu0 0.0
        %6965 = vmatpush1.msra.mxu0 %v6927
        %6966 = vmatprep.subr.mxu0 0.0
        %6967 = vmatpush1.msra.mxu0 %v6928
        %6968 = vmatprep.subr.mxu0 0.0
        %6969 = vmatpush1.msra.mxu0 %v6929
        %6970 = vmatprep.subr.mxu0 0.0
        %6971 = vmatpush1.msra.mxu0 %v6930
        %6972 = vmatprep.subr.mxu0 0.0
        %6973 = vmatpush1.msra.mxu0 0.0
        %6974 = vmatprep.subr.mxu0 0.0
        %6975 = vmatpush1.msra.mxu0 0.0
        %6976 = vmatprep.subr.mxu0 0.0
        %6977 = vmatpush1.msra.mxu0 0.0
        %6978 = vmatprep.subr.mxu0 0.0
        %6979 = vmatpush1.msra.mxu0 0.0
        %6980 = vmatprep.subr.mxu0 0.0
        %6981 = vmatpush1.msra.mxu0 0.0
        %6982 = vmatprep.subr.mxu0 0.0
        %6983 = vmatpush1.msra.mxu0 0.0
        %6984 = vmatprep.subr.mxu0 0.0
        %6985 = vmatpush1.msra.mxu0 0.0
        %6986 = vmatprep.subr.mxu0 0.0
        %6987 = vmatpush1.msra.mxu0 0.0
        %6988 = vmatprep.subr.mxu0 0.0
        %6989 = vmatpush1.msra.mxu0 0.0
        %6990 = vmatprep.subr.mxu0 0.0
        %6991 = vmatpush1.msra.mxu0 0.0
        %6992 = vmatprep.subr.mxu0 0.0
        %6993 = vmatpush1.msra.mxu0 0.0
        %6994 = vmatprep.subr.mxu0 0.0
        %6995 = vmatpush1.msra.mxu0 0.0
        %6996 = vmatprep.subr.mxu0 0.0
        %6997 = vmatpush1.msra.mxu0 0.0
        %6998 = vmatprep.subr.mxu0 0.0
        %6999 = vmatpush1.msra.mxu0 0.0
        %7000 = vmatprep.subr.mxu0 0.0
        %7001 = vmatpush1.msra.mxu0 0.0
        %7002 = vmatprep.subr.mxu0 0.0
        %7003 = vmatpush1.msra.mxu0 0.0
        %7004 = vmatprep.subr.mxu0 0.0
        %7005 = vmatpush1.msra.mxu0 0.0
        %7006 = vmatprep.subr.mxu0 0.0
        %7007 = vmatpush1.msra.mxu0 0.0
        %7008 = vmatprep.subr.mxu0 0.0
        %7009 = vmatpush1.msra.mxu0 0.0
        %7010 = vmatprep.subr.mxu0 0.0
        %7011 = vmatpush1.msra.mxu0 0.0
        %7012 = vmatprep.subr.mxu0 0.0
        %7013 = vmatpush1.msra.mxu0 0.0
        %7014 = vmatprep.subr.mxu0 0.0
        %7015 = vmatpush1.msra.mxu0 0.0
        %7016 = vmatprep.subr.mxu0 0.0
        %7017 = vmatpush1.msra.mxu0 0.0
        %7018 = vmatprep.subr.mxu0 0.0
        %7019 = vmatpush1.msra.mxu0 0.0
        %7020 = vmatprep.mubr.f32.mxu0 0.0
        %7021 = vmatmul.mubr.f32.gmra.mrb[0].mxu0 %v6933
        %v7022 = vpop.f32.mrb[0].mxu0
        %v7023 = vadd.f32 0.0, %v7022
        %v7024 = vpop.f32.mrb[0].mxu0
        %7025 = vmatprep.mubr.f32.mxu0 0.0
        %7026 = vmatmul.mubr.f32.gmra.mrb[0].mxu0 %v6936
        %v7027 = vpop.f32.mrb[0].mxu0
        %v7028 = vadd.f32 0.0, %v7027
        %v7029 = vpop.f32.mrb[0].mxu0
        %7030 = vmatprep.mubr.f32.mxu0 0.0
        %7031 = vmatmul.mubr.f32.gmra.mrb[0].mxu0 %v6939
        %v7032 = vpop.f32.mrb[0].mxu0
        %v7033 = vadd.f32 0.0, %v7032
        %v7034 = vpop.f32.mrb[0].mxu0
        %7035 = vmatprep.mubr.f32.mxu0 0.0
        %7036 = vmatmul.mubr.f32.gmra.mrb[0].mxu0 %v6942
        %v7037 = vpop.f32.mrb[0].mxu0
        %v7038 = vadd.f32 0.0, %v7037
        %v7039 = vpop.f32.mrb[0].mxu0
        %7040 = vmatprep.mubr.f32.mxu0 0.0
        %7041 = vmatmul.mubr.f32.gmra.mrb[0].mxu0 %v6945
        %v7042 = vpop.f32.mrb[0].mxu0
        %v7043 = vadd.f32 0.0, %v7042
        %v7044 = vpop.f32.mrb[0].mxu0
        %7045 = vmatprep.mubr.f32.mxu0 0.0
        %7046 = vmatmul.mubr.f32.gmra.mrb[0].mxu0 %v6948
        %v7047 = vpop.f32.mrb[0].mxu0
        %v7048 = vadd.f32 0.0, %v7047
        %v7049 = vpop.f32.mrb[0].mxu0
        %7050 = vmatprep.mubr.f32.mxu0 0.0
        %7051 = vmatmul.mubr.f32.gmra.mrb[0].mxu0 %v6951
        %v7052 = vpop.f32.mrb[0].mxu0
        %v7053 = vadd.f32 0.0, %v7052
        %v7054 = vpop.f32.mrb[0].mxu0
        %7055 = vmatprep.mubr.f32.mxu0 0.0
        %7056 = vmatmul.mubr.f32.gmra.mrb[0].mxu0 %v6954
        %v7057 = vpop.f32.mrb[0].mxu0
        %v7058 = vadd.f32 0.0, %v7057
        %v7059 = vpop.f32.mrb[0].mxu0
        %7060 = vdwg.mxu0
        %v7061 = vadd.f32 %v6569, %v7023
        %v7062 = vadd.f32 %v6570, %v7028
        %v7063 = vadd.f32 %v6571, %v7033
        %v7064 = vadd.f32 %v6572, %v7038
        %v7065 = vadd.f32 %v6573, %v7043
        %v7066 = vadd.f32 %v6574, %v7048
        %v7067 = vadd.f32 %v6575, %v7053
        %v7068 = vadd.f32 %v6576, %v7058
        %v7069 = vld [vmem:[%s1284] sm:$0x1]
        %v7071 = vlaneseq
        %v7072 = vshrl.u32 %v7071, 7
        %v7073 = vsub.s32 0, %v7072
        %v7074 = vrot.slane %v7069, %v7073
        %v7076 = vadd.f32 %v7061, %v7074
        %v7077 = vadd.f32 %v7062, %v7074
        %v7078 = vadd.f32 %v7063, %v7074
        %v7079 = vadd.f32 %v7064, %v7074
        %v7080 = vadd.f32 %v7065, %v7074
        %v7081 = vadd.f32 %v7066, %v7074
        %v7082 = vadd.f32 %v7067, %v7074
        %v7083 = vadd.f32 %v7068, %v7074
        %7084 = vst.msk [vmem:[#allocation2] sm:$0xff] %vm4031, %v7076
        %7085 = vst.msk [vmem:[#allocation2 + $0x8] sm:$0xff] %vm4031, %v7077
        %7086 = vst.msk [vmem:[#allocation2 + $0x10] sm:$0xff] %vm4031, %v7078
        %7087 = vst.msk [vmem:[#allocation2 + $0x18] sm:$0xff] %vm4031, %v7079
        %7088 = vst.msk [vmem:[#allocation2 + $0x20] sm:$0xff] %vm4031, %v7080
        %7089 = vst.msk [vmem:[#allocation2 + $0x28] sm:$0xff] %vm4031, %v7081
        %7090 = vst.msk [vmem:[#allocation2 + $0x30] sm:$0xff] %vm4031, %v7082
        %7091 = vst.msk [vmem:[#allocation2 + $0x38] sm:$0x3f] %vm4053, %v7083
        %p7092 = scmp.eq.s32.totalorder %s87, 1
        // Predicated region
        $region173: #{base_model_forward.1} parent=167 // pred_check
          %p7093 = pneg %p7092
        $region174: #{base_model_forward.1} parent=167 // pred_check_branch
          %7095 = sbr.rel (%p7093) target = $region176
        $region175: #{base_model_forward.1} parent=167 // pred_region
          %v7096 = vld [vmem:[#allocation2] sm:$0xff]
          %v7097 = vld [vmem:[#allocation2 + $0x8] sm:$0xff]
          %v7098 = vld [vmem:[#allocation2 + $0x10] sm:$0xff]
          %v7099 = vld [vmem:[#allocation2 + $0x18] sm:$0xff]
          %v7100 = vld [vmem:[#allocation2 + $0x20] sm:$0xff]
          %v7101 = vld [vmem:[#allocation2 + $0x28] sm:$0xff]
          %v7102 = vld [vmem:[#allocation2 + $0x30] sm:$0xff]
          %v7103 = vld [vmem:[#allocation2 + $0x38] sm:$0x3f]
          %v7104 = vld [vmem:[%s63] sm:$0x1]
          %v7105 = vld [vmem:[%s65] sm:$0x1]
          %v7106 = vsel %vm4031, %v7096, 0.0
          %7107 = vadd.xlane.f32.xlu0 %v7106
          %v7108 = vpop.xlane.xlu0 %7107
          %v7109 = vsel %vm4031, %v7097, 0.0
          %7110 = vadd.xlane.f32.xlu0 %v7109
          %v7111 = vpop.xlane.xlu0 %7110
          %v7112 = vsel %vm4031, %v7098, 0.0
          %7113 = vadd.xlane.f32.xlu0 %v7112
          %v7114 = vpop.xlane.xlu0 %7113
          %v7115 = vsel %vm4031, %v7099, 0.0
          %7116 = vadd.xlane.f32.xlu0 %v7115
          %v7117 = vpop.xlane.xlu0 %7116
          %v7118 = vsel %vm4031, %v7100, 0.0
          %7119 = vadd.xlane.f32.xlu0 %v7118
          %v7120 = vpop.xlane.xlu0 %7119
          %v7121 = vsel %vm4031, %v7101, 0.0
          %7122 = vadd.xlane.f32.xlu0 %v7121
          %v7123 = vpop.xlane.xlu0 %7122
          %v7124 = vsel %vm4031, %v7102, 0.0
          %7125 = vadd.xlane.f32.xlu0 %v7124
          %v7126 = vpop.xlane.xlu0 %7125
          %v7127 = vsel %vm4053, %v7103, 0.0
          %7128 = vadd.xlane.f32.xlu0 %v7127
          %v7129 = vpop.xlane.xlu0 %7128
          %v7130 = vmul.f32 %v7108, %v4057
          %v7131 = vmul.f32 %v7111, %v4057
          %v7132 = vmul.f32 %v7114, %v4057
          %v7133 = vmul.f32 %v7117, %v4057
          %v7134 = vmul.f32 %v7120, %v4057
          %v7135 = vmul.f32 %v7123, %v4057
          %v7136 = vmul.f32 %v7126, %v4057
          %v7137 = vmul.f32 %v7129, %v4057
          %v7138 = vsub.f32 %v7096, %v7130
          %v7139 = vsub.f32 %v7097, %v7131
          %v7140 = vsub.f32 %v7098, %v7132
          %v7141 = vsub.f32 %v7099, %v7133
          %v7142 = vsub.f32 %v7100, %v7134
          %v7143 = vsub.f32 %v7101, %v7135
          %v7144 = vsub.f32 %v7102, %v7136
          %v7145 = vsub.f32 %v7103, %v7137
          %v7146 = vmul.f32 %v7138, %v7138
          %v7147 = vmul.f32 %v7139, %v7139
          %v7148 = vmul.f32 %v7140, %v7140
          %v7149 = vmul.f32 %v7141, %v7141
          %v7150 = vmul.f32 %v7142, %v7142
          %v7151 = vmul.f32 %v7143, %v7143
          %v7152 = vmul.f32 %v7144, %v7144
          %v7153 = vmul.f32 %v7145, %v7145
          %v7154 = vsel %vm4031, %v7146, 0.0
          %7155 = vadd.xlane.f32.xlu0 %v7154
          %v7156 = vpop.xlane.xlu0 %7155
          %v7157 = vsel %vm4031, %v7147, 0.0
          %7158 = vadd.xlane.f32.xlu0 %v7157
          %v7159 = vpop.xlane.xlu0 %7158
          %v7160 = vsel %vm4031, %v7148, 0.0
          %7161 = vadd.xlane.f32.xlu0 %v7160
          %v7162 = vpop.xlane.xlu0 %7161
          %v7163 = vsel %vm4031, %v7149, 0.0
          %7164 = vadd.xlane.f32.xlu0 %v7163
          %v7165 = vpop.xlane.xlu0 %7164
          %v7166 = vsel %vm4031, %v7150, 0.0
          %7167 = vadd.xlane.f32.xlu0 %v7166
          %v7168 = vpop.xlane.xlu0 %7167
          %v7169 = vsel %vm4031, %v7151, 0.0
          %7170 = vadd.xlane.f32.xlu0 %v7169
          %v7171 = vpop.xlane.xlu0 %7170
          %v7172 = vsel %vm4031, %v7152, 0.0
          %7173 = vadd.xlane.f32.xlu0 %v7172
          %v7174 = vpop.xlane.xlu0 %7173
          %v7175 = vsel %vm4053, %v7153, 0.0
          %7176 = vadd.xlane.f32.xlu0 %v7175
          %v7177 = vpop.xlane.xlu0 %7176
          %v7178 = vmul.f32 %v7156, %v4057
          %v7179 = vmul.f32 %v7159, %v4057
          %v7180 = vmul.f32 %v7162, %v4057
          %v7181 = vmul.f32 %v7165, %v4057
          %v7182 = vmul.f32 %v7168, %v4057
          %v7183 = vmul.f32 %v7171, %v4057
          %v7184 = vmul.f32 %v7174, %v4057
          %v7185 = vmul.f32 %v7177, %v4057
          %v7186 = vadd.f32 %v7178, 1e-05
          %v7187 = vadd.f32 %v7179, 1e-05
          %v7188 = vadd.f32 %v7180, 1e-05
          %v7189 = vadd.f32 %v7181, 1e-05
          %v7190 = vadd.f32 %v7182, 1e-05
          %v7191 = vadd.f32 %v7183, 1e-05
          %v7192 = vadd.f32 %v7184, 1e-05
          %v7193 = vadd.f32 %v7185, 1e-05
          %v7194 = vrsqrt.pop %v7186
          %v7195 = vrsqrt.pop %v7187
          %v7196 = vrsqrt.pop %v7188
          %v7197 = vrsqrt.pop %v7189
          %v7198 = vrsqrt.pop %v7190
          %v7199 = vrsqrt.pop %v7191
          %v7200 = vrsqrt.pop %v7192
          %v7201 = vrsqrt.pop %v7193
          %v7202 = vmul.f32 %v7138, %v7194
          %v7203 = vmul.f32 %v7139, %v7195
          %v7204 = vmul.f32 %v7140, %v7196
          %v7205 = vmul.f32 %v7141, %v7197
          %v7206 = vmul.f32 %v7142, %v7198
          %v7207 = vmul.f32 %v7143, %v7199
          %v7208 = vmul.f32 %v7144, %v7200
          %v7209 = vmul.f32 %v7145, %v7201
          %v7211 = vlaneseq
          %v7212 = vshrl.u32 %v7211, 7
          %v7213 = vsub.s32 0, %v7212
          %v7214 = vrot.slane %v7104, %v7213
          %v7216 = vmul.f32 %v7202, %v7214
          %v7217 = vmul.f32 %v7203, %v7214
          %v7218 = vmul.f32 %v7204, %v7214
          %v7219 = vmul.f32 %v7205, %v7214
          %v7220 = vmul.f32 %v7206, %v7214
          %v7221 = vmul.f32 %v7207, %v7214
          %v7222 = vmul.f32 %v7208, %v7214
          %v7223 = vmul.f32 %v7209, %v7214
          %v7225 = vlaneseq
          %v7226 = vshrl.u32 %v7225, 7
          %v7227 = vsub.s32 0, %v7226
          %v7228 = vrot.slane %v7105, %v7227
          %v7230 = vadd.f32 %v7216, %v7228
          %v7231 = vadd.f32 %v7217, %v7228
          %v7232 = vadd.f32 %v7218, %v7228
          %v7233 = vadd.f32 %v7219, %v7228
          %v7234 = vadd.f32 %v7220, %v7228
          %v7235 = vadd.f32 %v7221, %v7228
          %v7236 = vadd.f32 %v7222, %v7228
          %v7237 = vadd.f32 %v7223, %v7228
          %v7238 = vld [vmem:[%s37] sm:$0x3]
          %v7240 = vsel %vm4496, %v7238, 0
          %v7243 = vsel %vm4633, %v7237, 0
          %7245 = vmatprep.subr.mxu0 0.0
          %7246 = vmatpush1.msra.mxu0 %v7230
          %7247 = vmatprep.subr.mxu0 0.0
          %7248 = vmatpush1.msra.mxu0 %v7231
          %7249 = vmatprep.subr.mxu0 0.0
          %7250 = vmatpush1.msra.mxu0 %v7232
          %7251 = vmatprep.subr.mxu0 0.0
          %7252 = vmatpush1.msra.mxu0 %v7233
          %7253 = vmatprep.subr.mxu0 0.0
          %7254 = vmatpush1.msra.mxu0 %v7234
          %7255 = vmatprep.subr.mxu0 0.0
          %7256 = vmatpush1.msra.mxu0 %v7235
          %7257 = vmatprep.subr.mxu0 0.0
          %7258 = vmatpush1.msra.mxu0 %v7236
          %7259 = vmatprep.subr.mxu0 0.0
          %7260 = vmatpush1.msra.mxu0 %v7243
          %7261 = vmatprep.subr.mxu0 0.0
          %7262 = vmatpush1.msra.mxu0 0.0
          %7263 = vmatprep.subr.mxu0 0.0
          %7264 = vmatpush1.msra.mxu0 0.0
          %7265 = vmatprep.subr.mxu0 0.0
          %7266 = vmatpush1.msra.mxu0 0.0
          %7267 = vmatprep.subr.mxu0 0.0
          %7268 = vmatpush1.msra.mxu0 0.0
          %7269 = vmatprep.subr.mxu0 0.0
          %7270 = vmatpush1.msra.mxu0 0.0
          %7271 = vmatprep.subr.mxu0 0.0
          %7272 = vmatpush1.msra.mxu0 0.0
          %7273 = vmatprep.subr.mxu0 0.0
          %7274 = vmatpush1.msra.mxu0 0.0
          %7275 = vmatprep.subr.mxu0 0.0
          %7276 = vmatpush1.msra.mxu0 0.0
          %7277 = vmatprep.subr.mxu0 0.0
          %7278 = vmatpush1.msra.mxu0 0.0
          %7279 = vmatprep.subr.mxu0 0.0
          %7280 = vmatpush1.msra.mxu0 0.0
          %7281 = vmatprep.subr.mxu0 0.0
          %7282 = vmatpush1.msra.mxu0 0.0
          %7283 = vmatprep.subr.mxu0 0.0
          %7284 = vmatpush1.msra.mxu0 0.0
          %7285 = vmatprep.subr.mxu0 0.0
          %7286 = vmatpush1.msra.mxu0 0.0
          %7287 = vmatprep.subr.mxu0 0.0
          %7288 = vmatpush1.msra.mxu0 0.0
          %7289 = vmatprep.subr.mxu0 0.0
          %7290 = vmatpush1.msra.mxu0 0.0
          %7291 = vmatprep.subr.mxu0 0.0
          %7292 = vmatpush1.msra.mxu0 0.0
          %7293 = vmatprep.subr.mxu0 0.0
          %7294 = vmatpush1.msra.mxu0 0.0
          %7295 = vmatprep.subr.mxu0 0.0
          %7296 = vmatpush1.msra.mxu0 0.0
          %7297 = vmatprep.subr.mxu0 0.0
          %7298 = vmatpush1.msra.mxu0 0.0
          %7299 = vmatprep.subr.mxu0 0.0
          %7300 = vmatpush1.msra.mxu0 0.0
          %7301 = vmatprep.subr.mxu0 0.0
          %7302 = vmatpush1.msra.mxu0 0.0
          %7303 = vmatprep.subr.mxu0 0.0
          %7304 = vmatpush1.msra.mxu0 0.0
          %7305 = vmatprep.subr.mxu0 0.0
          %7306 = vmatpush1.msra.mxu0 0.0
          %7307 = vmatprep.subr.mxu0 0.0
          %7308 = vmatpush1.msra.mxu0 0.0
          %7309 = vmatprep.mubr.f32.mxu0 0.0
          %7310 = vmatmul.mubr.f32.gmra.mrb[0].mxu0 %v7240
          %v7311 = vpop.f32.mrb[0].mxu0
          %v7312 = vadd.f32 0.0, %v7311
          %v7313 = vpop.f32.mrb[0].mxu0
          %7314 = vdwg.mxu0
          %v7315 = vld [vmem:[%s67] sm:$0xff]
          %v7316 = vld [vmem:[%s67 + $0x8] sm:$0xff]
          %v7317 = vld [vmem:[%s67 + $0x10] sm:$0xff]
          %v7318 = vld [vmem:[%s67 + $0x18] sm:$0xff]
          %v7319 = vld [vmem:[%s67 + $0x20] sm:$0xff]
          %v7320 = vld [vmem:[%s67 + $0x28] sm:$0xff]
          %v7321 = vld [vmem:[%s67 + $0x30] sm:$0xff]
          %v7322 = vld [vmem:[%s67 + $0x38] sm:$0xff]
          %v7323 = vld [vmem:[%s69] sm:$0x3]
          %v7325 = vlaneseq
          %v7326 = vshrl.u32 %v7325, 7
          %v7327 = vsub.s32 0, %v7326
          %v7328 = vrot.slane %v7323, %v7327
          %v7329 = vlaneseq
          %v7330 = vshrl.u32 %v7329, 7
          %v7331 = vsub.s32 1, %v7330
          %v7332 = vrot.slane %v7323, %v7331
          %v7336 = vsel %vm4031, %v7312, 0
          %7338 = vmatprep.subr.mxu0 %v7316
          %7339 = vmatpush1.msra.mxu0 %v7315
          %7340 = vmatprep.subr.mxu0 %v7318
          %7341 = vmatpush1.msra.mxu0 %v7317
          %7342 = vmatprep.subr.mxu0 %v7320
          %7343 = vmatpush1.msra.mxu0 %v7319
          %7344 = vmatprep.subr.mxu0 %v7322
          %7345 = vmatpush1.msra.mxu0 %v7321
          %7346 = vmatprep.subr.mxu0 0.0
          %7347 = vmatpush1.msra.mxu0 0.0
          %7348 = vmatprep.subr.mxu0 0.0
          %7349 = vmatpush1.msra.mxu0 0.0
          %7350 = vmatprep.subr.mxu0 0.0
          %7351 = vmatpush1.msra.mxu0 0.0
          %7352 = vmatprep.subr.mxu0 0.0
          %7353 = vmatpush1.msra.mxu0 0.0
          %7354 = vmatprep.subr.mxu0 0.0
          %7355 = vmatpush1.msra.mxu0 0.0
          %7356 = vmatprep.subr.mxu0 0.0
          %7357 = vmatpush1.msra.mxu0 0.0
          %7358 = vmatprep.subr.mxu0 0.0
          %7359 = vmatpush1.msra.mxu0 0.0
          %7360 = vmatprep.subr.mxu0 0.0
          %7361 = vmatpush1.msra.mxu0 0.0
          %7362 = vmatprep.subr.mxu0 0.0
          %7363 = vmatpush1.msra.mxu0 0.0
          %7364 = vmatprep.subr.mxu0 0.0
          %7365 = vmatpush1.msra.mxu0 0.0
          %7366 = vmatprep.subr.mxu0 0.0
          %7367 = vmatpush1.msra.mxu0 0.0
          %7368 = vmatprep.subr.mxu0 0.0
          %7369 = vmatpush1.msra.mxu0 0.0
          %7370 = vmatprep.subr.mxu0 0.0
          %7371 = vmatpush1.msra.mxu0 0.0
          %7372 = vmatprep.subr.mxu0 0.0
          %7373 = vmatpush1.msra.mxu0 0.0
          %7374 = vmatprep.subr.mxu0 0.0
          %7375 = vmatpush1.msra.mxu0 0.0
          %7376 = vmatprep.subr.mxu0 0.0
          %7377 = vmatpush1.msra.mxu0 0.0
          %7378 = vmatprep.subr.mxu0 0.0
          %7379 = vmatpush1.msra.mxu0 0.0
          %7380 = vmatprep.subr.mxu0 0.0
          %7381 = vmatpush1.msra.mxu0 0.0
          %7382 = vmatprep.subr.mxu0 0.0
          %7383 = vmatpush1.msra.mxu0 0.0
          %7384 = vmatprep.subr.mxu0 0.0
          %7385 = vmatpush1.msra.mxu0 0.0
          %7386 = vmatprep.subr.mxu0 0.0
          %7387 = vmatpush1.msra.mxu0 0.0
          %7388 = vmatprep.subr.mxu0 0.0
          %7389 = vmatpush1.msra.mxu0 0.0
          %7390 = vmatprep.subr.mxu0 0.0
          %7391 = vmatpush1.msra.mxu0 0.0
          %7392 = vmatprep.subr.mxu0 0.0
          %7393 = vmatpush1.msra.mxu0 0.0
          %7394 = vmatprep.subr.mxu0 0.0
          %7395 = vmatpush1.msra.mxu0 0.0
          %7396 = vmatprep.subr.mxu0 0.0
          %7397 = vmatpush1.msra.mxu0 0.0
          %7398 = vmatprep.subr.mxu0 0.0
          %7399 = vmatpush1.msra.mxu0 0.0
          %7400 = vmatprep.subr.mxu0 0.0
          %7401 = vmatpush1.msra.mxu0 0.0
          %7402 = vmatprep.mubr.f32.mxu0 0.0
          %7403 = vmatmul.mubr.f32.gmra.mrb[0].mxu0 %v7336
          %v7404 = vpop.f32.mrb[0].mxu0
          %v7405 = vadd.f32 %v7328, %v7404
          %v7406 = vpop.f32.mrb[0].mxu0
          %v7407 = vadd.f32 %v7332, %v7406
          %7408 = vdwg.mxu0
          %v7409 = vld [vmem:[%s71] sm:$0xff]
          %v7410 = vld [vmem:[%s71 + $0x8] sm:$0xff]
          %v7411 = vld [vmem:[%s71 + $0x10] sm:$0xff]
          %v7412 = vld [vmem:[%s71 + $0x18] sm:$0xff]
          %v7413 = vld [vmem:[%s71 + $0x20] sm:$0xff]
          %v7414 = vld [vmem:[%s71 + $0x28] sm:$0xff]
          %v7415 = vld [vmem:[%s71 + $0x30] sm:$0xff]
          %v7416 = vld [vmem:[%s71 + $0x38] sm:$0xff]
          %v7417 = vld [vmem:[%s71 + $0x40] sm:$0xff]
          %v7418 = vld [vmem:[%s71 + $0x48] sm:$0xff]
          %v7419 = vld [vmem:[%s71 + $0x50] sm:$0xff]
          %v7420 = vld [vmem:[%s71 + $0x58] sm:$0xff]
          %v7421 = vld [vmem:[%s71 + $0x60] sm:$0xff]
          %v7422 = vld [vmem:[%s71 + $0x68] sm:$0xff]
          %v7423 = vld [vmem:[%s71 + $0x70] sm:$0xff]
          %v7424 = vld [vmem:[%s71 + $0x78] sm:$0xff]
          %v7425 = vld [vmem:[%s71 + $0x80] sm:$0xff]
          %v7426 = vld [vmem:[%s71 + $0x88] sm:$0xff]
          %v7427 = vld [vmem:[%s71 + $0x90] sm:$0xff]
          %v7428 = vld [vmem:[%s71 + $0x98] sm:$0xff]
          %v7429 = vld [vmem:[%s71 + $0xa0] sm:$0xff]
          %v7430 = vld [vmem:[%s71 + $0xa8] sm:$0xff]
          %v7431 = vld [vmem:[%s71 + $0xb0] sm:$0xff]
          %v7432 = vld [vmem:[%s71 + $0xb8] sm:$0xff]
          %v7433 = vld [vmem:[%s71 + $0xc0] sm:$0xff]
          %v7434 = vld [vmem:[%s71 + $0xc8] sm:$0xff]
          %v7435 = vld [vmem:[%s71 + $0xd0] sm:$0xff]
          %v7436 = vld [vmem:[%s71 + $0xd8] sm:$0xff]
          %v7437 = vld [vmem:[%s71 + $0xe0] sm:$0xff]
          %v7438 = vld [vmem:[%s71 + $0xe8] sm:$0xff]
          %v7439 = vld [vmem:[%s71 + $0xf0] sm:$0xff]
          %v7440 = vld [vmem:[%s71 + $0xf8] sm:$0xff]
          %v7441 = vld [vmem:[%s73] sm:$0x1]
          %v7443 = vlaneseq
          %v7444 = vshrl.u32 %v7443, 7
          %v7445 = vsub.s32 0, %v7444
          %v7446 = vrot.slane %v7441, %v7445
          %7448 = vmatprep.subr.mxu0 0.0
          %7449 = vmatpush1.msra.mxu0 %v7409
          %7450 = vmatprep.subr.mxu0 0.0
          %7451 = vmatpush1.msra.mxu0 %v7410
          %7452 = vmatprep.subr.mxu0 0.0
          %7453 = vmatpush1.msra.mxu0 %v7411
          %7454 = vmatprep.subr.mxu0 0.0
          %7455 = vmatpush1.msra.mxu0 %v7412
          %7456 = vmatprep.subr.mxu0 0.0
          %7457 = vmatpush1.msra.mxu0 %v7413
          %7458 = vmatprep.subr.mxu0 0.0
          %7459 = vmatpush1.msra.mxu0 %v7414
          %7460 = vmatprep.subr.mxu0 0.0
          %7461 = vmatpush1.msra.mxu0 %v7415
          %7462 = vmatprep.subr.mxu0 0.0
          %7463 = vmatpush1.msra.mxu0 %v7416
          %7464 = vmatprep.subr.mxu0 0.0
          %7465 = vmatpush1.msra.mxu0 %v7417
          %7466 = vmatprep.subr.mxu0 0.0
          %7467 = vmatpush1.msra.mxu0 %v7418
          %7468 = vmatprep.subr.mxu0 0.0
          %7469 = vmatpush1.msra.mxu0 %v7419
          %7470 = vmatprep.subr.mxu0 0.0
          %7471 = vmatpush1.msra.mxu0 %v7420
          %7472 = vmatprep.subr.mxu0 0.0
          %7473 = vmatpush1.msra.mxu0 %v7421
          %7474 = vmatprep.subr.mxu0 0.0
          %7475 = vmatpush1.msra.mxu0 %v7422
          %7476 = vmatprep.subr.mxu0 0.0
          %7477 = vmatpush1.msra.mxu0 %v7423
          %7478 = vmatprep.subr.mxu0 0.0
          %7479 = vmatpush1.msra.mxu0 %v7424
          %7480 = vmatprep.subr.mxu0 0.0
          %7481 = vmatpush1.msra.mxu0 %v7425
          %7482 = vmatprep.subr.mxu0 0.0
          %7483 = vmatpush1.msra.mxu0 %v7426
          %7484 = vmatprep.subr.mxu0 0.0
          %7485 = vmatpush1.msra.mxu0 %v7427
          %7486 = vmatprep.subr.mxu0 0.0
          %7487 = vmatpush1.msra.mxu0 %v7428
          %7488 = vmatprep.subr.mxu0 0.0
          %7489 = vmatpush1.msra.mxu0 %v7429
          %7490 = vmatprep.subr.mxu0 0.0
          %7491 = vmatpush1.msra.mxu0 %v7430
          %7492 = vmatprep.subr.mxu0 0.0
          %7493 = vmatpush1.msra.mxu0 %v7431
          %7494 = vmatprep.subr.mxu0 0.0
          %7495 = vmatpush1.msra.mxu0 %v7432
          %7496 = vmatprep.subr.mxu0 0.0
          %7497 = vmatpush1.msra.mxu0 %v7433
          %7498 = vmatprep.subr.mxu0 0.0
          %7499 = vmatpush1.msra.mxu0 %v7434
          %7500 = vmatprep.subr.mxu0 0.0
          %7501 = vmatpush1.msra.mxu0 %v7435
          %7502 = vmatprep.subr.mxu0 0.0
          %7503 = vmatpush1.msra.mxu0 %v7436
          %7504 = vmatprep.subr.mxu0 0.0
          %7505 = vmatpush1.msra.mxu0 %v7437
          %7506 = vmatprep.subr.mxu0 0.0
          %7507 = vmatpush1.msra.mxu0 %v7438
          %7508 = vmatprep.subr.mxu0 0.0
          %7509 = vmatpush1.msra.mxu0 %v7439
          %7510 = vmatprep.subr.mxu0 0.0
          %7511 = vmatpush1.msra.mxu0 %v7440
          %7512 = vmatprep.mubr.f32.mxu0 %v7407
          %7513 = vmatmul.mubr.f32.gmra.mrb[0].mxu0 %v7405
          %v7514 = vpop.f32.mrb[0].mxu0
          %v7515 = vadd.f32 %v7446, %v7514
          %v7516 = vpop.f32.mrb[0].mxu0
          %7517 = vdwg.mxu0
          %vm7518 = vcmask 41984
          %7519 = vst.msk [vmem:[#allocation3] sm:$0x3] %vm7518, %v7515
        $region176: #{base_model_forward.1} parent=167 // pred_fallthru
          _
        // Predicated region
        $region177: #{base_model_forward.1} parent=167 // pred_check
          %p7520 = pneg %p937
        $region178: #{base_model_forward.1} parent=167 // pred_check_branch
          %7522 = sbr.rel (%p7520) target = $region180
        $region179: #{base_model_forward.1} parent=167 // pred_region
          %s7524 = ssub.s32 32, 32
          %7525 = vsyncadd [#allocation4], %s7524
          %s7527 = sshll.u32 [#allocation3], 4
          %s7528 = int_to_ptr.vmem [resolvable:$true] %s7527
          %7530 = dma.vmem_to_hbm [thread:$0]  %s7528, 32, %s75, [#allocation4]
        $region180: #{base_model_forward.1} parent=167 // pred_fallthru
          _
        // Predicated region
        $region181: #{base_model_forward.1} parent=167 // pred_check
          %p7531 = pneg %p937
        $region182: #{base_model_forward.1} parent=167 // pred_check_branch
          %7533 = sbr.rel (%p7531) target = $region184
        $region183: #{base_model_forward.1} parent=167 // pred_region
          %7534 = dma.done [#allocation4], 32
        $region184: #{base_model_forward.1} parent=167 // pred_fallthru
          _
      $region168: #{base_model_forward.1} parent=5 // pred_fallthru
        _
      %p7535 = scmp.le.s32.totalorder 2, %s82
      // Predicated region
      $region185: #{base_model_forward.1} parent=5 // pred_check
        %p7536 = pneg %p7535
      $region186: #{base_model_forward.1} parent=5 // pred_check_branch
        %7538 = sbr.rel (%p7536) target = $region188
      $region187: #{base_model_forward.1} parent=5 // pred_region
        %s7539 = ssub.s32 %s82, 2
      $region188: #{base_model_forward.1} parent=5 // pred_fallthru
        _
    $region6: #{base_model_forward.1} parent=1 // loop_footer
      %s86 = sadd.s32 1, %s82
    $region7: #{base_model_forward.1} parent=1 // loop_footer_branch
      %81 = sbr.rel target = $region3
    $region8: #{base_model_forward.1} parent=1 // loop_exit
      _
    %7540 = vsyncpa [#allocation4], 1
    %s7541 = scalar_lea.sflag [#allocation4], 1
    %7542 = vsyncpa %s7541, 1

</llo_original>
